<compile_context>
chip_gen: v6e
topology: v6e:2x2x1
jax: 0.10.0
libtpu: 0.0.40
codegen_flags: <defaults>
</compile_context>

<pallas_src>
import jax
import jax.numpy as jnp
from jax import lax
from jax.experimental import pallas as pl
from jax.experimental.pallas import tpu as pltpu

HIDDEN_SIZE = 30
INPUT_SIZE = 36
SEQ_LEN = 20
HP = 128          # lane-aligned padded hidden size (each gate = 128 lanes)
G4 = 4 * HP       # 512 gate lanes, PyTorch order [i, f, g, o]


def lstm_kernel(x_ref, wx_ref, wh_ref, b_ref, out_ref, hn_ref, cn_ref, xg_sc):
    """Single-invocation LSTM recurrence, everything resident in VMEM.

    x_ref:   (T*Bp, I)     time-major activations, batch padded to Bp (mult of 8)
    wx_ref:  (I, 4*HP)     input->gates weights (transposed, gate-concatenated)
    wh_ref:  (HP, 4*HP)    hidden->gates weights
    b_ref:   (1, 4*HP)     bias_ih + bias_hh
    out_ref: (T*Bp, HP)    all hidden states
    hn_ref:  (Bp, HP)      final hidden state
    cn_ref:  (Bp, HP)      final cell state
    xg_sc:   (T*Bp, 4*HP)  f32 scratch: precomputed input projections + bias
    """
    TB = x_ref.shape[0]
    Bp = hn_ref.shape[0]
    T = TB // Bp

    # Hoist the input projection out of the serial recurrence:
    # one big MXU matmul for all timesteps, plus the bias broadcast-add.
    xg_sc[...] = (
        jnp.dot(x_ref[...], wx_ref[...], preferred_element_type=jnp.float32)
        + b_ref[...]
    )

    h0 = jnp.zeros((Bp, HP), jnp.float32)
    c0 = jnp.zeros((Bp, HP), jnp.float32)

    def step(t, carry):
        h, c = carry
        row = pl.multiple_of(t * Bp, Bp)   # aligned (Bp,·) slab
        gates = xg_sc[pl.ds(row, Bp), :] + jnp.dot(
            h, wh_ref[...], preferred_element_type=jnp.float32
        )  # (Bp, 4*HP)
        i_t = jax.nn.sigmoid(gates[:, 0 * HP:1 * HP])
        f_t = jax.nn.sigmoid(gates[:, 1 * HP:2 * HP])
        g_t = jnp.tanh(gates[:, 2 * HP:3 * HP])
        o_t = jax.nn.sigmoid(gates[:, 3 * HP:4 * HP])
        c_new = f_t * c + i_t * g_t
        h_new = o_t * jnp.tanh(c_new)
        out_ref[pl.ds(row, Bp), :] = h_new
        return (h_new, c_new)

    # Short static trip count -> fully unroll for scheduler visibility.
    h_fin, c_fin = lax.fori_loop(0, T, step, (h0, c0), unroll=True)
    hn_ref[...] = h_fin
    cn_ref[...] = c_fin


def _pack_params(weight_ih, weight_hh, bias_ih, bias_hh):
    """Transpose + gate-concatenate + zero-pad hidden 30->128 (single pad, no scatters)."""
    H, I = HIDDEN_SIZE, INPUT_SIZE
    pad = HP - H
    wx = jnp.pad(
        weight_ih.T.astype(jnp.float32).reshape(I, 4, H), ((0, 0), (0, 0), (0, pad))
    ).reshape(I, G4)
    wh = jnp.pad(
        weight_hh.T.astype(jnp.float32).reshape(H, 4, H), ((0, pad), (0, 0), (0, pad))
    ).reshape(HP, G4)
    b = jnp.pad(
        (bias_ih + bias_hh).astype(jnp.float32).reshape(4, H), ((0, 0), (0, pad))
    ).reshape(1, G4)
    return wx, wh, b


def mylstm_forward(x, weight_ih, weight_hh, bias_ih, bias_hh):
    """Matches mylstm.forward: x (B,T,I) -> (out (B,T,H), (hn (1,B,H), cn (1,B,H)))."""
    B, T, I = x.shape
    H = HIDDEN_SIZE
    Bp = max(8, ((B + 7) // 8) * 8)  # full (8,128) sublane tiles, unmasked stores

    wx, wh, b = _pack_params(weight_ih, weight_hh, bias_ih, bias_hh)

    x_tm = jnp.transpose(x, (1, 0, 2)).astype(jnp.float32)   # (T, B, I) time-major
    x_tm = jnp.pad(x_tm, ((0, 0), (0, Bp - B), (0, 0)))      # (T, Bp, I)
    x2 = x_tm.reshape(T * Bp, I)

    out_p, hn_p, cn_p = pl.pallas_call(
        lstm_kernel,
        out_shape=(
            jax.ShapeDtypeStruct((T * Bp, HP), jnp.float32),
            jax.ShapeDtypeStruct((Bp, HP), jnp.float32),
            jax.ShapeDtypeStruct((Bp, HP), jnp.float32),
        ),
        in_specs=[pl.BlockSpec(memory_space=pltpu.MemorySpace.VMEM)] * 4,
        out_specs=(
            pl.BlockSpec(memory_space=pltpu.MemorySpace.VMEM),
            pl.BlockSpec(memory_space=pltpu.MemorySpace.VMEM),
            pl.BlockSpec(memory_space=pltpu.MemorySpace.VMEM),
        ),
        scratch_shapes=[pltpu.VMEM((T * Bp, G4), jnp.float32)],
    )(x2, wx, wh, b)

    out = jnp.transpose(out_p.reshape(T, Bp, HP)[:, :B, :H], (1, 0, 2))  # (B, T, H)
    hn = hn_p[None, :B, :H]                                              # (1, B, H)
    cn = cn_p[None, :B, :H]                                              # (1, B, H)
    return out, (hn, cn)


def lstm_ref(x, weight_ih, weight_hh, bias_ih, bias_hh):
    """Pure-JAX reference mirroring the PyTorch forward exactly."""
    B, T, _ = x.shape
    H = HIDDEN_SIZE
    h = jnp.zeros((B, H), jnp.float32)
    c = jnp.zeros((B, H), jnp.float32)
    outs = []
    for t in range(T):
        x_t = x[:, t, :]
        gates = x_t @ weight_ih.T + bias_ih + h @ weight_hh.T + bias_hh
        i_t = jax.nn.sigmoid(gates[:, 0 * H:1 * H])
        f_t = jax.nn.sigmoid(gates[:, 1 * H:2 * H])
        g_t = jnp.tanh(gates[:, 2 * H:3 * H])
        o_t = jax.nn.sigmoid(gates[:, 3 * H:4 * H])
        c = f_t * c + i_t * g_t
        h = o_t * jnp.tanh(c)
        outs.append(h)
    out = jnp.stack(outs, axis=1)
    return out, (h[None], c[None])


if __name__ == "__main__":
    B, T, I, H = 2, SEQ_LEN, INPUT_SIZE, HIDDEN_SIZE
    key = jax.random.PRNGKey(0)
    k1, k2, k3, k4, k5 = jax.random.split(key, 5)
    bound = 1.0 / float(jnp.sqrt(jnp.float32(H)))
    # Deterministic synthetic parameters (same shapes as nn.LSTM state_dict).
    weight_ih = jax.random.uniform(k1, (4 * H, I), jnp.float32, -bound, bound)
    weight_hh = jax.random.uniform(k2, (4 * H, H), jnp.float32, -bound, bound)
    bias_ih = jax.random.uniform(k3, (4 * H,), jnp.float32, -bound, bound)
    bias_hh = jax.random.uniform(k4, (4 * H,), jnp.float32, -bound, bound)
    x = jax.random.normal(k5, (B, T, I), jnp.float32)

    fwd = jax.jit(mylstm_forward)
    out, (hn, cn) = fwd(x, weight_ih, weight_hh, bias_ih, bias_hh)
    jax.block_until_ready(out)

    out_r, (hn_r, cn_r) = lstm_ref(x, weight_ih, weight_hh, bias_ih, bias_hh)
    assert out.shape == (B, T, H) and hn.shape == (1, B, H) and cn.shape == (1, B, H)
    assert jnp.allclose(out, out_r, atol=1e-5, rtol=1e-5)
    assert jnp.allclose(hn, hn_r, atol=1e-5, rtol=1e-5)
    assert jnp.allclose(cn, cn_r, atol=1e-5, rtol=1e-5)

    print("KERNEL_OK")
</pallas_src>

<mosaic_0001>
module attributes {stable_mosaic.version = 11 : i64} {
  func.func @lstm_kernel(%arg0: memref<160x36xf32, #tpu.memory_space<vmem>>, %arg1: memref<36x512xf32, #tpu.memory_space<vmem>>, %arg2: memref<128x512xf32, #tpu.memory_space<vmem>>, %arg3: memref<1x512xf32, #tpu.memory_space<vmem>>, %arg4: memref<160x128xf32, #tpu.memory_space<vmem>>, %arg5: memref<8x128xf32, #tpu.memory_space<vmem>>, %arg6: memref<8x128xf32, #tpu.memory_space<vmem>>, %arg7: memref<160x512xf32, #tpu.memory_space<vmem>>) attributes {dimension_semantics = [], scalar_prefetch = 0 : i64, scratch_operands = 1 : i64, tpu.core_type = #tpu.core_type<tc>} {
    %c0 = arith.constant 0 : index
    %c0_0 = arith.constant 0 : index
    %0 = vector.load %arg0[%c0, %c0_0] : memref<160x36xf32, #tpu.memory_space<vmem>>, vector<160x36xf32>
    %c0_1 = arith.constant 0 : index
    %c0_2 = arith.constant 0 : index
    %1 = vector.load %arg1[%c0_1, %c0_2] : memref<36x512xf32, #tpu.memory_space<vmem>>, vector<36x512xf32>
    %cst = arith.constant dense<0.000000e+00> : vector<160x512xf32>
    %2 = tpu.matmul %0, %1, %cst {dimension_numbers = #tpu.dot_dimension_numbers<[1], [0], [0], [1], [0, 0, 1, 1], [], []>} : vector<160x36xf32>, vector<36x512xf32>, vector<160x512xf32> -> vector<160x512xf32>
    %c0_3 = arith.constant 0 : index
    %c0_4 = arith.constant 0 : index
    %3 = vector.load %arg3[%c0_3, %c0_4] : memref<1x512xf32, #tpu.memory_space<vmem>>, vector<1x512xf32>
    %4 = vector.broadcast %3 : vector<1x512xf32> to vector<160x512xf32>
    %5 = arith.addf %2, %4 : vector<160x512xf32>
    %c0_5 = arith.constant 0 : index
    %c0_6 = arith.constant 0 : index
    %6 = vector.load %arg7[%c0_5, %c0_6] : memref<160x512xf32, #tpu.memory_space<vmem>>, vector<160x512xf32>
    tpu.vector_store %arg7[%c0_5, %c0_6], %5 {strides = array<i32>} : memref<160x512xf32, #tpu.memory_space<vmem>>, vector<160x512xf32>,
    %cst_7 = arith.constant 0.000000e+00 : f32
    %7 = vector.broadcast %cst_7 : f32 to vector<8x128xf32>
    %cst_8 = arith.constant 0.000000e+00 : f32
    %8 = vector.broadcast %cst_8 : f32 to vector<8x128xf32>
    %c0_i32 = arith.constant 0 : i32
    %c8_i32 = arith.constant 8 : i32
    %9 = arith.muli %c0_i32, %c8_i32 : i32
    %10 = tpu.assume_multiple %9, 8 : i32
    %11 = arith.index_cast %10 : i32 to index
    %c0_9 = arith.constant 0 : index
    %12 = vector.load %arg7[%11, %c0_9] : memref<160x512xf32, #tpu.memory_space<vmem>>, vector<8x512xf32>
    %c0_10 = arith.constant 0 : index
    %c0_11 = arith.constant 0 : index
    %13 = vector.load %arg2[%c0_10, %c0_11] : memref<128x512xf32, #tpu.memory_space<vmem>>, vector<128x512xf32>
    %cst_12 = arith.constant dense<0.000000e+00> : vector<8x512xf32>
    %14 = tpu.matmul %7, %13, %cst_12 {dimension_numbers = #tpu.dot_dimension_numbers<[1], [0], [0], [1], [0, 0, 1, 1], [], []>} : vector<8x128xf32>, vector<128x512xf32>, vector<8x512xf32> -> vector<8x512xf32>
    %15 = arith.addf %12, %14 : vector<8x512xf32>
    %16 = vector.extract_strided_slice %15 {offsets = [0, 0], sizes = [8, 128], strides = [1, 1]} : vector<8x512xf32> to vector<8x128xf32>
    %17 = arith.negf %16 : vector<8x128xf32>
    %18 = math.exp %17 : vector<8x128xf32>
    %cst_13 = arith.constant 1.000000e+00 : f32
    %19 = vector.broadcast %cst_13 : f32 to vector<8x128xf32>
    %20 = arith.addf %19, %18 : vector<8x128xf32>
    %21 = arith.divf %19, %20 : vector<8x128xf32>
    %22 = vector.extract_strided_slice %15 {offsets = [0, 128], sizes = [8, 128], strides = [1, 1]} : vector<8x512xf32> to vector<8x128xf32>
    %23 = arith.negf %22 : vector<8x128xf32>
    %24 = math.exp %23 : vector<8x128xf32>
    %cst_14 = arith.constant 1.000000e+00 : f32
    %25 = vector.broadcast %cst_14 : f32 to vector<8x128xf32>
    %26 = arith.addf %25, %24 : vector<8x128xf32>
    %27 = arith.divf %25, %26 : vector<8x128xf32>
    %28 = vector.extract_strided_slice %15 {offsets = [0, 256], sizes = [8, 128], strides = [1, 1]} : vector<8x512xf32> to vector<8x128xf32>
    %29 = math.tanh %28 : vector<8x128xf32>
    %30 = vector.extract_strided_slice %15 {offsets = [0, 384], sizes = [8, 128], strides = [1, 1]} : vector<8x512xf32> to vector<8x128xf32>
    %31 = arith.negf %30 : vector<8x128xf32>
    %32 = math.exp %31 : vector<8x128xf32>
    %cst_15 = arith.constant 1.000000e+00 : f32
    %33 = vector.broadcast %cst_15 : f32 to vector<8x128xf32>
    %34 = arith.addf %33, %32 : vector<8x128xf32>
    %35 = arith.divf %33, %34 : vector<8x128xf32>
    %36 = arith.mulf %27, %8 : vector<8x128xf32>
    %37 = arith.mulf %21, %29 : vector<8x128xf32>
    %38 = arith.addf %36, %37 : vector<8x128xf32>
    %39 = math.tanh %38 : vector<8x128xf32>
    %40 = arith.mulf %35, %39 : vector<8x128xf32>
    %41 = arith.index_cast %10 : i32 to index
    %c0_16 = arith.constant 0 : index
    %42 = vector.load %arg4[%41, %c0_16] : memref<160x128xf32, #tpu.memory_space<vmem>>, vector<8x128xf32>
    tpu.vector_store %arg4[%41, %c0_16], %40 {strides = array<i32>} : memref<160x128xf32, #tpu.memory_space<vmem>>, vector<8x128xf32>,
    %c1_i32 = arith.constant 1 : i32
    %c8_i32_17 = arith.constant 8 : i32
    %43 = arith.muli %c1_i32, %c8_i32_17 : i32
    %44 = tpu.assume_multiple %43, 8 : i32
    %45 = arith.index_cast %44 : i32 to index
    %c0_18 = arith.constant 0 : index
    %46 = vector.load %arg7[%45, %c0_18] : memref<160x512xf32, #tpu.memory_space<vmem>>, vector<8x512xf32>
    %c0_19 = arith.constant 0 : index
    %c0_20 = arith.constant 0 : index
    %47 = vector.load %arg2[%c0_19, %c0_20] : memref<128x512xf32, #tpu.memory_space<vmem>>, vector<128x512xf32>
    %cst_21 = arith.constant dense<0.000000e+00> : vector<8x512xf32>
    %48 = tpu.matmul %40, %47, %cst_21 {dimension_numbers = #tpu.dot_dimension_numbers<[1], [0], [0], [1], [0, 0, 1, 1], [], []>} : vector<8x128xf32>, vector<128x512xf32>, vector<8x512xf32> -> vector<8x512xf32>
    %49 = arith.addf %46, %48 : vector<8x512xf32>
    %50 = vector.extract_strided_slice %49 {offsets = [0, 0], sizes = [8, 128], strides = [1, 1]} : vector<8x512xf32> to vector<8x128xf32>
    %51 = arith.negf %50 : vector<8x128xf32>
    %52 = math.exp %51 : vector<8x128xf32>
    %cst_22 = arith.constant 1.000000e+00 : f32
    %53 = vector.broadcast %cst_22 : f32 to vector<8x128xf32>
    %54 = arith.addf %53, %52 : vector<8x128xf32>
    %55 = arith.divf %53, %54 : vector<8x128xf32>
    %56 = vector.extract_strided_slice %49 {offsets = [0, 128], sizes = [8, 128], strides = [1, 1]} : vector<8x512xf32> to vector<8x128xf32>
    %57 = arith.negf %56 : vector<8x128xf32>
    %58 = math.exp %57 : vector<8x128xf32>
    %cst_23 = arith.constant 1.000000e+00 : f32
    %59 = vector.broadcast %cst_23 : f32 to vector<8x128xf32>
    %60 = arith.addf %59, %58 : vector<8x128xf32>
    %61 = arith.divf %59, %60 : vector<8x128xf32>
    %62 = vector.extract_strided_slice %49 {offsets = [0, 256], sizes = [8, 128], strides = [1, 1]} : vector<8x512xf32> to vector<8x128xf32>
    %63 = math.tanh %62 : vector<8x128xf32>
    %64 = vector.extract_strided_slice %49 {offsets = [0, 384], sizes = [8, 128], strides = [1, 1]} : vector<8x512xf32> to vector<8x128xf32>
    %65 = arith.negf %64 : vector<8x128xf32>
    %66 = math.exp %65 : vector<8x128xf32>
    %cst_24 = arith.constant 1.000000e+00 : f32
    %67 = vector.broadcast %cst_24 : f32 to vector<8x128xf32>
    %68 = arith.addf %67, %66 : vector<8x128xf32>
    %69 = arith.divf %67, %68 : vector<8x128xf32>
    %70 = arith.mulf %61, %38 : vector<8x128xf32>
    %71 = arith.mulf %55, %63 : vector<8x128xf32>
    %72 = arith.addf %70, %71 : vector<8x128xf32>
    %73 = math.tanh %72 : vector<8x128xf32>
    %74 = arith.mulf %69, %73 : vector<8x128xf32>
    %75 = arith.index_cast %44 : i32 to index
    %c0_25 = arith.constant 0 : index
    %76 = vector.load %arg4[%75, %c0_25] : memref<160x128xf32, #tpu.memory_space<vmem>>, vector<8x128xf32>
    tpu.vector_store %arg4[%75, %c0_25], %74 {strides = array<i32>} : memref<160x128xf32, #tpu.memory_space<vmem>>, vector<8x128xf32>,
    %c2_i32 = arith.constant 2 : i32
    %c8_i32_26 = arith.constant 8 : i32
    %77 = arith.muli %c2_i32, %c8_i32_26 : i32
    %78 = tpu.assume_multiple %77, 8 : i32
    %79 = arith.index_cast %78 : i32 to index
    %c0_27 = arith.constant 0 : index
    %80 = vector.load %arg7[%79, %c0_27] : memref<160x512xf32, #tpu.memory_space<vmem>>, vector<8x512xf32>
    %c0_28 = arith.constant 0 : index
    %c0_29 = arith.constant 0 : index
    %81 = vector.load %arg2[%c0_28, %c0_29] : memref<128x512xf32, #tpu.memory_space<vmem>>, vector<128x512xf32>
    %cst_30 = arith.constant dense<0.000000e+00> : vector<8x512xf32>
    %82 = tpu.matmul %74, %81, %cst_30 {dimension_numbers = #tpu.dot_dimension_numbers<[1], [0], [0], [1], [0, 0, 1, 1], [], []>} : vector<8x128xf32>, vector<128x512xf32>, vector<8x512xf32> -> vector<8x512xf32>
    %83 = arith.addf %80, %82 : vector<8x512xf32>
    %84 = vector.extract_strided_slice %83 {offsets = [0, 0], sizes = [8, 128], strides = [1, 1]} : vector<8x512xf32> to vector<8x128xf32>
    %85 = arith.negf %84 : vector<8x128xf32>
    %86 = math.exp %85 : vector<8x128xf32>
    %cst_31 = arith.constant 1.000000e+00 : f32
    %87 = vector.broadcast %cst_31 : f32 to vector<8x128xf32>
    %88 = arith.addf %87, %86 : vector<8x128xf32>
    %89 = arith.divf %87, %88 : vector<8x128xf32>
    %90 = vector.extract_strided_slice %83 {offsets = [0, 128], sizes = [8, 128], strides = [1, 1]} : vector<8x512xf32> to vector<8x128xf32>
    %91 = arith.negf %90 : vector<8x128xf32>
    %92 = math.exp %91 : vector<8x128xf32>
    %cst_32 = arith.constant 1.000000e+00 : f32
    %93 = vector.broadcast %cst_32 : f32 to vector<8x128xf32>
    %94 = arith.addf %93, %92 : vector<8x128xf32>
    %95 = arith.divf %93, %94 : vector<8x128xf32>
    %96 = vector.extract_strided_slice %83 {offsets = [0, 256], sizes = [8, 128], strides = [1, 1]} : vector<8x512xf32> to vector<8x128xf32>
    %97 = math.tanh %96 : vector<8x128xf32>
    %98 = vector.extract_strided_slice %83 {offsets = [0, 384], sizes = [8, 128], strides = [1, 1]} : vector<8x512xf32> to vector<8x128xf32>
    %99 = arith.negf %98 : vector<8x128xf32>
    %100 = math.exp %99 : vector<8x128xf32>
    %cst_33 = arith.constant 1.000000e+00 : f32
    %101 = vector.broadcast %cst_33 : f32 to vector<8x128xf32>
    %102 = arith.addf %101, %100 : vector<8x128xf32>
    %103 = arith.divf %101, %102 : vector<8x128xf32>
    %104 = arith.mulf %95, %72 : vector<8x128xf32>
    %105 = arith.mulf %89, %97 : vector<8x128xf32>
    %106 = arith.addf %104, %105 : vector<8x128xf32>
    %107 = math.tanh %106 : vector<8x128xf32>
    %108 = arith.mulf %103, %107 : vector<8x128xf32>
    %109 = arith.index_cast %78 : i32 to index
    %c0_34 = arith.constant 0 : index
    %110 = vector.load %arg4[%109, %c0_34] : memref<160x128xf32, #tpu.memory_space<vmem>>, vector<8x128xf32>
    tpu.vector_store %arg4[%109, %c0_34], %108 {strides = array<i32>} : memref<160x128xf32, #tpu.memory_space<vmem>>, vector<8x128xf32>,
    %c3_i32 = arith.constant 3 : i32
    %c8_i32_35 = arith.constant 8 : i32
    %111 = arith.muli %c3_i32, %c8_i32_35 : i32
    %112 = tpu.assume_multiple %111, 8 : i32
    %113 = arith.index_cast %112 : i32 to index
    %c0_36 = arith.constant 0 : index
    %114 = vector.load %arg7[%113, %c0_36] : memref<160x512xf32, #tpu.memory_space<vmem>>, vector<8x512xf32>
    %c0_37 = arith.constant 0 : index
    %c0_38 = arith.constant 0 : index
    %115 = vector.load %arg2[%c0_37, %c0_38] : memref<128x512xf32, #tpu.memory_space<vmem>>, vector<128x512xf32>
    %cst_39 = arith.constant dense<0.000000e+00> : vector<8x512xf32>
    %116 = tpu.matmul %108, %115, %cst_39 {dimension_numbers = #tpu.dot_dimension_numbers<[1], [0], [0], [1], [0, 0, 1, 1], [], []>} : vector<8x128xf32>, vector<128x512xf32>, vector<8x512xf32> -> vector<8x512xf32>
    %117 = arith.addf %114, %116 : vector<8x512xf32>
    %118 = vector.extract_strided_slice %117 {offsets = [0, 0], sizes = [8, 128], strides = [1, 1]} : vector<8x512xf32> to vector<8x128xf32>
    %119 = arith.negf %118 : vector<8x128xf32>
    %120 = math.exp %119 : vector<8x128xf32>
    %cst_40 = arith.constant 1.000000e+00 : f32
    %121 = vector.broadcast %cst_40 : f32 to vector<8x128xf32>
    %122 = arith.addf %121, %120 : vector<8x128xf32>
    %123 = arith.divf %121, %122 : vector<8x128xf32>
    %124 = vector.extract_strided_slice %117 {offsets = [0, 128], sizes = [8, 128], strides = [1, 1]} : vector<8x512xf32> to vector<8x128xf32>
    %125 = arith.negf %124 : vector<8x128xf32>
    %126 = math.exp %125 : vector<8x128xf32>
    %cst_41 = arith.constant 1.000000e+00 : f32
    %127 = vector.broadcast %cst_41 : f32 to vector<8x128xf32>
    %128 = arith.addf %127, %126 : vector<8x128xf32>
    %129 = arith.divf %127, %128 : vector<8x128xf32>
    %130 = vector.extract_strided_slice %117 {offsets = [0, 256], sizes = [8, 128], strides = [1, 1]} : vector<8x512xf32> to vector<8x128xf32>
    %131 = math.tanh %130 : vector<8x128xf32>
    %132 = vector.extract_strided_slice %117 {offsets = [0, 384], sizes = [8, 128], strides = [1, 1]} : vector<8x512xf32> to vector<8x128xf32>
    %133 = arith.negf %132 : vector<8x128xf32>
    %134 = math.exp %133 : vector<8x128xf32>
    %cst_42 = arith.constant 1.000000e+00 : f32
    %135 = vector.broadcast %cst_42 : f32 to vector<8x128xf32>
    %136 = arith.addf %135, %134 : vector<8x128xf32>
    %137 = arith.divf %135, %136 : vector<8x128xf32>
    %138 = arith.mulf %129, %106 : vector<8x128xf32>
    %139 = arith.mulf %123, %131 : vector<8x128xf32>
    %140 = arith.addf %138, %139 : vector<8x128xf32>
    %141 = math.tanh %140 : vector<8x128xf32>
    %142 = arith.mulf %137, %141 : vector<8x128xf32>
    %143 = arith.index_cast %112 : i32 to index
    %c0_43 = arith.constant 0 : index
    %144 = vector.load %arg4[%143, %c0_43] : memref<160x128xf32, #tpu.memory_space<vmem>>, vector<8x128xf32>
    tpu.vector_store %arg4[%143, %c0_43], %142 {strides = array<i32>} : memref<160x128xf32, #tpu.memory_space<vmem>>, vector<8x128xf32>,
    %c4_i32 = arith.constant 4 : i32
    %c8_i32_44 = arith.constant 8 : i32
    %145 = arith.muli %c4_i32, %c8_i32_44 : i32
    %146 = tpu.assume_multiple %145, 8 : i32
    %147 = arith.index_cast %146 : i32 to index
    %c0_45 = arith.constant 0 : index
    %148 = vector.load %arg7[%147, %c0_45] : memref<160x512xf32, #tpu.memory_space<vmem>>, vector<8x512xf32>
    %c0_46 = arith.constant 0 : index
    %c0_47 = arith.constant 0 : index
    %149 = vector.load %arg2[%c0_46, %c0_47] : memref<128x512xf32, #tpu.memory_space<vmem>>, vector<128x512xf32>
    %cst_48 = arith.constant dense<0.000000e+00> : vector<8x512xf32>
    %150 = tpu.matmul %142, %149, %cst_48 {dimension_numbers = #tpu.dot_dimension_numbers<[1], [0], [0], [1], [0, 0, 1, 1], [], []>} : vector<8x128xf32>, vector<128x512xf32>, vector<8x512xf32> -> vector<8x512xf32>
    %151 = arith.addf %148, %150 : vector<8x512xf32>
    %152 = vector.extract_strided_slice %151 {offsets = [0, 0], sizes = [8, 128], strides = [1, 1]} : vector<8x512xf32> to vector<8x128xf32>
    %153 = arith.negf %152 : vector<8x128xf32>
    %154 = math.exp %153 : vector<8x128xf32>
    %cst_49 = arith.constant 1.000000e+00 : f32
    %155 = vector.broadcast %cst_49 : f32 to vector<8x128xf32>
    %156 = arith.addf %155, %154 : vector<8x128xf32>
    %157 = arith.divf %155, %156 : vector<8x128xf32>
    %158 = vector.extract_strided_slice %151 {offsets = [0, 128], sizes = [8, 128], strides = [1, 1]} : vector<8x512xf32> to vector<8x128xf32>
    %159 = arith.negf %158 : vector<8x128xf32>
    %160 = math.exp %159 : vector<8x128xf32>
    %cst_50 = arith.constant 1.000000e+00 : f32
    %161 = vector.broadcast %cst_50 : f32 to vector<8x128xf32>
    %162 = arith.addf %161, %160 : vector<8x128xf32>
    %163 = arith.divf %161, %162 : vector<8x128xf32>
    %164 = vector.extract_strided_slice %151 {offsets = [0, 256], sizes = [8, 128], strides = [1, 1]} : vector<8x512xf32> to vector<8x128xf32>
    %165 = math.tanh %164 : vector<8x128xf32>
    %166 = vector.extract_strided_slice %151 {offsets = [0, 384], sizes = [8, 128], strides = [1, 1]} : vector<8x512xf32> to vector<8x128xf32>
    %167 = arith.negf %166 : vector<8x128xf32>
    %168 = math.exp %167 : vector<8x128xf32>
    %cst_51 = arith.constant 1.000000e+00 : f32
    %169 = vector.broadcast %cst_51 : f32 to vector<8x128xf32>
    %170 = arith.addf %169, %168 : vector<8x128xf32>
    %171 = arith.divf %169, %170 : vector<8x128xf32>
    %172 = arith.mulf %163, %140 : vector<8x128xf32>
    %173 = arith.mulf %157, %165 : vector<8x128xf32>
    %174 = arith.addf %172, %173 : vector<8x128xf32>
    %175 = math.tanh %174 : vector<8x128xf32>
    %176 = arith.mulf %171, %175 : vector<8x128xf32>
    %177 = arith.index_cast %146 : i32 to index
    %c0_52 = arith.constant 0 : index
    %178 = vector.load %arg4[%177, %c0_52] : memref<160x128xf32, #tpu.memory_space<vmem>>, vector<8x128xf32>
    tpu.vector_store %arg4[%177, %c0_52], %176 {strides = array<i32>} : memref<160x128xf32, #tpu.memory_space<vmem>>, vector<8x128xf32>,
    %c5_i32 = arith.constant 5 : i32
    %c8_i32_53 = arith.constant 8 : i32
    %179 = arith.muli %c5_i32, %c8_i32_53 : i32
    %180 = tpu.assume_multiple %179, 8 : i32
    %181 = arith.index_cast %180 : i32 to index
    %c0_54 = arith.constant 0 : index
    %182 = vector.load %arg7[%181, %c0_54] : memref<160x512xf32, #tpu.memory_space<vmem>>, vector<8x512xf32>
    %c0_55 = arith.constant 0 : index
    %c0_56 = arith.constant 0 : index
    %183 = vector.load %arg2[%c0_55, %c0_56] : memref<128x512xf32, #tpu.memory_space<vmem>>, vector<128x512xf32>
    %cst_57 = arith.constant dense<0.000000e+00> : vector<8x512xf32>
    %184 = tpu.matmul %176, %183, %cst_57 {dimension_numbers = #tpu.dot_dimension_numbers<[1], [0], [0], [1], [0, 0, 1, 1], [], []>} : vector<8x128xf32>, vector<128x512xf32>, vector<8x512xf32> -> vector<8x512xf32>
    %185 = arith.addf %182, %184 : vector<8x512xf32>
    %186 = vector.extract_strided_slice %185 {offsets = [0, 0], sizes = [8, 128], strides = [1, 1]} : vector<8x512xf32> to vector<8x128xf32>
    %187 = arith.negf %186 : vector<8x128xf32>
    %188 = math.exp %187 : vector<8x128xf32>
    %cst_58 = arith.constant 1.000000e+00 : f32
    %189 = vector.broadcast %cst_58 : f32 to vector<8x128xf32>
    %190 = arith.addf %189, %188 : vector<8x128xf32>
    %191 = arith.divf %189, %190 : vector<8x128xf32>
    %192 = vector.extract_strided_slice %185 {offsets = [0, 128], sizes = [8, 128], strides = [1, 1]} : vector<8x512xf32> to vector<8x128xf32>
    %193 = arith.negf %192 : vector<8x128xf32>
    %194 = math.exp %193 : vector<8x128xf32>
    %cst_59 = arith.constant 1.000000e+00 : f32
    %195 = vector.broadcast %cst_59 : f32 to vector<8x128xf32>
    %196 = arith.addf %195, %194 : vector<8x128xf32>
    %197 = arith.divf %195, %196 : vector<8x128xf32>
    %198 = vector.extract_strided_slice %185 {offsets = [0, 256], sizes = [8, 128], strides = [1, 1]} : vector<8x512xf32> to vector<8x128xf32>
    %199 = math.tanh %198 : vector<8x128xf32>
    %200 = vector.extract_strided_slice %185 {offsets = [0, 384], sizes = [8, 128], strides = [1, 1]} : vector<8x512xf32> to vector<8x128xf32>
    %201 = arith.negf %200 : vector<8x128xf32>
    %202 = math.exp %201 : vector<8x128xf32>
    %cst_60 = arith.constant 1.000000e+00 : f32
    %203 = vector.broadcast %cst_60 : f32 to vector<8x128xf32>
    %204 = arith.addf %203, %202 : vector<8x128xf32>
    %205 = arith.divf %203, %204 : vector<8x128xf32>
    %206 = arith.mulf %197, %174 : vector<8x128xf32>
    %207 = arith.mulf %191, %199 : vector<8x128xf32>
    %208 = arith.addf %206, %207 : vector<8x128xf32>
    %209 = math.tanh %208 : vector<8x128xf32>
    %210 = arith.mulf %205, %209 : vector<8x128xf32>
    %211 = arith.index_cast %180 : i32 to index
    %c0_61 = arith.constant 0 : index
    %212 = vector.load %arg4[%211, %c0_61] : memref<160x128xf32, #tpu.memory_space<vmem>>, vector<8x128xf32>
    tpu.vector_store %arg4[%211, %c0_61], %210 {strides = array<i32>} : memref<160x128xf32, #tpu.memory_space<vmem>>, vector<8x128xf32>,
    %c6_i32 = arith.constant 6 : i32
    %c8_i32_62 = arith.constant 8 : i32
    %213 = arith.muli %c6_i32, %c8_i32_62 : i32
    %214 = tpu.assume_multiple %213, 8 : i32
    %215 = arith.index_cast %214 : i32 to index
    %c0_63 = arith.constant 0 : index
    %216 = vector.load %arg7[%215, %c0_63] : memref<160x512xf32, #tpu.memory_space<vmem>>, vector<8x512xf32>
    %c0_64 = arith.constant 0 : index
    %c0_65 = arith.constant 0 : index
    %217 = vector.load %arg2[%c0_64, %c0_65] : memref<128x512xf32, #tpu.memory_space<vmem>>, vector<128x512xf32>
    %cst_66 = arith.constant dense<0.000000e+00> : vector<8x512xf32>
    %218 = tpu.matmul %210, %217, %cst_66 {dimension_numbers = #tpu.dot_dimension_numbers<[1], [0], [0], [1], [0, 0, 1, 1], [], []>} : vector<8x128xf32>, vector<128x512xf32>, vector<8x512xf32> -> vector<8x512xf32>
    %219 = arith.addf %216, %218 : vector<8x512xf32>
    %220 = vector.extract_strided_slice %219 {offsets = [0, 0], sizes = [8, 128], strides = [1, 1]} : vector<8x512xf32> to vector<8x128xf32>
    %221 = arith.negf %220 : vector<8x128xf32>
    %222 = math.exp %221 : vector<8x128xf32>
    %cst_67 = arith.constant 1.000000e+00 : f32
    %223 = vector.broadcast %cst_67 : f32 to vector<8x128xf32>
    %224 = arith.addf %223, %222 : vector<8x128xf32>
    %225 = arith.divf %223, %224 : vector<8x128xf32>
    %226 = vector.extract_strided_slice %219 {offsets = [0, 128], sizes = [8, 128], strides = [1, 1]} : vector<8x512xf32> to vector<8x128xf32>
    %227 = arith.negf %226 : vector<8x128xf32>
    %228 = math.exp %227 : vector<8x128xf32>
    %cst_68 = arith.constant 1.000000e+00 : f32
    %229 = vector.broadcast %cst_68 : f32 to vector<8x128xf32>
    %230 = arith.addf %229, %228 : vector<8x128xf32>
    %231 = arith.divf %229, %230 : vector<8x128xf32>
    %232 = vector.extract_strided_slice %219 {offsets = [0, 256], sizes = [8, 128], strides = [1, 1]} : vector<8x512xf32> to vector<8x128xf32>
    %233 = math.tanh %232 : vector<8x128xf32>
    %234 = vector.extract_strided_slice %219 {offsets = [0, 384], sizes = [8, 128], strides = [1, 1]} : vector<8x512xf32> to vector<8x128xf32>
    %235 = arith.negf %234 : vector<8x128xf32>
    %236 = math.exp %235 : vector<8x128xf32>
    %cst_69 = arith.constant 1.000000e+00 : f32
    %237 = vector.broadcast %cst_69 : f32 to vector<8x128xf32>
    %238 = arith.addf %237, %236 : vector<8x128xf32>
    %239 = arith.divf %237, %238 : vector<8x128xf32>
    %240 = arith.mulf %231, %208 : vector<8x128xf32>
    %241 = arith.mulf %225, %233 : vector<8x128xf32>
    %242 = arith.addf %240, %241 : vector<8x128xf32>
    %243 = math.tanh %242 : vector<8x128xf32>
    %244 = arith.mulf %239, %243 : vector<8x128xf32>
    %245 = arith.index_cast %214 : i32 to index
    %c0_70 = arith.constant 0 : index
    %246 = vector.load %arg4[%245, %c0_70] : memref<160x128xf32, #tpu.memory_space<vmem>>, vector<8x128xf32>
    tpu.vector_store %arg4[%245, %c0_70], %244 {strides = array<i32>} : memref<160x128xf32, #tpu.memory_space<vmem>>, vector<8x128xf32>,
    %c7_i32 = arith.constant 7 : i32
    %c8_i32_71 = arith.constant 8 : i32
    %247 = arith.muli %c7_i32, %c8_i32_71 : i32
    %248 = tpu.assume_multiple %247, 8 : i32
    %249 = arith.index_cast %248 : i32 to index
    %c0_72 = arith.constant 0 : index
    %250 = vector.load %arg7[%249, %c0_72] : memref<160x512xf32, #tpu.memory_space<vmem>>, vector<8x512xf32>
    %c0_73 = arith.constant 0 : index
    %c0_74 = arith.constant 0 : index
    %251 = vector.load %arg2[%c0_73, %c0_74] : memref<128x512xf32, #tpu.memory_space<vmem>>, vector<128x512xf32>
    %cst_75 = arith.constant dense<0.000000e+00> : vector<8x512xf32>
    %252 = tpu.matmul %244, %251, %cst_75 {dimension_numbers = #tpu.dot_dimension_numbers<[1], [0], [0], [1], [0, 0, 1, 1], [], []>} : vector<8x128xf32>, vector<128x512xf32>, vector<8x512xf32> -> vector<8x512xf32>
    %253 = arith.addf %250, %252 : vector<8x512xf32>
    %254 = vector.extract_strided_slice %253 {offsets = [0, 0], sizes = [8, 128], strides = [1, 1]} : vector<8x512xf32> to vector<8x128xf32>
    %255 = arith.negf %254 : vector<8x128xf32>
    %256 = math.exp %255 : vector<8x128xf32>
    %cst_76 = arith.constant 1.000000e+00 : f32
    %257 = vector.broadcast %cst_76 : f32 to vector<8x128xf32>
    %258 = arith.addf %257, %256 : vector<8x128xf32>
    %259 = arith.divf %257, %258 : vector<8x128xf32>
    %260 = vector.extract_strided_slice %253 {offsets = [0, 128], sizes = [8, 128], strides = [1, 1]} : vector<8x512xf32> to vector<8x128xf32>
    %261 = arith.negf %260 : vector<8x128xf32>
    %262 = math.exp %261 : vector<8x128xf32>
    %cst_77 = arith.constant 1.000000e+00 : f32
    %263 = vector.broadcast %cst_77 : f32 to vector<8x128xf32>
    %264 = arith.addf %263, %262 : vector<8x128xf32>
    %265 = arith.divf %263, %264 : vector<8x128xf32>
    %266 = vector.extract_strided_slice %253 {offsets = [0, 256], sizes = [8, 128], strides = [1, 1]} : vector<8x512xf32> to vector<8x128xf32>
    %267 = math.tanh %266 : vector<8x128xf32>
    %268 = vector.extract_strided_slice %253 {offsets = [0, 384], sizes = [8, 128], strides = [1, 1]} : vector<8x512xf32> to vector<8x128xf32>
    %269 = arith.negf %268 : vector<8x128xf32>
    %270 = math.exp %269 : vector<8x128xf32>
    %cst_78 = arith.constant 1.000000e+00 : f32
    %271 = vector.broadcast %cst_78 : f32 to vector<8x128xf32>
    %272 = arith.addf %271, %270 : vector<8x128xf32>
    %273 = arith.divf %271, %272 : vector<8x128xf32>
    %274 = arith.mulf %265, %242 : vector<8x128xf32>
    %275 = arith.mulf %259, %267 : vector<8x128xf32>
    %276 = arith.addf %274, %275 : vector<8x128xf32>
    %277 = math.tanh %276 : vector<8x128xf32>
    %278 = arith.mulf %273, %277 : vector<8x128xf32>
    %279 = arith.index_cast %248 : i32 to index
    %c0_79 = arith.constant 0 : index
    %280 = vector.load %arg4[%279, %c0_79] : memref<160x128xf32, #tpu.memory_space<vmem>>, vector<8x128xf32>
    tpu.vector_store %arg4[%279, %c0_79], %278 {strides = array<i32>} : memref<160x128xf32, #tpu.memory_space<vmem>>, vector<8x128xf32>,
    %c8_i32_80 = arith.constant 8 : i32
    %c8_i32_81 = arith.constant 8 : i32
    %281 = arith.muli %c8_i32_80, %c8_i32_81 : i32
    %282 = tpu.assume_multiple %281, 8 : i32
    %283 = arith.index_cast %282 : i32 to index
    %c0_82 = arith.constant 0 : index
    %284 = vector.load %arg7[%283, %c0_82] : memref<160x512xf32, #tpu.memory_space<vmem>>, vector<8x512xf32>
    %c0_83 = arith.constant 0 : index
    %c0_84 = arith.constant 0 : index
    %285 = vector.load %arg2[%c0_83, %c0_84] : memref<128x512xf32, #tpu.memory_space<vmem>>, vector<128x512xf32>
    %cst_85 = arith.constant dense<0.000000e+00> : vector<8x512xf32>
    %286 = tpu.matmul %278, %285, %cst_85 {dimension_numbers = #tpu.dot_dimension_numbers<[1], [0], [0], [1], [0, 0, 1, 1], [], []>} : vector<8x128xf32>, vector<128x512xf32>, vector<8x512xf32> -> vector<8x512xf32>
    %287 = arith.addf %284, %286 : vector<8x512xf32>
    %288 = vector.extract_strided_slice %287 {offsets = [0, 0], sizes = [8, 128], strides = [1, 1]} : vector<8x512xf32> to vector<8x128xf32>
    %289 = arith.negf %288 : vector<8x128xf32>
    %290 = math.exp %289 : vector<8x128xf32>
    %cst_86 = arith.constant 1.000000e+00 : f32
    %291 = vector.broadcast %cst_86 : f32 to vector<8x128xf32>
    %292 = arith.addf %291, %290 : vector<8x128xf32>
    %293 = arith.divf %291, %292 : vector<8x128xf32>
    %294 = vector.extract_strided_slice %287 {offsets = [0, 128], sizes = [8, 128], strides = [1, 1]} : vector<8x512xf32> to vector<8x128xf32>
    %295 = arith.negf %294 : vector<8x128xf32>
    %296 = math.exp %295 : vector<8x128xf32>
    %cst_87 = arith.constant 1.000000e+00 : f32
    %297 = vector.broadcast %cst_87 : f32 to vector<8x128xf32>
    %298 = arith.addf %297, %296 : vector<8x128xf32>
    %299 = arith.divf %297, %298 : vector<8x128xf32>
    %300 = vector.extract_strided_slice %287 {offsets = [0, 256], sizes = [8, 128], strides = [1, 1]} : vector<8x512xf32> to vector<8x128xf32>
    %301 = math.tanh %300 : vector<8x128xf32>
    %302 = vector.extract_strided_slice %287 {offsets = [0, 384], sizes = [8, 128], strides = [1, 1]} : vector<8x512xf32> to vector<8x128xf32>
    %303 = arith.negf %302 : vector<8x128xf32>
    %304 = math.exp %303 : vector<8x128xf32>
    %cst_88 = arith.constant 1.000000e+00 : f32
    %305 = vector.broadcast %cst_88 : f32 to vector<8x128xf32>
    %306 = arith.addf %305, %304 : vector<8x128xf32>
    %307 = arith.divf %305, %306 : vector<8x128xf32>
    %308 = arith.mulf %299, %276 : vector<8x128xf32>
    %309 = arith.mulf %293, %301 : vector<8x128xf32>
    %310 = arith.addf %308, %309 : vector<8x128xf32>
    %311 = math.tanh %310 : vector<8x128xf32>
    %312 = arith.mulf %307, %311 : vector<8x128xf32>
    %313 = arith.index_cast %282 : i32 to index
    %c0_89 = arith.constant 0 : index
    %314 = vector.load %arg4[%313, %c0_89] : memref<160x128xf32, #tpu.memory_space<vmem>>, vector<8x128xf32>
    tpu.vector_store %arg4[%313, %c0_89], %312 {strides = array<i32>} : memref<160x128xf32, #tpu.memory_space<vmem>>, vector<8x128xf32>,
    %c9_i32 = arith.constant 9 : i32
    %c8_i32_90 = arith.constant 8 : i32
    %315 = arith.muli %c9_i32, %c8_i32_90 : i32
    %316 = tpu.assume_multiple %315, 8 : i32
    %317 = arith.index_cast %316 : i32 to index
    %c0_91 = arith.constant 0 : index
    %318 = vector.load %arg7[%317, %c0_91] : memref<160x512xf32, #tpu.memory_space<vmem>>, vector<8x512xf32>
    %c0_92 = arith.constant 0 : index
    %c0_93 = arith.constant 0 : index
    %319 = vector.load %arg2[%c0_92, %c0_93] : memref<128x512xf32, #tpu.memory_space<vmem>>, vector<128x512xf32>
    %cst_94 = arith.constant dense<0.000000e+00> : vector<8x512xf32>
    %320 = tpu.matmul %312, %319, %cst_94 {dimension_numbers = #tpu.dot_dimension_numbers<[1], [0], [0], [1], [0, 0, 1, 1], [], []>} : vector<8x128xf32>, vector<128x512xf32>, vector<8x512xf32> -> vector<8x512xf32>
    %321 = arith.addf %318, %320 : vector<8x512xf32>
    %322 = vector.extract_strided_slice %321 {offsets = [0, 0], sizes = [8, 128], strides = [1, 1]} : vector<8x512xf32> to vector<8x128xf32>
    %323 = arith.negf %322 : vector<8x128xf32>
    %324 = math.exp %323 : vector<8x128xf32>
    %cst_95 = arith.constant 1.000000e+00 : f32
    %325 = vector.broadcast %cst_95 : f32 to vector<8x128xf32>
    %326 = arith.addf %325, %324 : vector<8x128xf32>
    %327 = arith.divf %325, %326 : vector<8x128xf32>
    %328 = vector.extract_strided_slice %321 {offsets = [0, 128], sizes = [8, 128], strides = [1, 1]} : vector<8x512xf32> to vector<8x128xf32>
    %329 = arith.negf %328 : vector<8x128xf32>
    %330 = math.exp %329 : vector<8x128xf32>
    %cst_96 = arith.constant 1.000000e+00 : f32
    %331 = vector.broadcast %cst_96 : f32 to vector<8x128xf32>
    %332 = arith.addf %331, %330 : vector<8x128xf32>
    %333 = arith.divf %331, %332 : vector<8x128xf32>
    %334 = vector.extract_strided_slice %321 {offsets = [0, 256], sizes = [8, 128], strides = [1, 1]} : vector<8x512xf32> to vector<8x128xf32>
    %335 = math.tanh %334 : vector<8x128xf32>
    %336 = vector.extract_strided_slice %321 {offsets = [0, 384], sizes = [8, 128], strides = [1, 1]} : vector<8x512xf32> to vector<8x128xf32>
    %337 = arith.negf %336 : vector<8x128xf32>
    %338 = math.exp %337 : vector<8x128xf32>
    %cst_97 = arith.constant 1.000000e+00 : f32
    %339 = vector.broadcast %cst_97 : f32 to vector<8x128xf32>
    %340 = arith.addf %339, %338 : vector<8x128xf32>
    %341 = arith.divf %339, %340 : vector<8x128xf32>
    %342 = arith.mulf %333, %310 : vector<8x128xf32>
    %343 = arith.mulf %327, %335 : vector<8x128xf32>
    %344 = arith.addf %342, %343 : vector<8x128xf32>
    %345 = math.tanh %344 : vector<8x128xf32>
    %346 = arith.mulf %341, %345 : vector<8x128xf32>
    %347 = arith.index_cast %316 : i32 to index
    %c0_98 = arith.constant 0 : index
    %348 = vector.load %arg4[%347, %c0_98] : memref<160x128xf32, #tpu.memory_space<vmem>>, vector<8x128xf32>
    tpu.vector_store %arg4[%347, %c0_98], %346 {strides = array<i32>} : memref<160x128xf32, #tpu.memory_space<vmem>>, vector<8x128xf32>,
    %c10_i32 = arith.constant 10 : i32
    %c8_i32_99 = arith.constant 8 : i32
    %349 = arith.muli %c10_i32, %c8_i32_99 : i32
    %350 = tpu.assume_multiple %349, 8 : i32
    %351 = arith.index_cast %350 : i32 to index
    %c0_100 = arith.constant 0 : index
    %352 = vector.load %arg7[%351, %c0_100] : memref<160x512xf32, #tpu.memory_space<vmem>>, vector<8x512xf32>
    %c0_101 = arith.constant 0 : index
    %c0_102 = arith.constant 0 : index
    %353 = vector.load %arg2[%c0_101, %c0_102] : memref<128x512xf32, #tpu.memory_space<vmem>>, vector<128x512xf32>
    %cst_103 = arith.constant dense<0.000000e+00> : vector<8x512xf32>
    %354 = tpu.matmul %346, %353, %cst_103 {dimension_numbers = #tpu.dot_dimension_numbers<[1], [0], [0], [1], [0, 0, 1, 1], [], []>} : vector<8x128xf32>, vector<128x512xf32>, vector<8x512xf32> -> vector<8x512xf32>
    %355 = arith.addf %352, %354 : vector<8x512xf32>
    %356 = vector.extract_strided_slice %355 {offsets = [0, 0], sizes = [8, 128], strides = [1, 1]} : vector<8x512xf32> to vector<8x128xf32>
    %357 = arith.negf %356 : vector<8x128xf32>
    %358 = math.exp %357 : vector<8x128xf32>
    %cst_104 = arith.constant 1.000000e+00 : f32
    %359 = vector.broadcast %cst_104 : f32 to vector<8x128xf32>
    %360 = arith.addf %359, %358 : vector<8x128xf32>
    %361 = arith.divf %359, %360 : vector<8x128xf32>
    %362 = vector.extract_strided_slice %355 {offsets = [0, 128], sizes = [8, 128], strides = [1, 1]} : vector<8x512xf32> to vector<8x128xf32>
    %363 = arith.negf %362 : vector<8x128xf32>
    %364 = math.exp %363 : vector<8x128xf32>
    %cst_105 = arith.constant 1.000000e+00 : f32
    %365 = vector.broadcast %cst_105 : f32 to vector<8x128xf32>
    %366 = arith.addf %365, %364 : vector<8x128xf32>
    %367 = arith.divf %365, %366 : vector<8x128xf32>
    %368 = vector.extract_strided_slice %355 {offsets = [0, 256], sizes = [8, 128], strides = [1, 1]} : vector<8x512xf32> to vector<8x128xf32>
    %369 = math.tanh %368 : vector<8x128xf32>
    %370 = vector.extract_strided_slice %355 {offsets = [0, 384], sizes = [8, 128], strides = [1, 1]} : vector<8x512xf32> to vector<8x128xf32>
    %371 = arith.negf %370 : vector<8x128xf32>
    %372 = math.exp %371 : vector<8x128xf32>
    %cst_106 = arith.constant 1.000000e+00 : f32
    %373 = vector.broadcast %cst_106 : f32 to vector<8x128xf32>
    %374 = arith.addf %373, %372 : vector<8x128xf32>
    %375 = arith.divf %373, %374 : vector<8x128xf32>
    %376 = arith.mulf %367, %344 : vector<8x128xf32>
    %377 = arith.mulf %361, %369 : vector<8x128xf32>
    %378 = arith.addf %376, %377 : vector<8x128xf32>
    %379 = math.tanh %378 : vector<8x128xf32>
    %380 = arith.mulf %375, %379 : vector<8x128xf32>
    %381 = arith.index_cast %350 : i32 to index
    %c0_107 = arith.constant 0 : index
    %382 = vector.load %arg4[%381, %c0_107] : memref<160x128xf32, #tpu.memory_space<vmem>>, vector<8x128xf32>
    tpu.vector_store %arg4[%381, %c0_107], %380 {strides = array<i32>} : memref<160x128xf32, #tpu.memory_space<vmem>>, vector<8x128xf32>,
    %c11_i32 = arith.constant 11 : i32
    %c8_i32_108 = arith.constant 8 : i32
    %383 = arith.muli %c11_i32, %c8_i32_108 : i32
    %384 = tpu.assume_multiple %383, 8 : i32
    %385 = arith.index_cast %384 : i32 to index
    %c0_109 = arith.constant 0 : index
    %386 = vector.load %arg7[%385, %c0_109] : memref<160x512xf32, #tpu.memory_space<vmem>>, vector<8x512xf32>
    %c0_110 = arith.constant 0 : index
    %c0_111 = arith.constant 0 : index
    %387 = vector.load %arg2[%c0_110, %c0_111] : memref<128x512xf32, #tpu.memory_space<vmem>>, vector<128x512xf32>
    %cst_112 = arith.constant dense<0.000000e+00> : vector<8x512xf32>
    %388 = tpu.matmul %380, %387, %cst_112 {dimension_numbers = #tpu.dot_dimension_numbers<[1], [0], [0], [1], [0, 0, 1, 1], [], []>} : vector<8x128xf32>, vector<128x512xf32>, vector<8x512xf32> -> vector<8x512xf32>
    %389 = arith.addf %386, %388 : vector<8x512xf32>
    %390 = vector.extract_strided_slice %389 {offsets = [0, 0], sizes = [8, 128], strides = [1, 1]} : vector<8x512xf32> to vector<8x128xf32>
    %391 = arith.negf %390 : vector<8x128xf32>
    %392 = math.exp %391 : vector<8x128xf32>
    %cst_113 = arith.constant 1.000000e+00 : f32
    %393 = vector.broadcast %cst_113 : f32 to vector<8x128xf32>
    %394 = arith.addf %393, %392 : vector<8x128xf32>
    %395 = arith.divf %393, %394 : vector<8x128xf32>
    %396 = vector.extract_strided_slice %389 {offsets = [0, 128], sizes = [8, 128], strides = [1, 1]} : vector<8x512xf32> to vector<8x128xf32>
    %397 = arith.negf %396 : vector<8x128xf32>
    %398 = math.exp %397 : vector<8x128xf32>
    %cst_114 = arith.constant 1.000000e+00 : f32
    %399 = vector.broadcast %cst_114 : f32 to vector<8x128xf32>
    %400 = arith.addf %399, %398 : vector<8x128xf32>
    %401 = arith.divf %399, %400 : vector<8x128xf32>
    %402 = vector.extract_strided_slice %389 {offsets = [0, 256], sizes = [8, 128], strides = [1, 1]} : vector<8x512xf32> to vector<8x128xf32>
    %403 = math.tanh %402 : vector<8x128xf32>
    %404 = vector.extract_strided_slice %389 {offsets = [0, 384], sizes = [8, 128], strides = [1, 1]} : vector<8x512xf32> to vector<8x128xf32>
    %405 = arith.negf %404 : vector<8x128xf32>
    %406 = math.exp %405 : vector<8x128xf32>
    %cst_115 = arith.constant 1.000000e+00 : f32
    %407 = vector.broadcast %cst_115 : f32 to vector<8x128xf32>
    %408 = arith.addf %407, %406 : vector<8x128xf32>
    %409 = arith.divf %407, %408 : vector<8x128xf32>
    %410 = arith.mulf %401, %378 : vector<8x128xf32>
    %411 = arith.mulf %395, %403 : vector<8x128xf32>
    %412 = arith.addf %410, %411 : vector<8x128xf32>
    %413 = math.tanh %412 : vector<8x128xf32>
    %414 = arith.mulf %409, %413 : vector<8x128xf32>
    %415 = arith.index_cast %384 : i32 to index
    %c0_116 = arith.constant 0 : index
    %416 = vector.load %arg4[%415, %c0_116] : memref<160x128xf32, #tpu.memory_space<vmem>>, vector<8x128xf32>
    tpu.vector_store %arg4[%415, %c0_116], %414 {strides = array<i32>} : memref<160x128xf32, #tpu.memory_space<vmem>>, vector<8x128xf32>,
    %c12_i32 = arith.constant 12 : i32
    %c8_i32_117 = arith.constant 8 : i32
    %417 = arith.muli %c12_i32, %c8_i32_117 : i32
    %418 = tpu.assume_multiple %417, 8 : i32
    %419 = arith.index_cast %418 : i32 to index
    %c0_118 = arith.constant 0 : index
    %420 = vector.load %arg7[%419, %c0_118] : memref<160x512xf32, #tpu.memory_space<vmem>>, vector<8x512xf32>
    %c0_119 = arith.constant 0 : index
    %c0_120 = arith.constant 0 : index
    %421 = vector.load %arg2[%c0_119, %c0_120] : memref<128x512xf32, #tpu.memory_space<vmem>>, vector<128x512xf32>
    %cst_121 = arith.constant dense<0.000000e+00> : vector<8x512xf32>
    %422 = tpu.matmul %414, %421, %cst_121 {dimension_numbers = #tpu.dot_dimension_numbers<[1], [0], [0], [1], [0, 0, 1, 1], [], []>} : vector<8x128xf32>, vector<128x512xf32>, vector<8x512xf32> -> vector<8x512xf32>
    %423 = arith.addf %420, %422 : vector<8x512xf32>
    %424 = vector.extract_strided_slice %423 {offsets = [0, 0], sizes = [8, 128], strides = [1, 1]} : vector<8x512xf32> to vector<8x128xf32>
    %425 = arith.negf %424 : vector<8x128xf32>
    %426 = math.exp %425 : vector<8x128xf32>
    %cst_122 = arith.constant 1.000000e+00 : f32
    %427 = vector.broadcast %cst_122 : f32 to vector<8x128xf32>
    %428 = arith.addf %427, %426 : vector<8x128xf32>
    %429 = arith.divf %427, %428 : vector<8x128xf32>
    %430 = vector.extract_strided_slice %423 {offsets = [0, 128], sizes = [8, 128], strides = [1, 1]} : vector<8x512xf32> to vector<8x128xf32>
    %431 = arith.negf %430 : vector<8x128xf32>
    %432 = math.exp %431 : vector<8x128xf32>
    %cst_123 = arith.constant 1.000000e+00 : f32
    %433 = vector.broadcast %cst_123 : f32 to vector<8x128xf32>
    %434 = arith.addf %433, %432 : vector<8x128xf32>
    %435 = arith.divf %433, %434 : vector<8x128xf32>
    %436 = vector.extract_strided_slice %423 {offsets = [0, 256], sizes = [8, 128], strides = [1, 1]} : vector<8x512xf32> to vector<8x128xf32>
    %437 = math.tanh %436 : vector<8x128xf32>
    %438 = vector.extract_strided_slice %423 {offsets = [0, 384], sizes = [8, 128], strides = [1, 1]} : vector<8x512xf32> to vector<8x128xf32>
    %439 = arith.negf %438 : vector<8x128xf32>
    %440 = math.exp %439 : vector<8x128xf32>
    %cst_124 = arith.constant 1.000000e+00 : f32
    %441 = vector.broadcast %cst_124 : f32 to vector<8x128xf32>
    %442 = arith.addf %441, %440 : vector<8x128xf32>
    %443 = arith.divf %441, %442 : vector<8x128xf32>
    %444 = arith.mulf %435, %412 : vector<8x128xf32>
    %445 = arith.mulf %429, %437 : vector<8x128xf32>
    %446 = arith.addf %444, %445 : vector<8x128xf32>
    %447 = math.tanh %446 : vector<8x128xf32>
    %448 = arith.mulf %443, %447 : vector<8x128xf32>
    %449 = arith.index_cast %418 : i32 to index
    %c0_125 = arith.constant 0 : index
    %450 = vector.load %arg4[%449, %c0_125] : memref<160x128xf32, #tpu.memory_space<vmem>>, vector<8x128xf32>
    tpu.vector_store %arg4[%449, %c0_125], %448 {strides = array<i32>} : memref<160x128xf32, #tpu.memory_space<vmem>>, vector<8x128xf32>,
    %c13_i32 = arith.constant 13 : i32
    %c8_i32_126 = arith.constant 8 : i32
    %451 = arith.muli %c13_i32, %c8_i32_126 : i32
    %452 = tpu.assume_multiple %451, 8 : i32
    %453 = arith.index_cast %452 : i32 to index
    %c0_127 = arith.constant 0 : index
    %454 = vector.load %arg7[%453, %c0_127] : memref<160x512xf32, #tpu.memory_space<vmem>>, vector<8x512xf32>
    %c0_128 = arith.constant 0 : index
    %c0_129 = arith.constant 0 : index
    %455 = vector.load %arg2[%c0_128, %c0_129] : memref<128x512xf32, #tpu.memory_space<vmem>>, vector<128x512xf32>
    %cst_130 = arith.constant dense<0.000000e+00> : vector<8x512xf32>
    %456 = tpu.matmul %448, %455, %cst_130 {dimension_numbers = #tpu.dot_dimension_numbers<[1], [0], [0], [1], [0, 0, 1, 1], [], []>} : vector<8x128xf32>, vector<128x512xf32>, vector<8x512xf32> -> vector<8x512xf32>
    %457 = arith.addf %454, %456 : vector<8x512xf32>
    %458 = vector.extract_strided_slice %457 {offsets = [0, 0], sizes = [8, 128], strides = [1, 1]} : vector<8x512xf32> to vector<8x128xf32>
    %459 = arith.negf %458 : vector<8x128xf32>
    %460 = math.exp %459 : vector<8x128xf32>
    %cst_131 = arith.constant 1.000000e+00 : f32
    %461 = vector.broadcast %cst_131 : f32 to vector<8x128xf32>
    %462 = arith.addf %461, %460 : vector<8x128xf32>
    %463 = arith.divf %461, %462 : vector<8x128xf32>
    %464 = vector.extract_strided_slice %457 {offsets = [0, 128], sizes = [8, 128], strides = [1, 1]} : vector<8x512xf32> to vector<8x128xf32>
    %465 = arith.negf %464 : vector<8x128xf32>
    %466 = math.exp %465 : vector<8x128xf32>
    %cst_132 = arith.constant 1.000000e+00 : f32
    %467 = vector.broadcast %cst_132 : f32 to vector<8x128xf32>
    %468 = arith.addf %467, %466 : vector<8x128xf32>
    %469 = arith.divf %467, %468 : vector<8x128xf32>
    %470 = vector.extract_strided_slice %457 {offsets = [0, 256], sizes = [8, 128], strides = [1, 1]} : vector<8x512xf32> to vector<8x128xf32>
    %471 = math.tanh %470 : vector<8x128xf32>
    %472 = vector.extract_strided_slice %457 {offsets = [0, 384], sizes = [8, 128], strides = [1, 1]} : vector<8x512xf32> to vector<8x128xf32>
    %473 = arith.negf %472 : vector<8x128xf32>
    %474 = math.exp %473 : vector<8x128xf32>
    %cst_133 = arith.constant 1.000000e+00 : f32
    %475 = vector.broadcast %cst_133 : f32 to vector<8x128xf32>
    %476 = arith.addf %475, %474 : vector<8x128xf32>
    %477 = arith.divf %475, %476 : vector<8x128xf32>
    %478 = arith.mulf %469, %446 : vector<8x128xf32>
    %479 = arith.mulf %463, %471 : vector<8x128xf32>
    %480 = arith.addf %478, %479 : vector<8x128xf32>
    %481 = math.tanh %480 : vector<8x128xf32>
    %482 = arith.mulf %477, %481 : vector<8x128xf32>
    %483 = arith.index_cast %452 : i32 to index
    %c0_134 = arith.constant 0 : index
    %484 = vector.load %arg4[%483, %c0_134] : memref<160x128xf32, #tpu.memory_space<vmem>>, vector<8x128xf32>
    tpu.vector_store %arg4[%483, %c0_134], %482 {strides = array<i32>} : memref<160x128xf32, #tpu.memory_space<vmem>>, vector<8x128xf32>,
    %c14_i32 = arith.constant 14 : i32
    %c8_i32_135 = arith.constant 8 : i32
    %485 = arith.muli %c14_i32, %c8_i32_135 : i32
    %486 = tpu.assume_multiple %485, 8 : i32
    %487 = arith.index_cast %486 : i32 to index
    %c0_136 = arith.constant 0 : index
    %488 = vector.load %arg7[%487, %c0_136] : memref<160x512xf32, #tpu.memory_space<vmem>>, vector<8x512xf32>
    %c0_137 = arith.constant 0 : index
    %c0_138 = arith.constant 0 : index
    %489 = vector.load %arg2[%c0_137, %c0_138] : memref<128x512xf32, #tpu.memory_space<vmem>>, vector<128x512xf32>
    %cst_139 = arith.constant dense<0.000000e+00> : vector<8x512xf32>
    %490 = tpu.matmul %482, %489, %cst_139 {dimension_numbers = #tpu.dot_dimension_numbers<[1], [0], [0], [1], [0, 0, 1, 1], [], []>} : vector<8x128xf32>, vector<128x512xf32>, vector<8x512xf32> -> vector<8x512xf32>
    %491 = arith.addf %488, %490 : vector<8x512xf32>
    %492 = vector.extract_strided_slice %491 {offsets = [0, 0], sizes = [8, 128], strides = [1, 1]} : vector<8x512xf32> to vector<8x128xf32>
    %493 = arith.negf %492 : vector<8x128xf32>
    %494 = math.exp %493 : vector<8x128xf32>
    %cst_140 = arith.constant 1.000000e+00 : f32
    %495 = vector.broadcast %cst_140 : f32 to vector<8x128xf32>
    %496 = arith.addf %495, %494 : vector<8x128xf32>
    %497 = arith.divf %495, %496 : vector<8x128xf32>
    %498 = vector.extract_strided_slice %491 {offsets = [0, 128], sizes = [8, 128], strides = [1, 1]} : vector<8x512xf32> to vector<8x128xf32>
    %499 = arith.negf %498 : vector<8x128xf32>
    %500 = math.exp %499 : vector<8x128xf32>
    %cst_141 = arith.constant 1.000000e+00 : f32
    %501 = vector.broadcast %cst_141 : f32 to vector<8x128xf32>
    %502 = arith.addf %501, %500 : vector<8x128xf32>
    %503 = arith.divf %501, %502 : vector<8x128xf32>
    %504 = vector.extract_strided_slice %491 {offsets = [0, 256], sizes = [8, 128], strides = [1, 1]} : vector<8x512xf32> to vector<8x128xf32>
    %505 = math.tanh %504 : vector<8x128xf32>
    %506 = vector.extract_strided_slice %491 {offsets = [0, 384], sizes = [8, 128], strides = [1, 1]} : vector<8x512xf32> to vector<8x128xf32>
    %507 = arith.negf %506 : vector<8x128xf32>
    %508 = math.exp %507 : vector<8x128xf32>
    %cst_142 = arith.constant 1.000000e+00 : f32
    %509 = vector.broadcast %cst_142 : f32 to vector<8x128xf32>
    %510 = arith.addf %509, %508 : vector<8x128xf32>
    %511 = arith.divf %509, %510 : vector<8x128xf32>
    %512 = arith.mulf %503, %480 : vector<8x128xf32>
    %513 = arith.mulf %497, %505 : vector<8x128xf32>
    %514 = arith.addf %512, %513 : vector<8x128xf32>
    %515 = math.tanh %514 : vector<8x128xf32>
    %516 = arith.mulf %511, %515 : vector<8x128xf32>
    %517 = arith.index_cast %486 : i32 to index
    %c0_143 = arith.constant 0 : index
    %518 = vector.load %arg4[%517, %c0_143] : memref<160x128xf32, #tpu.memory_space<vmem>>, vector<8x128xf32>
    tpu.vector_store %arg4[%517, %c0_143], %516 {strides = array<i32>} : memref<160x128xf32, #tpu.memory_space<vmem>>, vector<8x128xf32>,
    %c15_i32 = arith.constant 15 : i32
    %c8_i32_144 = arith.constant 8 : i32
    %519 = arith.muli %c15_i32, %c8_i32_144 : i32
    %520 = tpu.assume_multiple %519, 8 : i32
    %521 = arith.index_cast %520 : i32 to index
    %c0_145 = arith.constant 0 : index
    %522 = vector.load %arg7[%521, %c0_145] : memref<160x512xf32, #tpu.memory_space<vmem>>, vector<8x512xf32>
    %c0_146 = arith.constant 0 : index
    %c0_147 = arith.constant 0 : index
    %523 = vector.load %arg2[%c0_146, %c0_147] : memref<128x512xf32, #tpu.memory_space<vmem>>, vector<128x512xf32>
    %cst_148 = arith.constant dense<0.000000e+00> : vector<8x512xf32>
    %524 = tpu.matmul %516, %523, %cst_148 {dimension_numbers = #tpu.dot_dimension_numbers<[1], [0], [0], [1], [0, 0, 1, 1], [], []>} : vector<8x128xf32>, vector<128x512xf32>, vector<8x512xf32> -> vector<8x512xf32>
    %525 = arith.addf %522, %524 : vector<8x512xf32>
    %526 = vector.extract_strided_slice %525 {offsets = [0, 0], sizes = [8, 128], strides = [1, 1]} : vector<8x512xf32> to vector<8x128xf32>
    %527 = arith.negf %526 : vector<8x128xf32>
    %528 = math.exp %527 : vector<8x128xf32>
    %cst_149 = arith.constant 1.000000e+00 : f32
    %529 = vector.broadcast %cst_149 : f32 to vector<8x128xf32>
    %530 = arith.addf %529, %528 : vector<8x128xf32>
    %531 = arith.divf %529, %530 : vector<8x128xf32>
    %532 = vector.extract_strided_slice %525 {offsets = [0, 128], sizes = [8, 128], strides = [1, 1]} : vector<8x512xf32> to vector<8x128xf32>
    %533 = arith.negf %532 : vector<8x128xf32>
    %534 = math.exp %533 : vector<8x128xf32>
    %cst_150 = arith.constant 1.000000e+00 : f32
    %535 = vector.broadcast %cst_150 : f32 to vector<8x128xf32>
    %536 = arith.addf %535, %534 : vector<8x128xf32>
    %537 = arith.divf %535, %536 : vector<8x128xf32>
    %538 = vector.extract_strided_slice %525 {offsets = [0, 256], sizes = [8, 128], strides = [1, 1]} : vector<8x512xf32> to vector<8x128xf32>
    %539 = math.tanh %538 : vector<8x128xf32>
    %540 = vector.extract_strided_slice %525 {offsets = [0, 384], sizes = [8, 128], strides = [1, 1]} : vector<8x512xf32> to vector<8x128xf32>
    %541 = arith.negf %540 : vector<8x128xf32>
    %542 = math.exp %541 : vector<8x128xf32>
    %cst_151 = arith.constant 1.000000e+00 : f32
    %543 = vector.broadcast %cst_151 : f32 to vector<8x128xf32>
    %544 = arith.addf %543, %542 : vector<8x128xf32>
    %545 = arith.divf %543, %544 : vector<8x128xf32>
    %546 = arith.mulf %537, %514 : vector<8x128xf32>
    %547 = arith.mulf %531, %539 : vector<8x128xf32>
    %548 = arith.addf %546, %547 : vector<8x128xf32>
    %549 = math.tanh %548 : vector<8x128xf32>
    %550 = arith.mulf %545, %549 : vector<8x128xf32>
    %551 = arith.index_cast %520 : i32 to index
    %c0_152 = arith.constant 0 : index
    %552 = vector.load %arg4[%551, %c0_152] : memref<160x128xf32, #tpu.memory_space<vmem>>, vector<8x128xf32>
    tpu.vector_store %arg4[%551, %c0_152], %550 {strides = array<i32>} : memref<160x128xf32, #tpu.memory_space<vmem>>, vector<8x128xf32>,
    %c16_i32 = arith.constant 16 : i32
    %c8_i32_153 = arith.constant 8 : i32
    %553 = arith.muli %c16_i32, %c8_i32_153 : i32
    %554 = tpu.assume_multiple %553, 8 : i32
    %555 = arith.index_cast %554 : i32 to index
    %c0_154 = arith.constant 0 : index
    %556 = vector.load %arg7[%555, %c0_154] : memref<160x512xf32, #tpu.memory_space<vmem>>, vector<8x512xf32>
    %c0_155 = arith.constant 0 : index
    %c0_156 = arith.constant 0 : index
    %557 = vector.load %arg2[%c0_155, %c0_156] : memref<128x512xf32, #tpu.memory_space<vmem>>, vector<128x512xf32>
    %cst_157 = arith.constant dense<0.000000e+00> : vector<8x512xf32>
    %558 = tpu.matmul %550, %557, %cst_157 {dimension_numbers = #tpu.dot_dimension_numbers<[1], [0], [0], [1], [0, 0, 1, 1], [], []>} : vector<8x128xf32>, vector<128x512xf32>, vector<8x512xf32> -> vector<8x512xf32>
    %559 = arith.addf %556, %558 : vector<8x512xf32>
    %560 = vector.extract_strided_slice %559 {offsets = [0, 0], sizes = [8, 128], strides = [1, 1]} : vector<8x512xf32> to vector<8x128xf32>
    %561 = arith.negf %560 : vector<8x128xf32>
    %562 = math.exp %561 : vector<8x128xf32>
    %cst_158 = arith.constant 1.000000e+00 : f32
    %563 = vector.broadcast %cst_158 : f32 to vector<8x128xf32>
    %564 = arith.addf %563, %562 : vector<8x128xf32>
    %565 = arith.divf %563, %564 : vector<8x128xf32>
    %566 = vector.extract_strided_slice %559 {offsets = [0, 128], sizes = [8, 128], strides = [1, 1]} : vector<8x512xf32> to vector<8x128xf32>
    %567 = arith.negf %566 : vector<8x128xf32>
    %568 = math.exp %567 : vector<8x128xf32>
    %cst_159 = arith.constant 1.000000e+00 : f32
    %569 = vector.broadcast %cst_159 : f32 to vector<8x128xf32>
    %570 = arith.addf %569, %568 : vector<8x128xf32>
    %571 = arith.divf %569, %570 : vector<8x128xf32>
    %572 = vector.extract_strided_slice %559 {offsets = [0, 256], sizes = [8, 128], strides = [1, 1]} : vector<8x512xf32> to vector<8x128xf32>
    %573 = math.tanh %572 : vector<8x128xf32>
    %574 = vector.extract_strided_slice %559 {offsets = [0, 384], sizes = [8, 128], strides = [1, 1]} : vector<8x512xf32> to vector<8x128xf32>
    %575 = arith.negf %574 : vector<8x128xf32>
    %576 = math.exp %575 : vector<8x128xf32>
    %cst_160 = arith.constant 1.000000e+00 : f32
    %577 = vector.broadcast %cst_160 : f32 to vector<8x128xf32>
    %578 = arith.addf %577, %576 : vector<8x128xf32>
    %579 = arith.divf %577, %578 : vector<8x128xf32>
    %580 = arith.mulf %571, %548 : vector<8x128xf32>
    %581 = arith.mulf %565, %573 : vector<8x128xf32>
    %582 = arith.addf %580, %581 : vector<8x128xf32>
    %583 = math.tanh %582 : vector<8x128xf32>
    %584 = arith.mulf %579, %583 : vector<8x128xf32>
    %585 = arith.index_cast %554 : i32 to index
    %c0_161 = arith.constant 0 : index
    %586 = vector.load %arg4[%585, %c0_161] : memref<160x128xf32, #tpu.memory_space<vmem>>, vector<8x128xf32>
    tpu.vector_store %arg4[%585, %c0_161], %584 {strides = array<i32>} : memref<160x128xf32, #tpu.memory_space<vmem>>, vector<8x128xf32>,
    %c17_i32 = arith.constant 17 : i32
    %c8_i32_162 = arith.constant 8 : i32
    %587 = arith.muli %c17_i32, %c8_i32_162 : i32
    %588 = tpu.assume_multiple %587, 8 : i32
    %589 = arith.index_cast %588 : i32 to index
    %c0_163 = arith.constant 0 : index
    %590 = vector.load %arg7[%589, %c0_163] : memref<160x512xf32, #tpu.memory_space<vmem>>, vector<8x512xf32>
    %c0_164 = arith.constant 0 : index
    %c0_165 = arith.constant 0 : index
    %591 = vector.load %arg2[%c0_164, %c0_165] : memref<128x512xf32, #tpu.memory_space<vmem>>, vector<128x512xf32>
    %cst_166 = arith.constant dense<0.000000e+00> : vector<8x512xf32>
    %592 = tpu.matmul %584, %591, %cst_166 {dimension_numbers = #tpu.dot_dimension_numbers<[1], [0], [0], [1], [0, 0, 1, 1], [], []>} : vector<8x128xf32>, vector<128x512xf32>, vector<8x512xf32> -> vector<8x512xf32>
    %593 = arith.addf %590, %592 : vector<8x512xf32>
    %594 = vector.extract_strided_slice %593 {offsets = [0, 0], sizes = [8, 128], strides = [1, 1]} : vector<8x512xf32> to vector<8x128xf32>
    %595 = arith.negf %594 : vector<8x128xf32>
    %596 = math.exp %595 : vector<8x128xf32>
    %cst_167 = arith.constant 1.000000e+00 : f32
    %597 = vector.broadcast %cst_167 : f32 to vector<8x128xf32>
    %598 = arith.addf %597, %596 : vector<8x128xf32>
    %599 = arith.divf %597, %598 : vector<8x128xf32>
    %600 = vector.extract_strided_slice %593 {offsets = [0, 128], sizes = [8, 128], strides = [1, 1]} : vector<8x512xf32> to vector<8x128xf32>
    %601 = arith.negf %600 : vector<8x128xf32>
    %602 = math.exp %601 : vector<8x128xf32>
    %cst_168 = arith.constant 1.000000e+00 : f32
    %603 = vector.broadcast %cst_168 : f32 to vector<8x128xf32>
    %604 = arith.addf %603, %602 : vector<8x128xf32>
    %605 = arith.divf %603, %604 : vector<8x128xf32>
    %606 = vector.extract_strided_slice %593 {offsets = [0, 256], sizes = [8, 128], strides = [1, 1]} : vector<8x512xf32> to vector<8x128xf32>
    %607 = math.tanh %606 : vector<8x128xf32>
    %608 = vector.extract_strided_slice %593 {offsets = [0, 384], sizes = [8, 128], strides = [1, 1]} : vector<8x512xf32> to vector<8x128xf32>
    %609 = arith.negf %608 : vector<8x128xf32>
    %610 = math.exp %609 : vector<8x128xf32>
    %cst_169 = arith.constant 1.000000e+00 : f32
    %611 = vector.broadcast %cst_169 : f32 to vector<8x128xf32>
    %612 = arith.addf %611, %610 : vector<8x128xf32>
    %613 = arith.divf %611, %612 : vector<8x128xf32>
    %614 = arith.mulf %605, %582 : vector<8x128xf32>
    %615 = arith.mulf %599, %607 : vector<8x128xf32>
    %616 = arith.addf %614, %615 : vector<8x128xf32>
    %617 = math.tanh %616 : vector<8x128xf32>
    %618 = arith.mulf %613, %617 : vector<8x128xf32>
    %619 = arith.index_cast %588 : i32 to index
    %c0_170 = arith.constant 0 : index
    %620 = vector.load %arg4[%619, %c0_170] : memref<160x128xf32, #tpu.memory_space<vmem>>, vector<8x128xf32>
    tpu.vector_store %arg4[%619, %c0_170], %618 {strides = array<i32>} : memref<160x128xf32, #tpu.memory_space<vmem>>, vector<8x128xf32>,
    %c18_i32 = arith.constant 18 : i32
    %c8_i32_171 = arith.constant 8 : i32
    %621 = arith.muli %c18_i32, %c8_i32_171 : i32
    %622 = tpu.assume_multiple %621, 8 : i32
    %623 = arith.index_cast %622 : i32 to index
    %c0_172 = arith.constant 0 : index
    %624 = vector.load %arg7[%623, %c0_172] : memref<160x512xf32, #tpu.memory_space<vmem>>, vector<8x512xf32>
    %c0_173 = arith.constant 0 : index
    %c0_174 = arith.constant 0 : index
    %625 = vector.load %arg2[%c0_173, %c0_174] : memref<128x512xf32, #tpu.memory_space<vmem>>, vector<128x512xf32>
    %cst_175 = arith.constant dense<0.000000e+00> : vector<8x512xf32>
    %626 = tpu.matmul %618, %625, %cst_175 {dimension_numbers = #tpu.dot_dimension_numbers<[1], [0], [0], [1], [0, 0, 1, 1], [], []>} : vector<8x128xf32>, vector<128x512xf32>, vector<8x512xf32> -> vector<8x512xf32>
    %627 = arith.addf %624, %626 : vector<8x512xf32>
    %628 = vector.extract_strided_slice %627 {offsets = [0, 0], sizes = [8, 128], strides = [1, 1]} : vector<8x512xf32> to vector<8x128xf32>
    %629 = arith.negf %628 : vector<8x128xf32>
    %630 = math.exp %629 : vector<8x128xf32>
    %cst_176 = arith.constant 1.000000e+00 : f32
    %631 = vector.broadcast %cst_176 : f32 to vector<8x128xf32>
    %632 = arith.addf %631, %630 : vector<8x128xf32>
    %633 = arith.divf %631, %632 : vector<8x128xf32>
    %634 = vector.extract_strided_slice %627 {offsets = [0, 128], sizes = [8, 128], strides = [1, 1]} : vector<8x512xf32> to vector<8x128xf32>
    %635 = arith.negf %634 : vector<8x128xf32>
    %636 = math.exp %635 : vector<8x128xf32>
    %cst_177 = arith.constant 1.000000e+00 : f32
    %637 = vector.broadcast %cst_177 : f32 to vector<8x128xf32>
    %638 = arith.addf %637, %636 : vector<8x128xf32>
    %639 = arith.divf %637, %638 : vector<8x128xf32>
    %640 = vector.extract_strided_slice %627 {offsets = [0, 256], sizes = [8, 128], strides = [1, 1]} : vector<8x512xf32> to vector<8x128xf32>
    %641 = math.tanh %640 : vector<8x128xf32>
    %642 = vector.extract_strided_slice %627 {offsets = [0, 384], sizes = [8, 128], strides = [1, 1]} : vector<8x512xf32> to vector<8x128xf32>
    %643 = arith.negf %642 : vector<8x128xf32>
    %644 = math.exp %643 : vector<8x128xf32>
    %cst_178 = arith.constant 1.000000e+00 : f32
    %645 = vector.broadcast %cst_178 : f32 to vector<8x128xf32>
    %646 = arith.addf %645, %644 : vector<8x128xf32>
    %647 = arith.divf %645, %646 : vector<8x128xf32>
    %648 = arith.mulf %639, %616 : vector<8x128xf32>
    %649 = arith.mulf %633, %641 : vector<8x128xf32>
    %650 = arith.addf %648, %649 : vector<8x128xf32>
    %651 = math.tanh %650 : vector<8x128xf32>
    %652 = arith.mulf %647, %651 : vector<8x128xf32>
    %653 = arith.index_cast %622 : i32 to index
    %c0_179 = arith.constant 0 : index
    %654 = vector.load %arg4[%653, %c0_179] : memref<160x128xf32, #tpu.memory_space<vmem>>, vector<8x128xf32>
    tpu.vector_store %arg4[%653, %c0_179], %652 {strides = array<i32>} : memref<160x128xf32, #tpu.memory_space<vmem>>, vector<8x128xf32>,
    %c19_i32 = arith.constant 19 : i32
    %c8_i32_180 = arith.constant 8 : i32
    %655 = arith.muli %c19_i32, %c8_i32_180 : i32
    %656 = tpu.assume_multiple %655, 8 : i32
    %657 = arith.index_cast %656 : i32 to index
    %c0_181 = arith.constant 0 : index
    %658 = vector.load %arg7[%657, %c0_181] : memref<160x512xf32, #tpu.memory_space<vmem>>, vector<8x512xf32>
    %c0_182 = arith.constant 0 : index
    %c0_183 = arith.constant 0 : index
    %659 = vector.load %arg2[%c0_182, %c0_183] : memref<128x512xf32, #tpu.memory_space<vmem>>, vector<128x512xf32>
    %cst_184 = arith.constant dense<0.000000e+00> : vector<8x512xf32>
    %660 = tpu.matmul %652, %659, %cst_184 {dimension_numbers = #tpu.dot_dimension_numbers<[1], [0], [0], [1], [0, 0, 1, 1], [], []>} : vector<8x128xf32>, vector<128x512xf32>, vector<8x512xf32> -> vector<8x512xf32>
    %661 = arith.addf %658, %660 : vector<8x512xf32>
    %662 = vector.extract_strided_slice %661 {offsets = [0, 0], sizes = [8, 128], strides = [1, 1]} : vector<8x512xf32> to vector<8x128xf32>
    %663 = arith.negf %662 : vector<8x128xf32>
    %664 = math.exp %663 : vector<8x128xf32>
    %cst_185 = arith.constant 1.000000e+00 : f32
    %665 = vector.broadcast %cst_185 : f32 to vector<8x128xf32>
    %666 = arith.addf %665, %664 : vector<8x128xf32>
    %667 = arith.divf %665, %666 : vector<8x128xf32>
    %668 = vector.extract_strided_slice %661 {offsets = [0, 128], sizes = [8, 128], strides = [1, 1]} : vector<8x512xf32> to vector<8x128xf32>
    %669 = arith.negf %668 : vector<8x128xf32>
    %670 = math.exp %669 : vector<8x128xf32>
    %cst_186 = arith.constant 1.000000e+00 : f32
    %671 = vector.broadcast %cst_186 : f32 to vector<8x128xf32>
    %672 = arith.addf %671, %670 : vector<8x128xf32>
    %673 = arith.divf %671, %672 : vector<8x128xf32>
    %674 = vector.extract_strided_slice %661 {offsets = [0, 256], sizes = [8, 128], strides = [1, 1]} : vector<8x512xf32> to vector<8x128xf32>
    %675 = math.tanh %674 : vector<8x128xf32>
    %676 = vector.extract_strided_slice %661 {offsets = [0, 384], sizes = [8, 128], strides = [1, 1]} : vector<8x512xf32> to vector<8x128xf32>
    %677 = arith.negf %676 : vector<8x128xf32>
    %678 = math.exp %677 : vector<8x128xf32>
    %cst_187 = arith.constant 1.000000e+00 : f32
    %679 = vector.broadcast %cst_187 : f32 to vector<8x128xf32>
    %680 = arith.addf %679, %678 : vector<8x128xf32>
    %681 = arith.divf %679, %680 : vector<8x128xf32>
    %682 = arith.mulf %673, %650 : vector<8x128xf32>
    %683 = arith.mulf %667, %675 : vector<8x128xf32>
    %684 = arith.addf %682, %683 : vector<8x128xf32>
    %685 = math.tanh %684 : vector<8x128xf32>
    %686 = arith.mulf %681, %685 : vector<8x128xf32>
    %687 = arith.index_cast %656 : i32 to index
    %c0_188 = arith.constant 0 : index
    %688 = vector.load %arg4[%687, %c0_188] : memref<160x128xf32, #tpu.memory_space<vmem>>, vector<8x128xf32>
    tpu.vector_store %arg4[%687, %c0_188], %686 {strides = array<i32>} : memref<160x128xf32, #tpu.memory_space<vmem>>, vector<8x128xf32>,
    %c20_i32 = arith.constant 20 : i32
    %c0_189 = arith.constant 0 : index
    %c0_190 = arith.constant 0 : index
    %689 = vector.load %arg5[%c0_189, %c0_190] : memref<8x128xf32, #tpu.memory_space<vmem>>, vector<8x128xf32>
    tpu.vector_store %arg5[%c0_189, %c0_190], %686 {strides = array<i32>} : memref<8x128xf32, #tpu.memory_space<vmem>>, vector<8x128xf32>,
    %c0_191 = arith.constant 0 : index
    %c0_192 = arith.constant 0 : index
    %690 = vector.load %arg6[%c0_191, %c0_192] : memref<8x128xf32, #tpu.memory_space<vmem>>, vector<8x128xf32>
    tpu.vector_store %arg6[%c0_191, %c0_192], %684 {strides = array<i32>} : memref<8x128xf32, #tpu.memory_space<vmem>>, vector<8x128xf32>,
    return
  }
}

</mosaic_0001>

<llo_original>
// kernel: mylstm_forward.1
$region0: #{mylstm_forward.1}
  #allocation0 [shape = 'u32[]', space=smem, size = 0x4, offset = 0x4, fixed_abs, tag = 'smem constant byte address 0x4 - core index']
  #allocation1 [shape = 'u32[144,128]{1,0:T(1,128)}', space=vmem, size = 0x12000, scoped, tag = 'internal scratch']
  #allocation2 [shape = 'f32[160,512]{1,0:T(8,128)}', space=vmem, size = 0x50000, scoped, tag = 'scratch operand']
  %s0 = inlined_call_operand.vmem [shape: f32[160,36], index: 0, kind: input, shape index: {}]
  %s1 = inlined_call_operand.vmem [shape: f32[36,512], index: 1, kind: input, shape index: {}]
  %s2 = inlined_call_operand.vmem [shape: f32[128,512], index: 2, kind: input, shape index: {}]
  %s3 = inlined_call_operand.vmem [shape: f32[1,512], index: 3, kind: input, shape index: {}]
  %s4 = inlined_call_operand.vmem [shape: f32[160,128], index: 4, kind: output, shape index: {0}]
  %s5 = inlined_call_operand.vmem [shape: f32[8,128], index: 5, kind: output, shape index: {1}]
  %s6 = inlined_call_operand.vmem [shape: f32[8,128], index: 6, kind: output, shape index: {2}]
  %7 = xla_tuple %s4, %s5, %s6
  %s8 = sld [smem:[#allocation0]]
  $region42: #{mylstm_forward.1} parent=0
    _
  %s10 = ssub.s32 1, %s8
  %s11 = scalar_select 0, %s10, %s8
  // Predicated region
  $region2: #{mylstm_forward.1} parent=0 // pred_check
    _
  $region3: #{mylstm_forward.1} parent=0 // pred_check_branch
    %13 = sbr.rel (0) target = $region5
  $region4: #{mylstm_forward.1} parent=0 // pred_region
    _
  $region5: #{mylstm_forward.1} parent=0 // pred_fallthru
    _
  // Predicated region
  $region6: #{mylstm_forward.1} parent=0 // pred_check
    _
  $region7: #{mylstm_forward.1} parent=0 // pred_check_branch
    %15 = sbr.rel (0) target = $region9
  $region8: #{mylstm_forward.1} parent=0 // pred_region
    _
  $region9: #{mylstm_forward.1} parent=0 // pred_fallthru
    _
  // Predicated region
  $region10: #{mylstm_forward.1} parent=0 // pred_check
    _
  $region11: #{mylstm_forward.1} parent=0 // pred_check_branch
    %17 = sbr.rel (0) target = $region13
  $region12: #{mylstm_forward.1} parent=0 // pred_region
    _
  $region13: #{mylstm_forward.1} parent=0 // pred_fallthru
    _
  // Predicated region
  $region14: #{mylstm_forward.1} parent=0 // pred_check
    _
  $region15: #{mylstm_forward.1} parent=0 // pred_check_branch
    %19 = sbr.rel (0) target = $region17
  $region16: #{mylstm_forward.1} parent=0 // pred_region
    _
  $region17: #{mylstm_forward.1} parent=0 // pred_fallthru
    _
  %v20 = vld [vmem:[%s0] sm:$0xff]
  %v21 = vld [vmem:[%s0 + $0x8] sm:$0xff]
  %v22 = vld [vmem:[%s0 + $0x10] sm:$0xff]
  %v23 = vld [vmem:[%s0 + $0x18] sm:$0xff]
  %v24 = vld [vmem:[%s0 + $0x20] sm:$0xff]
  %v25 = vld [vmem:[%s0 + $0x28] sm:$0xff]
  %v26 = vld [vmem:[%s0 + $0x30] sm:$0xff]
  %v27 = vld [vmem:[%s0 + $0x38] sm:$0xff]
  %v28 = vld [vmem:[%s0 + $0x40] sm:$0xff]
  %v29 = vld [vmem:[%s0 + $0x48] sm:$0xff]
  %v30 = vld [vmem:[%s0 + $0x50] sm:$0xff]
  %v31 = vld [vmem:[%s0 + $0x58] sm:$0xff]
  %v32 = vld [vmem:[%s0 + $0x60] sm:$0xff]
  %v33 = vld [vmem:[%s0 + $0x68] sm:$0xff]
  %v34 = vld [vmem:[%s0 + $0x70] sm:$0xff]
  %v35 = vld [vmem:[%s0 + $0x78] sm:$0xff]
  %v36 = vld [vmem:[%s0 + $0x80] sm:$0xff]
  %v37 = vld [vmem:[%s0 + $0x88] sm:$0xff]
  %v38 = vld [vmem:[%s0 + $0x90] sm:$0xff]
  %v39 = vld [vmem:[%s0 + $0x98] sm:$0xff]
  %v40 = vld [vmem:[%s1] sm:$0xff]
  %v41 = vld [vmem:[%s1 + $0x8] sm:$0xff]
  %v42 = vld [vmem:[%s1 + $0x10] sm:$0xff]
  %v43 = vld [vmem:[%s1 + $0x18] sm:$0xff]
  %v44 = vld [vmem:[%s1 + $0x20] sm:$0xff]
  %v45 = vld [vmem:[%s1 + $0x28] sm:$0xff]
  %v46 = vld [vmem:[%s1 + $0x30] sm:$0xff]
  %v47 = vld [vmem:[%s1 + $0x38] sm:$0xff]
  %v48 = vld [vmem:[%s1 + $0x40] sm:$0xff]
  %v49 = vld [vmem:[%s1 + $0x48] sm:$0xff]
  %v50 = vld [vmem:[%s1 + $0x50] sm:$0xff]
  %v51 = vld [vmem:[%s1 + $0x58] sm:$0xff]
  %v52 = vld [vmem:[%s1 + $0x60] sm:$0xff]
  %v53 = vld [vmem:[%s1 + $0x68] sm:$0xff]
  %v54 = vld [vmem:[%s1 + $0x70] sm:$0xff]
  %v55 = vld [vmem:[%s1 + $0x78] sm:$0xff]
  %v56 = vld [vmem:[%s1 + $0x80] sm:$0xf]
  %v57 = vld [vmem:[%s1 + $0x88] sm:$0xf]
  %v58 = vld [vmem:[%s1 + $0x90] sm:$0xf]
  %v59 = vld [vmem:[%s1 + $0x98] sm:$0xf]
  %v60 = vld [vmem:[%s3] sm:$0xf]
  %v62 = vlaneseq
  %v63 = vshrl.u32 %v62, 7
  %v64 = vsub.s32 0, %v63
  %v65 = vrot.slane %v60, %v64
  %v66 = vlaneseq
  %v67 = vshrl.u32 %v66, 7
  %v68 = vsub.s32 1, %v67
  %v69 = vrot.slane %v60, %v68
  %v70 = vlaneseq
  %v71 = vshrl.u32 %v70, 7
  %v72 = vsub.s32 2, %v71
  %v73 = vrot.slane %v60, %v72
  %v74 = vlaneseq
  %v75 = vshrl.u32 %v74, 7
  %v76 = vsub.s32 3, %v75
  %v77 = vrot.slane %v60, %v76
  %vm82 = vcmask 293888
  %v84 = vsel %vm82, %v20, 0
  %v87 = vsel %vm82, %v21, 0
  %v90 = vsel %vm82, %v22, 0
  %v93 = vsel %vm82, %v23, 0
  %v96 = vsel %vm82, %v24, 0
  %v99 = vsel %vm82, %v25, 0
  %v102 = vsel %vm82, %v26, 0
  %v105 = vsel %vm82, %v27, 0
  %v108 = vsel %vm82, %v28, 0
  %v111 = vsel %vm82, %v29, 0
  %v114 = vsel %vm82, %v30, 0
  %v117 = vsel %vm82, %v31, 0
  %v120 = vsel %vm82, %v32, 0
  %v123 = vsel %vm82, %v33, 0
  %v126 = vsel %vm82, %v34, 0
  %v129 = vsel %vm82, %v35, 0
  %v132 = vsel %vm82, %v36, 0
  %v135 = vsel %vm82, %v37, 0
  %v138 = vsel %vm82, %v38, 0
  %v141 = vsel %vm82, %v39, 0
  %vm143 = vcmask 1043456
  %v145 = vsel %vm143, %v56, 0
  %v148 = vsel %vm143, %v57, 0
  %v151 = vsel %vm143, %v58, 0
  %v154 = vsel %vm143, %v59, 0
  %156 = vmatprep.subr.mxu0 0.0
  %157 = vmatpush1.msra.mxu0 0.0
  %158 = vmatprep.subr.mxu0 0.0
  %159 = vmatpush1.msra.mxu0 0.0
  %160 = vmatprep.subr.mxu0 0.0
  %161 = vmatpush1.msra.mxu0 0.0
  %162 = vmatprep.subr.mxu0 0.0
  %163 = vmatpush1.msra.mxu0 0.0
  %164 = vmatprep.subr.mxu0 0.0
  %165 = vmatpush1.msra.mxu0 0.0
  %166 = vmatprep.subr.mxu0 0.0
  %167 = vmatpush1.msra.mxu0 0.0
  %168 = vmatprep.subr.mxu0 0.0
  %169 = vmatpush1.msra.mxu0 0.0
  %170 = vmatprep.subr.mxu0 0.0
  %171 = vmatpush1.msra.mxu0 0.0
  %172 = vmatprep.subr.mxu0 0.0
  %173 = vmatpush1.msra.mxu0 0.0
  %174 = vmatprep.subr.mxu0 0.0
  %175 = vmatpush1.msra.mxu0 0.0
  %176 = vmatprep.subr.mxu0 0.0
  %177 = vmatpush1.msra.mxu0 0.0
  %178 = vmatprep.subr.mxu0 %v148
  %179 = vmatpush1.msra.mxu0 %v145
  %180 = vmatprep.subr.mxu0 %v53
  %181 = vmatpush1.msra.mxu0 %v52
  %182 = vmatprep.subr.mxu0 %v49
  %183 = vmatpush1.msra.mxu0 %v48
  %184 = vmatprep.subr.mxu0 %v45
  %185 = vmatpush1.msra.mxu0 %v44
  %186 = vmatprep.subr.mxu0 %v41
  %187 = vmatpush1.msra.mxu0 %v40
  %188 = vmatprep.subr.mxu0 0.0
  %189 = vmatpush2.msra.mxu0 0.0
  %190 = vmatprep.subr.mxu0 0.0
  %191 = vmatpush2.msra.mxu0 0.0
  %192 = vmatprep.subr.mxu0 0.0
  %193 = vmatpush2.msra.mxu0 0.0
  %194 = vmatprep.subr.mxu0 0.0
  %195 = vmatpush2.msra.mxu0 0.0
  %196 = vmatprep.subr.mxu0 0.0
  %197 = vmatpush2.msra.mxu0 0.0
  %198 = vmatprep.subr.mxu0 0.0
  %199 = vmatpush2.msra.mxu0 0.0
  %200 = vmatprep.subr.mxu0 0.0
  %201 = vmatpush2.msra.mxu0 0.0
  %202 = vmatprep.subr.mxu0 0.0
  %203 = vmatpush2.msra.mxu0 0.0
  %204 = vmatprep.subr.mxu0 0.0
  %205 = vmatpush2.msra.mxu0 0.0
  %206 = vmatprep.subr.mxu0 0.0
  %207 = vmatpush2.msra.mxu0 0.0
  %208 = vmatprep.subr.mxu0 0.0
  %209 = vmatpush2.msra.mxu0 0.0
  %210 = vmatprep.subr.mxu0 0.0
  %211 = vmatpush2.msra.mxu0 0.0
  %212 = vmatprep.subr.mxu0 0.0
  %213 = vmatpush2.msra.mxu0 0.0
  %214 = vmatprep.subr.mxu0 0.0
  %215 = vmatpush2.msra.mxu0 0.0
  %216 = vmatprep.subr.mxu0 0.0
  %217 = vmatpush2.msra.mxu0 0.0
  %218 = vmatprep.subr.mxu0 0.0
  %219 = vmatpush2.msra.mxu0 0.0
  %220 = vmatprep.mubr.f32.mxu0 0.0
  %221 = vmatmul.mubr.f32.gmra.mxu0 %v84
  %v222 = vpop.f32.mrf.mxu0
  %v223 = vadd.f32 %v65, %v222
  %v224 = vpop.f32.mrf.mxu0
  %v225 = vadd.f32 %v69, %v224
  %226 = vmatprep.mubr.f32.mxu0 0.0
  %227 = vmatmul.mubr.f32.gmra.mxu0 %v87
  %v228 = vpop.f32.mrf.mxu0
  %v229 = vadd.f32 %v65, %v228
  %v230 = vpop.f32.mrf.mxu0
  %v231 = vadd.f32 %v69, %v230
  %232 = vmatprep.mubr.f32.mxu0 0.0
  %233 = vmatmul.mubr.f32.gmra.mxu0 %v90
  %v234 = vpop.f32.mrf.mxu0
  %v235 = vadd.f32 %v65, %v234
  %v236 = vpop.f32.mrf.mxu0
  %v237 = vadd.f32 %v69, %v236
  %238 = vmatprep.mubr.f32.mxu0 0.0
  %239 = vmatmul.mubr.f32.gmra.mxu0 %v93
  %v240 = vpop.f32.mrf.mxu0
  %v241 = vadd.f32 %v65, %v240
  %v242 = vpop.f32.mrf.mxu0
  %v243 = vadd.f32 %v69, %v242
  %244 = vmatprep.mubr.f32.mxu0 0.0
  %245 = vmatmul.mubr.f32.gmra.mxu0 %v96
  %v246 = vpop.f32.mrf.mxu0
  %v247 = vadd.f32 %v65, %v246
  %v248 = vpop.f32.mrf.mxu0
  %v249 = vadd.f32 %v69, %v248
  %250 = vmatprep.mubr.f32.mxu0 0.0
  %251 = vmatmul.mubr.f32.gmra.mxu0 %v99
  %v252 = vpop.f32.mrf.mxu0
  %v253 = vadd.f32 %v65, %v252
  %v254 = vpop.f32.mrf.mxu0
  %v255 = vadd.f32 %v69, %v254
  %256 = vmatprep.mubr.f32.mxu0 0.0
  %257 = vmatmul.mubr.f32.gmra.mxu0 %v102
  %v258 = vpop.f32.mrf.mxu0
  %v259 = vadd.f32 %v65, %v258
  %v260 = vpop.f32.mrf.mxu0
  %v261 = vadd.f32 %v69, %v260
  %262 = vmatprep.mubr.f32.mxu0 0.0
  %263 = vmatmul.mubr.f32.gmra.mxu0 %v105
  %v264 = vpop.f32.mrf.mxu0
  %v265 = vadd.f32 %v65, %v264
  %v266 = vpop.f32.mrf.mxu0
  %v267 = vadd.f32 %v69, %v266
  %268 = vmatprep.mubr.f32.mxu0 0.0
  %269 = vmatmul.mubr.f32.gmra.mxu0 %v108
  %v270 = vpop.f32.mrf.mxu0
  %v271 = vadd.f32 %v65, %v270
  %v272 = vpop.f32.mrf.mxu0
  %v273 = vadd.f32 %v69, %v272
  %274 = vmatprep.mubr.f32.mxu0 0.0
  %275 = vmatmul.mubr.f32.gmra.mxu0 %v111
  %v276 = vpop.f32.mrf.mxu0
  %v277 = vadd.f32 %v65, %v276
  %v278 = vpop.f32.mrf.mxu0
  %v279 = vadd.f32 %v69, %v278
  %280 = vmatprep.mubr.f32.mxu0 0.0
  %281 = vmatmul.mubr.f32.gmra.mxu0 %v114
  %v282 = vpop.f32.mrf.mxu0
  %v283 = vadd.f32 %v65, %v282
  %v284 = vpop.f32.mrf.mxu0
  %v285 = vadd.f32 %v69, %v284
  %286 = vmatprep.mubr.f32.mxu0 0.0
  %287 = vmatmul.mubr.f32.gmra.mxu0 %v117
  %v288 = vpop.f32.mrf.mxu0
  %v289 = vadd.f32 %v65, %v288
  %v290 = vpop.f32.mrf.mxu0
  %v291 = vadd.f32 %v69, %v290
  %292 = vmatprep.mubr.f32.mxu0 0.0
  %293 = vmatmul.mubr.f32.gmra.mxu0 %v120
  %v294 = vpop.f32.mrf.mxu0
  %v295 = vadd.f32 %v65, %v294
  %v296 = vpop.f32.mrf.mxu0
  %v297 = vadd.f32 %v69, %v296
  %298 = vmatprep.mubr.f32.mxu0 0.0
  %299 = vmatmul.mubr.f32.gmra.mxu0 %v123
  %v300 = vpop.f32.mrf.mxu0
  %v301 = vadd.f32 %v65, %v300
  %v302 = vpop.f32.mrf.mxu0
  %v303 = vadd.f32 %v69, %v302
  %304 = vmatprep.mubr.f32.mxu0 0.0
  %305 = vmatmul.mubr.f32.gmra.mxu0 %v126
  %v306 = vpop.f32.mrf.mxu0
  %v307 = vadd.f32 %v65, %v306
  %v308 = vpop.f32.mrf.mxu0
  %v309 = vadd.f32 %v69, %v308
  %310 = vmatprep.mubr.f32.mxu0 0.0
  %311 = vmatmul.mubr.f32.gmra.mxu0 %v129
  %v312 = vpop.f32.mrf.mxu0
  %v313 = vadd.f32 %v65, %v312
  %v314 = vpop.f32.mrf.mxu0
  %v315 = vadd.f32 %v69, %v314
  %316 = vmatprep.mubr.f32.mxu0 0.0
  %317 = vmatmul.mubr.f32.gmra.mxu0 %v132
  %v318 = vpop.f32.mrf.mxu0
  %v319 = vadd.f32 %v65, %v318
  %v320 = vpop.f32.mrf.mxu0
  %v321 = vadd.f32 %v69, %v320
  %322 = vmatprep.mubr.f32.mxu0 0.0
  %323 = vmatmul.mubr.f32.gmra.mxu0 %v135
  %v324 = vpop.f32.mrf.mxu0
  %v325 = vadd.f32 %v65, %v324
  %v326 = vpop.f32.mrf.mxu0
  %v327 = vadd.f32 %v69, %v326
  %328 = vmatprep.mubr.f32.mxu0 0.0
  %329 = vmatmul.mubr.f32.gmra.mxu0 %v138
  %v330 = vpop.f32.mrf.mxu0
  %v331 = vadd.f32 %v65, %v330
  %v332 = vpop.f32.mrf.mxu0
  %v333 = vadd.f32 %v69, %v332
  %334 = vmatprep.mubr.f32.mxu0 0.0
  %335 = vmatmul.mubr.f32.gmra.mxu0 %v141
  %v336 = vpop.f32.mrf.mxu0
  %v337 = vadd.f32 %v65, %v336
  %v338 = vpop.f32.mrf.mxu0
  %v339 = vadd.f32 %v69, %v338
  %340 = vdwg.mxu0
  %341 = vmatprep.subr.mxu0 0.0
  %342 = vmatpush1.msra.mxu0 0.0
  %343 = vmatprep.subr.mxu0 0.0
  %344 = vmatpush1.msra.mxu0 0.0
  %345 = vmatprep.subr.mxu0 0.0
  %346 = vmatpush1.msra.mxu0 0.0
  %347 = vmatprep.subr.mxu0 0.0
  %348 = vmatpush1.msra.mxu0 0.0
  %349 = vmatprep.subr.mxu0 0.0
  %350 = vmatpush1.msra.mxu0 0.0
  %351 = vmatprep.subr.mxu0 0.0
  %352 = vmatpush1.msra.mxu0 0.0
  %353 = vmatprep.subr.mxu0 0.0
  %354 = vmatpush1.msra.mxu0 0.0
  %355 = vmatprep.subr.mxu0 0.0
  %356 = vmatpush1.msra.mxu0 0.0
  %357 = vmatprep.subr.mxu0 0.0
  %358 = vmatpush1.msra.mxu0 0.0
  %359 = vmatprep.subr.mxu0 0.0
  %360 = vmatpush1.msra.mxu0 0.0
  %361 = vmatprep.subr.mxu0 0.0
  %362 = vmatpush1.msra.mxu0 0.0
  %363 = vmatprep.subr.mxu0 %v154
  %364 = vmatpush1.msra.mxu0 %v151
  %365 = vmatprep.subr.mxu0 %v55
  %366 = vmatpush1.msra.mxu0 %v54
  %367 = vmatprep.subr.mxu0 %v51
  %368 = vmatpush1.msra.mxu0 %v50
  %369 = vmatprep.subr.mxu0 %v47
  %370 = vmatpush1.msra.mxu0 %v46
  %371 = vmatprep.subr.mxu0 %v43
  %372 = vmatpush1.msra.mxu0 %v42
  %373 = vmatprep.subr.mxu0 0.0
  %374 = vmatpush2.msra.mxu0 0.0
  %375 = vmatprep.subr.mxu0 0.0
  %376 = vmatpush2.msra.mxu0 0.0
  %377 = vmatprep.subr.mxu0 0.0
  %378 = vmatpush2.msra.mxu0 0.0
  %379 = vmatprep.subr.mxu0 0.0
  %380 = vmatpush2.msra.mxu0 0.0
  %381 = vmatprep.subr.mxu0 0.0
  %382 = vmatpush2.msra.mxu0 0.0
  %383 = vmatprep.subr.mxu0 0.0
  %384 = vmatpush2.msra.mxu0 0.0
  %385 = vmatprep.subr.mxu0 0.0
  %386 = vmatpush2.msra.mxu0 0.0
  %387 = vmatprep.subr.mxu0 0.0
  %388 = vmatpush2.msra.mxu0 0.0
  %389 = vmatprep.subr.mxu0 0.0
  %390 = vmatpush2.msra.mxu0 0.0
  %391 = vmatprep.subr.mxu0 0.0
  %392 = vmatpush2.msra.mxu0 0.0
  %393 = vmatprep.subr.mxu0 0.0
  %394 = vmatpush2.msra.mxu0 0.0
  %395 = vmatprep.subr.mxu0 0.0
  %396 = vmatpush2.msra.mxu0 0.0
  %397 = vmatprep.subr.mxu0 0.0
  %398 = vmatpush2.msra.mxu0 0.0
  %399 = vmatprep.subr.mxu0 0.0
  %400 = vmatpush2.msra.mxu0 0.0
  %401 = vmatprep.subr.mxu0 0.0
  %402 = vmatpush2.msra.mxu0 0.0
  %403 = vmatprep.subr.mxu0 0.0
  %404 = vmatpush2.msra.mxu0 0.0
  %405 = vmatprep.mubr.f32.mxu0 0.0
  %406 = vmatmul.mubr.f32.gmra.mxu0 %v84
  %v407 = vpop.f32.mrf.mxu0
  %v408 = vadd.f32 %v73, %v407
  %v409 = vpop.f32.mrf.mxu0
  %v410 = vadd.f32 %v77, %v409
  %411 = vmatprep.mubr.f32.mxu0 0.0
  %412 = vmatmul.mubr.f32.gmra.mxu0 %v87
  %v413 = vpop.f32.mrf.mxu0
  %v414 = vadd.f32 %v73, %v413
  %v415 = vpop.f32.mrf.mxu0
  %v416 = vadd.f32 %v77, %v415
  %417 = vmatprep.mubr.f32.mxu0 0.0
  %418 = vmatmul.mubr.f32.gmra.mxu0 %v90
  %v419 = vpop.f32.mrf.mxu0
  %v420 = vadd.f32 %v73, %v419
  %v421 = vpop.f32.mrf.mxu0
  %v422 = vadd.f32 %v77, %v421
  %423 = vmatprep.mubr.f32.mxu0 0.0
  %424 = vmatmul.mubr.f32.gmra.mxu0 %v93
  %v425 = vpop.f32.mrf.mxu0
  %v426 = vadd.f32 %v73, %v425
  %v427 = vpop.f32.mrf.mxu0
  %v428 = vadd.f32 %v77, %v427
  %429 = vmatprep.mubr.f32.mxu0 0.0
  %430 = vmatmul.mubr.f32.gmra.mxu0 %v96
  %v431 = vpop.f32.mrf.mxu0
  %v432 = vadd.f32 %v73, %v431
  %v433 = vpop.f32.mrf.mxu0
  %v434 = vadd.f32 %v77, %v433
  %435 = vmatprep.mubr.f32.mxu0 0.0
  %436 = vmatmul.mubr.f32.gmra.mxu0 %v99
  %v437 = vpop.f32.mrf.mxu0
  %v438 = vadd.f32 %v73, %v437
  %v439 = vpop.f32.mrf.mxu0
  %v440 = vadd.f32 %v77, %v439
  %441 = vmatprep.mubr.f32.mxu0 0.0
  %442 = vmatmul.mubr.f32.gmra.mxu0 %v102
  %v443 = vpop.f32.mrf.mxu0
  %v444 = vadd.f32 %v73, %v443
  %v445 = vpop.f32.mrf.mxu0
  %v446 = vadd.f32 %v77, %v445
  %447 = vmatprep.mubr.f32.mxu0 0.0
  %448 = vmatmul.mubr.f32.gmra.mxu0 %v105
  %v449 = vpop.f32.mrf.mxu0
  %v450 = vadd.f32 %v73, %v449
  %v451 = vpop.f32.mrf.mxu0
  %v452 = vadd.f32 %v77, %v451
  %453 = vmatprep.mubr.f32.mxu0 0.0
  %454 = vmatmul.mubr.f32.gmra.mxu0 %v108
  %v455 = vpop.f32.mrf.mxu0
  %v456 = vadd.f32 %v73, %v455
  %v457 = vpop.f32.mrf.mxu0
  %v458 = vadd.f32 %v77, %v457
  %459 = vmatprep.mubr.f32.mxu0 0.0
  %460 = vmatmul.mubr.f32.gmra.mxu0 %v111
  %v461 = vpop.f32.mrf.mxu0
  %v462 = vadd.f32 %v73, %v461
  %v463 = vpop.f32.mrf.mxu0
  %v464 = vadd.f32 %v77, %v463
  %465 = vmatprep.mubr.f32.mxu0 0.0
  %466 = vmatmul.mubr.f32.gmra.mxu0 %v114
  %v467 = vpop.f32.mrf.mxu0
  %v468 = vadd.f32 %v73, %v467
  %v469 = vpop.f32.mrf.mxu0
  %v470 = vadd.f32 %v77, %v469
  %471 = vmatprep.mubr.f32.mxu0 0.0
  %472 = vmatmul.mubr.f32.gmra.mxu0 %v117
  %v473 = vpop.f32.mrf.mxu0
  %v474 = vadd.f32 %v73, %v473
  %v475 = vpop.f32.mrf.mxu0
  %v476 = vadd.f32 %v77, %v475
  %477 = vmatprep.mubr.f32.mxu0 0.0
  %478 = vmatmul.mubr.f32.gmra.mxu0 %v120
  %v479 = vpop.f32.mrf.mxu0
  %v480 = vadd.f32 %v73, %v479
  %v481 = vpop.f32.mrf.mxu0
  %v482 = vadd.f32 %v77, %v481
  %483 = vmatprep.mubr.f32.mxu0 0.0
  %484 = vmatmul.mubr.f32.gmra.mxu0 %v123
  %v485 = vpop.f32.mrf.mxu0
  %v486 = vadd.f32 %v73, %v485
  %v487 = vpop.f32.mrf.mxu0
  %v488 = vadd.f32 %v77, %v487
  %489 = vmatprep.mubr.f32.mxu0 0.0
  %490 = vmatmul.mubr.f32.gmra.mxu0 %v126
  %v491 = vpop.f32.mrf.mxu0
  %v492 = vadd.f32 %v73, %v491
  %v493 = vpop.f32.mrf.mxu0
  %v494 = vadd.f32 %v77, %v493
  %495 = vmatprep.mubr.f32.mxu0 0.0
  %496 = vmatmul.mubr.f32.gmra.mxu0 %v129
  %v497 = vpop.f32.mrf.mxu0
  %v498 = vadd.f32 %v73, %v497
  %v499 = vpop.f32.mrf.mxu0
  %v500 = vadd.f32 %v77, %v499
  %501 = vmatprep.mubr.f32.mxu0 0.0
  %502 = vmatmul.mubr.f32.gmra.mxu0 %v132
  %v503 = vpop.f32.mrf.mxu0
  %v504 = vadd.f32 %v73, %v503
  %v505 = vpop.f32.mrf.mxu0
  %v506 = vadd.f32 %v77, %v505
  %507 = vmatprep.mubr.f32.mxu0 0.0
  %508 = vmatmul.mubr.f32.gmra.mxu0 %v135
  %v509 = vpop.f32.mrf.mxu0
  %v510 = vadd.f32 %v73, %v509
  %v511 = vpop.f32.mrf.mxu0
  %v512 = vadd.f32 %v77, %v511
  %513 = vmatprep.mubr.f32.mxu0 0.0
  %514 = vmatmul.mubr.f32.gmra.mxu0 %v138
  %v515 = vpop.f32.mrf.mxu0
  %v516 = vadd.f32 %v73, %v515
  %v517 = vpop.f32.mrf.mxu0
  %v518 = vadd.f32 %v77, %v517
  %519 = vmatprep.mubr.f32.mxu0 0.0
  %520 = vmatmul.mubr.f32.gmra.mxu0 %v141
  %v521 = vpop.f32.mrf.mxu0
  %v522 = vadd.f32 %v73, %v521
  %v523 = vpop.f32.mrf.mxu0
  %v524 = vadd.f32 %v77, %v523
  %525 = vdwg.mxu0
  %526 = vst [vmem:[#allocation2] sm:$0xff] %v223
  %527 = vst [vmem:[#allocation2 + $0x8] sm:$0xff] %v225
  %528 = vst [vmem:[#allocation2 + $0x10] sm:$0xff] %v408
  %529 = vst [vmem:[#allocation2 + $0x18] sm:$0xff] %v410
  %530 = vst [vmem:[#allocation2 + $0x20] sm:$0xff] %v229
  %531 = vst [vmem:[#allocation2 + $0x28] sm:$0xff] %v231
  %532 = vst [vmem:[#allocation2 + $0x30] sm:$0xff] %v414
  %533 = vst [vmem:[#allocation2 + $0x38] sm:$0xff] %v416
  %534 = vst [vmem:[#allocation2 + $0x40] sm:$0xff] %v235
  %535 = vst [vmem:[#allocation2 + $0x48] sm:$0xff] %v237
  %536 = vst [vmem:[#allocation2 + $0x50] sm:$0xff] %v420
  %537 = vst [vmem:[#allocation2 + $0x58] sm:$0xff] %v422
  %538 = vst [vmem:[#allocation2 + $0x60] sm:$0xff] %v241
  %539 = vst [vmem:[#allocation2 + $0x68] sm:$0xff] %v243
  %540 = vst [vmem:[#allocation2 + $0x70] sm:$0xff] %v426
  %541 = vst [vmem:[#allocation2 + $0x78] sm:$0xff] %v428
  %542 = vst [vmem:[#allocation2 + $0x80] sm:$0xff] %v247
  %543 = vst [vmem:[#allocation2 + $0x88] sm:$0xff] %v249
  %544 = vst [vmem:[#allocation2 + $0x90] sm:$0xff] %v432
  %545 = vst [vmem:[#allocation2 + $0x98] sm:$0xff] %v434
  %546 = vst [vmem:[#allocation2 + $0xa0] sm:$0xff] %v253
  %547 = vst [vmem:[#allocation2 + $0xa8] sm:$0xff] %v255
  %548 = vst [vmem:[#allocation2 + $0xb0] sm:$0xff] %v438
  %549 = vst [vmem:[#allocation2 + $0xb8] sm:$0xff] %v440
  %550 = vst [vmem:[#allocation2 + $0xc0] sm:$0xff] %v259
  %551 = vst [vmem:[#allocation2 + $0xc8] sm:$0xff] %v261
  %552 = vst [vmem:[#allocation2 + $0xd0] sm:$0xff] %v444
  %553 = vst [vmem:[#allocation2 + $0xd8] sm:$0xff] %v446
  %554 = vst [vmem:[#allocation2 + $0xe0] sm:$0xff] %v265
  %555 = vst [vmem:[#allocation2 + $0xe8] sm:$0xff] %v267
  %556 = vst [vmem:[#allocation2 + $0xf0] sm:$0xff] %v450
  %557 = vst [vmem:[#allocation2 + $0xf8] sm:$0xff] %v452
  %558 = vst [vmem:[#allocation2 + $0x100] sm:$0xff] %v271
  %559 = vst [vmem:[#allocation2 + $0x108] sm:$0xff] %v273
  %560 = vst [vmem:[#allocation2 + $0x110] sm:$0xff] %v456
  %561 = vst [vmem:[#allocation2 + $0x118] sm:$0xff] %v458
  %562 = vst [vmem:[#allocation2 + $0x120] sm:$0xff] %v277
  %563 = vst [vmem:[#allocation2 + $0x128] sm:$0xff] %v279
  %564 = vst [vmem:[#allocation2 + $0x130] sm:$0xff] %v462
  %565 = vst [vmem:[#allocation2 + $0x138] sm:$0xff] %v464
  %566 = vst [vmem:[#allocation2 + $0x140] sm:$0xff] %v283
  %567 = vst [vmem:[#allocation2 + $0x148] sm:$0xff] %v285
  %568 = vst [vmem:[#allocation2 + $0x150] sm:$0xff] %v468
  %569 = vst [vmem:[#allocation2 + $0x158] sm:$0xff] %v470
  %570 = vst [vmem:[#allocation2 + $0x160] sm:$0xff] %v289
  %571 = vst [vmem:[#allocation2 + $0x168] sm:$0xff] %v291
  %572 = vst [vmem:[#allocation2 + $0x170] sm:$0xff] %v474
  %573 = vst [vmem:[#allocation2 + $0x178] sm:$0xff] %v476
  %574 = vst [vmem:[#allocation2 + $0x180] sm:$0xff] %v295
  %575 = vst [vmem:[#allocation2 + $0x188] sm:$0xff] %v297
  %576 = vst [vmem:[#allocation2 + $0x190] sm:$0xff] %v480
  %577 = vst [vmem:[#allocation2 + $0x198] sm:$0xff] %v482
  %578 = vst [vmem:[#allocation2 + $0x1a0] sm:$0xff] %v301
  %579 = vst [vmem:[#allocation2 + $0x1a8] sm:$0xff] %v303
  %580 = vst [vmem:[#allocation2 + $0x1b0] sm:$0xff] %v486
  %581 = vst [vmem:[#allocation2 + $0x1b8] sm:$0xff] %v488
  %582 = vst [vmem:[#allocation2 + $0x1c0] sm:$0xff] %v307
  %583 = vst [vmem:[#allocation2 + $0x1c8] sm:$0xff] %v309
  %584 = vst [vmem:[#allocation2 + $0x1d0] sm:$0xff] %v492
  %585 = vst [vmem:[#allocation2 + $0x1d8] sm:$0xff] %v494
  %586 = vst [vmem:[#allocation2 + $0x1e0] sm:$0xff] %v313
  %587 = vst [vmem:[#allocation2 + $0x1e8] sm:$0xff] %v315
  %588 = vst [vmem:[#allocation2 + $0x1f0] sm:$0xff] %v498
  %589 = vst [vmem:[#allocation2 + $0x1f8] sm:$0xff] %v500
  %590 = vst [vmem:[#allocation2 + $0x200] sm:$0xff] %v319
  %591 = vst [vmem:[#allocation2 + $0x208] sm:$0xff] %v321
  %592 = vst [vmem:[#allocation2 + $0x210] sm:$0xff] %v504
  %593 = vst [vmem:[#allocation2 + $0x218] sm:$0xff] %v506
  %594 = vst [vmem:[#allocation2 + $0x220] sm:$0xff] %v325
  %595 = vst [vmem:[#allocation2 + $0x228] sm:$0xff] %v327
  %596 = vst [vmem:[#allocation2 + $0x230] sm:$0xff] %v510
  %597 = vst [vmem:[#allocation2 + $0x238] sm:$0xff] %v512
  %598 = vst [vmem:[#allocation2 + $0x240] sm:$0xff] %v331
  %599 = vst [vmem:[#allocation2 + $0x248] sm:$0xff] %v333
  %600 = vst [vmem:[#allocation2 + $0x250] sm:$0xff] %v516
  %601 = vst [vmem:[#allocation2 + $0x258] sm:$0xff] %v518
  %602 = vst [vmem:[#allocation2 + $0x260] sm:$0xff] %v337
  %603 = vst [vmem:[#allocation2 + $0x268] sm:$0xff] %v339
  %604 = vst [vmem:[#allocation2 + $0x270] sm:$0xff] %v522
  %605 = vst [vmem:[#allocation2 + $0x278] sm:$0xff] %v524
  %s606 = smul.u32 0, 4
  %s607 = smul.addr %s606, 8
  %s608 = scalar_lea.vmem [#allocation2], %s607
  %v609 = vld [vmem:[%s608] sm:$0xff]
  %v610 = vld [vmem:[%s608 + $0x8] sm:$0xff]
  %v611 = vld [vmem:[%s608 + $0x10] sm:$0xff]
  %v612 = vld [vmem:[%s608 + $0x18] sm:$0xff]
  %v613 = vld [vmem:[%s2] sm:$0xff]
  %v614 = vld [vmem:[%s2 + $0x8] sm:$0xff]
  %v615 = vld [vmem:[%s2 + $0x10] sm:$0xff]
  %v616 = vld [vmem:[%s2 + $0x18] sm:$0xff]
  %v617 = vld [vmem:[%s2 + $0x20] sm:$0xff]
  %v618 = vld [vmem:[%s2 + $0x28] sm:$0xff]
  %v619 = vld [vmem:[%s2 + $0x30] sm:$0xff]
  %v620 = vld [vmem:[%s2 + $0x38] sm:$0xff]
  %v621 = vld [vmem:[%s2 + $0x40] sm:$0xff]
  %v622 = vld [vmem:[%s2 + $0x48] sm:$0xff]
  %v623 = vld [vmem:[%s2 + $0x50] sm:$0xff]
  %v624 = vld [vmem:[%s2 + $0x58] sm:$0xff]
  %v625 = vld [vmem:[%s2 + $0x60] sm:$0xff]
  %v626 = vld [vmem:[%s2 + $0x68] sm:$0xff]
  %v627 = vld [vmem:[%s2 + $0x70] sm:$0xff]
  %v628 = vld [vmem:[%s2 + $0x78] sm:$0xff]
  %v629 = vld [vmem:[%s2 + $0x80] sm:$0xff]
  %v630 = vld [vmem:[%s2 + $0x88] sm:$0xff]
  %v631 = vld [vmem:[%s2 + $0x90] sm:$0xff]
  %v632 = vld [vmem:[%s2 + $0x98] sm:$0xff]
  %v633 = vld [vmem:[%s2 + $0xa0] sm:$0xff]
  %v634 = vld [vmem:[%s2 + $0xa8] sm:$0xff]
  %v635 = vld [vmem:[%s2 + $0xb0] sm:$0xff]
  %v636 = vld [vmem:[%s2 + $0xb8] sm:$0xff]
  %v637 = vld [vmem:[%s2 + $0xc0] sm:$0xff]
  %v638 = vld [vmem:[%s2 + $0xc8] sm:$0xff]
  %v639 = vld [vmem:[%s2 + $0xd0] sm:$0xff]
  %v640 = vld [vmem:[%s2 + $0xd8] sm:$0xff]
  %v641 = vld [vmem:[%s2 + $0xe0] sm:$0xff]
  %v642 = vld [vmem:[%s2 + $0xe8] sm:$0xff]
  %v643 = vld [vmem:[%s2 + $0xf0] sm:$0xff]
  %v644 = vld [vmem:[%s2 + $0xf8] sm:$0xff]
  %v645 = vld [vmem:[%s2 + $0x100] sm:$0xff]
  %v646 = vld [vmem:[%s2 + $0x108] sm:$0xff]
  %v647 = vld [vmem:[%s2 + $0x110] sm:$0xff]
  %v648 = vld [vmem:[%s2 + $0x118] sm:$0xff]
  %v649 = vld [vmem:[%s2 + $0x120] sm:$0xff]
  %v650 = vld [vmem:[%s2 + $0x128] sm:$0xff]
  %v651 = vld [vmem:[%s2 + $0x130] sm:$0xff]
  %v652 = vld [vmem:[%s2 + $0x138] sm:$0xff]
  %v653 = vld [vmem:[%s2 + $0x140] sm:$0xff]
  %v654 = vld [vmem:[%s2 + $0x148] sm:$0xff]
  %v655 = vld [vmem:[%s2 + $0x150] sm:$0xff]
  %v656 = vld [vmem:[%s2 + $0x158] sm:$0xff]
  %v657 = vld [vmem:[%s2 + $0x160] sm:$0xff]
  %v658 = vld [vmem:[%s2 + $0x168] sm:$0xff]
  %v659 = vld [vmem:[%s2 + $0x170] sm:$0xff]
  %v660 = vld [vmem:[%s2 + $0x178] sm:$0xff]
  %v661 = vld [vmem:[%s2 + $0x180] sm:$0xff]
  %v662 = vld [vmem:[%s2 + $0x188] sm:$0xff]
  %v663 = vld [vmem:[%s2 + $0x190] sm:$0xff]
  %v664 = vld [vmem:[%s2 + $0x198] sm:$0xff]
  %v665 = vld [vmem:[%s2 + $0x1a0] sm:$0xff]
  %v666 = vld [vmem:[%s2 + $0x1a8] sm:$0xff]
  %v667 = vld [vmem:[%s2 + $0x1b0] sm:$0xff]
  %v668 = vld [vmem:[%s2 + $0x1b8] sm:$0xff]
  %v669 = vld [vmem:[%s2 + $0x1c0] sm:$0xff]
  %v670 = vld [vmem:[%s2 + $0x1c8] sm:$0xff]
  %v671 = vld [vmem:[%s2 + $0x1d0] sm:$0xff]
  %v672 = vld [vmem:[%s2 + $0x1d8] sm:$0xff]
  %v673 = vld [vmem:[%s2 + $0x1e0] sm:$0xff]
  %v674 = vld [vmem:[%s2 + $0x1e8] sm:$0xff]
  %v675 = vld [vmem:[%s2 + $0x1f0] sm:$0xff]
  %v676 = vld [vmem:[%s2 + $0x1f8] sm:$0xff]
  %677 = vmatprep.subr.mxu0 %v674
  %678 = vmatpush1.msra.mxu0 %v673
  %679 = vmatprep.subr.mxu0 %v670
  %680 = vmatpush1.msra.mxu0 %v669
  %681 = vmatprep.subr.mxu0 %v666
  %682 = vmatpush1.msra.mxu0 %v665
  %683 = vmatprep.subr.mxu0 %v662
  %684 = vmatpush1.msra.mxu0 %v661
  %685 = vmatprep.subr.mxu0 %v658
  %686 = vmatpush1.msra.mxu0 %v657
  %687 = vmatprep.subr.mxu0 %v654
  %688 = vmatpush1.msra.mxu0 %v653
  %689 = vmatprep.subr.mxu0 %v650
  %690 = vmatpush1.msra.mxu0 %v649
  %691 = vmatprep.subr.mxu0 %v646
  %692 = vmatpush1.msra.mxu0 %v645
  %693 = vmatprep.subr.mxu0 %v642
  %694 = vmatpush1.msra.mxu0 %v641
  %695 = vmatprep.subr.mxu0 %v638
  %696 = vmatpush1.msra.mxu0 %v637
  %697 = vmatprep.subr.mxu0 %v634
  %698 = vmatpush1.msra.mxu0 %v633
  %699 = vmatprep.subr.mxu0 %v630
  %700 = vmatpush1.msra.mxu0 %v629
  %701 = vmatprep.subr.mxu0 %v626
  %702 = vmatpush1.msra.mxu0 %v625
  %703 = vmatprep.subr.mxu0 %v622
  %704 = vmatpush1.msra.mxu0 %v621
  %705 = vmatprep.subr.mxu0 %v618
  %706 = vmatpush1.msra.mxu0 %v617
  %707 = vmatprep.subr.mxu0 %v614
  %708 = vmatpush1.msra.mxu0 %v613
  %709 = vmatprep.subr.mxu0 0.0
  %710 = vmatpush2.msra.mxu0 0.0
  %711 = vmatprep.subr.mxu0 0.0
  %712 = vmatpush2.msra.mxu0 0.0
  %713 = vmatprep.subr.mxu0 0.0
  %714 = vmatpush2.msra.mxu0 0.0
  %715 = vmatprep.subr.mxu0 0.0
  %716 = vmatpush2.msra.mxu0 0.0
  %717 = vmatprep.subr.mxu0 0.0
  %718 = vmatpush2.msra.mxu0 0.0
  %719 = vmatprep.subr.mxu0 0.0
  %720 = vmatpush2.msra.mxu0 0.0
  %721 = vmatprep.subr.mxu0 0.0
  %722 = vmatpush2.msra.mxu0 0.0
  %723 = vmatprep.subr.mxu0 0.0
  %724 = vmatpush2.msra.mxu0 0.0
  %725 = vmatprep.subr.mxu0 0.0
  %726 = vmatpush2.msra.mxu0 0.0
  %727 = vmatprep.subr.mxu0 0.0
  %728 = vmatpush2.msra.mxu0 0.0
  %729 = vmatprep.subr.mxu0 0.0
  %730 = vmatpush2.msra.mxu0 0.0
  %731 = vmatprep.subr.mxu0 0.0
  %732 = vmatpush2.msra.mxu0 0.0
  %733 = vmatprep.subr.mxu0 0.0
  %734 = vmatpush2.msra.mxu0 0.0
  %735 = vmatprep.subr.mxu0 0.0
  %736 = vmatpush2.msra.mxu0 0.0
  %737 = vmatprep.subr.mxu0 0.0
  %738 = vmatpush2.msra.mxu0 0.0
  %739 = vmatprep.subr.mxu0 0.0
  %740 = vmatpush2.msra.mxu0 0.0
  %741 = vmatprep.mubr.f32.mxu0 0.0
  %742 = vmatmul.mubr.f32.gmra.mxu0 0.0
  %v743 = vpop.f32.mrf.mxu0
  %v744 = vadd.f32 0.0, %v743
  %v745 = vpop.f32.mrf.mxu0
  %v746 = vadd.f32 0.0, %v745
  %747 = vdwg.mxu0
  %748 = vmatprep.subr.mxu0 %v676
  %749 = vmatpush1.msra.mxu0 %v675
  %750 = vmatprep.subr.mxu0 %v672
  %751 = vmatpush1.msra.mxu0 %v671
  %752 = vmatprep.subr.mxu0 %v668
  %753 = vmatpush1.msra.mxu0 %v667
  %754 = vmatprep.subr.mxu0 %v664
  %755 = vmatpush1.msra.mxu0 %v663
  %756 = vmatprep.subr.mxu0 %v660
  %757 = vmatpush1.msra.mxu0 %v659
  %758 = vmatprep.subr.mxu0 %v656
  %759 = vmatpush1.msra.mxu0 %v655
  %760 = vmatprep.subr.mxu0 %v652
  %761 = vmatpush1.msra.mxu0 %v651
  %762 = vmatprep.subr.mxu0 %v648
  %763 = vmatpush1.msra.mxu0 %v647
  %764 = vmatprep.subr.mxu0 %v644
  %765 = vmatpush1.msra.mxu0 %v643
  %766 = vmatprep.subr.mxu0 %v640
  %767 = vmatpush1.msra.mxu0 %v639
  %768 = vmatprep.subr.mxu0 %v636
  %769 = vmatpush1.msra.mxu0 %v635
  %770 = vmatprep.subr.mxu0 %v632
  %771 = vmatpush1.msra.mxu0 %v631
  %772 = vmatprep.subr.mxu0 %v628
  %773 = vmatpush1.msra.mxu0 %v627
  %774 = vmatprep.subr.mxu0 %v624
  %775 = vmatpush1.msra.mxu0 %v623
  %776 = vmatprep.subr.mxu0 %v620
  %777 = vmatpush1.msra.mxu0 %v619
  %778 = vmatprep.subr.mxu0 %v616
  %779 = vmatpush1.msra.mxu0 %v615
  %780 = vmatprep.subr.mxu0 0.0
  %781 = vmatpush2.msra.mxu0 0.0
  %782 = vmatprep.subr.mxu0 0.0
  %783 = vmatpush2.msra.mxu0 0.0
  %784 = vmatprep.subr.mxu0 0.0
  %785 = vmatpush2.msra.mxu0 0.0
  %786 = vmatprep.subr.mxu0 0.0
  %787 = vmatpush2.msra.mxu0 0.0
  %788 = vmatprep.subr.mxu0 0.0
  %789 = vmatpush2.msra.mxu0 0.0
  %790 = vmatprep.subr.mxu0 0.0
  %791 = vmatpush2.msra.mxu0 0.0
  %792 = vmatprep.subr.mxu0 0.0
  %793 = vmatpush2.msra.mxu0 0.0
  %794 = vmatprep.subr.mxu0 0.0
  %795 = vmatpush2.msra.mxu0 0.0
  %796 = vmatprep.subr.mxu0 0.0
  %797 = vmatpush2.msra.mxu0 0.0
  %798 = vmatprep.subr.mxu0 0.0
  %799 = vmatpush2.msra.mxu0 0.0
  %800 = vmatprep.subr.mxu0 0.0
  %801 = vmatpush2.msra.mxu0 0.0
  %802 = vmatprep.subr.mxu0 0.0
  %803 = vmatpush2.msra.mxu0 0.0
  %804 = vmatprep.subr.mxu0 0.0
  %805 = vmatpush2.msra.mxu0 0.0
  %806 = vmatprep.subr.mxu0 0.0
  %807 = vmatpush2.msra.mxu0 0.0
  %808 = vmatprep.subr.mxu0 0.0
  %809 = vmatpush2.msra.mxu0 0.0
  %810 = vmatprep.subr.mxu0 0.0
  %811 = vmatpush2.msra.mxu0 0.0
  %812 = vmatprep.mubr.f32.mxu0 0.0
  %813 = vmatmul.mubr.f32.gmra.mxu0 0.0
  %v814 = vpop.f32.mrf.mxu0
  %v815 = vadd.f32 0.0, %v814
  %v816 = vpop.f32.mrf.mxu0
  %v817 = vadd.f32 0.0, %v816
  %818 = vdwg.mxu0
  %v819 = vadd.f32 %v609, %v744
  %v820 = vadd.f32 %v610, %v746
  %v821 = vadd.f32 %v611, %v815
  %v822 = vadd.f32 %v612, %v817
  %v823 = vxor.u32 %v819, 2147483648
  %v824 = vmul.f32 %v823, 1.442695
  %v825 = vpow.pop %v824
  %v826 = vadd.f32 %v825, 1.0
  %v827 = vrcp.pop %v826
  %v828 = vmul.f32 1.0, %v827
  %v829 = vxor.u32 %v820, 2147483648
  %v830 = vmul.f32 %v829, 1.442695
  %v831 = vpow.pop %v830
  %v832 = vadd.f32 %v831, 1.0
  %v833 = vrcp.pop %v832
  %v834 = vmul.f32 1.0, %v833
  %v835 = vtanh.pop %v821
  %v836 = vxor.u32 %v822, 2147483648
  %v837 = vmul.f32 %v836, 1.442695
  %v838 = vpow.pop %v837
  %v839 = vadd.f32 %v838, 1.0
  %v840 = vrcp.pop %v839
  %v841 = vmul.f32 1.0, %v840
  %v842 = vmul.f32 %v834, 0.0
  %v843 = vmul.f32 %v828, %v835
  %v844 = vadd.f32 %v842, %v843
  %v845 = vtanh.pop %v844
  %v846 = vmul.f32 %v841, %v845
  %847 = vst [vmem:[%s4] sm:$0xff] %v846
  %s848 = smul.u32 1, 4
  %s849 = smul.addr %s848, 8
  %s850 = scalar_lea.vmem [#allocation2], %s849
  %v851 = vld [vmem:[%s850] sm:$0xff]
  %v852 = vld [vmem:[%s850 + $0x8] sm:$0xff]
  %v853 = vld [vmem:[%s850 + $0x10] sm:$0xff]
  %v854 = vld [vmem:[%s850 + $0x18] sm:$0xff]
  %v855 = vld [vmem:[%s2] sm:$0xff]
  %v856 = vld [vmem:[%s2 + $0x8] sm:$0xff]
  %v857 = vld [vmem:[%s2 + $0x10] sm:$0xff]
  %v858 = vld [vmem:[%s2 + $0x18] sm:$0xff]
  %v859 = vld [vmem:[%s2 + $0x20] sm:$0xff]
  %v860 = vld [vmem:[%s2 + $0x28] sm:$0xff]
  %v861 = vld [vmem:[%s2 + $0x30] sm:$0xff]
  %v862 = vld [vmem:[%s2 + $0x38] sm:$0xff]
  %v863 = vld [vmem:[%s2 + $0x40] sm:$0xff]
  %v864 = vld [vmem:[%s2 + $0x48] sm:$0xff]
  %v865 = vld [vmem:[%s2 + $0x50] sm:$0xff]
  %v866 = vld [vmem:[%s2 + $0x58] sm:$0xff]
  %v867 = vld [vmem:[%s2 + $0x60] sm:$0xff]
  %v868 = vld [vmem:[%s2 + $0x68] sm:$0xff]
  %v869 = vld [vmem:[%s2 + $0x70] sm:$0xff]
  %v870 = vld [vmem:[%s2 + $0x78] sm:$0xff]
  %v871 = vld [vmem:[%s2 + $0x80] sm:$0xff]
  %v872 = vld [vmem:[%s2 + $0x88] sm:$0xff]
  %v873 = vld [vmem:[%s2 + $0x90] sm:$0xff]
  %v874 = vld [vmem:[%s2 + $0x98] sm:$0xff]
  %v875 = vld [vmem:[%s2 + $0xa0] sm:$0xff]
  %v876 = vld [vmem:[%s2 + $0xa8] sm:$0xff]
  %v877 = vld [vmem:[%s2 + $0xb0] sm:$0xff]
  %v878 = vld [vmem:[%s2 + $0xb8] sm:$0xff]
  %v879 = vld [vmem:[%s2 + $0xc0] sm:$0xff]
  %v880 = vld [vmem:[%s2 + $0xc8] sm:$0xff]
  %v881 = vld [vmem:[%s2 + $0xd0] sm:$0xff]
  %v882 = vld [vmem:[%s2 + $0xd8] sm:$0xff]
  %v883 = vld [vmem:[%s2 + $0xe0] sm:$0xff]
  %v884 = vld [vmem:[%s2 + $0xe8] sm:$0xff]
  %v885 = vld [vmem:[%s2 + $0xf0] sm:$0xff]
  %v886 = vld [vmem:[%s2 + $0xf8] sm:$0xff]
  %v887 = vld [vmem:[%s2 + $0x100] sm:$0xff]
  %v888 = vld [vmem:[%s2 + $0x108] sm:$0xff]
  %v889 = vld [vmem:[%s2 + $0x110] sm:$0xff]
  %v890 = vld [vmem:[%s2 + $0x118] sm:$0xff]
  %v891 = vld [vmem:[%s2 + $0x120] sm:$0xff]
  %v892 = vld [vmem:[%s2 + $0x128] sm:$0xff]
  %v893 = vld [vmem:[%s2 + $0x130] sm:$0xff]
  %v894 = vld [vmem:[%s2 + $0x138] sm:$0xff]
  %v895 = vld [vmem:[%s2 + $0x140] sm:$0xff]
  %v896 = vld [vmem:[%s2 + $0x148] sm:$0xff]
  %v897 = vld [vmem:[%s2 + $0x150] sm:$0xff]
  %v898 = vld [vmem:[%s2 + $0x158] sm:$0xff]
  %v899 = vld [vmem:[%s2 + $0x160] sm:$0xff]
  %v900 = vld [vmem:[%s2 + $0x168] sm:$0xff]
  %v901 = vld [vmem:[%s2 + $0x170] sm:$0xff]
  %v902 = vld [vmem:[%s2 + $0x178] sm:$0xff]
  %v903 = vld [vmem:[%s2 + $0x180] sm:$0xff]
  %v904 = vld [vmem:[%s2 + $0x188] sm:$0xff]
  %v905 = vld [vmem:[%s2 + $0x190] sm:$0xff]
  %v906 = vld [vmem:[%s2 + $0x198] sm:$0xff]
  %v907 = vld [vmem:[%s2 + $0x1a0] sm:$0xff]
  %v908 = vld [vmem:[%s2 + $0x1a8] sm:$0xff]
  %v909 = vld [vmem:[%s2 + $0x1b0] sm:$0xff]
  %v910 = vld [vmem:[%s2 + $0x1b8] sm:$0xff]
  %v911 = vld [vmem:[%s2 + $0x1c0] sm:$0xff]
  %v912 = vld [vmem:[%s2 + $0x1c8] sm:$0xff]
  %v913 = vld [vmem:[%s2 + $0x1d0] sm:$0xff]
  %v914 = vld [vmem:[%s2 + $0x1d8] sm:$0xff]
  %v915 = vld [vmem:[%s2 + $0x1e0] sm:$0xff]
  %v916 = vld [vmem:[%s2 + $0x1e8] sm:$0xff]
  %v917 = vld [vmem:[%s2 + $0x1f0] sm:$0xff]
  %v918 = vld [vmem:[%s2 + $0x1f8] sm:$0xff]
  %919 = vmatprep.subr.mxu0 %v916
  %920 = vmatpush1.msra.mxu0 %v915
  %921 = vmatprep.subr.mxu0 %v912
  %922 = vmatpush1.msra.mxu0 %v911
  %923 = vmatprep.subr.mxu0 %v908
  %924 = vmatpush1.msra.mxu0 %v907
  %925 = vmatprep.subr.mxu0 %v904
  %926 = vmatpush1.msra.mxu0 %v903
  %927 = vmatprep.subr.mxu0 %v900
  %928 = vmatpush1.msra.mxu0 %v899
  %929 = vmatprep.subr.mxu0 %v896
  %930 = vmatpush1.msra.mxu0 %v895
  %931 = vmatprep.subr.mxu0 %v892
  %932 = vmatpush1.msra.mxu0 %v891
  %933 = vmatprep.subr.mxu0 %v888
  %934 = vmatpush1.msra.mxu0 %v887
  %935 = vmatprep.subr.mxu0 %v884
  %936 = vmatpush1.msra.mxu0 %v883
  %937 = vmatprep.subr.mxu0 %v880
  %938 = vmatpush1.msra.mxu0 %v879
  %939 = vmatprep.subr.mxu0 %v876
  %940 = vmatpush1.msra.mxu0 %v875
  %941 = vmatprep.subr.mxu0 %v872
  %942 = vmatpush1.msra.mxu0 %v871
  %943 = vmatprep.subr.mxu0 %v868
  %944 = vmatpush1.msra.mxu0 %v867
  %945 = vmatprep.subr.mxu0 %v864
  %946 = vmatpush1.msra.mxu0 %v863
  %947 = vmatprep.subr.mxu0 %v860
  %948 = vmatpush1.msra.mxu0 %v859
  %949 = vmatprep.subr.mxu0 %v856
  %950 = vmatpush1.msra.mxu0 %v855
  %951 = vmatprep.subr.mxu0 0.0
  %952 = vmatpush2.msra.mxu0 0.0
  %953 = vmatprep.subr.mxu0 0.0
  %954 = vmatpush2.msra.mxu0 0.0
  %955 = vmatprep.subr.mxu0 0.0
  %956 = vmatpush2.msra.mxu0 0.0
  %957 = vmatprep.subr.mxu0 0.0
  %958 = vmatpush2.msra.mxu0 0.0
  %959 = vmatprep.subr.mxu0 0.0
  %960 = vmatpush2.msra.mxu0 0.0
  %961 = vmatprep.subr.mxu0 0.0
  %962 = vmatpush2.msra.mxu0 0.0
  %963 = vmatprep.subr.mxu0 0.0
  %964 = vmatpush2.msra.mxu0 0.0
  %965 = vmatprep.subr.mxu0 0.0
  %966 = vmatpush2.msra.mxu0 0.0
  %967 = vmatprep.subr.mxu0 0.0
  %968 = vmatpush2.msra.mxu0 0.0
  %969 = vmatprep.subr.mxu0 0.0
  %970 = vmatpush2.msra.mxu0 0.0
  %971 = vmatprep.subr.mxu0 0.0
  %972 = vmatpush2.msra.mxu0 0.0
  %973 = vmatprep.subr.mxu0 0.0
  %974 = vmatpush2.msra.mxu0 0.0
  %975 = vmatprep.subr.mxu0 0.0
  %976 = vmatpush2.msra.mxu0 0.0
  %977 = vmatprep.subr.mxu0 0.0
  %978 = vmatpush2.msra.mxu0 0.0
  %979 = vmatprep.subr.mxu0 0.0
  %980 = vmatpush2.msra.mxu0 0.0
  %981 = vmatprep.subr.mxu0 0.0
  %982 = vmatpush2.msra.mxu0 0.0
  %983 = vmatprep.mubr.f32.mxu0 0.0
  %984 = vmatmul.mubr.f32.gmra.mxu0 %v846
  %v985 = vpop.f32.mrf.mxu0
  %v986 = vadd.f32 0.0, %v985
  %v987 = vpop.f32.mrf.mxu0
  %v988 = vadd.f32 0.0, %v987
  %989 = vdwg.mxu0
  %990 = vmatprep.subr.mxu0 %v918
  %991 = vmatpush1.msra.mxu0 %v917
  %992 = vmatprep.subr.mxu0 %v914
  %993 = vmatpush1.msra.mxu0 %v913
  %994 = vmatprep.subr.mxu0 %v910
  %995 = vmatpush1.msra.mxu0 %v909
  %996 = vmatprep.subr.mxu0 %v906
  %997 = vmatpush1.msra.mxu0 %v905
  %998 = vmatprep.subr.mxu0 %v902
  %999 = vmatpush1.msra.mxu0 %v901
  %1000 = vmatprep.subr.mxu0 %v898
  %1001 = vmatpush1.msra.mxu0 %v897
  %1002 = vmatprep.subr.mxu0 %v894
  %1003 = vmatpush1.msra.mxu0 %v893
  %1004 = vmatprep.subr.mxu0 %v890
  %1005 = vmatpush1.msra.mxu0 %v889
  %1006 = vmatprep.subr.mxu0 %v886
  %1007 = vmatpush1.msra.mxu0 %v885
  %1008 = vmatprep.subr.mxu0 %v882
  %1009 = vmatpush1.msra.mxu0 %v881
  %1010 = vmatprep.subr.mxu0 %v878
  %1011 = vmatpush1.msra.mxu0 %v877
  %1012 = vmatprep.subr.mxu0 %v874
  %1013 = vmatpush1.msra.mxu0 %v873
  %1014 = vmatprep.subr.mxu0 %v870
  %1015 = vmatpush1.msra.mxu0 %v869
  %1016 = vmatprep.subr.mxu0 %v866
  %1017 = vmatpush1.msra.mxu0 %v865
  %1018 = vmatprep.subr.mxu0 %v862
  %1019 = vmatpush1.msra.mxu0 %v861
  %1020 = vmatprep.subr.mxu0 %v858
  %1021 = vmatpush1.msra.mxu0 %v857
  %1022 = vmatprep.subr.mxu0 0.0
  %1023 = vmatpush2.msra.mxu0 0.0
  %1024 = vmatprep.subr.mxu0 0.0
  %1025 = vmatpush2.msra.mxu0 0.0
  %1026 = vmatprep.subr.mxu0 0.0
  %1027 = vmatpush2.msra.mxu0 0.0
  %1028 = vmatprep.subr.mxu0 0.0
  %1029 = vmatpush2.msra.mxu0 0.0
  %1030 = vmatprep.subr.mxu0 0.0
  %1031 = vmatpush2.msra.mxu0 0.0
  %1032 = vmatprep.subr.mxu0 0.0
  %1033 = vmatpush2.msra.mxu0 0.0
  %1034 = vmatprep.subr.mxu0 0.0
  %1035 = vmatpush2.msra.mxu0 0.0
  %1036 = vmatprep.subr.mxu0 0.0
  %1037 = vmatpush2.msra.mxu0 0.0
  %1038 = vmatprep.subr.mxu0 0.0
  %1039 = vmatpush2.msra.mxu0 0.0
  %1040 = vmatprep.subr.mxu0 0.0
  %1041 = vmatpush2.msra.mxu0 0.0
  %1042 = vmatprep.subr.mxu0 0.0
  %1043 = vmatpush2.msra.mxu0 0.0
  %1044 = vmatprep.subr.mxu0 0.0
  %1045 = vmatpush2.msra.mxu0 0.0
  %1046 = vmatprep.subr.mxu0 0.0
  %1047 = vmatpush2.msra.mxu0 0.0
  %1048 = vmatprep.subr.mxu0 0.0
  %1049 = vmatpush2.msra.mxu0 0.0
  %1050 = vmatprep.subr.mxu0 0.0
  %1051 = vmatpush2.msra.mxu0 0.0
  %1052 = vmatprep.subr.mxu0 0.0
  %1053 = vmatpush2.msra.mxu0 0.0
  %1054 = vmatprep.mubr.f32.mxu0 0.0
  %1055 = vmatmul.mubr.f32.gmra.mxu0 %v846
  %v1056 = vpop.f32.mrf.mxu0
  %v1057 = vadd.f32 0.0, %v1056
  %v1058 = vpop.f32.mrf.mxu0
  %v1059 = vadd.f32 0.0, %v1058
  %1060 = vdwg.mxu0
  %v1061 = vadd.f32 %v851, %v986
  %v1062 = vadd.f32 %v852, %v988
  %v1063 = vadd.f32 %v853, %v1057
  %v1064 = vadd.f32 %v854, %v1059
  %v1065 = vxor.u32 %v1061, 2147483648
  %v1066 = vmul.f32 %v1065, 1.442695
  %v1067 = vpow.pop %v1066
  %v1068 = vadd.f32 %v1067, 1.0
  %v1069 = vrcp.pop %v1068
  %v1070 = vmul.f32 1.0, %v1069
  %v1071 = vxor.u32 %v1062, 2147483648
  %v1072 = vmul.f32 %v1071, 1.442695
  %v1073 = vpow.pop %v1072
  %v1074 = vadd.f32 %v1073, 1.0
  %v1075 = vrcp.pop %v1074
  %v1076 = vmul.f32 1.0, %v1075
  %v1077 = vtanh.pop %v1063
  %v1078 = vxor.u32 %v1064, 2147483648
  %v1079 = vmul.f32 %v1078, 1.442695
  %v1080 = vpow.pop %v1079
  %v1081 = vadd.f32 %v1080, 1.0
  %v1082 = vrcp.pop %v1081
  %v1083 = vmul.f32 1.0, %v1082
  %v1084 = vmul.f32 %v1076, %v844
  %v1085 = vmul.f32 %v1070, %v1077
  %v1086 = vadd.f32 %v1084, %v1085
  %v1087 = vtanh.pop %v1086
  %v1088 = vmul.f32 %v1083, %v1087
  %s1089 = scalar_lea.vmem %s4, 8
  %1090 = vst [vmem:[%s1089] sm:$0xff] %v1088
  %s1091 = smul.u32 2, 4
  %s1092 = smul.addr %s1091, 8
  %s1093 = scalar_lea.vmem [#allocation2], %s1092
  %v1094 = vld [vmem:[%s1093] sm:$0xff]
  %v1095 = vld [vmem:[%s1093 + $0x8] sm:$0xff]
  %v1096 = vld [vmem:[%s1093 + $0x10] sm:$0xff]
  %v1097 = vld [vmem:[%s1093 + $0x18] sm:$0xff]
  %v1098 = vld [vmem:[%s2] sm:$0xff]
  %v1099 = vld [vmem:[%s2 + $0x8] sm:$0xff]
  %v1100 = vld [vmem:[%s2 + $0x10] sm:$0xff]
  %v1101 = vld [vmem:[%s2 + $0x18] sm:$0xff]
  %v1102 = vld [vmem:[%s2 + $0x20] sm:$0xff]
  %v1103 = vld [vmem:[%s2 + $0x28] sm:$0xff]
  %v1104 = vld [vmem:[%s2 + $0x30] sm:$0xff]
  %v1105 = vld [vmem:[%s2 + $0x38] sm:$0xff]
  %v1106 = vld [vmem:[%s2 + $0x40] sm:$0xff]
  %v1107 = vld [vmem:[%s2 + $0x48] sm:$0xff]
  %v1108 = vld [vmem:[%s2 + $0x50] sm:$0xff]
  %v1109 = vld [vmem:[%s2 + $0x58] sm:$0xff]
  %v1110 = vld [vmem:[%s2 + $0x60] sm:$0xff]
  %v1111 = vld [vmem:[%s2 + $0x68] sm:$0xff]
  %v1112 = vld [vmem:[%s2 + $0x70] sm:$0xff]
  %v1113 = vld [vmem:[%s2 + $0x78] sm:$0xff]
  %v1114 = vld [vmem:[%s2 + $0x80] sm:$0xff]
  %v1115 = vld [vmem:[%s2 + $0x88] sm:$0xff]
  %v1116 = vld [vmem:[%s2 + $0x90] sm:$0xff]
  %v1117 = vld [vmem:[%s2 + $0x98] sm:$0xff]
  %v1118 = vld [vmem:[%s2 + $0xa0] sm:$0xff]
  %v1119 = vld [vmem:[%s2 + $0xa8] sm:$0xff]
  %v1120 = vld [vmem:[%s2 + $0xb0] sm:$0xff]
  %v1121 = vld [vmem:[%s2 + $0xb8] sm:$0xff]
  %v1122 = vld [vmem:[%s2 + $0xc0] sm:$0xff]
  %v1123 = vld [vmem:[%s2 + $0xc8] sm:$0xff]
  %v1124 = vld [vmem:[%s2 + $0xd0] sm:$0xff]
  %v1125 = vld [vmem:[%s2 + $0xd8] sm:$0xff]
  %v1126 = vld [vmem:[%s2 + $0xe0] sm:$0xff]
  %v1127 = vld [vmem:[%s2 + $0xe8] sm:$0xff]
  %v1128 = vld [vmem:[%s2 + $0xf0] sm:$0xff]
  %v1129 = vld [vmem:[%s2 + $0xf8] sm:$0xff]
  %v1130 = vld [vmem:[%s2 + $0x100] sm:$0xff]
  %v1131 = vld [vmem:[%s2 + $0x108] sm:$0xff]
  %v1132 = vld [vmem:[%s2 + $0x110] sm:$0xff]
  %v1133 = vld [vmem:[%s2 + $0x118] sm:$0xff]
  %v1134 = vld [vmem:[%s2 + $0x120] sm:$0xff]
  %v1135 = vld [vmem:[%s2 + $0x128] sm:$0xff]
  %v1136 = vld [vmem:[%s2 + $0x130] sm:$0xff]
  %v1137 = vld [vmem:[%s2 + $0x138] sm:$0xff]
  %v1138 = vld [vmem:[%s2 + $0x140] sm:$0xff]
  %v1139 = vld [vmem:[%s2 + $0x148] sm:$0xff]
  %v1140 = vld [vmem:[%s2 + $0x150] sm:$0xff]
  %v1141 = vld [vmem:[%s2 + $0x158] sm:$0xff]
  %v1142 = vld [vmem:[%s2 + $0x160] sm:$0xff]
  %v1143 = vld [vmem:[%s2 + $0x168] sm:$0xff]
  %v1144 = vld [vmem:[%s2 + $0x170] sm:$0xff]
  %v1145 = vld [vmem:[%s2 + $0x178] sm:$0xff]
  %v1146 = vld [vmem:[%s2 + $0x180] sm:$0xff]
  %v1147 = vld [vmem:[%s2 + $0x188] sm:$0xff]
  %v1148 = vld [vmem:[%s2 + $0x190] sm:$0xff]
  %v1149 = vld [vmem:[%s2 + $0x198] sm:$0xff]
  %v1150 = vld [vmem:[%s2 + $0x1a0] sm:$0xff]
  %v1151 = vld [vmem:[%s2 + $0x1a8] sm:$0xff]
  %v1152 = vld [vmem:[%s2 + $0x1b0] sm:$0xff]
  %v1153 = vld [vmem:[%s2 + $0x1b8] sm:$0xff]
  %v1154 = vld [vmem:[%s2 + $0x1c0] sm:$0xff]
  %v1155 = vld [vmem:[%s2 + $0x1c8] sm:$0xff]
  %v1156 = vld [vmem:[%s2 + $0x1d0] sm:$0xff]
  %v1157 = vld [vmem:[%s2 + $0x1d8] sm:$0xff]
  %v1158 = vld [vmem:[%s2 + $0x1e0] sm:$0xff]
  %v1159 = vld [vmem:[%s2 + $0x1e8] sm:$0xff]
  %v1160 = vld [vmem:[%s2 + $0x1f0] sm:$0xff]
  %v1161 = vld [vmem:[%s2 + $0x1f8] sm:$0xff]
  %1162 = vmatprep.subr.mxu0 %v1159
  %1163 = vmatpush1.msra.mxu0 %v1158
  %1164 = vmatprep.subr.mxu0 %v1155
  %1165 = vmatpush1.msra.mxu0 %v1154
  %1166 = vmatprep.subr.mxu0 %v1151
  %1167 = vmatpush1.msra.mxu0 %v1150
  %1168 = vmatprep.subr.mxu0 %v1147
  %1169 = vmatpush1.msra.mxu0 %v1146
  %1170 = vmatprep.subr.mxu0 %v1143
  %1171 = vmatpush1.msra.mxu0 %v1142
  %1172 = vmatprep.subr.mxu0 %v1139
  %1173 = vmatpush1.msra.mxu0 %v1138
  %1174 = vmatprep.subr.mxu0 %v1135
  %1175 = vmatpush1.msra.mxu0 %v1134
  %1176 = vmatprep.subr.mxu0 %v1131
  %1177 = vmatpush1.msra.mxu0 %v1130
  %1178 = vmatprep.subr.mxu0 %v1127
  %1179 = vmatpush1.msra.mxu0 %v1126
  %1180 = vmatprep.subr.mxu0 %v1123
  %1181 = vmatpush1.msra.mxu0 %v1122
  %1182 = vmatprep.subr.mxu0 %v1119
  %1183 = vmatpush1.msra.mxu0 %v1118
  %1184 = vmatprep.subr.mxu0 %v1115
  %1185 = vmatpush1.msra.mxu0 %v1114
  %1186 = vmatprep.subr.mxu0 %v1111
  %1187 = vmatpush1.msra.mxu0 %v1110
  %1188 = vmatprep.subr.mxu0 %v1107
  %1189 = vmatpush1.msra.mxu0 %v1106
  %1190 = vmatprep.subr.mxu0 %v1103
  %1191 = vmatpush1.msra.mxu0 %v1102
  %1192 = vmatprep.subr.mxu0 %v1099
  %1193 = vmatpush1.msra.mxu0 %v1098
  %1194 = vmatprep.subr.mxu0 0.0
  %1195 = vmatpush2.msra.mxu0 0.0
  %1196 = vmatprep.subr.mxu0 0.0
  %1197 = vmatpush2.msra.mxu0 0.0
  %1198 = vmatprep.subr.mxu0 0.0
  %1199 = vmatpush2.msra.mxu0 0.0
  %1200 = vmatprep.subr.mxu0 0.0
  %1201 = vmatpush2.msra.mxu0 0.0
  %1202 = vmatprep.subr.mxu0 0.0
  %1203 = vmatpush2.msra.mxu0 0.0
  %1204 = vmatprep.subr.mxu0 0.0
  %1205 = vmatpush2.msra.mxu0 0.0
  %1206 = vmatprep.subr.mxu0 0.0
  %1207 = vmatpush2.msra.mxu0 0.0
  %1208 = vmatprep.subr.mxu0 0.0
  %1209 = vmatpush2.msra.mxu0 0.0
  %1210 = vmatprep.subr.mxu0 0.0
  %1211 = vmatpush2.msra.mxu0 0.0
  %1212 = vmatprep.subr.mxu0 0.0
  %1213 = vmatpush2.msra.mxu0 0.0
  %1214 = vmatprep.subr.mxu0 0.0
  %1215 = vmatpush2.msra.mxu0 0.0
  %1216 = vmatprep.subr.mxu0 0.0
  %1217 = vmatpush2.msra.mxu0 0.0
  %1218 = vmatprep.subr.mxu0 0.0
  %1219 = vmatpush2.msra.mxu0 0.0
  %1220 = vmatprep.subr.mxu0 0.0
  %1221 = vmatpush2.msra.mxu0 0.0
  %1222 = vmatprep.subr.mxu0 0.0
  %1223 = vmatpush2.msra.mxu0 0.0
  %1224 = vmatprep.subr.mxu0 0.0
  %1225 = vmatpush2.msra.mxu0 0.0
  %1226 = vmatprep.mubr.f32.mxu0 0.0
  %1227 = vmatmul.mubr.f32.gmra.mxu0 %v1088
  %v1228 = vpop.f32.mrf.mxu0
  %v1229 = vadd.f32 0.0, %v1228
  %v1230 = vpop.f32.mrf.mxu0
  %v1231 = vadd.f32 0.0, %v1230
  %1232 = vdwg.mxu0
  %1233 = vmatprep.subr.mxu0 %v1161
  %1234 = vmatpush1.msra.mxu0 %v1160
  %1235 = vmatprep.subr.mxu0 %v1157
  %1236 = vmatpush1.msra.mxu0 %v1156
  %1237 = vmatprep.subr.mxu0 %v1153
  %1238 = vmatpush1.msra.mxu0 %v1152
  %1239 = vmatprep.subr.mxu0 %v1149
  %1240 = vmatpush1.msra.mxu0 %v1148
  %1241 = vmatprep.subr.mxu0 %v1145
  %1242 = vmatpush1.msra.mxu0 %v1144
  %1243 = vmatprep.subr.mxu0 %v1141
  %1244 = vmatpush1.msra.mxu0 %v1140
  %1245 = vmatprep.subr.mxu0 %v1137
  %1246 = vmatpush1.msra.mxu0 %v1136
  %1247 = vmatprep.subr.mxu0 %v1133
  %1248 = vmatpush1.msra.mxu0 %v1132
  %1249 = vmatprep.subr.mxu0 %v1129
  %1250 = vmatpush1.msra.mxu0 %v1128
  %1251 = vmatprep.subr.mxu0 %v1125
  %1252 = vmatpush1.msra.mxu0 %v1124
  %1253 = vmatprep.subr.mxu0 %v1121
  %1254 = vmatpush1.msra.mxu0 %v1120
  %1255 = vmatprep.subr.mxu0 %v1117
  %1256 = vmatpush1.msra.mxu0 %v1116
  %1257 = vmatprep.subr.mxu0 %v1113
  %1258 = vmatpush1.msra.mxu0 %v1112
  %1259 = vmatprep.subr.mxu0 %v1109
  %1260 = vmatpush1.msra.mxu0 %v1108
  %1261 = vmatprep.subr.mxu0 %v1105
  %1262 = vmatpush1.msra.mxu0 %v1104
  %1263 = vmatprep.subr.mxu0 %v1101
  %1264 = vmatpush1.msra.mxu0 %v1100
  %1265 = vmatprep.subr.mxu0 0.0
  %1266 = vmatpush2.msra.mxu0 0.0
  %1267 = vmatprep.subr.mxu0 0.0
  %1268 = vmatpush2.msra.mxu0 0.0
  %1269 = vmatprep.subr.mxu0 0.0
  %1270 = vmatpush2.msra.mxu0 0.0
  %1271 = vmatprep.subr.mxu0 0.0
  %1272 = vmatpush2.msra.mxu0 0.0
  %1273 = vmatprep.subr.mxu0 0.0
  %1274 = vmatpush2.msra.mxu0 0.0
  %1275 = vmatprep.subr.mxu0 0.0
  %1276 = vmatpush2.msra.mxu0 0.0
  %1277 = vmatprep.subr.mxu0 0.0
  %1278 = vmatpush2.msra.mxu0 0.0
  %1279 = vmatprep.subr.mxu0 0.0
  %1280 = vmatpush2.msra.mxu0 0.0
  %1281 = vmatprep.subr.mxu0 0.0
  %1282 = vmatpush2.msra.mxu0 0.0
  %1283 = vmatprep.subr.mxu0 0.0
  %1284 = vmatpush2.msra.mxu0 0.0
  %1285 = vmatprep.subr.mxu0 0.0
  %1286 = vmatpush2.msra.mxu0 0.0
  %1287 = vmatprep.subr.mxu0 0.0
  %1288 = vmatpush2.msra.mxu0 0.0
  %1289 = vmatprep.subr.mxu0 0.0
  %1290 = vmatpush2.msra.mxu0 0.0
  %1291 = vmatprep.subr.mxu0 0.0
  %1292 = vmatpush2.msra.mxu0 0.0
  %1293 = vmatprep.subr.mxu0 0.0
  %1294 = vmatpush2.msra.mxu0 0.0
  %1295 = vmatprep.subr.mxu0 0.0
  %1296 = vmatpush2.msra.mxu0 0.0
  %1297 = vmatprep.mubr.f32.mxu0 0.0
  %1298 = vmatmul.mubr.f32.gmra.mxu0 %v1088
  %v1299 = vpop.f32.mrf.mxu0
  %v1300 = vadd.f32 0.0, %v1299
  %v1301 = vpop.f32.mrf.mxu0
  %v1302 = vadd.f32 0.0, %v1301
  %1303 = vdwg.mxu0
  %v1304 = vadd.f32 %v1094, %v1229
  %v1305 = vadd.f32 %v1095, %v1231
  %v1306 = vadd.f32 %v1096, %v1300
  %v1307 = vadd.f32 %v1097, %v1302
  %v1308 = vxor.u32 %v1304, 2147483648
  %v1309 = vmul.f32 %v1308, 1.442695
  %v1310 = vpow.pop %v1309
  %v1311 = vadd.f32 %v1310, 1.0
  %v1312 = vrcp.pop %v1311
  %v1313 = vmul.f32 1.0, %v1312
  %v1314 = vxor.u32 %v1305, 2147483648
  %v1315 = vmul.f32 %v1314, 1.442695
  %v1316 = vpow.pop %v1315
  %v1317 = vadd.f32 %v1316, 1.0
  %v1318 = vrcp.pop %v1317
  %v1319 = vmul.f32 1.0, %v1318
  %v1320 = vtanh.pop %v1306
  %v1321 = vxor.u32 %v1307, 2147483648
  %v1322 = vmul.f32 %v1321, 1.442695
  %v1323 = vpow.pop %v1322
  %v1324 = vadd.f32 %v1323, 1.0
  %v1325 = vrcp.pop %v1324
  %v1326 = vmul.f32 1.0, %v1325
  %v1327 = vmul.f32 %v1319, %v1086
  %v1328 = vmul.f32 %v1313, %v1320
  %v1329 = vadd.f32 %v1327, %v1328
  %v1330 = vtanh.pop %v1329
  %v1331 = vmul.f32 %v1326, %v1330
  %s1332 = scalar_lea.vmem %s4, 16
  %1333 = vst [vmem:[%s1332] sm:$0xff] %v1331
  %s1334 = smul.u32 3, 4
  %s1335 = smul.addr %s1334, 8
  %s1336 = scalar_lea.vmem [#allocation2], %s1335
  %v1337 = vld [vmem:[%s1336] sm:$0xff]
  %v1338 = vld [vmem:[%s1336 + $0x8] sm:$0xff]
  %v1339 = vld [vmem:[%s1336 + $0x10] sm:$0xff]
  %v1340 = vld [vmem:[%s1336 + $0x18] sm:$0xff]
  %v1341 = vld [vmem:[%s2] sm:$0xff]
  %v1342 = vld [vmem:[%s2 + $0x8] sm:$0xff]
  %v1343 = vld [vmem:[%s2 + $0x10] sm:$0xff]
  %v1344 = vld [vmem:[%s2 + $0x18] sm:$0xff]
  %v1345 = vld [vmem:[%s2 + $0x20] sm:$0xff]
  %v1346 = vld [vmem:[%s2 + $0x28] sm:$0xff]
  %v1347 = vld [vmem:[%s2 + $0x30] sm:$0xff]
  %v1348 = vld [vmem:[%s2 + $0x38] sm:$0xff]
  %v1349 = vld [vmem:[%s2 + $0x40] sm:$0xff]
  %v1350 = vld [vmem:[%s2 + $0x48] sm:$0xff]
  %v1351 = vld [vmem:[%s2 + $0x50] sm:$0xff]
  %v1352 = vld [vmem:[%s2 + $0x58] sm:$0xff]
  %v1353 = vld [vmem:[%s2 + $0x60] sm:$0xff]
  %v1354 = vld [vmem:[%s2 + $0x68] sm:$0xff]
  %v1355 = vld [vmem:[%s2 + $0x70] sm:$0xff]
  %v1356 = vld [vmem:[%s2 + $0x78] sm:$0xff]
  %v1357 = vld [vmem:[%s2 + $0x80] sm:$0xff]
  %v1358 = vld [vmem:[%s2 + $0x88] sm:$0xff]
  %v1359 = vld [vmem:[%s2 + $0x90] sm:$0xff]
  %v1360 = vld [vmem:[%s2 + $0x98] sm:$0xff]
  %v1361 = vld [vmem:[%s2 + $0xa0] sm:$0xff]
  %v1362 = vld [vmem:[%s2 + $0xa8] sm:$0xff]
  %v1363 = vld [vmem:[%s2 + $0xb0] sm:$0xff]
  %v1364 = vld [vmem:[%s2 + $0xb8] sm:$0xff]
  %v1365 = vld [vmem:[%s2 + $0xc0] sm:$0xff]
  %v1366 = vld [vmem:[%s2 + $0xc8] sm:$0xff]
  %v1367 = vld [vmem:[%s2 + $0xd0] sm:$0xff]
  %v1368 = vld [vmem:[%s2 + $0xd8] sm:$0xff]
  %v1369 = vld [vmem:[%s2 + $0xe0] sm:$0xff]
  %v1370 = vld [vmem:[%s2 + $0xe8] sm:$0xff]
  %v1371 = vld [vmem:[%s2 + $0xf0] sm:$0xff]
  %v1372 = vld [vmem:[%s2 + $0xf8] sm:$0xff]
  %v1373 = vld [vmem:[%s2 + $0x100] sm:$0xff]
  %v1374 = vld [vmem:[%s2 + $0x108] sm:$0xff]
  %v1375 = vld [vmem:[%s2 + $0x110] sm:$0xff]
  %v1376 = vld [vmem:[%s2 + $0x118] sm:$0xff]
  %v1377 = vld [vmem:[%s2 + $0x120] sm:$0xff]
  %v1378 = vld [vmem:[%s2 + $0x128] sm:$0xff]
  %v1379 = vld [vmem:[%s2 + $0x130] sm:$0xff]
  %v1380 = vld [vmem:[%s2 + $0x138] sm:$0xff]
  %v1381 = vld [vmem:[%s2 + $0x140] sm:$0xff]
  %v1382 = vld [vmem:[%s2 + $0x148] sm:$0xff]
  %v1383 = vld [vmem:[%s2 + $0x150] sm:$0xff]
  %v1384 = vld [vmem:[%s2 + $0x158] sm:$0xff]
  %v1385 = vld [vmem:[%s2 + $0x160] sm:$0xff]
  %v1386 = vld [vmem:[%s2 + $0x168] sm:$0xff]
  %v1387 = vld [vmem:[%s2 + $0x170] sm:$0xff]
  %v1388 = vld [vmem:[%s2 + $0x178] sm:$0xff]
  %v1389 = vld [vmem:[%s2 + $0x180] sm:$0xff]
  %v1390 = vld [vmem:[%s2 + $0x188] sm:$0xff]
  %v1391 = vld [vmem:[%s2 + $0x190] sm:$0xff]
  %v1392 = vld [vmem:[%s2 + $0x198] sm:$0xff]
  %v1393 = vld [vmem:[%s2 + $0x1a0] sm:$0xff]
  %v1394 = vld [vmem:[%s2 + $0x1a8] sm:$0xff]
  %v1395 = vld [vmem:[%s2 + $0x1b0] sm:$0xff]
  %v1396 = vld [vmem:[%s2 + $0x1b8] sm:$0xff]
  %v1397 = vld [vmem:[%s2 + $0x1c0] sm:$0xff]
  %v1398 = vld [vmem:[%s2 + $0x1c8] sm:$0xff]
  %v1399 = vld [vmem:[%s2 + $0x1d0] sm:$0xff]
  %v1400 = vld [vmem:[%s2 + $0x1d8] sm:$0xff]
  %v1401 = vld [vmem:[%s2 + $0x1e0] sm:$0xff]
  %v1402 = vld [vmem:[%s2 + $0x1e8] sm:$0xff]
  %v1403 = vld [vmem:[%s2 + $0x1f0] sm:$0xff]
  %v1404 = vld [vmem:[%s2 + $0x1f8] sm:$0xff]
  %1405 = vmatprep.subr.mxu0 %v1402
  %1406 = vmatpush1.msra.mxu0 %v1401
  %1407 = vmatprep.subr.mxu0 %v1398
  %1408 = vmatpush1.msra.mxu0 %v1397
  %1409 = vmatprep.subr.mxu0 %v1394
  %1410 = vmatpush1.msra.mxu0 %v1393
  %1411 = vmatprep.subr.mxu0 %v1390
  %1412 = vmatpush1.msra.mxu0 %v1389
  %1413 = vmatprep.subr.mxu0 %v1386
  %1414 = vmatpush1.msra.mxu0 %v1385
  %1415 = vmatprep.subr.mxu0 %v1382
  %1416 = vmatpush1.msra.mxu0 %v1381
  %1417 = vmatprep.subr.mxu0 %v1378
  %1418 = vmatpush1.msra.mxu0 %v1377
  %1419 = vmatprep.subr.mxu0 %v1374
  %1420 = vmatpush1.msra.mxu0 %v1373
  %1421 = vmatprep.subr.mxu0 %v1370
  %1422 = vmatpush1.msra.mxu0 %v1369
  %1423 = vmatprep.subr.mxu0 %v1366
  %1424 = vmatpush1.msra.mxu0 %v1365
  %1425 = vmatprep.subr.mxu0 %v1362
  %1426 = vmatpush1.msra.mxu0 %v1361
  %1427 = vmatprep.subr.mxu0 %v1358
  %1428 = vmatpush1.msra.mxu0 %v1357
  %1429 = vmatprep.subr.mxu0 %v1354
  %1430 = vmatpush1.msra.mxu0 %v1353
  %1431 = vmatprep.subr.mxu0 %v1350
  %1432 = vmatpush1.msra.mxu0 %v1349
  %1433 = vmatprep.subr.mxu0 %v1346
  %1434 = vmatpush1.msra.mxu0 %v1345
  %1435 = vmatprep.subr.mxu0 %v1342
  %1436 = vmatpush1.msra.mxu0 %v1341
  %1437 = vmatprep.subr.mxu0 0.0
  %1438 = vmatpush2.msra.mxu0 0.0
  %1439 = vmatprep.subr.mxu0 0.0
  %1440 = vmatpush2.msra.mxu0 0.0
  %1441 = vmatprep.subr.mxu0 0.0
  %1442 = vmatpush2.msra.mxu0 0.0
  %1443 = vmatprep.subr.mxu0 0.0
  %1444 = vmatpush2.msra.mxu0 0.0
  %1445 = vmatprep.subr.mxu0 0.0
  %1446 = vmatpush2.msra.mxu0 0.0
  %1447 = vmatprep.subr.mxu0 0.0
  %1448 = vmatpush2.msra.mxu0 0.0
  %1449 = vmatprep.subr.mxu0 0.0
  %1450 = vmatpush2.msra.mxu0 0.0
  %1451 = vmatprep.subr.mxu0 0.0
  %1452 = vmatpush2.msra.mxu0 0.0
  %1453 = vmatprep.subr.mxu0 0.0
  %1454 = vmatpush2.msra.mxu0 0.0
  %1455 = vmatprep.subr.mxu0 0.0
  %1456 = vmatpush2.msra.mxu0 0.0
  %1457 = vmatprep.subr.mxu0 0.0
  %1458 = vmatpush2.msra.mxu0 0.0
  %1459 = vmatprep.subr.mxu0 0.0
  %1460 = vmatpush2.msra.mxu0 0.0
  %1461 = vmatprep.subr.mxu0 0.0
  %1462 = vmatpush2.msra.mxu0 0.0
  %1463 = vmatprep.subr.mxu0 0.0
  %1464 = vmatpush2.msra.mxu0 0.0
  %1465 = vmatprep.subr.mxu0 0.0
  %1466 = vmatpush2.msra.mxu0 0.0
  %1467 = vmatprep.subr.mxu0 0.0
  %1468 = vmatpush2.msra.mxu0 0.0
  %1469 = vmatprep.mubr.f32.mxu0 0.0
  %1470 = vmatmul.mubr.f32.gmra.mxu0 %v1331
  %v1471 = vpop.f32.mrf.mxu0
  %v1472 = vadd.f32 0.0, %v1471
  %v1473 = vpop.f32.mrf.mxu0
  %v1474 = vadd.f32 0.0, %v1473
  %1475 = vdwg.mxu0
  %1476 = vmatprep.subr.mxu0 %v1404
  %1477 = vmatpush1.msra.mxu0 %v1403
  %1478 = vmatprep.subr.mxu0 %v1400
  %1479 = vmatpush1.msra.mxu0 %v1399
  %1480 = vmatprep.subr.mxu0 %v1396
  %1481 = vmatpush1.msra.mxu0 %v1395
  %1482 = vmatprep.subr.mxu0 %v1392
  %1483 = vmatpush1.msra.mxu0 %v1391
  %1484 = vmatprep.subr.mxu0 %v1388
  %1485 = vmatpush1.msra.mxu0 %v1387
  %1486 = vmatprep.subr.mxu0 %v1384
  %1487 = vmatpush1.msra.mxu0 %v1383
  %1488 = vmatprep.subr.mxu0 %v1380
  %1489 = vmatpush1.msra.mxu0 %v1379
  %1490 = vmatprep.subr.mxu0 %v1376
  %1491 = vmatpush1.msra.mxu0 %v1375
  %1492 = vmatprep.subr.mxu0 %v1372
  %1493 = vmatpush1.msra.mxu0 %v1371
  %1494 = vmatprep.subr.mxu0 %v1368
  %1495 = vmatpush1.msra.mxu0 %v1367
  %1496 = vmatprep.subr.mxu0 %v1364
  %1497 = vmatpush1.msra.mxu0 %v1363
  %1498 = vmatprep.subr.mxu0 %v1360
  %1499 = vmatpush1.msra.mxu0 %v1359
  %1500 = vmatprep.subr.mxu0 %v1356
  %1501 = vmatpush1.msra.mxu0 %v1355
  %1502 = vmatprep.subr.mxu0 %v1352
  %1503 = vmatpush1.msra.mxu0 %v1351
  %1504 = vmatprep.subr.mxu0 %v1348
  %1505 = vmatpush1.msra.mxu0 %v1347
  %1506 = vmatprep.subr.mxu0 %v1344
  %1507 = vmatpush1.msra.mxu0 %v1343
  %1508 = vmatprep.subr.mxu0 0.0
  %1509 = vmatpush2.msra.mxu0 0.0
  %1510 = vmatprep.subr.mxu0 0.0
  %1511 = vmatpush2.msra.mxu0 0.0
  %1512 = vmatprep.subr.mxu0 0.0
  %1513 = vmatpush2.msra.mxu0 0.0
  %1514 = vmatprep.subr.mxu0 0.0
  %1515 = vmatpush2.msra.mxu0 0.0
  %1516 = vmatprep.subr.mxu0 0.0
  %1517 = vmatpush2.msra.mxu0 0.0
  %1518 = vmatprep.subr.mxu0 0.0
  %1519 = vmatpush2.msra.mxu0 0.0
  %1520 = vmatprep.subr.mxu0 0.0
  %1521 = vmatpush2.msra.mxu0 0.0
  %1522 = vmatprep.subr.mxu0 0.0
  %1523 = vmatpush2.msra.mxu0 0.0
  %1524 = vmatprep.subr.mxu0 0.0
  %1525 = vmatpush2.msra.mxu0 0.0
  %1526 = vmatprep.subr.mxu0 0.0
  %1527 = vmatpush2.msra.mxu0 0.0
  %1528 = vmatprep.subr.mxu0 0.0
  %1529 = vmatpush2.msra.mxu0 0.0
  %1530 = vmatprep.subr.mxu0 0.0
  %1531 = vmatpush2.msra.mxu0 0.0
  %1532 = vmatprep.subr.mxu0 0.0
  %1533 = vmatpush2.msra.mxu0 0.0
  %1534 = vmatprep.subr.mxu0 0.0
  %1535 = vmatpush2.msra.mxu0 0.0
  %1536 = vmatprep.subr.mxu0 0.0
  %1537 = vmatpush2.msra.mxu0 0.0
  %1538 = vmatprep.subr.mxu0 0.0
  %1539 = vmatpush2.msra.mxu0 0.0
  %1540 = vmatprep.mubr.f32.mxu0 0.0
  %1541 = vmatmul.mubr.f32.gmra.mxu0 %v1331
  %v1542 = vpop.f32.mrf.mxu0
  %v1543 = vadd.f32 0.0, %v1542
  %v1544 = vpop.f32.mrf.mxu0
  %v1545 = vadd.f32 0.0, %v1544
  %1546 = vdwg.mxu0
  %v1547 = vadd.f32 %v1337, %v1472
  %v1548 = vadd.f32 %v1338, %v1474
  %v1549 = vadd.f32 %v1339, %v1543
  %v1550 = vadd.f32 %v1340, %v1545
  %v1551 = vxor.u32 %v1547, 2147483648
  %v1552 = vmul.f32 %v1551, 1.442695
  %v1553 = vpow.pop %v1552
  %v1554 = vadd.f32 %v1553, 1.0
  %v1555 = vrcp.pop %v1554
  %v1556 = vmul.f32 1.0, %v1555
  %v1557 = vxor.u32 %v1548, 2147483648
  %v1558 = vmul.f32 %v1557, 1.442695
  %v1559 = vpow.pop %v1558
  %v1560 = vadd.f32 %v1559, 1.0
  %v1561 = vrcp.pop %v1560
  %v1562 = vmul.f32 1.0, %v1561
  %v1563 = vtanh.pop %v1549
  %v1564 = vxor.u32 %v1550, 2147483648
  %v1565 = vmul.f32 %v1564, 1.442695
  %v1566 = vpow.pop %v1565
  %v1567 = vadd.f32 %v1566, 1.0
  %v1568 = vrcp.pop %v1567
  %v1569 = vmul.f32 1.0, %v1568
  %v1570 = vmul.f32 %v1562, %v1329
  %v1571 = vmul.f32 %v1556, %v1563
  %v1572 = vadd.f32 %v1570, %v1571
  %v1573 = vtanh.pop %v1572
  %v1574 = vmul.f32 %v1569, %v1573
  %s1575 = scalar_lea.vmem %s4, 24
  %1576 = vst [vmem:[%s1575] sm:$0xff] %v1574
  %s1577 = smul.u32 4, 4
  %s1578 = smul.addr %s1577, 8
  %s1579 = scalar_lea.vmem [#allocation2], %s1578
  %v1580 = vld [vmem:[%s1579] sm:$0xff]
  %v1581 = vld [vmem:[%s1579 + $0x8] sm:$0xff]
  %v1582 = vld [vmem:[%s1579 + $0x10] sm:$0xff]
  %v1583 = vld [vmem:[%s1579 + $0x18] sm:$0xff]
  %v1584 = vld [vmem:[%s2] sm:$0xff]
  %v1585 = vld [vmem:[%s2 + $0x8] sm:$0xff]
  %v1586 = vld [vmem:[%s2 + $0x10] sm:$0xff]
  %v1587 = vld [vmem:[%s2 + $0x18] sm:$0xff]
  %v1588 = vld [vmem:[%s2 + $0x20] sm:$0xff]
  %v1589 = vld [vmem:[%s2 + $0x28] sm:$0xff]
  %v1590 = vld [vmem:[%s2 + $0x30] sm:$0xff]
  %v1591 = vld [vmem:[%s2 + $0x38] sm:$0xff]
  %v1592 = vld [vmem:[%s2 + $0x40] sm:$0xff]
  %v1593 = vld [vmem:[%s2 + $0x48] sm:$0xff]
  %v1594 = vld [vmem:[%s2 + $0x50] sm:$0xff]
  %v1595 = vld [vmem:[%s2 + $0x58] sm:$0xff]
  %v1596 = vld [vmem:[%s2 + $0x60] sm:$0xff]
  %v1597 = vld [vmem:[%s2 + $0x68] sm:$0xff]
  %v1598 = vld [vmem:[%s2 + $0x70] sm:$0xff]
  %v1599 = vld [vmem:[%s2 + $0x78] sm:$0xff]
  %v1600 = vld [vmem:[%s2 + $0x80] sm:$0xff]
  %v1601 = vld [vmem:[%s2 + $0x88] sm:$0xff]
  %v1602 = vld [vmem:[%s2 + $0x90] sm:$0xff]
  %v1603 = vld [vmem:[%s2 + $0x98] sm:$0xff]
  %v1604 = vld [vmem:[%s2 + $0xa0] sm:$0xff]
  %v1605 = vld [vmem:[%s2 + $0xa8] sm:$0xff]
  %v1606 = vld [vmem:[%s2 + $0xb0] sm:$0xff]
  %v1607 = vld [vmem:[%s2 + $0xb8] sm:$0xff]
  %v1608 = vld [vmem:[%s2 + $0xc0] sm:$0xff]
  %v1609 = vld [vmem:[%s2 + $0xc8] sm:$0xff]
  %v1610 = vld [vmem:[%s2 + $0xd0] sm:$0xff]
  %v1611 = vld [vmem:[%s2 + $0xd8] sm:$0xff]
  %v1612 = vld [vmem:[%s2 + $0xe0] sm:$0xff]
  %v1613 = vld [vmem:[%s2 + $0xe8] sm:$0xff]
  %v1614 = vld [vmem:[%s2 + $0xf0] sm:$0xff]
  %v1615 = vld [vmem:[%s2 + $0xf8] sm:$0xff]
  %v1616 = vld [vmem:[%s2 + $0x100] sm:$0xff]
  %v1617 = vld [vmem:[%s2 + $0x108] sm:$0xff]
  %v1618 = vld [vmem:[%s2 + $0x110] sm:$0xff]
  %v1619 = vld [vmem:[%s2 + $0x118] sm:$0xff]
  %v1620 = vld [vmem:[%s2 + $0x120] sm:$0xff]
  %v1621 = vld [vmem:[%s2 + $0x128] sm:$0xff]
  %v1622 = vld [vmem:[%s2 + $0x130] sm:$0xff]
  %v1623 = vld [vmem:[%s2 + $0x138] sm:$0xff]
  %v1624 = vld [vmem:[%s2 + $0x140] sm:$0xff]
  %v1625 = vld [vmem:[%s2 + $0x148] sm:$0xff]
  %v1626 = vld [vmem:[%s2 + $0x150] sm:$0xff]
  %v1627 = vld [vmem:[%s2 + $0x158] sm:$0xff]
  %v1628 = vld [vmem:[%s2 + $0x160] sm:$0xff]
  %v1629 = vld [vmem:[%s2 + $0x168] sm:$0xff]
  %v1630 = vld [vmem:[%s2 + $0x170] sm:$0xff]
  %v1631 = vld [vmem:[%s2 + $0x178] sm:$0xff]
  %v1632 = vld [vmem:[%s2 + $0x180] sm:$0xff]
  %v1633 = vld [vmem:[%s2 + $0x188] sm:$0xff]
  %v1634 = vld [vmem:[%s2 + $0x190] sm:$0xff]
  %v1635 = vld [vmem:[%s2 + $0x198] sm:$0xff]
  %v1636 = vld [vmem:[%s2 + $0x1a0] sm:$0xff]
  %v1637 = vld [vmem:[%s2 + $0x1a8] sm:$0xff]
  %v1638 = vld [vmem:[%s2 + $0x1b0] sm:$0xff]
  %v1639 = vld [vmem:[%s2 + $0x1b8] sm:$0xff]
  %v1640 = vld [vmem:[%s2 + $0x1c0] sm:$0xff]
  %v1641 = vld [vmem:[%s2 + $0x1c8] sm:$0xff]
  %v1642 = vld [vmem:[%s2 + $0x1d0] sm:$0xff]
  %v1643 = vld [vmem:[%s2 + $0x1d8] sm:$0xff]
  %v1644 = vld [vmem:[%s2 + $0x1e0] sm:$0xff]
  %v1645 = vld [vmem:[%s2 + $0x1e8] sm:$0xff]
  %v1646 = vld [vmem:[%s2 + $0x1f0] sm:$0xff]
  %v1647 = vld [vmem:[%s2 + $0x1f8] sm:$0xff]
  %1648 = vmatprep.subr.mxu0 %v1645
  %1649 = vmatpush1.msra.mxu0 %v1644
  %1650 = vmatprep.subr.mxu0 %v1641
  %1651 = vmatpush1.msra.mxu0 %v1640
  %1652 = vmatprep.subr.mxu0 %v1637
  %1653 = vmatpush1.msra.mxu0 %v1636
  %1654 = vmatprep.subr.mxu0 %v1633
  %1655 = vmatpush1.msra.mxu0 %v1632
  %1656 = vmatprep.subr.mxu0 %v1629
  %1657 = vmatpush1.msra.mxu0 %v1628
  %1658 = vmatprep.subr.mxu0 %v1625
  %1659 = vmatpush1.msra.mxu0 %v1624
  %1660 = vmatprep.subr.mxu0 %v1621
  %1661 = vmatpush1.msra.mxu0 %v1620
  %1662 = vmatprep.subr.mxu0 %v1617
  %1663 = vmatpush1.msra.mxu0 %v1616
  %1664 = vmatprep.subr.mxu0 %v1613
  %1665 = vmatpush1.msra.mxu0 %v1612
  %1666 = vmatprep.subr.mxu0 %v1609
  %1667 = vmatpush1.msra.mxu0 %v1608
  %1668 = vmatprep.subr.mxu0 %v1605
  %1669 = vmatpush1.msra.mxu0 %v1604
  %1670 = vmatprep.subr.mxu0 %v1601
  %1671 = vmatpush1.msra.mxu0 %v1600
  %1672 = vmatprep.subr.mxu0 %v1597
  %1673 = vmatpush1.msra.mxu0 %v1596
  %1674 = vmatprep.subr.mxu0 %v1593
  %1675 = vmatpush1.msra.mxu0 %v1592
  %1676 = vmatprep.subr.mxu0 %v1589
  %1677 = vmatpush1.msra.mxu0 %v1588
  %1678 = vmatprep.subr.mxu0 %v1585
  %1679 = vmatpush1.msra.mxu0 %v1584
  %1680 = vmatprep.subr.mxu0 0.0
  %1681 = vmatpush2.msra.mxu0 0.0
  %1682 = vmatprep.subr.mxu0 0.0
  %1683 = vmatpush2.msra.mxu0 0.0
  %1684 = vmatprep.subr.mxu0 0.0
  %1685 = vmatpush2.msra.mxu0 0.0
  %1686 = vmatprep.subr.mxu0 0.0
  %1687 = vmatpush2.msra.mxu0 0.0
  %1688 = vmatprep.subr.mxu0 0.0
  %1689 = vmatpush2.msra.mxu0 0.0
  %1690 = vmatprep.subr.mxu0 0.0
  %1691 = vmatpush2.msra.mxu0 0.0
  %1692 = vmatprep.subr.mxu0 0.0
  %1693 = vmatpush2.msra.mxu0 0.0
  %1694 = vmatprep.subr.mxu0 0.0
  %1695 = vmatpush2.msra.mxu0 0.0
  %1696 = vmatprep.subr.mxu0 0.0
  %1697 = vmatpush2.msra.mxu0 0.0
  %1698 = vmatprep.subr.mxu0 0.0
  %1699 = vmatpush2.msra.mxu0 0.0
  %1700 = vmatprep.subr.mxu0 0.0
  %1701 = vmatpush2.msra.mxu0 0.0
  %1702 = vmatprep.subr.mxu0 0.0
  %1703 = vmatpush2.msra.mxu0 0.0
  %1704 = vmatprep.subr.mxu0 0.0
  %1705 = vmatpush2.msra.mxu0 0.0
  %1706 = vmatprep.subr.mxu0 0.0
  %1707 = vmatpush2.msra.mxu0 0.0
  %1708 = vmatprep.subr.mxu0 0.0
  %1709 = vmatpush2.msra.mxu0 0.0
  %1710 = vmatprep.subr.mxu0 0.0
  %1711 = vmatpush2.msra.mxu0 0.0
  %1712 = vmatprep.mubr.f32.mxu0 0.0
  %1713 = vmatmul.mubr.f32.gmra.mxu0 %v1574
  %v1714 = vpop.f32.mrf.mxu0
  %v1715 = vadd.f32 0.0, %v1714
  %v1716 = vpop.f32.mrf.mxu0
  %v1717 = vadd.f32 0.0, %v1716
  %1718 = vdwg.mxu0
  %1719 = vmatprep.subr.mxu0 %v1647
  %1720 = vmatpush1.msra.mxu0 %v1646
  %1721 = vmatprep.subr.mxu0 %v1643
  %1722 = vmatpush1.msra.mxu0 %v1642
  %1723 = vmatprep.subr.mxu0 %v1639
  %1724 = vmatpush1.msra.mxu0 %v1638
  %1725 = vmatprep.subr.mxu0 %v1635
  %1726 = vmatpush1.msra.mxu0 %v1634
  %1727 = vmatprep.subr.mxu0 %v1631
  %1728 = vmatpush1.msra.mxu0 %v1630
  %1729 = vmatprep.subr.mxu0 %v1627
  %1730 = vmatpush1.msra.mxu0 %v1626
  %1731 = vmatprep.subr.mxu0 %v1623
  %1732 = vmatpush1.msra.mxu0 %v1622
  %1733 = vmatprep.subr.mxu0 %v1619
  %1734 = vmatpush1.msra.mxu0 %v1618
  %1735 = vmatprep.subr.mxu0 %v1615
  %1736 = vmatpush1.msra.mxu0 %v1614
  %1737 = vmatprep.subr.mxu0 %v1611
  %1738 = vmatpush1.msra.mxu0 %v1610
  %1739 = vmatprep.subr.mxu0 %v1607
  %1740 = vmatpush1.msra.mxu0 %v1606
  %1741 = vmatprep.subr.mxu0 %v1603
  %1742 = vmatpush1.msra.mxu0 %v1602
  %1743 = vmatprep.subr.mxu0 %v1599
  %1744 = vmatpush1.msra.mxu0 %v1598
  %1745 = vmatprep.subr.mxu0 %v1595
  %1746 = vmatpush1.msra.mxu0 %v1594
  %1747 = vmatprep.subr.mxu0 %v1591
  %1748 = vmatpush1.msra.mxu0 %v1590
  %1749 = vmatprep.subr.mxu0 %v1587
  %1750 = vmatpush1.msra.mxu0 %v1586
  %1751 = vmatprep.subr.mxu0 0.0
  %1752 = vmatpush2.msra.mxu0 0.0
  %1753 = vmatprep.subr.mxu0 0.0
  %1754 = vmatpush2.msra.mxu0 0.0
  %1755 = vmatprep.subr.mxu0 0.0
  %1756 = vmatpush2.msra.mxu0 0.0
  %1757 = vmatprep.subr.mxu0 0.0
  %1758 = vmatpush2.msra.mxu0 0.0
  %1759 = vmatprep.subr.mxu0 0.0
  %1760 = vmatpush2.msra.mxu0 0.0
  %1761 = vmatprep.subr.mxu0 0.0
  %1762 = vmatpush2.msra.mxu0 0.0
  %1763 = vmatprep.subr.mxu0 0.0
  %1764 = vmatpush2.msra.mxu0 0.0
  %1765 = vmatprep.subr.mxu0 0.0
  %1766 = vmatpush2.msra.mxu0 0.0
  %1767 = vmatprep.subr.mxu0 0.0
  %1768 = vmatpush2.msra.mxu0 0.0
  %1769 = vmatprep.subr.mxu0 0.0
  %1770 = vmatpush2.msra.mxu0 0.0
  %1771 = vmatprep.subr.mxu0 0.0
  %1772 = vmatpush2.msra.mxu0 0.0
  %1773 = vmatprep.subr.mxu0 0.0
  %1774 = vmatpush2.msra.mxu0 0.0
  %1775 = vmatprep.subr.mxu0 0.0
  %1776 = vmatpush2.msra.mxu0 0.0
  %1777 = vmatprep.subr.mxu0 0.0
  %1778 = vmatpush2.msra.mxu0 0.0
  %1779 = vmatprep.subr.mxu0 0.0
  %1780 = vmatpush2.msra.mxu0 0.0
  %1781 = vmatprep.subr.mxu0 0.0
  %1782 = vmatpush2.msra.mxu0 0.0
  %1783 = vmatprep.mubr.f32.mxu0 0.0
  %1784 = vmatmul.mubr.f32.gmra.mxu0 %v1574
  %v1785 = vpop.f32.mrf.mxu0
  %v1786 = vadd.f32 0.0, %v1785
  %v1787 = vpop.f32.mrf.mxu0
  %v1788 = vadd.f32 0.0, %v1787
  %1789 = vdwg.mxu0
  %v1790 = vadd.f32 %v1580, %v1715
  %v1791 = vadd.f32 %v1581, %v1717
  %v1792 = vadd.f32 %v1582, %v1786
  %v1793 = vadd.f32 %v1583, %v1788
  %v1794 = vxor.u32 %v1790, 2147483648
  %v1795 = vmul.f32 %v1794, 1.442695
  %v1796 = vpow.pop %v1795
  %v1797 = vadd.f32 %v1796, 1.0
  %v1798 = vrcp.pop %v1797
  %v1799 = vmul.f32 1.0, %v1798
  %v1800 = vxor.u32 %v1791, 2147483648
  %v1801 = vmul.f32 %v1800, 1.442695
  %v1802 = vpow.pop %v1801
  %v1803 = vadd.f32 %v1802, 1.0
  %v1804 = vrcp.pop %v1803
  %v1805 = vmul.f32 1.0, %v1804
  %v1806 = vtanh.pop %v1792
  %v1807 = vxor.u32 %v1793, 2147483648
  %v1808 = vmul.f32 %v1807, 1.442695
  %v1809 = vpow.pop %v1808
  %v1810 = vadd.f32 %v1809, 1.0
  %v1811 = vrcp.pop %v1810
  %v1812 = vmul.f32 1.0, %v1811
  %v1813 = vmul.f32 %v1805, %v1572
  %v1814 = vmul.f32 %v1799, %v1806
  %v1815 = vadd.f32 %v1813, %v1814
  %v1816 = vtanh.pop %v1815
  %v1817 = vmul.f32 %v1812, %v1816
  %s1818 = scalar_lea.vmem %s4, 32
  %1819 = vst [vmem:[%s1818] sm:$0xff] %v1817
  %s1820 = smul.u32 5, 4
  %s1821 = smul.addr %s1820, 8
  %s1822 = scalar_lea.vmem [#allocation2], %s1821
  %v1823 = vld [vmem:[%s1822] sm:$0xff]
  %v1824 = vld [vmem:[%s1822 + $0x8] sm:$0xff]
  %v1825 = vld [vmem:[%s1822 + $0x10] sm:$0xff]
  %v1826 = vld [vmem:[%s1822 + $0x18] sm:$0xff]
  %v1827 = vld [vmem:[%s2] sm:$0xff]
  %v1828 = vld [vmem:[%s2 + $0x8] sm:$0xff]
  %v1829 = vld [vmem:[%s2 + $0x10] sm:$0xff]
  %v1830 = vld [vmem:[%s2 + $0x18] sm:$0xff]
  %v1831 = vld [vmem:[%s2 + $0x20] sm:$0xff]
  %v1832 = vld [vmem:[%s2 + $0x28] sm:$0xff]
  %v1833 = vld [vmem:[%s2 + $0x30] sm:$0xff]
  %v1834 = vld [vmem:[%s2 + $0x38] sm:$0xff]
  %v1835 = vld [vmem:[%s2 + $0x40] sm:$0xff]
  %v1836 = vld [vmem:[%s2 + $0x48] sm:$0xff]
  %v1837 = vld [vmem:[%s2 + $0x50] sm:$0xff]
  %v1838 = vld [vmem:[%s2 + $0x58] sm:$0xff]
  %v1839 = vld [vmem:[%s2 + $0x60] sm:$0xff]
  %v1840 = vld [vmem:[%s2 + $0x68] sm:$0xff]
  %v1841 = vld [vmem:[%s2 + $0x70] sm:$0xff]
  %v1842 = vld [vmem:[%s2 + $0x78] sm:$0xff]
  %v1843 = vld [vmem:[%s2 + $0x80] sm:$0xff]
  %v1844 = vld [vmem:[%s2 + $0x88] sm:$0xff]
  %v1845 = vld [vmem:[%s2 + $0x90] sm:$0xff]
  %v1846 = vld [vmem:[%s2 + $0x98] sm:$0xff]
  %v1847 = vld [vmem:[%s2 + $0xa0] sm:$0xff]
  %v1848 = vld [vmem:[%s2 + $0xa8] sm:$0xff]
  %v1849 = vld [vmem:[%s2 + $0xb0] sm:$0xff]
  %v1850 = vld [vmem:[%s2 + $0xb8] sm:$0xff]
  %v1851 = vld [vmem:[%s2 + $0xc0] sm:$0xff]
  %v1852 = vld [vmem:[%s2 + $0xc8] sm:$0xff]
  %v1853 = vld [vmem:[%s2 + $0xd0] sm:$0xff]
  %v1854 = vld [vmem:[%s2 + $0xd8] sm:$0xff]
  %v1855 = vld [vmem:[%s2 + $0xe0] sm:$0xff]
  %v1856 = vld [vmem:[%s2 + $0xe8] sm:$0xff]
  %v1857 = vld [vmem:[%s2 + $0xf0] sm:$0xff]
  %v1858 = vld [vmem:[%s2 + $0xf8] sm:$0xff]
  %v1859 = vld [vmem:[%s2 + $0x100] sm:$0xff]
  %v1860 = vld [vmem:[%s2 + $0x108] sm:$0xff]
  %v1861 = vld [vmem:[%s2 + $0x110] sm:$0xff]
  %v1862 = vld [vmem:[%s2 + $0x118] sm:$0xff]
  %v1863 = vld [vmem:[%s2 + $0x120] sm:$0xff]
  %v1864 = vld [vmem:[%s2 + $0x128] sm:$0xff]
  %v1865 = vld [vmem:[%s2 + $0x130] sm:$0xff]
  %v1866 = vld [vmem:[%s2 + $0x138] sm:$0xff]
  %v1867 = vld [vmem:[%s2 + $0x140] sm:$0xff]
  %v1868 = vld [vmem:[%s2 + $0x148] sm:$0xff]
  %v1869 = vld [vmem:[%s2 + $0x150] sm:$0xff]
  %v1870 = vld [vmem:[%s2 + $0x158] sm:$0xff]
  %v1871 = vld [vmem:[%s2 + $0x160] sm:$0xff]
  %v1872 = vld [vmem:[%s2 + $0x168] sm:$0xff]
  %v1873 = vld [vmem:[%s2 + $0x170] sm:$0xff]
  %v1874 = vld [vmem:[%s2 + $0x178] sm:$0xff]
  %v1875 = vld [vmem:[%s2 + $0x180] sm:$0xff]
  %v1876 = vld [vmem:[%s2 + $0x188] sm:$0xff]
  %v1877 = vld [vmem:[%s2 + $0x190] sm:$0xff]
  %v1878 = vld [vmem:[%s2 + $0x198] sm:$0xff]
  %v1879 = vld [vmem:[%s2 + $0x1a0] sm:$0xff]
  %v1880 = vld [vmem:[%s2 + $0x1a8] sm:$0xff]
  %v1881 = vld [vmem:[%s2 + $0x1b0] sm:$0xff]
  %v1882 = vld [vmem:[%s2 + $0x1b8] sm:$0xff]
  %v1883 = vld [vmem:[%s2 + $0x1c0] sm:$0xff]
  %v1884 = vld [vmem:[%s2 + $0x1c8] sm:$0xff]
  %v1885 = vld [vmem:[%s2 + $0x1d0] sm:$0xff]
  %v1886 = vld [vmem:[%s2 + $0x1d8] sm:$0xff]
  %v1887 = vld [vmem:[%s2 + $0x1e0] sm:$0xff]
  %v1888 = vld [vmem:[%s2 + $0x1e8] sm:$0xff]
  %v1889 = vld [vmem:[%s2 + $0x1f0] sm:$0xff]
  %v1890 = vld [vmem:[%s2 + $0x1f8] sm:$0xff]
  %1891 = vmatprep.subr.mxu0 %v1888
  %1892 = vmatpush1.msra.mxu0 %v1887
  %1893 = vmatprep.subr.mxu0 %v1884
  %1894 = vmatpush1.msra.mxu0 %v1883
  %1895 = vmatprep.subr.mxu0 %v1880
  %1896 = vmatpush1.msra.mxu0 %v1879
  %1897 = vmatprep.subr.mxu0 %v1876
  %1898 = vmatpush1.msra.mxu0 %v1875
  %1899 = vmatprep.subr.mxu0 %v1872
  %1900 = vmatpush1.msra.mxu0 %v1871
  %1901 = vmatprep.subr.mxu0 %v1868
  %1902 = vmatpush1.msra.mxu0 %v1867
  %1903 = vmatprep.subr.mxu0 %v1864
  %1904 = vmatpush1.msra.mxu0 %v1863
  %1905 = vmatprep.subr.mxu0 %v1860
  %1906 = vmatpush1.msra.mxu0 %v1859
  %1907 = vmatprep.subr.mxu0 %v1856
  %1908 = vmatpush1.msra.mxu0 %v1855
  %1909 = vmatprep.subr.mxu0 %v1852
  %1910 = vmatpush1.msra.mxu0 %v1851
  %1911 = vmatprep.subr.mxu0 %v1848
  %1912 = vmatpush1.msra.mxu0 %v1847
  %1913 = vmatprep.subr.mxu0 %v1844
  %1914 = vmatpush1.msra.mxu0 %v1843
  %1915 = vmatprep.subr.mxu0 %v1840
  %1916 = vmatpush1.msra.mxu0 %v1839
  %1917 = vmatprep.subr.mxu0 %v1836
  %1918 = vmatpush1.msra.mxu0 %v1835
  %1919 = vmatprep.subr.mxu0 %v1832
  %1920 = vmatpush1.msra.mxu0 %v1831
  %1921 = vmatprep.subr.mxu0 %v1828
  %1922 = vmatpush1.msra.mxu0 %v1827
  %1923 = vmatprep.subr.mxu0 0.0
  %1924 = vmatpush2.msra.mxu0 0.0
  %1925 = vmatprep.subr.mxu0 0.0
  %1926 = vmatpush2.msra.mxu0 0.0
  %1927 = vmatprep.subr.mxu0 0.0
  %1928 = vmatpush2.msra.mxu0 0.0
  %1929 = vmatprep.subr.mxu0 0.0
  %1930 = vmatpush2.msra.mxu0 0.0
  %1931 = vmatprep.subr.mxu0 0.0
  %1932 = vmatpush2.msra.mxu0 0.0
  %1933 = vmatprep.subr.mxu0 0.0
  %1934 = vmatpush2.msra.mxu0 0.0
  %1935 = vmatprep.subr.mxu0 0.0
  %1936 = vmatpush2.msra.mxu0 0.0
  %1937 = vmatprep.subr.mxu0 0.0
  %1938 = vmatpush2.msra.mxu0 0.0
  %1939 = vmatprep.subr.mxu0 0.0
  %1940 = vmatpush2.msra.mxu0 0.0
  %1941 = vmatprep.subr.mxu0 0.0
  %1942 = vmatpush2.msra.mxu0 0.0
  %1943 = vmatprep.subr.mxu0 0.0
  %1944 = vmatpush2.msra.mxu0 0.0
  %1945 = vmatprep.subr.mxu0 0.0
  %1946 = vmatpush2.msra.mxu0 0.0
  %1947 = vmatprep.subr.mxu0 0.0
  %1948 = vmatpush2.msra.mxu0 0.0
  %1949 = vmatprep.subr.mxu0 0.0
  %1950 = vmatpush2.msra.mxu0 0.0
  %1951 = vmatprep.subr.mxu0 0.0
  %1952 = vmatpush2.msra.mxu0 0.0
  %1953 = vmatprep.subr.mxu0 0.0
  %1954 = vmatpush2.msra.mxu0 0.0
  %1955 = vmatprep.mubr.f32.mxu0 0.0
  %1956 = vmatmul.mubr.f32.gmra.mxu0 %v1817
  %v1957 = vpop.f32.mrf.mxu0
  %v1958 = vadd.f32 0.0, %v1957
  %v1959 = vpop.f32.mrf.mxu0
  %v1960 = vadd.f32 0.0, %v1959
  %1961 = vdwg.mxu0
  %1962 = vmatprep.subr.mxu0 %v1890
  %1963 = vmatpush1.msra.mxu0 %v1889
  %1964 = vmatprep.subr.mxu0 %v1886
  %1965 = vmatpush1.msra.mxu0 %v1885
  %1966 = vmatprep.subr.mxu0 %v1882
  %1967 = vmatpush1.msra.mxu0 %v1881
  %1968 = vmatprep.subr.mxu0 %v1878
  %1969 = vmatpush1.msra.mxu0 %v1877
  %1970 = vmatprep.subr.mxu0 %v1874
  %1971 = vmatpush1.msra.mxu0 %v1873
  %1972 = vmatprep.subr.mxu0 %v1870
  %1973 = vmatpush1.msra.mxu0 %v1869
  %1974 = vmatprep.subr.mxu0 %v1866
  %1975 = vmatpush1.msra.mxu0 %v1865
  %1976 = vmatprep.subr.mxu0 %v1862
  %1977 = vmatpush1.msra.mxu0 %v1861
  %1978 = vmatprep.subr.mxu0 %v1858
  %1979 = vmatpush1.msra.mxu0 %v1857
  %1980 = vmatprep.subr.mxu0 %v1854
  %1981 = vmatpush1.msra.mxu0 %v1853
  %1982 = vmatprep.subr.mxu0 %v1850
  %1983 = vmatpush1.msra.mxu0 %v1849
  %1984 = vmatprep.subr.mxu0 %v1846
  %1985 = vmatpush1.msra.mxu0 %v1845
  %1986 = vmatprep.subr.mxu0 %v1842
  %1987 = vmatpush1.msra.mxu0 %v1841
  %1988 = vmatprep.subr.mxu0 %v1838
  %1989 = vmatpush1.msra.mxu0 %v1837
  %1990 = vmatprep.subr.mxu0 %v1834
  %1991 = vmatpush1.msra.mxu0 %v1833
  %1992 = vmatprep.subr.mxu0 %v1830
  %1993 = vmatpush1.msra.mxu0 %v1829
  %1994 = vmatprep.subr.mxu0 0.0
  %1995 = vmatpush2.msra.mxu0 0.0
  %1996 = vmatprep.subr.mxu0 0.0
  %1997 = vmatpush2.msra.mxu0 0.0
  %1998 = vmatprep.subr.mxu0 0.0
  %1999 = vmatpush2.msra.mxu0 0.0
  %2000 = vmatprep.subr.mxu0 0.0
  %2001 = vmatpush2.msra.mxu0 0.0
  %2002 = vmatprep.subr.mxu0 0.0
  %2003 = vmatpush2.msra.mxu0 0.0
  %2004 = vmatprep.subr.mxu0 0.0
  %2005 = vmatpush2.msra.mxu0 0.0
  %2006 = vmatprep.subr.mxu0 0.0
  %2007 = vmatpush2.msra.mxu0 0.0
  %2008 = vmatprep.subr.mxu0 0.0
  %2009 = vmatpush2.msra.mxu0 0.0
  %2010 = vmatprep.subr.mxu0 0.0
  %2011 = vmatpush2.msra.mxu0 0.0
  %2012 = vmatprep.subr.mxu0 0.0
  %2013 = vmatpush2.msra.mxu0 0.0
  %2014 = vmatprep.subr.mxu0 0.0
  %2015 = vmatpush2.msra.mxu0 0.0
  %2016 = vmatprep.subr.mxu0 0.0
  %2017 = vmatpush2.msra.mxu0 0.0
  %2018 = vmatprep.subr.mxu0 0.0
  %2019 = vmatpush2.msra.mxu0 0.0
  %2020 = vmatprep.subr.mxu0 0.0
  %2021 = vmatpush2.msra.mxu0 0.0
  %2022 = vmatprep.subr.mxu0 0.0
  %2023 = vmatpush2.msra.mxu0 0.0
  %2024 = vmatprep.subr.mxu0 0.0
  %2025 = vmatpush2.msra.mxu0 0.0
  %2026 = vmatprep.mubr.f32.mxu0 0.0
  %2027 = vmatmul.mubr.f32.gmra.mxu0 %v1817
  %v2028 = vpop.f32.mrf.mxu0
  %v2029 = vadd.f32 0.0, %v2028
  %v2030 = vpop.f32.mrf.mxu0
  %v2031 = vadd.f32 0.0, %v2030
  %2032 = vdwg.mxu0
  %v2033 = vadd.f32 %v1823, %v1958
  %v2034 = vadd.f32 %v1824, %v1960
  %v2035 = vadd.f32 %v1825, %v2029
  %v2036 = vadd.f32 %v1826, %v2031
  %v2037 = vxor.u32 %v2033, 2147483648
  %v2038 = vmul.f32 %v2037, 1.442695
  %v2039 = vpow.pop %v2038
  %v2040 = vadd.f32 %v2039, 1.0
  %v2041 = vrcp.pop %v2040
  %v2042 = vmul.f32 1.0, %v2041
  %v2043 = vxor.u32 %v2034, 2147483648
  %v2044 = vmul.f32 %v2043, 1.442695
  %v2045 = vpow.pop %v2044
  %v2046 = vadd.f32 %v2045, 1.0
  %v2047 = vrcp.pop %v2046
  %v2048 = vmul.f32 1.0, %v2047
  %v2049 = vtanh.pop %v2035
  %v2050 = vxor.u32 %v2036, 2147483648
  %v2051 = vmul.f32 %v2050, 1.442695
  %v2052 = vpow.pop %v2051
  %v2053 = vadd.f32 %v2052, 1.0
  %v2054 = vrcp.pop %v2053
  %v2055 = vmul.f32 1.0, %v2054
  %v2056 = vmul.f32 %v2048, %v1815
  %v2057 = vmul.f32 %v2042, %v2049
  %v2058 = vadd.f32 %v2056, %v2057
  %v2059 = vtanh.pop %v2058
  %v2060 = vmul.f32 %v2055, %v2059
  %s2061 = scalar_lea.vmem %s4, 40
  %2062 = vst [vmem:[%s2061] sm:$0xff] %v2060
  %s2063 = smul.u32 6, 4
  %s2064 = smul.addr %s2063, 8
  %s2065 = scalar_lea.vmem [#allocation2], %s2064
  %v2066 = vld [vmem:[%s2065] sm:$0xff]
  %v2067 = vld [vmem:[%s2065 + $0x8] sm:$0xff]
  %v2068 = vld [vmem:[%s2065 + $0x10] sm:$0xff]
  %v2069 = vld [vmem:[%s2065 + $0x18] sm:$0xff]
  %v2070 = vld [vmem:[%s2] sm:$0xff]
  %v2071 = vld [vmem:[%s2 + $0x8] sm:$0xff]
  %v2072 = vld [vmem:[%s2 + $0x10] sm:$0xff]
  %v2073 = vld [vmem:[%s2 + $0x18] sm:$0xff]
  %v2074 = vld [vmem:[%s2 + $0x20] sm:$0xff]
  %v2075 = vld [vmem:[%s2 + $0x28] sm:$0xff]
  %v2076 = vld [vmem:[%s2 + $0x30] sm:$0xff]
  %v2077 = vld [vmem:[%s2 + $0x38] sm:$0xff]
  %v2078 = vld [vmem:[%s2 + $0x40] sm:$0xff]
  %v2079 = vld [vmem:[%s2 + $0x48] sm:$0xff]
  %v2080 = vld [vmem:[%s2 + $0x50] sm:$0xff]
  %v2081 = vld [vmem:[%s2 + $0x58] sm:$0xff]
  %v2082 = vld [vmem:[%s2 + $0x60] sm:$0xff]
  %v2083 = vld [vmem:[%s2 + $0x68] sm:$0xff]
  %v2084 = vld [vmem:[%s2 + $0x70] sm:$0xff]
  %v2085 = vld [vmem:[%s2 + $0x78] sm:$0xff]
  %v2086 = vld [vmem:[%s2 + $0x80] sm:$0xff]
  %v2087 = vld [vmem:[%s2 + $0x88] sm:$0xff]
  %v2088 = vld [vmem:[%s2 + $0x90] sm:$0xff]
  %v2089 = vld [vmem:[%s2 + $0x98] sm:$0xff]
  %v2090 = vld [vmem:[%s2 + $0xa0] sm:$0xff]
  %v2091 = vld [vmem:[%s2 + $0xa8] sm:$0xff]
  %v2092 = vld [vmem:[%s2 + $0xb0] sm:$0xff]
  %v2093 = vld [vmem:[%s2 + $0xb8] sm:$0xff]
  %v2094 = vld [vmem:[%s2 + $0xc0] sm:$0xff]
  %v2095 = vld [vmem:[%s2 + $0xc8] sm:$0xff]
  %v2096 = vld [vmem:[%s2 + $0xd0] sm:$0xff]
  %v2097 = vld [vmem:[%s2 + $0xd8] sm:$0xff]
  %v2098 = vld [vmem:[%s2 + $0xe0] sm:$0xff]
  %v2099 = vld [vmem:[%s2 + $0xe8] sm:$0xff]
  %v2100 = vld [vmem:[%s2 + $0xf0] sm:$0xff]
  %v2101 = vld [vmem:[%s2 + $0xf8] sm:$0xff]
  %v2102 = vld [vmem:[%s2 + $0x100] sm:$0xff]
  %v2103 = vld [vmem:[%s2 + $0x108] sm:$0xff]
  %v2104 = vld [vmem:[%s2 + $0x110] sm:$0xff]
  %v2105 = vld [vmem:[%s2 + $0x118] sm:$0xff]
  %v2106 = vld [vmem:[%s2 + $0x120] sm:$0xff]
  %v2107 = vld [vmem:[%s2 + $0x128] sm:$0xff]
  %v2108 = vld [vmem:[%s2 + $0x130] sm:$0xff]
  %v2109 = vld [vmem:[%s2 + $0x138] sm:$0xff]
  %v2110 = vld [vmem:[%s2 + $0x140] sm:$0xff]
  %v2111 = vld [vmem:[%s2 + $0x148] sm:$0xff]
  %v2112 = vld [vmem:[%s2 + $0x150] sm:$0xff]
  %v2113 = vld [vmem:[%s2 + $0x158] sm:$0xff]
  %v2114 = vld [vmem:[%s2 + $0x160] sm:$0xff]
  %v2115 = vld [vmem:[%s2 + $0x168] sm:$0xff]
  %v2116 = vld [vmem:[%s2 + $0x170] sm:$0xff]
  %v2117 = vld [vmem:[%s2 + $0x178] sm:$0xff]
  %v2118 = vld [vmem:[%s2 + $0x180] sm:$0xff]
  %v2119 = vld [vmem:[%s2 + $0x188] sm:$0xff]
  %v2120 = vld [vmem:[%s2 + $0x190] sm:$0xff]
  %v2121 = vld [vmem:[%s2 + $0x198] sm:$0xff]
  %v2122 = vld [vmem:[%s2 + $0x1a0] sm:$0xff]
  %v2123 = vld [vmem:[%s2 + $0x1a8] sm:$0xff]
  %v2124 = vld [vmem:[%s2 + $0x1b0] sm:$0xff]
  %v2125 = vld [vmem:[%s2 + $0x1b8] sm:$0xff]
  %v2126 = vld [vmem:[%s2 + $0x1c0] sm:$0xff]
  %v2127 = vld [vmem:[%s2 + $0x1c8] sm:$0xff]
  %v2128 = vld [vmem:[%s2 + $0x1d0] sm:$0xff]
  %v2129 = vld [vmem:[%s2 + $0x1d8] sm:$0xff]
  %v2130 = vld [vmem:[%s2 + $0x1e0] sm:$0xff]
  %v2131 = vld [vmem:[%s2 + $0x1e8] sm:$0xff]
  %v2132 = vld [vmem:[%s2 + $0x1f0] sm:$0xff]
  %v2133 = vld [vmem:[%s2 + $0x1f8] sm:$0xff]
  %2134 = vmatprep.subr.mxu0 %v2131
  %2135 = vmatpush1.msra.mxu0 %v2130
  %2136 = vmatprep.subr.mxu0 %v2127
  %2137 = vmatpush1.msra.mxu0 %v2126
  %2138 = vmatprep.subr.mxu0 %v2123
  %2139 = vmatpush1.msra.mxu0 %v2122
  %2140 = vmatprep.subr.mxu0 %v2119
  %2141 = vmatpush1.msra.mxu0 %v2118
  %2142 = vmatprep.subr.mxu0 %v2115
  %2143 = vmatpush1.msra.mxu0 %v2114
  %2144 = vmatprep.subr.mxu0 %v2111
  %2145 = vmatpush1.msra.mxu0 %v2110
  %2146 = vmatprep.subr.mxu0 %v2107
  %2147 = vmatpush1.msra.mxu0 %v2106
  %2148 = vmatprep.subr.mxu0 %v2103
  %2149 = vmatpush1.msra.mxu0 %v2102
  %2150 = vmatprep.subr.mxu0 %v2099
  %2151 = vmatpush1.msra.mxu0 %v2098
  %2152 = vmatprep.subr.mxu0 %v2095
  %2153 = vmatpush1.msra.mxu0 %v2094
  %2154 = vmatprep.subr.mxu0 %v2091
  %2155 = vmatpush1.msra.mxu0 %v2090
  %2156 = vmatprep.subr.mxu0 %v2087
  %2157 = vmatpush1.msra.mxu0 %v2086
  %2158 = vmatprep.subr.mxu0 %v2083
  %2159 = vmatpush1.msra.mxu0 %v2082
  %2160 = vmatprep.subr.mxu0 %v2079
  %2161 = vmatpush1.msra.mxu0 %v2078
  %2162 = vmatprep.subr.mxu0 %v2075
  %2163 = vmatpush1.msra.mxu0 %v2074
  %2164 = vmatprep.subr.mxu0 %v2071
  %2165 = vmatpush1.msra.mxu0 %v2070
  %2166 = vmatprep.subr.mxu0 0.0
  %2167 = vmatpush2.msra.mxu0 0.0
  %2168 = vmatprep.subr.mxu0 0.0
  %2169 = vmatpush2.msra.mxu0 0.0
  %2170 = vmatprep.subr.mxu0 0.0
  %2171 = vmatpush2.msra.mxu0 0.0
  %2172 = vmatprep.subr.mxu0 0.0
  %2173 = vmatpush2.msra.mxu0 0.0
  %2174 = vmatprep.subr.mxu0 0.0
  %2175 = vmatpush2.msra.mxu0 0.0
  %2176 = vmatprep.subr.mxu0 0.0
  %2177 = vmatpush2.msra.mxu0 0.0
  %2178 = vmatprep.subr.mxu0 0.0
  %2179 = vmatpush2.msra.mxu0 0.0
  %2180 = vmatprep.subr.mxu0 0.0
  %2181 = vmatpush2.msra.mxu0 0.0
  %2182 = vmatprep.subr.mxu0 0.0
  %2183 = vmatpush2.msra.mxu0 0.0
  %2184 = vmatprep.subr.mxu0 0.0
  %2185 = vmatpush2.msra.mxu0 0.0
  %2186 = vmatprep.subr.mxu0 0.0
  %2187 = vmatpush2.msra.mxu0 0.0
  %2188 = vmatprep.subr.mxu0 0.0
  %2189 = vmatpush2.msra.mxu0 0.0
  %2190 = vmatprep.subr.mxu0 0.0
  %2191 = vmatpush2.msra.mxu0 0.0
  %2192 = vmatprep.subr.mxu0 0.0
  %2193 = vmatpush2.msra.mxu0 0.0
  %2194 = vmatprep.subr.mxu0 0.0
  %2195 = vmatpush2.msra.mxu0 0.0
  %2196 = vmatprep.subr.mxu0 0.0
  %2197 = vmatpush2.msra.mxu0 0.0
  %2198 = vmatprep.mubr.f32.mxu0 0.0
  %2199 = vmatmul.mubr.f32.gmra.mxu0 %v2060
  %v2200 = vpop.f32.mrf.mxu0
  %v2201 = vadd.f32 0.0, %v2200
  %v2202 = vpop.f32.mrf.mxu0
  %v2203 = vadd.f32 0.0, %v2202
  %2204 = vdwg.mxu0
  %2205 = vmatprep.subr.mxu0 %v2133
  %2206 = vmatpush1.msra.mxu0 %v2132
  %2207 = vmatprep.subr.mxu0 %v2129
  %2208 = vmatpush1.msra.mxu0 %v2128
  %2209 = vmatprep.subr.mxu0 %v2125
  %2210 = vmatpush1.msra.mxu0 %v2124
  %2211 = vmatprep.subr.mxu0 %v2121
  %2212 = vmatpush1.msra.mxu0 %v2120
  %2213 = vmatprep.subr.mxu0 %v2117
  %2214 = vmatpush1.msra.mxu0 %v2116
  %2215 = vmatprep.subr.mxu0 %v2113
  %2216 = vmatpush1.msra.mxu0 %v2112
  %2217 = vmatprep.subr.mxu0 %v2109
  %2218 = vmatpush1.msra.mxu0 %v2108
  %2219 = vmatprep.subr.mxu0 %v2105
  %2220 = vmatpush1.msra.mxu0 %v2104
  %2221 = vmatprep.subr.mxu0 %v2101
  %2222 = vmatpush1.msra.mxu0 %v2100
  %2223 = vmatprep.subr.mxu0 %v2097
  %2224 = vmatpush1.msra.mxu0 %v2096
  %2225 = vmatprep.subr.mxu0 %v2093
  %2226 = vmatpush1.msra.mxu0 %v2092
  %2227 = vmatprep.subr.mxu0 %v2089
  %2228 = vmatpush1.msra.mxu0 %v2088
  %2229 = vmatprep.subr.mxu0 %v2085
  %2230 = vmatpush1.msra.mxu0 %v2084
  %2231 = vmatprep.subr.mxu0 %v2081
  %2232 = vmatpush1.msra.mxu0 %v2080
  %2233 = vmatprep.subr.mxu0 %v2077
  %2234 = vmatpush1.msra.mxu0 %v2076
  %2235 = vmatprep.subr.mxu0 %v2073
  %2236 = vmatpush1.msra.mxu0 %v2072
  %2237 = vmatprep.subr.mxu0 0.0
  %2238 = vmatpush2.msra.mxu0 0.0
  %2239 = vmatprep.subr.mxu0 0.0
  %2240 = vmatpush2.msra.mxu0 0.0
  %2241 = vmatprep.subr.mxu0 0.0
  %2242 = vmatpush2.msra.mxu0 0.0
  %2243 = vmatprep.subr.mxu0 0.0
  %2244 = vmatpush2.msra.mxu0 0.0
  %2245 = vmatprep.subr.mxu0 0.0
  %2246 = vmatpush2.msra.mxu0 0.0
  %2247 = vmatprep.subr.mxu0 0.0
  %2248 = vmatpush2.msra.mxu0 0.0
  %2249 = vmatprep.subr.mxu0 0.0
  %2250 = vmatpush2.msra.mxu0 0.0
  %2251 = vmatprep.subr.mxu0 0.0
  %2252 = vmatpush2.msra.mxu0 0.0
  %2253 = vmatprep.subr.mxu0 0.0
  %2254 = vmatpush2.msra.mxu0 0.0
  %2255 = vmatprep.subr.mxu0 0.0
  %2256 = vmatpush2.msra.mxu0 0.0
  %2257 = vmatprep.subr.mxu0 0.0
  %2258 = vmatpush2.msra.mxu0 0.0
  %2259 = vmatprep.subr.mxu0 0.0
  %2260 = vmatpush2.msra.mxu0 0.0
  %2261 = vmatprep.subr.mxu0 0.0
  %2262 = vmatpush2.msra.mxu0 0.0
  %2263 = vmatprep.subr.mxu0 0.0
  %2264 = vmatpush2.msra.mxu0 0.0
  %2265 = vmatprep.subr.mxu0 0.0
  %2266 = vmatpush2.msra.mxu0 0.0
  %2267 = vmatprep.subr.mxu0 0.0
  %2268 = vmatpush2.msra.mxu0 0.0
  %2269 = vmatprep.mubr.f32.mxu0 0.0
  %2270 = vmatmul.mubr.f32.gmra.mxu0 %v2060
  %v2271 = vpop.f32.mrf.mxu0
  %v2272 = vadd.f32 0.0, %v2271
  %v2273 = vpop.f32.mrf.mxu0
  %v2274 = vadd.f32 0.0, %v2273
  %2275 = vdwg.mxu0
  %v2276 = vadd.f32 %v2066, %v2201
  %v2277 = vadd.f32 %v2067, %v2203
  %v2278 = vadd.f32 %v2068, %v2272
  %v2279 = vadd.f32 %v2069, %v2274
  %v2280 = vxor.u32 %v2276, 2147483648
  %v2281 = vmul.f32 %v2280, 1.442695
  %v2282 = vpow.pop %v2281
  %v2283 = vadd.f32 %v2282, 1.0
  %v2284 = vrcp.pop %v2283
  %v2285 = vmul.f32 1.0, %v2284
  %v2286 = vxor.u32 %v2277, 2147483648
  %v2287 = vmul.f32 %v2286, 1.442695
  %v2288 = vpow.pop %v2287
  %v2289 = vadd.f32 %v2288, 1.0
  %v2290 = vrcp.pop %v2289
  %v2291 = vmul.f32 1.0, %v2290
  %v2292 = vtanh.pop %v2278
  %v2293 = vxor.u32 %v2279, 2147483648
  %v2294 = vmul.f32 %v2293, 1.442695
  %v2295 = vpow.pop %v2294
  %v2296 = vadd.f32 %v2295, 1.0
  %v2297 = vrcp.pop %v2296
  %v2298 = vmul.f32 1.0, %v2297
  %v2299 = vmul.f32 %v2291, %v2058
  %v2300 = vmul.f32 %v2285, %v2292
  %v2301 = vadd.f32 %v2299, %v2300
  %v2302 = vtanh.pop %v2301
  %v2303 = vmul.f32 %v2298, %v2302
  %s2304 = scalar_lea.vmem %s4, 48
  %2305 = vst [vmem:[%s2304] sm:$0xff] %v2303
  %s2306 = smul.u32 7, 4
  %s2307 = smul.addr %s2306, 8
  %s2308 = scalar_lea.vmem [#allocation2], %s2307
  %v2309 = vld [vmem:[%s2308] sm:$0xff]
  %v2310 = vld [vmem:[%s2308 + $0x8] sm:$0xff]
  %v2311 = vld [vmem:[%s2308 + $0x10] sm:$0xff]
  %v2312 = vld [vmem:[%s2308 + $0x18] sm:$0xff]
  %v2313 = vld [vmem:[%s2] sm:$0xff]
  %v2314 = vld [vmem:[%s2 + $0x8] sm:$0xff]
  %v2315 = vld [vmem:[%s2 + $0x10] sm:$0xff]
  %v2316 = vld [vmem:[%s2 + $0x18] sm:$0xff]
  %v2317 = vld [vmem:[%s2 + $0x20] sm:$0xff]
  %v2318 = vld [vmem:[%s2 + $0x28] sm:$0xff]
  %v2319 = vld [vmem:[%s2 + $0x30] sm:$0xff]
  %v2320 = vld [vmem:[%s2 + $0x38] sm:$0xff]
  %v2321 = vld [vmem:[%s2 + $0x40] sm:$0xff]
  %v2322 = vld [vmem:[%s2 + $0x48] sm:$0xff]
  %v2323 = vld [vmem:[%s2 + $0x50] sm:$0xff]
  %v2324 = vld [vmem:[%s2 + $0x58] sm:$0xff]
  %v2325 = vld [vmem:[%s2 + $0x60] sm:$0xff]
  %v2326 = vld [vmem:[%s2 + $0x68] sm:$0xff]
  %v2327 = vld [vmem:[%s2 + $0x70] sm:$0xff]
  %v2328 = vld [vmem:[%s2 + $0x78] sm:$0xff]
  %v2329 = vld [vmem:[%s2 + $0x80] sm:$0xff]
  %v2330 = vld [vmem:[%s2 + $0x88] sm:$0xff]
  %v2331 = vld [vmem:[%s2 + $0x90] sm:$0xff]
  %v2332 = vld [vmem:[%s2 + $0x98] sm:$0xff]
  %v2333 = vld [vmem:[%s2 + $0xa0] sm:$0xff]
  %v2334 = vld [vmem:[%s2 + $0xa8] sm:$0xff]
  %v2335 = vld [vmem:[%s2 + $0xb0] sm:$0xff]
  %v2336 = vld [vmem:[%s2 + $0xb8] sm:$0xff]
  %v2337 = vld [vmem:[%s2 + $0xc0] sm:$0xff]
  %v2338 = vld [vmem:[%s2 + $0xc8] sm:$0xff]
  %v2339 = vld [vmem:[%s2 + $0xd0] sm:$0xff]
  %v2340 = vld [vmem:[%s2 + $0xd8] sm:$0xff]
  %v2341 = vld [vmem:[%s2 + $0xe0] sm:$0xff]
  %v2342 = vld [vmem:[%s2 + $0xe8] sm:$0xff]
  %v2343 = vld [vmem:[%s2 + $0xf0] sm:$0xff]
  %v2344 = vld [vmem:[%s2 + $0xf8] sm:$0xff]
  %v2345 = vld [vmem:[%s2 + $0x100] sm:$0xff]
  %v2346 = vld [vmem:[%s2 + $0x108] sm:$0xff]
  %v2347 = vld [vmem:[%s2 + $0x110] sm:$0xff]
  %v2348 = vld [vmem:[%s2 + $0x118] sm:$0xff]
  %v2349 = vld [vmem:[%s2 + $0x120] sm:$0xff]
  %v2350 = vld [vmem:[%s2 + $0x128] sm:$0xff]
  %v2351 = vld [vmem:[%s2 + $0x130] sm:$0xff]
  %v2352 = vld [vmem:[%s2 + $0x138] sm:$0xff]
  %v2353 = vld [vmem:[%s2 + $0x140] sm:$0xff]
  %v2354 = vld [vmem:[%s2 + $0x148] sm:$0xff]
  %v2355 = vld [vmem:[%s2 + $0x150] sm:$0xff]
  %v2356 = vld [vmem:[%s2 + $0x158] sm:$0xff]
  %v2357 = vld [vmem:[%s2 + $0x160] sm:$0xff]
  %v2358 = vld [vmem:[%s2 + $0x168] sm:$0xff]
  %v2359 = vld [vmem:[%s2 + $0x170] sm:$0xff]
  %v2360 = vld [vmem:[%s2 + $0x178] sm:$0xff]
  %v2361 = vld [vmem:[%s2 + $0x180] sm:$0xff]
  %v2362 = vld [vmem:[%s2 + $0x188] sm:$0xff]
  %v2363 = vld [vmem:[%s2 + $0x190] sm:$0xff]
  %v2364 = vld [vmem:[%s2 + $0x198] sm:$0xff]
  %v2365 = vld [vmem:[%s2 + $0x1a0] sm:$0xff]
  %v2366 = vld [vmem:[%s2 + $0x1a8] sm:$0xff]
  %v2367 = vld [vmem:[%s2 + $0x1b0] sm:$0xff]
  %v2368 = vld [vmem:[%s2 + $0x1b8] sm:$0xff]
  %v2369 = vld [vmem:[%s2 + $0x1c0] sm:$0xff]
  %v2370 = vld [vmem:[%s2 + $0x1c8] sm:$0xff]
  %v2371 = vld [vmem:[%s2 + $0x1d0] sm:$0xff]
  %v2372 = vld [vmem:[%s2 + $0x1d8] sm:$0xff]
  %v2373 = vld [vmem:[%s2 + $0x1e0] sm:$0xff]
  %v2374 = vld [vmem:[%s2 + $0x1e8] sm:$0xff]
  %v2375 = vld [vmem:[%s2 + $0x1f0] sm:$0xff]
  %v2376 = vld [vmem:[%s2 + $0x1f8] sm:$0xff]
  %2377 = vmatprep.subr.mxu0 %v2374
  %2378 = vmatpush1.msra.mxu0 %v2373
  %2379 = vmatprep.subr.mxu0 %v2370
  %2380 = vmatpush1.msra.mxu0 %v2369
  %2381 = vmatprep.subr.mxu0 %v2366
  %2382 = vmatpush1.msra.mxu0 %v2365
  %2383 = vmatprep.subr.mxu0 %v2362
  %2384 = vmatpush1.msra.mxu0 %v2361
  %2385 = vmatprep.subr.mxu0 %v2358
  %2386 = vmatpush1.msra.mxu0 %v2357
  %2387 = vmatprep.subr.mxu0 %v2354
  %2388 = vmatpush1.msra.mxu0 %v2353
  %2389 = vmatprep.subr.mxu0 %v2350
  %2390 = vmatpush1.msra.mxu0 %v2349
  %2391 = vmatprep.subr.mxu0 %v2346
  %2392 = vmatpush1.msra.mxu0 %v2345
  %2393 = vmatprep.subr.mxu0 %v2342
  %2394 = vmatpush1.msra.mxu0 %v2341
  %2395 = vmatprep.subr.mxu0 %v2338
  %2396 = vmatpush1.msra.mxu0 %v2337
  %2397 = vmatprep.subr.mxu0 %v2334
  %2398 = vmatpush1.msra.mxu0 %v2333
  %2399 = vmatprep.subr.mxu0 %v2330
  %2400 = vmatpush1.msra.mxu0 %v2329
  %2401 = vmatprep.subr.mxu0 %v2326
  %2402 = vmatpush1.msra.mxu0 %v2325
  %2403 = vmatprep.subr.mxu0 %v2322
  %2404 = vmatpush1.msra.mxu0 %v2321
  %2405 = vmatprep.subr.mxu0 %v2318
  %2406 = vmatpush1.msra.mxu0 %v2317
  %2407 = vmatprep.subr.mxu0 %v2314
  %2408 = vmatpush1.msra.mxu0 %v2313
  %2409 = vmatprep.subr.mxu0 0.0
  %2410 = vmatpush2.msra.mxu0 0.0
  %2411 = vmatprep.subr.mxu0 0.0
  %2412 = vmatpush2.msra.mxu0 0.0
  %2413 = vmatprep.subr.mxu0 0.0
  %2414 = vmatpush2.msra.mxu0 0.0
  %2415 = vmatprep.subr.mxu0 0.0
  %2416 = vmatpush2.msra.mxu0 0.0
  %2417 = vmatprep.subr.mxu0 0.0
  %2418 = vmatpush2.msra.mxu0 0.0
  %2419 = vmatprep.subr.mxu0 0.0
  %2420 = vmatpush2.msra.mxu0 0.0
  %2421 = vmatprep.subr.mxu0 0.0
  %2422 = vmatpush2.msra.mxu0 0.0
  %2423 = vmatprep.subr.mxu0 0.0
  %2424 = vmatpush2.msra.mxu0 0.0
  %2425 = vmatprep.subr.mxu0 0.0
  %2426 = vmatpush2.msra.mxu0 0.0
  %2427 = vmatprep.subr.mxu0 0.0
  %2428 = vmatpush2.msra.mxu0 0.0
  %2429 = vmatprep.subr.mxu0 0.0
  %2430 = vmatpush2.msra.mxu0 0.0
  %2431 = vmatprep.subr.mxu0 0.0
  %2432 = vmatpush2.msra.mxu0 0.0
  %2433 = vmatprep.subr.mxu0 0.0
  %2434 = vmatpush2.msra.mxu0 0.0
  %2435 = vmatprep.subr.mxu0 0.0
  %2436 = vmatpush2.msra.mxu0 0.0
  %2437 = vmatprep.subr.mxu0 0.0
  %2438 = vmatpush2.msra.mxu0 0.0
  %2439 = vmatprep.subr.mxu0 0.0
  %2440 = vmatpush2.msra.mxu0 0.0
  %2441 = vmatprep.mubr.f32.mxu0 0.0
  %2442 = vmatmul.mubr.f32.gmra.mxu0 %v2303
  %v2443 = vpop.f32.mrf.mxu0
  %v2444 = vadd.f32 0.0, %v2443
  %v2445 = vpop.f32.mrf.mxu0
  %v2446 = vadd.f32 0.0, %v2445
  %2447 = vdwg.mxu0
  %2448 = vmatprep.subr.mxu0 %v2376
  %2449 = vmatpush1.msra.mxu0 %v2375
  %2450 = vmatprep.subr.mxu0 %v2372
  %2451 = vmatpush1.msra.mxu0 %v2371
  %2452 = vmatprep.subr.mxu0 %v2368
  %2453 = vmatpush1.msra.mxu0 %v2367
  %2454 = vmatprep.subr.mxu0 %v2364
  %2455 = vmatpush1.msra.mxu0 %v2363
  %2456 = vmatprep.subr.mxu0 %v2360
  %2457 = vmatpush1.msra.mxu0 %v2359
  %2458 = vmatprep.subr.mxu0 %v2356
  %2459 = vmatpush1.msra.mxu0 %v2355
  %2460 = vmatprep.subr.mxu0 %v2352
  %2461 = vmatpush1.msra.mxu0 %v2351
  %2462 = vmatprep.subr.mxu0 %v2348
  %2463 = vmatpush1.msra.mxu0 %v2347
  %2464 = vmatprep.subr.mxu0 %v2344
  %2465 = vmatpush1.msra.mxu0 %v2343
  %2466 = vmatprep.subr.mxu0 %v2340
  %2467 = vmatpush1.msra.mxu0 %v2339
  %2468 = vmatprep.subr.mxu0 %v2336
  %2469 = vmatpush1.msra.mxu0 %v2335
  %2470 = vmatprep.subr.mxu0 %v2332
  %2471 = vmatpush1.msra.mxu0 %v2331
  %2472 = vmatprep.subr.mxu0 %v2328
  %2473 = vmatpush1.msra.mxu0 %v2327
  %2474 = vmatprep.subr.mxu0 %v2324
  %2475 = vmatpush1.msra.mxu0 %v2323
  %2476 = vmatprep.subr.mxu0 %v2320
  %2477 = vmatpush1.msra.mxu0 %v2319
  %2478 = vmatprep.subr.mxu0 %v2316
  %2479 = vmatpush1.msra.mxu0 %v2315
  %2480 = vmatprep.subr.mxu0 0.0
  %2481 = vmatpush2.msra.mxu0 0.0
  %2482 = vmatprep.subr.mxu0 0.0
  %2483 = vmatpush2.msra.mxu0 0.0
  %2484 = vmatprep.subr.mxu0 0.0
  %2485 = vmatpush2.msra.mxu0 0.0
  %2486 = vmatprep.subr.mxu0 0.0
  %2487 = vmatpush2.msra.mxu0 0.0
  %2488 = vmatprep.subr.mxu0 0.0
  %2489 = vmatpush2.msra.mxu0 0.0
  %2490 = vmatprep.subr.mxu0 0.0
  %2491 = vmatpush2.msra.mxu0 0.0
  %2492 = vmatprep.subr.mxu0 0.0
  %2493 = vmatpush2.msra.mxu0 0.0
  %2494 = vmatprep.subr.mxu0 0.0
  %2495 = vmatpush2.msra.mxu0 0.0
  %2496 = vmatprep.subr.mxu0 0.0
  %2497 = vmatpush2.msra.mxu0 0.0
  %2498 = vmatprep.subr.mxu0 0.0
  %2499 = vmatpush2.msra.mxu0 0.0
  %2500 = vmatprep.subr.mxu0 0.0
  %2501 = vmatpush2.msra.mxu0 0.0
  %2502 = vmatprep.subr.mxu0 0.0
  %2503 = vmatpush2.msra.mxu0 0.0
  %2504 = vmatprep.subr.mxu0 0.0
  %2505 = vmatpush2.msra.mxu0 0.0
  %2506 = vmatprep.subr.mxu0 0.0
  %2507 = vmatpush2.msra.mxu0 0.0
  %2508 = vmatprep.subr.mxu0 0.0
  %2509 = vmatpush2.msra.mxu0 0.0
  %2510 = vmatprep.subr.mxu0 0.0
  %2511 = vmatpush2.msra.mxu0 0.0
  %2512 = vmatprep.mubr.f32.mxu0 0.0
  %2513 = vmatmul.mubr.f32.gmra.mxu0 %v2303
  %v2514 = vpop.f32.mrf.mxu0
  %v2515 = vadd.f32 0.0, %v2514
  %v2516 = vpop.f32.mrf.mxu0
  %v2517 = vadd.f32 0.0, %v2516
  %2518 = vdwg.mxu0
  %v2519 = vadd.f32 %v2309, %v2444
  %v2520 = vadd.f32 %v2310, %v2446
  %v2521 = vadd.f32 %v2311, %v2515
  %v2522 = vadd.f32 %v2312, %v2517
  %v2523 = vxor.u32 %v2519, 2147483648
  %v2524 = vmul.f32 %v2523, 1.442695
  %v2525 = vpow.pop %v2524
  %v2526 = vadd.f32 %v2525, 1.0
  %v2527 = vrcp.pop %v2526
  %v2528 = vmul.f32 1.0, %v2527
  %v2529 = vxor.u32 %v2520, 2147483648
  %v2530 = vmul.f32 %v2529, 1.442695
  %v2531 = vpow.pop %v2530
  %v2532 = vadd.f32 %v2531, 1.0
  %v2533 = vrcp.pop %v2532
  %v2534 = vmul.f32 1.0, %v2533
  %v2535 = vtanh.pop %v2521
  %v2536 = vxor.u32 %v2522, 2147483648
  %v2537 = vmul.f32 %v2536, 1.442695
  %v2538 = vpow.pop %v2537
  %v2539 = vadd.f32 %v2538, 1.0
  %v2540 = vrcp.pop %v2539
  %v2541 = vmul.f32 1.0, %v2540
  %v2542 = vmul.f32 %v2534, %v2301
  %v2543 = vmul.f32 %v2528, %v2535
  %v2544 = vadd.f32 %v2542, %v2543
  %v2545 = vtanh.pop %v2544
  %v2546 = vmul.f32 %v2541, %v2545
  %s2547 = scalar_lea.vmem %s4, 56
  %2548 = vst [vmem:[%s2547] sm:$0xff] %v2546
  %s2549 = smul.u32 8, 4
  %s2550 = smul.addr %s2549, 8
  %s2551 = scalar_lea.vmem [#allocation2], %s2550
  %v2552 = vld [vmem:[%s2551] sm:$0xff]
  %v2553 = vld [vmem:[%s2551 + $0x8] sm:$0xff]
  %v2554 = vld [vmem:[%s2551 + $0x10] sm:$0xff]
  %v2555 = vld [vmem:[%s2551 + $0x18] sm:$0xff]
  %v2556 = vld [vmem:[%s2] sm:$0xff]
  %v2557 = vld [vmem:[%s2 + $0x8] sm:$0xff]
  %v2558 = vld [vmem:[%s2 + $0x10] sm:$0xff]
  %v2559 = vld [vmem:[%s2 + $0x18] sm:$0xff]
  %v2560 = vld [vmem:[%s2 + $0x20] sm:$0xff]
  %v2561 = vld [vmem:[%s2 + $0x28] sm:$0xff]
  %v2562 = vld [vmem:[%s2 + $0x30] sm:$0xff]
  %v2563 = vld [vmem:[%s2 + $0x38] sm:$0xff]
  %v2564 = vld [vmem:[%s2 + $0x40] sm:$0xff]
  %v2565 = vld [vmem:[%s2 + $0x48] sm:$0xff]
  %v2566 = vld [vmem:[%s2 + $0x50] sm:$0xff]
  %v2567 = vld [vmem:[%s2 + $0x58] sm:$0xff]
  %v2568 = vld [vmem:[%s2 + $0x60] sm:$0xff]
  %v2569 = vld [vmem:[%s2 + $0x68] sm:$0xff]
  %v2570 = vld [vmem:[%s2 + $0x70] sm:$0xff]
  %v2571 = vld [vmem:[%s2 + $0x78] sm:$0xff]
  %v2572 = vld [vmem:[%s2 + $0x80] sm:$0xff]
  %v2573 = vld [vmem:[%s2 + $0x88] sm:$0xff]
  %v2574 = vld [vmem:[%s2 + $0x90] sm:$0xff]
  %v2575 = vld [vmem:[%s2 + $0x98] sm:$0xff]
  %v2576 = vld [vmem:[%s2 + $0xa0] sm:$0xff]
  %v2577 = vld [vmem:[%s2 + $0xa8] sm:$0xff]
  %v2578 = vld [vmem:[%s2 + $0xb0] sm:$0xff]
  %v2579 = vld [vmem:[%s2 + $0xb8] sm:$0xff]
  %v2580 = vld [vmem:[%s2 + $0xc0] sm:$0xff]
  %v2581 = vld [vmem:[%s2 + $0xc8] sm:$0xff]
  %v2582 = vld [vmem:[%s2 + $0xd0] sm:$0xff]
  %v2583 = vld [vmem:[%s2 + $0xd8] sm:$0xff]
  %v2584 = vld [vmem:[%s2 + $0xe0] sm:$0xff]
  %v2585 = vld [vmem:[%s2 + $0xe8] sm:$0xff]
  %v2586 = vld [vmem:[%s2 + $0xf0] sm:$0xff]
  %v2587 = vld [vmem:[%s2 + $0xf8] sm:$0xff]
  %v2588 = vld [vmem:[%s2 + $0x100] sm:$0xff]
  %v2589 = vld [vmem:[%s2 + $0x108] sm:$0xff]
  %v2590 = vld [vmem:[%s2 + $0x110] sm:$0xff]
  %v2591 = vld [vmem:[%s2 + $0x118] sm:$0xff]
  %v2592 = vld [vmem:[%s2 + $0x120] sm:$0xff]
  %v2593 = vld [vmem:[%s2 + $0x128] sm:$0xff]
  %v2594 = vld [vmem:[%s2 + $0x130] sm:$0xff]
  %v2595 = vld [vmem:[%s2 + $0x138] sm:$0xff]
  %v2596 = vld [vmem:[%s2 + $0x140] sm:$0xff]
  %v2597 = vld [vmem:[%s2 + $0x148] sm:$0xff]
  %v2598 = vld [vmem:[%s2 + $0x150] sm:$0xff]
  %v2599 = vld [vmem:[%s2 + $0x158] sm:$0xff]
  %v2600 = vld [vmem:[%s2 + $0x160] sm:$0xff]
  %v2601 = vld [vmem:[%s2 + $0x168] sm:$0xff]
  %v2602 = vld [vmem:[%s2 + $0x170] sm:$0xff]
  %v2603 = vld [vmem:[%s2 + $0x178] sm:$0xff]
  %v2604 = vld [vmem:[%s2 + $0x180] sm:$0xff]
  %v2605 = vld [vmem:[%s2 + $0x188] sm:$0xff]
  %v2606 = vld [vmem:[%s2 + $0x190] sm:$0xff]
  %v2607 = vld [vmem:[%s2 + $0x198] sm:$0xff]
  %v2608 = vld [vmem:[%s2 + $0x1a0] sm:$0xff]
  %v2609 = vld [vmem:[%s2 + $0x1a8] sm:$0xff]
  %v2610 = vld [vmem:[%s2 + $0x1b0] sm:$0xff]
  %v2611 = vld [vmem:[%s2 + $0x1b8] sm:$0xff]
  %v2612 = vld [vmem:[%s2 + $0x1c0] sm:$0xff]
  %v2613 = vld [vmem:[%s2 + $0x1c8] sm:$0xff]
  %v2614 = vld [vmem:[%s2 + $0x1d0] sm:$0xff]
  %v2615 = vld [vmem:[%s2 + $0x1d8] sm:$0xff]
  %v2616 = vld [vmem:[%s2 + $0x1e0] sm:$0xff]
  %v2617 = vld [vmem:[%s2 + $0x1e8] sm:$0xff]
  %v2618 = vld [vmem:[%s2 + $0x1f0] sm:$0xff]
  %v2619 = vld [vmem:[%s2 + $0x1f8] sm:$0xff]
  %2620 = vmatprep.subr.mxu0 %v2617
  %2621 = vmatpush1.msra.mxu0 %v2616
  %2622 = vmatprep.subr.mxu0 %v2613
  %2623 = vmatpush1.msra.mxu0 %v2612
  %2624 = vmatprep.subr.mxu0 %v2609
  %2625 = vmatpush1.msra.mxu0 %v2608
  %2626 = vmatprep.subr.mxu0 %v2605
  %2627 = vmatpush1.msra.mxu0 %v2604
  %2628 = vmatprep.subr.mxu0 %v2601
  %2629 = vmatpush1.msra.mxu0 %v2600
  %2630 = vmatprep.subr.mxu0 %v2597
  %2631 = vmatpush1.msra.mxu0 %v2596
  %2632 = vmatprep.subr.mxu0 %v2593
  %2633 = vmatpush1.msra.mxu0 %v2592
  %2634 = vmatprep.subr.mxu0 %v2589
  %2635 = vmatpush1.msra.mxu0 %v2588
  %2636 = vmatprep.subr.mxu0 %v2585
  %2637 = vmatpush1.msra.mxu0 %v2584
  %2638 = vmatprep.subr.mxu0 %v2581
  %2639 = vmatpush1.msra.mxu0 %v2580
  %2640 = vmatprep.subr.mxu0 %v2577
  %2641 = vmatpush1.msra.mxu0 %v2576
  %2642 = vmatprep.subr.mxu0 %v2573
  %2643 = vmatpush1.msra.mxu0 %v2572
  %2644 = vmatprep.subr.mxu0 %v2569
  %2645 = vmatpush1.msra.mxu0 %v2568
  %2646 = vmatprep.subr.mxu0 %v2565
  %2647 = vmatpush1.msra.mxu0 %v2564
  %2648 = vmatprep.subr.mxu0 %v2561
  %2649 = vmatpush1.msra.mxu0 %v2560
  %2650 = vmatprep.subr.mxu0 %v2557
  %2651 = vmatpush1.msra.mxu0 %v2556
  %2652 = vmatprep.subr.mxu0 0.0
  %2653 = vmatpush2.msra.mxu0 0.0
  %2654 = vmatprep.subr.mxu0 0.0
  %2655 = vmatpush2.msra.mxu0 0.0
  %2656 = vmatprep.subr.mxu0 0.0
  %2657 = vmatpush2.msra.mxu0 0.0
  %2658 = vmatprep.subr.mxu0 0.0
  %2659 = vmatpush2.msra.mxu0 0.0
  %2660 = vmatprep.subr.mxu0 0.0
  %2661 = vmatpush2.msra.mxu0 0.0
  %2662 = vmatprep.subr.mxu0 0.0
  %2663 = vmatpush2.msra.mxu0 0.0
  %2664 = vmatprep.subr.mxu0 0.0
  %2665 = vmatpush2.msra.mxu0 0.0
  %2666 = vmatprep.subr.mxu0 0.0
  %2667 = vmatpush2.msra.mxu0 0.0
  %2668 = vmatprep.subr.mxu0 0.0
  %2669 = vmatpush2.msra.mxu0 0.0
  %2670 = vmatprep.subr.mxu0 0.0
  %2671 = vmatpush2.msra.mxu0 0.0
  %2672 = vmatprep.subr.mxu0 0.0
  %2673 = vmatpush2.msra.mxu0 0.0
  %2674 = vmatprep.subr.mxu0 0.0
  %2675 = vmatpush2.msra.mxu0 0.0
  %2676 = vmatprep.subr.mxu0 0.0
  %2677 = vmatpush2.msra.mxu0 0.0
  %2678 = vmatprep.subr.mxu0 0.0
  %2679 = vmatpush2.msra.mxu0 0.0
  %2680 = vmatprep.subr.mxu0 0.0
  %2681 = vmatpush2.msra.mxu0 0.0
  %2682 = vmatprep.subr.mxu0 0.0
  %2683 = vmatpush2.msra.mxu0 0.0
  %2684 = vmatprep.mubr.f32.mxu0 0.0
  %2685 = vmatmul.mubr.f32.gmra.mxu0 %v2546
  %v2686 = vpop.f32.mrf.mxu0
  %v2687 = vadd.f32 0.0, %v2686
  %v2688 = vpop.f32.mrf.mxu0
  %v2689 = vadd.f32 0.0, %v2688
  %2690 = vdwg.mxu0
  %2691 = vmatprep.subr.mxu0 %v2619
  %2692 = vmatpush1.msra.mxu0 %v2618
  %2693 = vmatprep.subr.mxu0 %v2615
  %2694 = vmatpush1.msra.mxu0 %v2614
  %2695 = vmatprep.subr.mxu0 %v2611
  %2696 = vmatpush1.msra.mxu0 %v2610
  %2697 = vmatprep.subr.mxu0 %v2607
  %2698 = vmatpush1.msra.mxu0 %v2606
  %2699 = vmatprep.subr.mxu0 %v2603
  %2700 = vmatpush1.msra.mxu0 %v2602
  %2701 = vmatprep.subr.mxu0 %v2599
  %2702 = vmatpush1.msra.mxu0 %v2598
  %2703 = vmatprep.subr.mxu0 %v2595
  %2704 = vmatpush1.msra.mxu0 %v2594
  %2705 = vmatprep.subr.mxu0 %v2591
  %2706 = vmatpush1.msra.mxu0 %v2590
  %2707 = vmatprep.subr.mxu0 %v2587
  %2708 = vmatpush1.msra.mxu0 %v2586
  %2709 = vmatprep.subr.mxu0 %v2583
  %2710 = vmatpush1.msra.mxu0 %v2582
  %2711 = vmatprep.subr.mxu0 %v2579
  %2712 = vmatpush1.msra.mxu0 %v2578
  %2713 = vmatprep.subr.mxu0 %v2575
  %2714 = vmatpush1.msra.mxu0 %v2574
  %2715 = vmatprep.subr.mxu0 %v2571
  %2716 = vmatpush1.msra.mxu0 %v2570
  %2717 = vmatprep.subr.mxu0 %v2567
  %2718 = vmatpush1.msra.mxu0 %v2566
  %2719 = vmatprep.subr.mxu0 %v2563
  %2720 = vmatpush1.msra.mxu0 %v2562
  %2721 = vmatprep.subr.mxu0 %v2559
  %2722 = vmatpush1.msra.mxu0 %v2558
  %2723 = vmatprep.subr.mxu0 0.0
  %2724 = vmatpush2.msra.mxu0 0.0
  %2725 = vmatprep.subr.mxu0 0.0
  %2726 = vmatpush2.msra.mxu0 0.0
  %2727 = vmatprep.subr.mxu0 0.0
  %2728 = vmatpush2.msra.mxu0 0.0
  %2729 = vmatprep.subr.mxu0 0.0
  %2730 = vmatpush2.msra.mxu0 0.0
  %2731 = vmatprep.subr.mxu0 0.0
  %2732 = vmatpush2.msra.mxu0 0.0
  %2733 = vmatprep.subr.mxu0 0.0
  %2734 = vmatpush2.msra.mxu0 0.0
  %2735 = vmatprep.subr.mxu0 0.0
  %2736 = vmatpush2.msra.mxu0 0.0
  %2737 = vmatprep.subr.mxu0 0.0
  %2738 = vmatpush2.msra.mxu0 0.0
  %2739 = vmatprep.subr.mxu0 0.0
  %2740 = vmatpush2.msra.mxu0 0.0
  %2741 = vmatprep.subr.mxu0 0.0
  %2742 = vmatpush2.msra.mxu0 0.0
  %2743 = vmatprep.subr.mxu0 0.0
  %2744 = vmatpush2.msra.mxu0 0.0
  %2745 = vmatprep.subr.mxu0 0.0
  %2746 = vmatpush2.msra.mxu0 0.0
  %2747 = vmatprep.subr.mxu0 0.0
  %2748 = vmatpush2.msra.mxu0 0.0
  %2749 = vmatprep.subr.mxu0 0.0
  %2750 = vmatpush2.msra.mxu0 0.0
  %2751 = vmatprep.subr.mxu0 0.0
  %2752 = vmatpush2.msra.mxu0 0.0
  %2753 = vmatprep.subr.mxu0 0.0
  %2754 = vmatpush2.msra.mxu0 0.0
  %2755 = vmatprep.mubr.f32.mxu0 0.0
  %2756 = vmatmul.mubr.f32.gmra.mxu0 %v2546
  %v2757 = vpop.f32.mrf.mxu0
  %v2758 = vadd.f32 0.0, %v2757
  %v2759 = vpop.f32.mrf.mxu0
  %v2760 = vadd.f32 0.0, %v2759
  %2761 = vdwg.mxu0
  %v2762 = vadd.f32 %v2552, %v2687
  %v2763 = vadd.f32 %v2553, %v2689
  %v2764 = vadd.f32 %v2554, %v2758
  %v2765 = vadd.f32 %v2555, %v2760
  %v2766 = vxor.u32 %v2762, 2147483648
  %v2767 = vmul.f32 %v2766, 1.442695
  %v2768 = vpow.pop %v2767
  %v2769 = vadd.f32 %v2768, 1.0
  %v2770 = vrcp.pop %v2769
  %v2771 = vmul.f32 1.0, %v2770
  %v2772 = vxor.u32 %v2763, 2147483648
  %v2773 = vmul.f32 %v2772, 1.442695
  %v2774 = vpow.pop %v2773
  %v2775 = vadd.f32 %v2774, 1.0
  %v2776 = vrcp.pop %v2775
  %v2777 = vmul.f32 1.0, %v2776
  %v2778 = vtanh.pop %v2764
  %v2779 = vxor.u32 %v2765, 2147483648
  %v2780 = vmul.f32 %v2779, 1.442695
  %v2781 = vpow.pop %v2780
  %v2782 = vadd.f32 %v2781, 1.0
  %v2783 = vrcp.pop %v2782
  %v2784 = vmul.f32 1.0, %v2783
  %v2785 = vmul.f32 %v2777, %v2544
  %v2786 = vmul.f32 %v2771, %v2778
  %v2787 = vadd.f32 %v2785, %v2786
  %v2788 = vtanh.pop %v2787
  %v2789 = vmul.f32 %v2784, %v2788
  %s2790 = scalar_lea.vmem %s4, 64
  %2791 = vst [vmem:[%s2790] sm:$0xff] %v2789
  %s2792 = smul.u32 9, 4
  %s2793 = smul.addr %s2792, 8
  %s2794 = scalar_lea.vmem [#allocation2], %s2793
  %v2795 = vld [vmem:[%s2794] sm:$0xff]
  %v2796 = vld [vmem:[%s2794 + $0x8] sm:$0xff]
  %v2797 = vld [vmem:[%s2794 + $0x10] sm:$0xff]
  %v2798 = vld [vmem:[%s2794 + $0x18] sm:$0xff]
  %v2799 = vld [vmem:[%s2] sm:$0xff]
  %v2800 = vld [vmem:[%s2 + $0x8] sm:$0xff]
  %v2801 = vld [vmem:[%s2 + $0x10] sm:$0xff]
  %v2802 = vld [vmem:[%s2 + $0x18] sm:$0xff]
  %v2803 = vld [vmem:[%s2 + $0x20] sm:$0xff]
  %v2804 = vld [vmem:[%s2 + $0x28] sm:$0xff]
  %v2805 = vld [vmem:[%s2 + $0x30] sm:$0xff]
  %v2806 = vld [vmem:[%s2 + $0x38] sm:$0xff]
  %v2807 = vld [vmem:[%s2 + $0x40] sm:$0xff]
  %v2808 = vld [vmem:[%s2 + $0x48] sm:$0xff]
  %v2809 = vld [vmem:[%s2 + $0x50] sm:$0xff]
  %v2810 = vld [vmem:[%s2 + $0x58] sm:$0xff]
  %v2811 = vld [vmem:[%s2 + $0x60] sm:$0xff]
  %v2812 = vld [vmem:[%s2 + $0x68] sm:$0xff]
  %v2813 = vld [vmem:[%s2 + $0x70] sm:$0xff]
  %v2814 = vld [vmem:[%s2 + $0x78] sm:$0xff]
  %v2815 = vld [vmem:[%s2 + $0x80] sm:$0xff]
  %v2816 = vld [vmem:[%s2 + $0x88] sm:$0xff]
  %v2817 = vld [vmem:[%s2 + $0x90] sm:$0xff]
  %v2818 = vld [vmem:[%s2 + $0x98] sm:$0xff]
  %v2819 = vld [vmem:[%s2 + $0xa0] sm:$0xff]
  %v2820 = vld [vmem:[%s2 + $0xa8] sm:$0xff]
  %v2821 = vld [vmem:[%s2 + $0xb0] sm:$0xff]
  %v2822 = vld [vmem:[%s2 + $0xb8] sm:$0xff]
  %v2823 = vld [vmem:[%s2 + $0xc0] sm:$0xff]
  %v2824 = vld [vmem:[%s2 + $0xc8] sm:$0xff]
  %v2825 = vld [vmem:[%s2 + $0xd0] sm:$0xff]
  %v2826 = vld [vmem:[%s2 + $0xd8] sm:$0xff]
  %v2827 = vld [vmem:[%s2 + $0xe0] sm:$0xff]
  %v2828 = vld [vmem:[%s2 + $0xe8] sm:$0xff]
  %v2829 = vld [vmem:[%s2 + $0xf0] sm:$0xff]
  %v2830 = vld [vmem:[%s2 + $0xf8] sm:$0xff]
  %v2831 = vld [vmem:[%s2 + $0x100] sm:$0xff]
  %v2832 = vld [vmem:[%s2 + $0x108] sm:$0xff]
  %v2833 = vld [vmem:[%s2 + $0x110] sm:$0xff]
  %v2834 = vld [vmem:[%s2 + $0x118] sm:$0xff]
  %v2835 = vld [vmem:[%s2 + $0x120] sm:$0xff]
  %v2836 = vld [vmem:[%s2 + $0x128] sm:$0xff]
  %v2837 = vld [vmem:[%s2 + $0x130] sm:$0xff]
  %v2838 = vld [vmem:[%s2 + $0x138] sm:$0xff]
  %v2839 = vld [vmem:[%s2 + $0x140] sm:$0xff]
  %v2840 = vld [vmem:[%s2 + $0x148] sm:$0xff]
  %v2841 = vld [vmem:[%s2 + $0x150] sm:$0xff]
  %v2842 = vld [vmem:[%s2 + $0x158] sm:$0xff]
  %v2843 = vld [vmem:[%s2 + $0x160] sm:$0xff]
  %v2844 = vld [vmem:[%s2 + $0x168] sm:$0xff]
  %v2845 = vld [vmem:[%s2 + $0x170] sm:$0xff]
  %v2846 = vld [vmem:[%s2 + $0x178] sm:$0xff]
  %v2847 = vld [vmem:[%s2 + $0x180] sm:$0xff]
  %v2848 = vld [vmem:[%s2 + $0x188] sm:$0xff]
  %v2849 = vld [vmem:[%s2 + $0x190] sm:$0xff]
  %v2850 = vld [vmem:[%s2 + $0x198] sm:$0xff]
  %v2851 = vld [vmem:[%s2 + $0x1a0] sm:$0xff]
  %v2852 = vld [vmem:[%s2 + $0x1a8] sm:$0xff]
  %v2853 = vld [vmem:[%s2 + $0x1b0] sm:$0xff]
  %v2854 = vld [vmem:[%s2 + $0x1b8] sm:$0xff]
  %v2855 = vld [vmem:[%s2 + $0x1c0] sm:$0xff]
  %v2856 = vld [vmem:[%s2 + $0x1c8] sm:$0xff]
  %v2857 = vld [vmem:[%s2 + $0x1d0] sm:$0xff]
  %v2858 = vld [vmem:[%s2 + $0x1d8] sm:$0xff]
  %v2859 = vld [vmem:[%s2 + $0x1e0] sm:$0xff]
  %v2860 = vld [vmem:[%s2 + $0x1e8] sm:$0xff]
  %v2861 = vld [vmem:[%s2 + $0x1f0] sm:$0xff]
  %v2862 = vld [vmem:[%s2 + $0x1f8] sm:$0xff]
  %2863 = vmatprep.subr.mxu0 %v2860
  %2864 = vmatpush1.msra.mxu0 %v2859
  %2865 = vmatprep.subr.mxu0 %v2856
  %2866 = vmatpush1.msra.mxu0 %v2855
  %2867 = vmatprep.subr.mxu0 %v2852
  %2868 = vmatpush1.msra.mxu0 %v2851
  %2869 = vmatprep.subr.mxu0 %v2848
  %2870 = vmatpush1.msra.mxu0 %v2847
  %2871 = vmatprep.subr.mxu0 %v2844
  %2872 = vmatpush1.msra.mxu0 %v2843
  %2873 = vmatprep.subr.mxu0 %v2840
  %2874 = vmatpush1.msra.mxu0 %v2839
  %2875 = vmatprep.subr.mxu0 %v2836
  %2876 = vmatpush1.msra.mxu0 %v2835
  %2877 = vmatprep.subr.mxu0 %v2832
  %2878 = vmatpush1.msra.mxu0 %v2831
  %2879 = vmatprep.subr.mxu0 %v2828
  %2880 = vmatpush1.msra.mxu0 %v2827
  %2881 = vmatprep.subr.mxu0 %v2824
  %2882 = vmatpush1.msra.mxu0 %v2823
  %2883 = vmatprep.subr.mxu0 %v2820
  %2884 = vmatpush1.msra.mxu0 %v2819
  %2885 = vmatprep.subr.mxu0 %v2816
  %2886 = vmatpush1.msra.mxu0 %v2815
  %2887 = vmatprep.subr.mxu0 %v2812
  %2888 = vmatpush1.msra.mxu0 %v2811
  %2889 = vmatprep.subr.mxu0 %v2808
  %2890 = vmatpush1.msra.mxu0 %v2807
  %2891 = vmatprep.subr.mxu0 %v2804
  %2892 = vmatpush1.msra.mxu0 %v2803
  %2893 = vmatprep.subr.mxu0 %v2800
  %2894 = vmatpush1.msra.mxu0 %v2799
  %2895 = vmatprep.subr.mxu0 0.0
  %2896 = vmatpush2.msra.mxu0 0.0
  %2897 = vmatprep.subr.mxu0 0.0
  %2898 = vmatpush2.msra.mxu0 0.0
  %2899 = vmatprep.subr.mxu0 0.0
  %2900 = vmatpush2.msra.mxu0 0.0
  %2901 = vmatprep.subr.mxu0 0.0
  %2902 = vmatpush2.msra.mxu0 0.0
  %2903 = vmatprep.subr.mxu0 0.0
  %2904 = vmatpush2.msra.mxu0 0.0
  %2905 = vmatprep.subr.mxu0 0.0
  %2906 = vmatpush2.msra.mxu0 0.0
  %2907 = vmatprep.subr.mxu0 0.0
  %2908 = vmatpush2.msra.mxu0 0.0
  %2909 = vmatprep.subr.mxu0 0.0
  %2910 = vmatpush2.msra.mxu0 0.0
  %2911 = vmatprep.subr.mxu0 0.0
  %2912 = vmatpush2.msra.mxu0 0.0
  %2913 = vmatprep.subr.mxu0 0.0
  %2914 = vmatpush2.msra.mxu0 0.0
  %2915 = vmatprep.subr.mxu0 0.0
  %2916 = vmatpush2.msra.mxu0 0.0
  %2917 = vmatprep.subr.mxu0 0.0
  %2918 = vmatpush2.msra.mxu0 0.0
  %2919 = vmatprep.subr.mxu0 0.0
  %2920 = vmatpush2.msra.mxu0 0.0
  %2921 = vmatprep.subr.mxu0 0.0
  %2922 = vmatpush2.msra.mxu0 0.0
  %2923 = vmatprep.subr.mxu0 0.0
  %2924 = vmatpush2.msra.mxu0 0.0
  %2925 = vmatprep.subr.mxu0 0.0
  %2926 = vmatpush2.msra.mxu0 0.0
  %2927 = vmatprep.mubr.f32.mxu0 0.0
  %2928 = vmatmul.mubr.f32.gmra.mxu0 %v2789
  %v2929 = vpop.f32.mrf.mxu0
  %v2930 = vadd.f32 0.0, %v2929
  %v2931 = vpop.f32.mrf.mxu0
  %v2932 = vadd.f32 0.0, %v2931
  %2933 = vdwg.mxu0
  %2934 = vmatprep.subr.mxu0 %v2862
  %2935 = vmatpush1.msra.mxu0 %v2861
  %2936 = vmatprep.subr.mxu0 %v2858
  %2937 = vmatpush1.msra.mxu0 %v2857
  %2938 = vmatprep.subr.mxu0 %v2854
  %2939 = vmatpush1.msra.mxu0 %v2853
  %2940 = vmatprep.subr.mxu0 %v2850
  %2941 = vmatpush1.msra.mxu0 %v2849
  %2942 = vmatprep.subr.mxu0 %v2846
  %2943 = vmatpush1.msra.mxu0 %v2845
  %2944 = vmatprep.subr.mxu0 %v2842
  %2945 = vmatpush1.msra.mxu0 %v2841
  %2946 = vmatprep.subr.mxu0 %v2838
  %2947 = vmatpush1.msra.mxu0 %v2837
  %2948 = vmatprep.subr.mxu0 %v2834
  %2949 = vmatpush1.msra.mxu0 %v2833
  %2950 = vmatprep.subr.mxu0 %v2830
  %2951 = vmatpush1.msra.mxu0 %v2829
  %2952 = vmatprep.subr.mxu0 %v2826
  %2953 = vmatpush1.msra.mxu0 %v2825
  %2954 = vmatprep.subr.mxu0 %v2822
  %2955 = vmatpush1.msra.mxu0 %v2821
  %2956 = vmatprep.subr.mxu0 %v2818
  %2957 = vmatpush1.msra.mxu0 %v2817
  %2958 = vmatprep.subr.mxu0 %v2814
  %2959 = vmatpush1.msra.mxu0 %v2813
  %2960 = vmatprep.subr.mxu0 %v2810
  %2961 = vmatpush1.msra.mxu0 %v2809
  %2962 = vmatprep.subr.mxu0 %v2806
  %2963 = vmatpush1.msra.mxu0 %v2805
  %2964 = vmatprep.subr.mxu0 %v2802
  %2965 = vmatpush1.msra.mxu0 %v2801
  %2966 = vmatprep.subr.mxu0 0.0
  %2967 = vmatpush2.msra.mxu0 0.0
  %2968 = vmatprep.subr.mxu0 0.0
  %2969 = vmatpush2.msra.mxu0 0.0
  %2970 = vmatprep.subr.mxu0 0.0
  %2971 = vmatpush2.msra.mxu0 0.0
  %2972 = vmatprep.subr.mxu0 0.0
  %2973 = vmatpush2.msra.mxu0 0.0
  %2974 = vmatprep.subr.mxu0 0.0
  %2975 = vmatpush2.msra.mxu0 0.0
  %2976 = vmatprep.subr.mxu0 0.0
  %2977 = vmatpush2.msra.mxu0 0.0
  %2978 = vmatprep.subr.mxu0 0.0
  %2979 = vmatpush2.msra.mxu0 0.0
  %2980 = vmatprep.subr.mxu0 0.0
  %2981 = vmatpush2.msra.mxu0 0.0
  %2982 = vmatprep.subr.mxu0 0.0
  %2983 = vmatpush2.msra.mxu0 0.0
  %2984 = vmatprep.subr.mxu0 0.0
  %2985 = vmatpush2.msra.mxu0 0.0
  %2986 = vmatprep.subr.mxu0 0.0
  %2987 = vmatpush2.msra.mxu0 0.0
  %2988 = vmatprep.subr.mxu0 0.0
  %2989 = vmatpush2.msra.mxu0 0.0
  %2990 = vmatprep.subr.mxu0 0.0
  %2991 = vmatpush2.msra.mxu0 0.0
  %2992 = vmatprep.subr.mxu0 0.0
  %2993 = vmatpush2.msra.mxu0 0.0
  %2994 = vmatprep.subr.mxu0 0.0
  %2995 = vmatpush2.msra.mxu0 0.0
  %2996 = vmatprep.subr.mxu0 0.0
  %2997 = vmatpush2.msra.mxu0 0.0
  %2998 = vmatprep.mubr.f32.mxu0 0.0
  %2999 = vmatmul.mubr.f32.gmra.mxu0 %v2789
  %v3000 = vpop.f32.mrf.mxu0
  %v3001 = vadd.f32 0.0, %v3000
  %v3002 = vpop.f32.mrf.mxu0
  %v3003 = vadd.f32 0.0, %v3002
  %3004 = vdwg.mxu0
  %v3005 = vadd.f32 %v2795, %v2930
  %v3006 = vadd.f32 %v2796, %v2932
  %v3007 = vadd.f32 %v2797, %v3001
  %v3008 = vadd.f32 %v2798, %v3003
  %v3009 = vxor.u32 %v3005, 2147483648
  %v3010 = vmul.f32 %v3009, 1.442695
  %v3011 = vpow.pop %v3010
  %v3012 = vadd.f32 %v3011, 1.0
  %v3013 = vrcp.pop %v3012
  %v3014 = vmul.f32 1.0, %v3013
  %v3015 = vxor.u32 %v3006, 2147483648
  %v3016 = vmul.f32 %v3015, 1.442695
  %v3017 = vpow.pop %v3016
  %v3018 = vadd.f32 %v3017, 1.0
  %v3019 = vrcp.pop %v3018
  %v3020 = vmul.f32 1.0, %v3019
  %v3021 = vtanh.pop %v3007
  %v3022 = vxor.u32 %v3008, 2147483648
  %v3023 = vmul.f32 %v3022, 1.442695
  %v3024 = vpow.pop %v3023
  %v3025 = vadd.f32 %v3024, 1.0
  %v3026 = vrcp.pop %v3025
  %v3027 = vmul.f32 1.0, %v3026
  %v3028 = vmul.f32 %v3020, %v2787
  %v3029 = vmul.f32 %v3014, %v3021
  %v3030 = vadd.f32 %v3028, %v3029
  %v3031 = vtanh.pop %v3030
  %v3032 = vmul.f32 %v3027, %v3031
  %s3033 = scalar_lea.vmem %s4, 72
  %3034 = vst [vmem:[%s3033] sm:$0xff] %v3032
  %s3035 = smul.u32 10, 4
  %s3036 = smul.addr %s3035, 8
  %s3037 = scalar_lea.vmem [#allocation2], %s3036
  %v3038 = vld [vmem:[%s3037] sm:$0xff]
  %v3039 = vld [vmem:[%s3037 + $0x8] sm:$0xff]
  %v3040 = vld [vmem:[%s3037 + $0x10] sm:$0xff]
  %v3041 = vld [vmem:[%s3037 + $0x18] sm:$0xff]
  %v3042 = vld [vmem:[%s2] sm:$0xff]
  %v3043 = vld [vmem:[%s2 + $0x8] sm:$0xff]
  %v3044 = vld [vmem:[%s2 + $0x10] sm:$0xff]
  %v3045 = vld [vmem:[%s2 + $0x18] sm:$0xff]
  %v3046 = vld [vmem:[%s2 + $0x20] sm:$0xff]
  %v3047 = vld [vmem:[%s2 + $0x28] sm:$0xff]
  %v3048 = vld [vmem:[%s2 + $0x30] sm:$0xff]
  %v3049 = vld [vmem:[%s2 + $0x38] sm:$0xff]
  %v3050 = vld [vmem:[%s2 + $0x40] sm:$0xff]
  %v3051 = vld [vmem:[%s2 + $0x48] sm:$0xff]
  %v3052 = vld [vmem:[%s2 + $0x50] sm:$0xff]
  %v3053 = vld [vmem:[%s2 + $0x58] sm:$0xff]
  %v3054 = vld [vmem:[%s2 + $0x60] sm:$0xff]
  %v3055 = vld [vmem:[%s2 + $0x68] sm:$0xff]
  %v3056 = vld [vmem:[%s2 + $0x70] sm:$0xff]
  %v3057 = vld [vmem:[%s2 + $0x78] sm:$0xff]
  %v3058 = vld [vmem:[%s2 + $0x80] sm:$0xff]
  %v3059 = vld [vmem:[%s2 + $0x88] sm:$0xff]
  %v3060 = vld [vmem:[%s2 + $0x90] sm:$0xff]
  %v3061 = vld [vmem:[%s2 + $0x98] sm:$0xff]
  %v3062 = vld [vmem:[%s2 + $0xa0] sm:$0xff]
  %v3063 = vld [vmem:[%s2 + $0xa8] sm:$0xff]
  %v3064 = vld [vmem:[%s2 + $0xb0] sm:$0xff]
  %v3065 = vld [vmem:[%s2 + $0xb8] sm:$0xff]
  %v3066 = vld [vmem:[%s2 + $0xc0] sm:$0xff]
  %v3067 = vld [vmem:[%s2 + $0xc8] sm:$0xff]
  %v3068 = vld [vmem:[%s2 + $0xd0] sm:$0xff]
  %v3069 = vld [vmem:[%s2 + $0xd8] sm:$0xff]
  %v3070 = vld [vmem:[%s2 + $0xe0] sm:$0xff]
  %v3071 = vld [vmem:[%s2 + $0xe8] sm:$0xff]
  %v3072 = vld [vmem:[%s2 + $0xf0] sm:$0xff]
  %v3073 = vld [vmem:[%s2 + $0xf8] sm:$0xff]
  %v3074 = vld [vmem:[%s2 + $0x100] sm:$0xff]
  %v3075 = vld [vmem:[%s2 + $0x108] sm:$0xff]
  %v3076 = vld [vmem:[%s2 + $0x110] sm:$0xff]
  %v3077 = vld [vmem:[%s2 + $0x118] sm:$0xff]
  %v3078 = vld [vmem:[%s2 + $0x120] sm:$0xff]
  %v3079 = vld [vmem:[%s2 + $0x128] sm:$0xff]
  %v3080 = vld [vmem:[%s2 + $0x130] sm:$0xff]
  %v3081 = vld [vmem:[%s2 + $0x138] sm:$0xff]
  %v3082 = vld [vmem:[%s2 + $0x140] sm:$0xff]
  %v3083 = vld [vmem:[%s2 + $0x148] sm:$0xff]
  %v3084 = vld [vmem:[%s2 + $0x150] sm:$0xff]
  %v3085 = vld [vmem:[%s2 + $0x158] sm:$0xff]
  %v3086 = vld [vmem:[%s2 + $0x160] sm:$0xff]
  %v3087 = vld [vmem:[%s2 + $0x168] sm:$0xff]
  %v3088 = vld [vmem:[%s2 + $0x170] sm:$0xff]
  %v3089 = vld [vmem:[%s2 + $0x178] sm:$0xff]
  %v3090 = vld [vmem:[%s2 + $0x180] sm:$0xff]
  %v3091 = vld [vmem:[%s2 + $0x188] sm:$0xff]
  %v3092 = vld [vmem:[%s2 + $0x190] sm:$0xff]
  %v3093 = vld [vmem:[%s2 + $0x198] sm:$0xff]
  %v3094 = vld [vmem:[%s2 + $0x1a0] sm:$0xff]
  %v3095 = vld [vmem:[%s2 + $0x1a8] sm:$0xff]
  %v3096 = vld [vmem:[%s2 + $0x1b0] sm:$0xff]
  %v3097 = vld [vmem:[%s2 + $0x1b8] sm:$0xff]
  %v3098 = vld [vmem:[%s2 + $0x1c0] sm:$0xff]
  %v3099 = vld [vmem:[%s2 + $0x1c8] sm:$0xff]
  %v3100 = vld [vmem:[%s2 + $0x1d0] sm:$0xff]
  %v3101 = vld [vmem:[%s2 + $0x1d8] sm:$0xff]
  %v3102 = vld [vmem:[%s2 + $0x1e0] sm:$0xff]
  %v3103 = vld [vmem:[%s2 + $0x1e8] sm:$0xff]
  %v3104 = vld [vmem:[%s2 + $0x1f0] sm:$0xff]
  %v3105 = vld [vmem:[%s2 + $0x1f8] sm:$0xff]
  %3106 = vmatprep.subr.mxu0 %v3103
  %3107 = vmatpush1.msra.mxu0 %v3102
  %3108 = vmatprep.subr.mxu0 %v3099
  %3109 = vmatpush1.msra.mxu0 %v3098
  %3110 = vmatprep.subr.mxu0 %v3095
  %3111 = vmatpush1.msra.mxu0 %v3094
  %3112 = vmatprep.subr.mxu0 %v3091
  %3113 = vmatpush1.msra.mxu0 %v3090
  %3114 = vmatprep.subr.mxu0 %v3087
  %3115 = vmatpush1.msra.mxu0 %v3086
  %3116 = vmatprep.subr.mxu0 %v3083
  %3117 = vmatpush1.msra.mxu0 %v3082
  %3118 = vmatprep.subr.mxu0 %v3079
  %3119 = vmatpush1.msra.mxu0 %v3078
  %3120 = vmatprep.subr.mxu0 %v3075
  %3121 = vmatpush1.msra.mxu0 %v3074
  %3122 = vmatprep.subr.mxu0 %v3071
  %3123 = vmatpush1.msra.mxu0 %v3070
  %3124 = vmatprep.subr.mxu0 %v3067
  %3125 = vmatpush1.msra.mxu0 %v3066
  %3126 = vmatprep.subr.mxu0 %v3063
  %3127 = vmatpush1.msra.mxu0 %v3062
  %3128 = vmatprep.subr.mxu0 %v3059
  %3129 = vmatpush1.msra.mxu0 %v3058
  %3130 = vmatprep.subr.mxu0 %v3055
  %3131 = vmatpush1.msra.mxu0 %v3054
  %3132 = vmatprep.subr.mxu0 %v3051
  %3133 = vmatpush1.msra.mxu0 %v3050
  %3134 = vmatprep.subr.mxu0 %v3047
  %3135 = vmatpush1.msra.mxu0 %v3046
  %3136 = vmatprep.subr.mxu0 %v3043
  %3137 = vmatpush1.msra.mxu0 %v3042
  %3138 = vmatprep.subr.mxu0 0.0
  %3139 = vmatpush2.msra.mxu0 0.0
  %3140 = vmatprep.subr.mxu0 0.0
  %3141 = vmatpush2.msra.mxu0 0.0
  %3142 = vmatprep.subr.mxu0 0.0
  %3143 = vmatpush2.msra.mxu0 0.0
  %3144 = vmatprep.subr.mxu0 0.0
  %3145 = vmatpush2.msra.mxu0 0.0
  %3146 = vmatprep.subr.mxu0 0.0
  %3147 = vmatpush2.msra.mxu0 0.0
  %3148 = vmatprep.subr.mxu0 0.0
  %3149 = vmatpush2.msra.mxu0 0.0
  %3150 = vmatprep.subr.mxu0 0.0
  %3151 = vmatpush2.msra.mxu0 0.0
  %3152 = vmatprep.subr.mxu0 0.0
  %3153 = vmatpush2.msra.mxu0 0.0
  %3154 = vmatprep.subr.mxu0 0.0
  %3155 = vmatpush2.msra.mxu0 0.0
  %3156 = vmatprep.subr.mxu0 0.0
  %3157 = vmatpush2.msra.mxu0 0.0
  %3158 = vmatprep.subr.mxu0 0.0
  %3159 = vmatpush2.msra.mxu0 0.0
  %3160 = vmatprep.subr.mxu0 0.0
  %3161 = vmatpush2.msra.mxu0 0.0
  %3162 = vmatprep.subr.mxu0 0.0
  %3163 = vmatpush2.msra.mxu0 0.0
  %3164 = vmatprep.subr.mxu0 0.0
  %3165 = vmatpush2.msra.mxu0 0.0
  %3166 = vmatprep.subr.mxu0 0.0
  %3167 = vmatpush2.msra.mxu0 0.0
  %3168 = vmatprep.subr.mxu0 0.0
  %3169 = vmatpush2.msra.mxu0 0.0
  %3170 = vmatprep.mubr.f32.mxu0 0.0
  %3171 = vmatmul.mubr.f32.gmra.mxu0 %v3032
  %v3172 = vpop.f32.mrf.mxu0
  %v3173 = vadd.f32 0.0, %v3172
  %v3174 = vpop.f32.mrf.mxu0
  %v3175 = vadd.f32 0.0, %v3174
  %3176 = vdwg.mxu0
  %3177 = vmatprep.subr.mxu0 %v3105
  %3178 = vmatpush1.msra.mxu0 %v3104
  %3179 = vmatprep.subr.mxu0 %v3101
  %3180 = vmatpush1.msra.mxu0 %v3100
  %3181 = vmatprep.subr.mxu0 %v3097
  %3182 = vmatpush1.msra.mxu0 %v3096
  %3183 = vmatprep.subr.mxu0 %v3093
  %3184 = vmatpush1.msra.mxu0 %v3092
  %3185 = vmatprep.subr.mxu0 %v3089
  %3186 = vmatpush1.msra.mxu0 %v3088
  %3187 = vmatprep.subr.mxu0 %v3085
  %3188 = vmatpush1.msra.mxu0 %v3084
  %3189 = vmatprep.subr.mxu0 %v3081
  %3190 = vmatpush1.msra.mxu0 %v3080
  %3191 = vmatprep.subr.mxu0 %v3077
  %3192 = vmatpush1.msra.mxu0 %v3076
  %3193 = vmatprep.subr.mxu0 %v3073
  %3194 = vmatpush1.msra.mxu0 %v3072
  %3195 = vmatprep.subr.mxu0 %v3069
  %3196 = vmatpush1.msra.mxu0 %v3068
  %3197 = vmatprep.subr.mxu0 %v3065
  %3198 = vmatpush1.msra.mxu0 %v3064
  %3199 = vmatprep.subr.mxu0 %v3061
  %3200 = vmatpush1.msra.mxu0 %v3060
  %3201 = vmatprep.subr.mxu0 %v3057
  %3202 = vmatpush1.msra.mxu0 %v3056
  %3203 = vmatprep.subr.mxu0 %v3053
  %3204 = vmatpush1.msra.mxu0 %v3052
  %3205 = vmatprep.subr.mxu0 %v3049
  %3206 = vmatpush1.msra.mxu0 %v3048
  %3207 = vmatprep.subr.mxu0 %v3045
  %3208 = vmatpush1.msra.mxu0 %v3044
  %3209 = vmatprep.subr.mxu0 0.0
  %3210 = vmatpush2.msra.mxu0 0.0
  %3211 = vmatprep.subr.mxu0 0.0
  %3212 = vmatpush2.msra.mxu0 0.0
  %3213 = vmatprep.subr.mxu0 0.0
  %3214 = vmatpush2.msra.mxu0 0.0
  %3215 = vmatprep.subr.mxu0 0.0
  %3216 = vmatpush2.msra.mxu0 0.0
  %3217 = vmatprep.subr.mxu0 0.0
  %3218 = vmatpush2.msra.mxu0 0.0
  %3219 = vmatprep.subr.mxu0 0.0
  %3220 = vmatpush2.msra.mxu0 0.0
  %3221 = vmatprep.subr.mxu0 0.0
  %3222 = vmatpush2.msra.mxu0 0.0
  %3223 = vmatprep.subr.mxu0 0.0
  %3224 = vmatpush2.msra.mxu0 0.0
  %3225 = vmatprep.subr.mxu0 0.0
  %3226 = vmatpush2.msra.mxu0 0.0
  %3227 = vmatprep.subr.mxu0 0.0
  %3228 = vmatpush2.msra.mxu0 0.0
  %3229 = vmatprep.subr.mxu0 0.0
  %3230 = vmatpush2.msra.mxu0 0.0
  %3231 = vmatprep.subr.mxu0 0.0
  %3232 = vmatpush2.msra.mxu0 0.0
  %3233 = vmatprep.subr.mxu0 0.0
  %3234 = vmatpush2.msra.mxu0 0.0
  %3235 = vmatprep.subr.mxu0 0.0
  %3236 = vmatpush2.msra.mxu0 0.0
  %3237 = vmatprep.subr.mxu0 0.0
  %3238 = vmatpush2.msra.mxu0 0.0
  %3239 = vmatprep.subr.mxu0 0.0
  %3240 = vmatpush2.msra.mxu0 0.0
  %3241 = vmatprep.mubr.f32.mxu0 0.0
  %3242 = vmatmul.mubr.f32.gmra.mxu0 %v3032
  %v3243 = vpop.f32.mrf.mxu0
  %v3244 = vadd.f32 0.0, %v3243
  %v3245 = vpop.f32.mrf.mxu0
  %v3246 = vadd.f32 0.0, %v3245
  %3247 = vdwg.mxu0
  %v3248 = vadd.f32 %v3038, %v3173
  %v3249 = vadd.f32 %v3039, %v3175
  %v3250 = vadd.f32 %v3040, %v3244
  %v3251 = vadd.f32 %v3041, %v3246
  %v3252 = vxor.u32 %v3248, 2147483648
  %v3253 = vmul.f32 %v3252, 1.442695
  %v3254 = vpow.pop %v3253
  %v3255 = vadd.f32 %v3254, 1.0
  %v3256 = vrcp.pop %v3255
  %v3257 = vmul.f32 1.0, %v3256
  %v3258 = vxor.u32 %v3249, 2147483648
  %v3259 = vmul.f32 %v3258, 1.442695
  %v3260 = vpow.pop %v3259
  %v3261 = vadd.f32 %v3260, 1.0
  %v3262 = vrcp.pop %v3261
  %v3263 = vmul.f32 1.0, %v3262
  %v3264 = vtanh.pop %v3250
  %v3265 = vxor.u32 %v3251, 2147483648
  %v3266 = vmul.f32 %v3265, 1.442695
  %v3267 = vpow.pop %v3266
  %v3268 = vadd.f32 %v3267, 1.0
  %v3269 = vrcp.pop %v3268
  %v3270 = vmul.f32 1.0, %v3269
  %v3271 = vmul.f32 %v3263, %v3030
  %v3272 = vmul.f32 %v3257, %v3264
  %v3273 = vadd.f32 %v3271, %v3272
  %v3274 = vtanh.pop %v3273
  %v3275 = vmul.f32 %v3270, %v3274
  %s3276 = scalar_lea.vmem %s4, 80
  %3277 = vst [vmem:[%s3276] sm:$0xff] %v3275
  %s3278 = smul.u32 11, 4
  %s3279 = smul.addr %s3278, 8
  %s3280 = scalar_lea.vmem [#allocation2], %s3279
  %v3281 = vld [vmem:[%s3280] sm:$0xff]
  %v3282 = vld [vmem:[%s3280 + $0x8] sm:$0xff]
  %v3283 = vld [vmem:[%s3280 + $0x10] sm:$0xff]
  %v3284 = vld [vmem:[%s3280 + $0x18] sm:$0xff]
  %v3285 = vld [vmem:[%s2] sm:$0xff]
  %v3286 = vld [vmem:[%s2 + $0x8] sm:$0xff]
  %v3287 = vld [vmem:[%s2 + $0x10] sm:$0xff]
  %v3288 = vld [vmem:[%s2 + $0x18] sm:$0xff]
  %v3289 = vld [vmem:[%s2 + $0x20] sm:$0xff]
  %v3290 = vld [vmem:[%s2 + $0x28] sm:$0xff]
  %v3291 = vld [vmem:[%s2 + $0x30] sm:$0xff]
  %v3292 = vld [vmem:[%s2 + $0x38] sm:$0xff]
  %v3293 = vld [vmem:[%s2 + $0x40] sm:$0xff]
  %v3294 = vld [vmem:[%s2 + $0x48] sm:$0xff]
  %v3295 = vld [vmem:[%s2 + $0x50] sm:$0xff]
  %v3296 = vld [vmem:[%s2 + $0x58] sm:$0xff]
  %v3297 = vld [vmem:[%s2 + $0x60] sm:$0xff]
  %v3298 = vld [vmem:[%s2 + $0x68] sm:$0xff]
  %v3299 = vld [vmem:[%s2 + $0x70] sm:$0xff]
  %v3300 = vld [vmem:[%s2 + $0x78] sm:$0xff]
  %v3301 = vld [vmem:[%s2 + $0x80] sm:$0xff]
  %v3302 = vld [vmem:[%s2 + $0x88] sm:$0xff]
  %v3303 = vld [vmem:[%s2 + $0x90] sm:$0xff]
  %v3304 = vld [vmem:[%s2 + $0x98] sm:$0xff]
  %v3305 = vld [vmem:[%s2 + $0xa0] sm:$0xff]
  %v3306 = vld [vmem:[%s2 + $0xa8] sm:$0xff]
  %v3307 = vld [vmem:[%s2 + $0xb0] sm:$0xff]
  %v3308 = vld [vmem:[%s2 + $0xb8] sm:$0xff]
  %v3309 = vld [vmem:[%s2 + $0xc0] sm:$0xff]
  %v3310 = vld [vmem:[%s2 + $0xc8] sm:$0xff]
  %v3311 = vld [vmem:[%s2 + $0xd0] sm:$0xff]
  %v3312 = vld [vmem:[%s2 + $0xd8] sm:$0xff]
  %v3313 = vld [vmem:[%s2 + $0xe0] sm:$0xff]
  %v3314 = vld [vmem:[%s2 + $0xe8] sm:$0xff]
  %v3315 = vld [vmem:[%s2 + $0xf0] sm:$0xff]
  %v3316 = vld [vmem:[%s2 + $0xf8] sm:$0xff]
  %v3317 = vld [vmem:[%s2 + $0x100] sm:$0xff]
  %v3318 = vld [vmem:[%s2 + $0x108] sm:$0xff]
  %v3319 = vld [vmem:[%s2 + $0x110] sm:$0xff]
  %v3320 = vld [vmem:[%s2 + $0x118] sm:$0xff]
  %v3321 = vld [vmem:[%s2 + $0x120] sm:$0xff]
  %v3322 = vld [vmem:[%s2 + $0x128] sm:$0xff]
  %v3323 = vld [vmem:[%s2 + $0x130] sm:$0xff]
  %v3324 = vld [vmem:[%s2 + $0x138] sm:$0xff]
  %v3325 = vld [vmem:[%s2 + $0x140] sm:$0xff]
  %v3326 = vld [vmem:[%s2 + $0x148] sm:$0xff]
  %v3327 = vld [vmem:[%s2 + $0x150] sm:$0xff]
  %v3328 = vld [vmem:[%s2 + $0x158] sm:$0xff]
  %v3329 = vld [vmem:[%s2 + $0x160] sm:$0xff]
  %v3330 = vld [vmem:[%s2 + $0x168] sm:$0xff]
  %v3331 = vld [vmem:[%s2 + $0x170] sm:$0xff]
  %v3332 = vld [vmem:[%s2 + $0x178] sm:$0xff]
  %v3333 = vld [vmem:[%s2 + $0x180] sm:$0xff]
  %v3334 = vld [vmem:[%s2 + $0x188] sm:$0xff]
  %v3335 = vld [vmem:[%s2 + $0x190] sm:$0xff]
  %v3336 = vld [vmem:[%s2 + $0x198] sm:$0xff]
  %v3337 = vld [vmem:[%s2 + $0x1a0] sm:$0xff]
  %v3338 = vld [vmem:[%s2 + $0x1a8] sm:$0xff]
  %v3339 = vld [vmem:[%s2 + $0x1b0] sm:$0xff]
  %v3340 = vld [vmem:[%s2 + $0x1b8] sm:$0xff]
  %v3341 = vld [vmem:[%s2 + $0x1c0] sm:$0xff]
  %v3342 = vld [vmem:[%s2 + $0x1c8] sm:$0xff]
  %v3343 = vld [vmem:[%s2 + $0x1d0] sm:$0xff]
  %v3344 = vld [vmem:[%s2 + $0x1d8] sm:$0xff]
  %v3345 = vld [vmem:[%s2 + $0x1e0] sm:$0xff]
  %v3346 = vld [vmem:[%s2 + $0x1e8] sm:$0xff]
  %v3347 = vld [vmem:[%s2 + $0x1f0] sm:$0xff]
  %v3348 = vld [vmem:[%s2 + $0x1f8] sm:$0xff]
  %3349 = vmatprep.subr.mxu0 %v3346
  %3350 = vmatpush1.msra.mxu0 %v3345
  %3351 = vmatprep.subr.mxu0 %v3342
  %3352 = vmatpush1.msra.mxu0 %v3341
  %3353 = vmatprep.subr.mxu0 %v3338
  %3354 = vmatpush1.msra.mxu0 %v3337
  %3355 = vmatprep.subr.mxu0 %v3334
  %3356 = vmatpush1.msra.mxu0 %v3333
  %3357 = vmatprep.subr.mxu0 %v3330
  %3358 = vmatpush1.msra.mxu0 %v3329
  %3359 = vmatprep.subr.mxu0 %v3326
  %3360 = vmatpush1.msra.mxu0 %v3325
  %3361 = vmatprep.subr.mxu0 %v3322
  %3362 = vmatpush1.msra.mxu0 %v3321
  %3363 = vmatprep.subr.mxu0 %v3318
  %3364 = vmatpush1.msra.mxu0 %v3317
  %3365 = vmatprep.subr.mxu0 %v3314
  %3366 = vmatpush1.msra.mxu0 %v3313
  %3367 = vmatprep.subr.mxu0 %v3310
  %3368 = vmatpush1.msra.mxu0 %v3309
  %3369 = vmatprep.subr.mxu0 %v3306
  %3370 = vmatpush1.msra.mxu0 %v3305
  %3371 = vmatprep.subr.mxu0 %v3302
  %3372 = vmatpush1.msra.mxu0 %v3301
  %3373 = vmatprep.subr.mxu0 %v3298
  %3374 = vmatpush1.msra.mxu0 %v3297
  %3375 = vmatprep.subr.mxu0 %v3294
  %3376 = vmatpush1.msra.mxu0 %v3293
  %3377 = vmatprep.subr.mxu0 %v3290
  %3378 = vmatpush1.msra.mxu0 %v3289
  %3379 = vmatprep.subr.mxu0 %v3286
  %3380 = vmatpush1.msra.mxu0 %v3285
  %3381 = vmatprep.subr.mxu0 0.0
  %3382 = vmatpush2.msra.mxu0 0.0
  %3383 = vmatprep.subr.mxu0 0.0
  %3384 = vmatpush2.msra.mxu0 0.0
  %3385 = vmatprep.subr.mxu0 0.0
  %3386 = vmatpush2.msra.mxu0 0.0
  %3387 = vmatprep.subr.mxu0 0.0
  %3388 = vmatpush2.msra.mxu0 0.0
  %3389 = vmatprep.subr.mxu0 0.0
  %3390 = vmatpush2.msra.mxu0 0.0
  %3391 = vmatprep.subr.mxu0 0.0
  %3392 = vmatpush2.msra.mxu0 0.0
  %3393 = vmatprep.subr.mxu0 0.0
  %3394 = vmatpush2.msra.mxu0 0.0
  %3395 = vmatprep.subr.mxu0 0.0
  %3396 = vmatpush2.msra.mxu0 0.0
  %3397 = vmatprep.subr.mxu0 0.0
  %3398 = vmatpush2.msra.mxu0 0.0
  %3399 = vmatprep.subr.mxu0 0.0
  %3400 = vmatpush2.msra.mxu0 0.0
  %3401 = vmatprep.subr.mxu0 0.0
  %3402 = vmatpush2.msra.mxu0 0.0
  %3403 = vmatprep.subr.mxu0 0.0
  %3404 = vmatpush2.msra.mxu0 0.0
  %3405 = vmatprep.subr.mxu0 0.0
  %3406 = vmatpush2.msra.mxu0 0.0
  %3407 = vmatprep.subr.mxu0 0.0
  %3408 = vmatpush2.msra.mxu0 0.0
  %3409 = vmatprep.subr.mxu0 0.0
  %3410 = vmatpush2.msra.mxu0 0.0
  %3411 = vmatprep.subr.mxu0 0.0
  %3412 = vmatpush2.msra.mxu0 0.0
  %3413 = vmatprep.mubr.f32.mxu0 0.0
  %3414 = vmatmul.mubr.f32.gmra.mxu0 %v3275
  %v3415 = vpop.f32.mrf.mxu0
  %v3416 = vadd.f32 0.0, %v3415
  %v3417 = vpop.f32.mrf.mxu0
  %v3418 = vadd.f32 0.0, %v3417
  %3419 = vdwg.mxu0
  %3420 = vmatprep.subr.mxu0 %v3348
  %3421 = vmatpush1.msra.mxu0 %v3347
  %3422 = vmatprep.subr.mxu0 %v3344
  %3423 = vmatpush1.msra.mxu0 %v3343
  %3424 = vmatprep.subr.mxu0 %v3340
  %3425 = vmatpush1.msra.mxu0 %v3339
  %3426 = vmatprep.subr.mxu0 %v3336
  %3427 = vmatpush1.msra.mxu0 %v3335
  %3428 = vmatprep.subr.mxu0 %v3332
  %3429 = vmatpush1.msra.mxu0 %v3331
  %3430 = vmatprep.subr.mxu0 %v3328
  %3431 = vmatpush1.msra.mxu0 %v3327
  %3432 = vmatprep.subr.mxu0 %v3324
  %3433 = vmatpush1.msra.mxu0 %v3323
  %3434 = vmatprep.subr.mxu0 %v3320
  %3435 = vmatpush1.msra.mxu0 %v3319
  %3436 = vmatprep.subr.mxu0 %v3316
  %3437 = vmatpush1.msra.mxu0 %v3315
  %3438 = vmatprep.subr.mxu0 %v3312
  %3439 = vmatpush1.msra.mxu0 %v3311
  %3440 = vmatprep.subr.mxu0 %v3308
  %3441 = vmatpush1.msra.mxu0 %v3307
  %3442 = vmatprep.subr.mxu0 %v3304
  %3443 = vmatpush1.msra.mxu0 %v3303
  %3444 = vmatprep.subr.mxu0 %v3300
  %3445 = vmatpush1.msra.mxu0 %v3299
  %3446 = vmatprep.subr.mxu0 %v3296
  %3447 = vmatpush1.msra.mxu0 %v3295
  %3448 = vmatprep.subr.mxu0 %v3292
  %3449 = vmatpush1.msra.mxu0 %v3291
  %3450 = vmatprep.subr.mxu0 %v3288
  %3451 = vmatpush1.msra.mxu0 %v3287
  %3452 = vmatprep.subr.mxu0 0.0
  %3453 = vmatpush2.msra.mxu0 0.0
  %3454 = vmatprep.subr.mxu0 0.0
  %3455 = vmatpush2.msra.mxu0 0.0
  %3456 = vmatprep.subr.mxu0 0.0
  %3457 = vmatpush2.msra.mxu0 0.0
  %3458 = vmatprep.subr.mxu0 0.0
  %3459 = vmatpush2.msra.mxu0 0.0
  %3460 = vmatprep.subr.mxu0 0.0
  %3461 = vmatpush2.msra.mxu0 0.0
  %3462 = vmatprep.subr.mxu0 0.0
  %3463 = vmatpush2.msra.mxu0 0.0
  %3464 = vmatprep.subr.mxu0 0.0
  %3465 = vmatpush2.msra.mxu0 0.0
  %3466 = vmatprep.subr.mxu0 0.0
  %3467 = vmatpush2.msra.mxu0 0.0
  %3468 = vmatprep.subr.mxu0 0.0
  %3469 = vmatpush2.msra.mxu0 0.0
  %3470 = vmatprep.subr.mxu0 0.0
  %3471 = vmatpush2.msra.mxu0 0.0
  %3472 = vmatprep.subr.mxu0 0.0
  %3473 = vmatpush2.msra.mxu0 0.0
  %3474 = vmatprep.subr.mxu0 0.0
  %3475 = vmatpush2.msra.mxu0 0.0
  %3476 = vmatprep.subr.mxu0 0.0
  %3477 = vmatpush2.msra.mxu0 0.0
  %3478 = vmatprep.subr.mxu0 0.0
  %3479 = vmatpush2.msra.mxu0 0.0
  %3480 = vmatprep.subr.mxu0 0.0
  %3481 = vmatpush2.msra.mxu0 0.0
  %3482 = vmatprep.subr.mxu0 0.0
  %3483 = vmatpush2.msra.mxu0 0.0
  %3484 = vmatprep.mubr.f32.mxu0 0.0
  %3485 = vmatmul.mubr.f32.gmra.mxu0 %v3275
  %v3486 = vpop.f32.mrf.mxu0
  %v3487 = vadd.f32 0.0, %v3486
  %v3488 = vpop.f32.mrf.mxu0
  %v3489 = vadd.f32 0.0, %v3488
  %3490 = vdwg.mxu0
  %v3491 = vadd.f32 %v3281, %v3416
  %v3492 = vadd.f32 %v3282, %v3418
  %v3493 = vadd.f32 %v3283, %v3487
  %v3494 = vadd.f32 %v3284, %v3489
  %v3495 = vxor.u32 %v3491, 2147483648
  %v3496 = vmul.f32 %v3495, 1.442695
  %v3497 = vpow.pop %v3496
  %v3498 = vadd.f32 %v3497, 1.0
  %v3499 = vrcp.pop %v3498
  %v3500 = vmul.f32 1.0, %v3499
  %v3501 = vxor.u32 %v3492, 2147483648
  %v3502 = vmul.f32 %v3501, 1.442695
  %v3503 = vpow.pop %v3502
  %v3504 = vadd.f32 %v3503, 1.0
  %v3505 = vrcp.pop %v3504
  %v3506 = vmul.f32 1.0, %v3505
  %v3507 = vtanh.pop %v3493
  %v3508 = vxor.u32 %v3494, 2147483648
  %v3509 = vmul.f32 %v3508, 1.442695
  %v3510 = vpow.pop %v3509
  %v3511 = vadd.f32 %v3510, 1.0
  %v3512 = vrcp.pop %v3511
  %v3513 = vmul.f32 1.0, %v3512
  %v3514 = vmul.f32 %v3506, %v3273
  %v3515 = vmul.f32 %v3500, %v3507
  %v3516 = vadd.f32 %v3514, %v3515
  %v3517 = vtanh.pop %v3516
  %v3518 = vmul.f32 %v3513, %v3517
  %s3519 = scalar_lea.vmem %s4, 88
  %3520 = vst [vmem:[%s3519] sm:$0xff] %v3518
  %s3521 = smul.u32 12, 4
  %s3522 = smul.addr %s3521, 8
  %s3523 = scalar_lea.vmem [#allocation2], %s3522
  %v3524 = vld [vmem:[%s3523] sm:$0xff]
  %v3525 = vld [vmem:[%s3523 + $0x8] sm:$0xff]
  %v3526 = vld [vmem:[%s3523 + $0x10] sm:$0xff]
  %v3527 = vld [vmem:[%s3523 + $0x18] sm:$0xff]
  %v3528 = vld [vmem:[%s2] sm:$0xff]
  %v3529 = vld [vmem:[%s2 + $0x8] sm:$0xff]
  %v3530 = vld [vmem:[%s2 + $0x10] sm:$0xff]
  %v3531 = vld [vmem:[%s2 + $0x18] sm:$0xff]
  %v3532 = vld [vmem:[%s2 + $0x20] sm:$0xff]
  %v3533 = vld [vmem:[%s2 + $0x28] sm:$0xff]
  %v3534 = vld [vmem:[%s2 + $0x30] sm:$0xff]
  %v3535 = vld [vmem:[%s2 + $0x38] sm:$0xff]
  %v3536 = vld [vmem:[%s2 + $0x40] sm:$0xff]
  %v3537 = vld [vmem:[%s2 + $0x48] sm:$0xff]
  %v3538 = vld [vmem:[%s2 + $0x50] sm:$0xff]
  %v3539 = vld [vmem:[%s2 + $0x58] sm:$0xff]
  %v3540 = vld [vmem:[%s2 + $0x60] sm:$0xff]
  %v3541 = vld [vmem:[%s2 + $0x68] sm:$0xff]
  %v3542 = vld [vmem:[%s2 + $0x70] sm:$0xff]
  %v3543 = vld [vmem:[%s2 + $0x78] sm:$0xff]
  %v3544 = vld [vmem:[%s2 + $0x80] sm:$0xff]
  %v3545 = vld [vmem:[%s2 + $0x88] sm:$0xff]
  %v3546 = vld [vmem:[%s2 + $0x90] sm:$0xff]
  %v3547 = vld [vmem:[%s2 + $0x98] sm:$0xff]
  %v3548 = vld [vmem:[%s2 + $0xa0] sm:$0xff]
  %v3549 = vld [vmem:[%s2 + $0xa8] sm:$0xff]
  %v3550 = vld [vmem:[%s2 + $0xb0] sm:$0xff]
  %v3551 = vld [vmem:[%s2 + $0xb8] sm:$0xff]
  %v3552 = vld [vmem:[%s2 + $0xc0] sm:$0xff]
  %v3553 = vld [vmem:[%s2 + $0xc8] sm:$0xff]
  %v3554 = vld [vmem:[%s2 + $0xd0] sm:$0xff]
  %v3555 = vld [vmem:[%s2 + $0xd8] sm:$0xff]
  %v3556 = vld [vmem:[%s2 + $0xe0] sm:$0xff]
  %v3557 = vld [vmem:[%s2 + $0xe8] sm:$0xff]
  %v3558 = vld [vmem:[%s2 + $0xf0] sm:$0xff]
  %v3559 = vld [vmem:[%s2 + $0xf8] sm:$0xff]
  %v3560 = vld [vmem:[%s2 + $0x100] sm:$0xff]
  %v3561 = vld [vmem:[%s2 + $0x108] sm:$0xff]
  %v3562 = vld [vmem:[%s2 + $0x110] sm:$0xff]
  %v3563 = vld [vmem:[%s2 + $0x118] sm:$0xff]
  %v3564 = vld [vmem:[%s2 + $0x120] sm:$0xff]
  %v3565 = vld [vmem:[%s2 + $0x128] sm:$0xff]
  %v3566 = vld [vmem:[%s2 + $0x130] sm:$0xff]
  %v3567 = vld [vmem:[%s2 + $0x138] sm:$0xff]
  %v3568 = vld [vmem:[%s2 + $0x140] sm:$0xff]
  %v3569 = vld [vmem:[%s2 + $0x148] sm:$0xff]
  %v3570 = vld [vmem:[%s2 + $0x150] sm:$0xff]
  %v3571 = vld [vmem:[%s2 + $0x158] sm:$0xff]
  %v3572 = vld [vmem:[%s2 + $0x160] sm:$0xff]
  %v3573 = vld [vmem:[%s2 + $0x168] sm:$0xff]
  %v3574 = vld [vmem:[%s2 + $0x170] sm:$0xff]
  %v3575 = vld [vmem:[%s2 + $0x178] sm:$0xff]
  %v3576 = vld [vmem:[%s2 + $0x180] sm:$0xff]
  %v3577 = vld [vmem:[%s2 + $0x188] sm:$0xff]
  %v3578 = vld [vmem:[%s2 + $0x190] sm:$0xff]
  %v3579 = vld [vmem:[%s2 + $0x198] sm:$0xff]
  %v3580 = vld [vmem:[%s2 + $0x1a0] sm:$0xff]
  %v3581 = vld [vmem:[%s2 + $0x1a8] sm:$0xff]
  %v3582 = vld [vmem:[%s2 + $0x1b0] sm:$0xff]
  %v3583 = vld [vmem:[%s2 + $0x1b8] sm:$0xff]
  %v3584 = vld [vmem:[%s2 + $0x1c0] sm:$0xff]
  %v3585 = vld [vmem:[%s2 + $0x1c8] sm:$0xff]
  %v3586 = vld [vmem:[%s2 + $0x1d0] sm:$0xff]
  %v3587 = vld [vmem:[%s2 + $0x1d8] sm:$0xff]
  %v3588 = vld [vmem:[%s2 + $0x1e0] sm:$0xff]
  %v3589 = vld [vmem:[%s2 + $0x1e8] sm:$0xff]
  %v3590 = vld [vmem:[%s2 + $0x1f0] sm:$0xff]
  %v3591 = vld [vmem:[%s2 + $0x1f8] sm:$0xff]
  %3592 = vmatprep.subr.mxu0 %v3589
  %3593 = vmatpush1.msra.mxu0 %v3588
  %3594 = vmatprep.subr.mxu0 %v3585
  %3595 = vmatpush1.msra.mxu0 %v3584
  %3596 = vmatprep.subr.mxu0 %v3581
  %3597 = vmatpush1.msra.mxu0 %v3580
  %3598 = vmatprep.subr.mxu0 %v3577
  %3599 = vmatpush1.msra.mxu0 %v3576
  %3600 = vmatprep.subr.mxu0 %v3573
  %3601 = vmatpush1.msra.mxu0 %v3572
  %3602 = vmatprep.subr.mxu0 %v3569
  %3603 = vmatpush1.msra.mxu0 %v3568
  %3604 = vmatprep.subr.mxu0 %v3565
  %3605 = vmatpush1.msra.mxu0 %v3564
  %3606 = vmatprep.subr.mxu0 %v3561
  %3607 = vmatpush1.msra.mxu0 %v3560
  %3608 = vmatprep.subr.mxu0 %v3557
  %3609 = vmatpush1.msra.mxu0 %v3556
  %3610 = vmatprep.subr.mxu0 %v3553
  %3611 = vmatpush1.msra.mxu0 %v3552
  %3612 = vmatprep.subr.mxu0 %v3549
  %3613 = vmatpush1.msra.mxu0 %v3548
  %3614 = vmatprep.subr.mxu0 %v3545
  %3615 = vmatpush1.msra.mxu0 %v3544
  %3616 = vmatprep.subr.mxu0 %v3541
  %3617 = vmatpush1.msra.mxu0 %v3540
  %3618 = vmatprep.subr.mxu0 %v3537
  %3619 = vmatpush1.msra.mxu0 %v3536
  %3620 = vmatprep.subr.mxu0 %v3533
  %3621 = vmatpush1.msra.mxu0 %v3532
  %3622 = vmatprep.subr.mxu0 %v3529
  %3623 = vmatpush1.msra.mxu0 %v3528
  %3624 = vmatprep.subr.mxu0 0.0
  %3625 = vmatpush2.msra.mxu0 0.0
  %3626 = vmatprep.subr.mxu0 0.0
  %3627 = vmatpush2.msra.mxu0 0.0
  %3628 = vmatprep.subr.mxu0 0.0
  %3629 = vmatpush2.msra.mxu0 0.0
  %3630 = vmatprep.subr.mxu0 0.0
  %3631 = vmatpush2.msra.mxu0 0.0
  %3632 = vmatprep.subr.mxu0 0.0
  %3633 = vmatpush2.msra.mxu0 0.0
  %3634 = vmatprep.subr.mxu0 0.0
  %3635 = vmatpush2.msra.mxu0 0.0
  %3636 = vmatprep.subr.mxu0 0.0
  %3637 = vmatpush2.msra.mxu0 0.0
  %3638 = vmatprep.subr.mxu0 0.0
  %3639 = vmatpush2.msra.mxu0 0.0
  %3640 = vmatprep.subr.mxu0 0.0
  %3641 = vmatpush2.msra.mxu0 0.0
  %3642 = vmatprep.subr.mxu0 0.0
  %3643 = vmatpush2.msra.mxu0 0.0
  %3644 = vmatprep.subr.mxu0 0.0
  %3645 = vmatpush2.msra.mxu0 0.0
  %3646 = vmatprep.subr.mxu0 0.0
  %3647 = vmatpush2.msra.mxu0 0.0
  %3648 = vmatprep.subr.mxu0 0.0
  %3649 = vmatpush2.msra.mxu0 0.0
  %3650 = vmatprep.subr.mxu0 0.0
  %3651 = vmatpush2.msra.mxu0 0.0
  %3652 = vmatprep.subr.mxu0 0.0
  %3653 = vmatpush2.msra.mxu0 0.0
  %3654 = vmatprep.subr.mxu0 0.0
  %3655 = vmatpush2.msra.mxu0 0.0
  %3656 = vmatprep.mubr.f32.mxu0 0.0
  %3657 = vmatmul.mubr.f32.gmra.mxu0 %v3518
  %v3658 = vpop.f32.mrf.mxu0
  %v3659 = vadd.f32 0.0, %v3658
  %v3660 = vpop.f32.mrf.mxu0
  %v3661 = vadd.f32 0.0, %v3660
  %3662 = vdwg.mxu0
  %3663 = vmatprep.subr.mxu0 %v3591
  %3664 = vmatpush1.msra.mxu0 %v3590
  %3665 = vmatprep.subr.mxu0 %v3587
  %3666 = vmatpush1.msra.mxu0 %v3586
  %3667 = vmatprep.subr.mxu0 %v3583
  %3668 = vmatpush1.msra.mxu0 %v3582
  %3669 = vmatprep.subr.mxu0 %v3579
  %3670 = vmatpush1.msra.mxu0 %v3578
  %3671 = vmatprep.subr.mxu0 %v3575
  %3672 = vmatpush1.msra.mxu0 %v3574
  %3673 = vmatprep.subr.mxu0 %v3571
  %3674 = vmatpush1.msra.mxu0 %v3570
  %3675 = vmatprep.subr.mxu0 %v3567
  %3676 = vmatpush1.msra.mxu0 %v3566
  %3677 = vmatprep.subr.mxu0 %v3563
  %3678 = vmatpush1.msra.mxu0 %v3562
  %3679 = vmatprep.subr.mxu0 %v3559
  %3680 = vmatpush1.msra.mxu0 %v3558
  %3681 = vmatprep.subr.mxu0 %v3555
  %3682 = vmatpush1.msra.mxu0 %v3554
  %3683 = vmatprep.subr.mxu0 %v3551
  %3684 = vmatpush1.msra.mxu0 %v3550
  %3685 = vmatprep.subr.mxu0 %v3547
  %3686 = vmatpush1.msra.mxu0 %v3546
  %3687 = vmatprep.subr.mxu0 %v3543
  %3688 = vmatpush1.msra.mxu0 %v3542
  %3689 = vmatprep.subr.mxu0 %v3539
  %3690 = vmatpush1.msra.mxu0 %v3538
  %3691 = vmatprep.subr.mxu0 %v3535
  %3692 = vmatpush1.msra.mxu0 %v3534
  %3693 = vmatprep.subr.mxu0 %v3531
  %3694 = vmatpush1.msra.mxu0 %v3530
  %3695 = vmatprep.subr.mxu0 0.0
  %3696 = vmatpush2.msra.mxu0 0.0
  %3697 = vmatprep.subr.mxu0 0.0
  %3698 = vmatpush2.msra.mxu0 0.0
  %3699 = vmatprep.subr.mxu0 0.0
  %3700 = vmatpush2.msra.mxu0 0.0
  %3701 = vmatprep.subr.mxu0 0.0
  %3702 = vmatpush2.msra.mxu0 0.0
  %3703 = vmatprep.subr.mxu0 0.0
  %3704 = vmatpush2.msra.mxu0 0.0
  %3705 = vmatprep.subr.mxu0 0.0
  %3706 = vmatpush2.msra.mxu0 0.0
  %3707 = vmatprep.subr.mxu0 0.0
  %3708 = vmatpush2.msra.mxu0 0.0
  %3709 = vmatprep.subr.mxu0 0.0
  %3710 = vmatpush2.msra.mxu0 0.0
  %3711 = vmatprep.subr.mxu0 0.0
  %3712 = vmatpush2.msra.mxu0 0.0
  %3713 = vmatprep.subr.mxu0 0.0
  %3714 = vmatpush2.msra.mxu0 0.0
  %3715 = vmatprep.subr.mxu0 0.0
  %3716 = vmatpush2.msra.mxu0 0.0
  %3717 = vmatprep.subr.mxu0 0.0
  %3718 = vmatpush2.msra.mxu0 0.0
  %3719 = vmatprep.subr.mxu0 0.0
  %3720 = vmatpush2.msra.mxu0 0.0
  %3721 = vmatprep.subr.mxu0 0.0
  %3722 = vmatpush2.msra.mxu0 0.0
  %3723 = vmatprep.subr.mxu0 0.0
  %3724 = vmatpush2.msra.mxu0 0.0
  %3725 = vmatprep.subr.mxu0 0.0
  %3726 = vmatpush2.msra.mxu0 0.0
  %3727 = vmatprep.mubr.f32.mxu0 0.0
  %3728 = vmatmul.mubr.f32.gmra.mxu0 %v3518
  %v3729 = vpop.f32.mrf.mxu0
  %v3730 = vadd.f32 0.0, %v3729
  %v3731 = vpop.f32.mrf.mxu0
  %v3732 = vadd.f32 0.0, %v3731
  %3733 = vdwg.mxu0
  %v3734 = vadd.f32 %v3524, %v3659
  %v3735 = vadd.f32 %v3525, %v3661
  %v3736 = vadd.f32 %v3526, %v3730
  %v3737 = vadd.f32 %v3527, %v3732
  %v3738 = vxor.u32 %v3734, 2147483648
  %v3739 = vmul.f32 %v3738, 1.442695
  %v3740 = vpow.pop %v3739
  %v3741 = vadd.f32 %v3740, 1.0
  %v3742 = vrcp.pop %v3741
  %v3743 = vmul.f32 1.0, %v3742
  %v3744 = vxor.u32 %v3735, 2147483648
  %v3745 = vmul.f32 %v3744, 1.442695
  %v3746 = vpow.pop %v3745
  %v3747 = vadd.f32 %v3746, 1.0
  %v3748 = vrcp.pop %v3747
  %v3749 = vmul.f32 1.0, %v3748
  %v3750 = vtanh.pop %v3736
  %v3751 = vxor.u32 %v3737, 2147483648
  %v3752 = vmul.f32 %v3751, 1.442695
  %v3753 = vpow.pop %v3752
  %v3754 = vadd.f32 %v3753, 1.0
  %v3755 = vrcp.pop %v3754
  %v3756 = vmul.f32 1.0, %v3755
  %v3757 = vmul.f32 %v3749, %v3516
  %v3758 = vmul.f32 %v3743, %v3750
  %v3759 = vadd.f32 %v3757, %v3758
  %v3760 = vtanh.pop %v3759
  %v3761 = vmul.f32 %v3756, %v3760
  %s3762 = scalar_lea.vmem %s4, 96
  %3763 = vst [vmem:[%s3762] sm:$0xff] %v3761
  %s3764 = smul.u32 13, 4
  %s3765 = smul.addr %s3764, 8
  %s3766 = scalar_lea.vmem [#allocation2], %s3765
  %v3767 = vld [vmem:[%s3766] sm:$0xff]
  %v3768 = vld [vmem:[%s3766 + $0x8] sm:$0xff]
  %v3769 = vld [vmem:[%s3766 + $0x10] sm:$0xff]
  %v3770 = vld [vmem:[%s3766 + $0x18] sm:$0xff]
  %v3771 = vld [vmem:[%s2] sm:$0xff]
  %v3772 = vld [vmem:[%s2 + $0x8] sm:$0xff]
  %v3773 = vld [vmem:[%s2 + $0x10] sm:$0xff]
  %v3774 = vld [vmem:[%s2 + $0x18] sm:$0xff]
  %v3775 = vld [vmem:[%s2 + $0x20] sm:$0xff]
  %v3776 = vld [vmem:[%s2 + $0x28] sm:$0xff]
  %v3777 = vld [vmem:[%s2 + $0x30] sm:$0xff]
  %v3778 = vld [vmem:[%s2 + $0x38] sm:$0xff]
  %v3779 = vld [vmem:[%s2 + $0x40] sm:$0xff]
  %v3780 = vld [vmem:[%s2 + $0x48] sm:$0xff]
  %v3781 = vld [vmem:[%s2 + $0x50] sm:$0xff]
  %v3782 = vld [vmem:[%s2 + $0x58] sm:$0xff]
  %v3783 = vld [vmem:[%s2 + $0x60] sm:$0xff]
  %v3784 = vld [vmem:[%s2 + $0x68] sm:$0xff]
  %v3785 = vld [vmem:[%s2 + $0x70] sm:$0xff]
  %v3786 = vld [vmem:[%s2 + $0x78] sm:$0xff]
  %v3787 = vld [vmem:[%s2 + $0x80] sm:$0xff]
  %v3788 = vld [vmem:[%s2 + $0x88] sm:$0xff]
  %v3789 = vld [vmem:[%s2 + $0x90] sm:$0xff]
  %v3790 = vld [vmem:[%s2 + $0x98] sm:$0xff]
  %v3791 = vld [vmem:[%s2 + $0xa0] sm:$0xff]
  %v3792 = vld [vmem:[%s2 + $0xa8] sm:$0xff]
  %v3793 = vld [vmem:[%s2 + $0xb0] sm:$0xff]
  %v3794 = vld [vmem:[%s2 + $0xb8] sm:$0xff]
  %v3795 = vld [vmem:[%s2 + $0xc0] sm:$0xff]
  %v3796 = vld [vmem:[%s2 + $0xc8] sm:$0xff]
  %v3797 = vld [vmem:[%s2 + $0xd0] sm:$0xff]
  %v3798 = vld [vmem:[%s2 + $0xd8] sm:$0xff]
  %v3799 = vld [vmem:[%s2 + $0xe0] sm:$0xff]
  %v3800 = vld [vmem:[%s2 + $0xe8] sm:$0xff]
  %v3801 = vld [vmem:[%s2 + $0xf0] sm:$0xff]
  %v3802 = vld [vmem:[%s2 + $0xf8] sm:$0xff]
  %v3803 = vld [vmem:[%s2 + $0x100] sm:$0xff]
  %v3804 = vld [vmem:[%s2 + $0x108] sm:$0xff]
  %v3805 = vld [vmem:[%s2 + $0x110] sm:$0xff]
  %v3806 = vld [vmem:[%s2 + $0x118] sm:$0xff]
  %v3807 = vld [vmem:[%s2 + $0x120] sm:$0xff]
  %v3808 = vld [vmem:[%s2 + $0x128] sm:$0xff]
  %v3809 = vld [vmem:[%s2 + $0x130] sm:$0xff]
  %v3810 = vld [vmem:[%s2 + $0x138] sm:$0xff]
  %v3811 = vld [vmem:[%s2 + $0x140] sm:$0xff]
  %v3812 = vld [vmem:[%s2 + $0x148] sm:$0xff]
  %v3813 = vld [vmem:[%s2 + $0x150] sm:$0xff]
  %v3814 = vld [vmem:[%s2 + $0x158] sm:$0xff]
  %v3815 = vld [vmem:[%s2 + $0x160] sm:$0xff]
  %v3816 = vld [vmem:[%s2 + $0x168] sm:$0xff]
  %v3817 = vld [vmem:[%s2 + $0x170] sm:$0xff]
  %v3818 = vld [vmem:[%s2 + $0x178] sm:$0xff]
  %v3819 = vld [vmem:[%s2 + $0x180] sm:$0xff]
  %v3820 = vld [vmem:[%s2 + $0x188] sm:$0xff]
  %v3821 = vld [vmem:[%s2 + $0x190] sm:$0xff]
  %v3822 = vld [vmem:[%s2 + $0x198] sm:$0xff]
  %v3823 = vld [vmem:[%s2 + $0x1a0] sm:$0xff]
  %v3824 = vld [vmem:[%s2 + $0x1a8] sm:$0xff]
  %v3825 = vld [vmem:[%s2 + $0x1b0] sm:$0xff]
  %v3826 = vld [vmem:[%s2 + $0x1b8] sm:$0xff]
  %v3827 = vld [vmem:[%s2 + $0x1c0] sm:$0xff]
  %v3828 = vld [vmem:[%s2 + $0x1c8] sm:$0xff]
  %v3829 = vld [vmem:[%s2 + $0x1d0] sm:$0xff]
  %v3830 = vld [vmem:[%s2 + $0x1d8] sm:$0xff]
  %v3831 = vld [vmem:[%s2 + $0x1e0] sm:$0xff]
  %v3832 = vld [vmem:[%s2 + $0x1e8] sm:$0xff]
  %v3833 = vld [vmem:[%s2 + $0x1f0] sm:$0xff]
  %v3834 = vld [vmem:[%s2 + $0x1f8] sm:$0xff]
  %3835 = vmatprep.subr.mxu0 %v3832
  %3836 = vmatpush1.msra.mxu0 %v3831
  %3837 = vmatprep.subr.mxu0 %v3828
  %3838 = vmatpush1.msra.mxu0 %v3827
  %3839 = vmatprep.subr.mxu0 %v3824
  %3840 = vmatpush1.msra.mxu0 %v3823
  %3841 = vmatprep.subr.mxu0 %v3820
  %3842 = vmatpush1.msra.mxu0 %v3819
  %3843 = vmatprep.subr.mxu0 %v3816
  %3844 = vmatpush1.msra.mxu0 %v3815
  %3845 = vmatprep.subr.mxu0 %v3812
  %3846 = vmatpush1.msra.mxu0 %v3811
  %3847 = vmatprep.subr.mxu0 %v3808
  %3848 = vmatpush1.msra.mxu0 %v3807
  %3849 = vmatprep.subr.mxu0 %v3804
  %3850 = vmatpush1.msra.mxu0 %v3803
  %3851 = vmatprep.subr.mxu0 %v3800
  %3852 = vmatpush1.msra.mxu0 %v3799
  %3853 = vmatprep.subr.mxu0 %v3796
  %3854 = vmatpush1.msra.mxu0 %v3795
  %3855 = vmatprep.subr.mxu0 %v3792
  %3856 = vmatpush1.msra.mxu0 %v3791
  %3857 = vmatprep.subr.mxu0 %v3788
  %3858 = vmatpush1.msra.mxu0 %v3787
  %3859 = vmatprep.subr.mxu0 %v3784
  %3860 = vmatpush1.msra.mxu0 %v3783
  %3861 = vmatprep.subr.mxu0 %v3780
  %3862 = vmatpush1.msra.mxu0 %v3779
  %3863 = vmatprep.subr.mxu0 %v3776
  %3864 = vmatpush1.msra.mxu0 %v3775
  %3865 = vmatprep.subr.mxu0 %v3772
  %3866 = vmatpush1.msra.mxu0 %v3771
  %3867 = vmatprep.subr.mxu0 0.0
  %3868 = vmatpush2.msra.mxu0 0.0
  %3869 = vmatprep.subr.mxu0 0.0
  %3870 = vmatpush2.msra.mxu0 0.0
  %3871 = vmatprep.subr.mxu0 0.0
  %3872 = vmatpush2.msra.mxu0 0.0
  %3873 = vmatprep.subr.mxu0 0.0
  %3874 = vmatpush2.msra.mxu0 0.0
  %3875 = vmatprep.subr.mxu0 0.0
  %3876 = vmatpush2.msra.mxu0 0.0
  %3877 = vmatprep.subr.mxu0 0.0
  %3878 = vmatpush2.msra.mxu0 0.0
  %3879 = vmatprep.subr.mxu0 0.0
  %3880 = vmatpush2.msra.mxu0 0.0
  %3881 = vmatprep.subr.mxu0 0.0
  %3882 = vmatpush2.msra.mxu0 0.0
  %3883 = vmatprep.subr.mxu0 0.0
  %3884 = vmatpush2.msra.mxu0 0.0
  %3885 = vmatprep.subr.mxu0 0.0
  %3886 = vmatpush2.msra.mxu0 0.0
  %3887 = vmatprep.subr.mxu0 0.0
  %3888 = vmatpush2.msra.mxu0 0.0
  %3889 = vmatprep.subr.mxu0 0.0
  %3890 = vmatpush2.msra.mxu0 0.0
  %3891 = vmatprep.subr.mxu0 0.0
  %3892 = vmatpush2.msra.mxu0 0.0
  %3893 = vmatprep.subr.mxu0 0.0
  %3894 = vmatpush2.msra.mxu0 0.0
  %3895 = vmatprep.subr.mxu0 0.0
  %3896 = vmatpush2.msra.mxu0 0.0
  %3897 = vmatprep.subr.mxu0 0.0
  %3898 = vmatpush2.msra.mxu0 0.0
  %3899 = vmatprep.mubr.f32.mxu0 0.0
  %3900 = vmatmul.mubr.f32.gmra.mxu0 %v3761
  %v3901 = vpop.f32.mrf.mxu0
  %v3902 = vadd.f32 0.0, %v3901
  %v3903 = vpop.f32.mrf.mxu0
  %v3904 = vadd.f32 0.0, %v3903
  %3905 = vdwg.mxu0
  %3906 = vmatprep.subr.mxu0 %v3834
  %3907 = vmatpush1.msra.mxu0 %v3833
  %3908 = vmatprep.subr.mxu0 %v3830
  %3909 = vmatpush1.msra.mxu0 %v3829
  %3910 = vmatprep.subr.mxu0 %v3826
  %3911 = vmatpush1.msra.mxu0 %v3825
  %3912 = vmatprep.subr.mxu0 %v3822
  %3913 = vmatpush1.msra.mxu0 %v3821
  %3914 = vmatprep.subr.mxu0 %v3818
  %3915 = vmatpush1.msra.mxu0 %v3817
  %3916 = vmatprep.subr.mxu0 %v3814
  %3917 = vmatpush1.msra.mxu0 %v3813
  %3918 = vmatprep.subr.mxu0 %v3810
  %3919 = vmatpush1.msra.mxu0 %v3809
  %3920 = vmatprep.subr.mxu0 %v3806
  %3921 = vmatpush1.msra.mxu0 %v3805
  %3922 = vmatprep.subr.mxu0 %v3802
  %3923 = vmatpush1.msra.mxu0 %v3801
  %3924 = vmatprep.subr.mxu0 %v3798
  %3925 = vmatpush1.msra.mxu0 %v3797
  %3926 = vmatprep.subr.mxu0 %v3794
  %3927 = vmatpush1.msra.mxu0 %v3793
  %3928 = vmatprep.subr.mxu0 %v3790
  %3929 = vmatpush1.msra.mxu0 %v3789
  %3930 = vmatprep.subr.mxu0 %v3786
  %3931 = vmatpush1.msra.mxu0 %v3785
  %3932 = vmatprep.subr.mxu0 %v3782
  %3933 = vmatpush1.msra.mxu0 %v3781
  %3934 = vmatprep.subr.mxu0 %v3778
  %3935 = vmatpush1.msra.mxu0 %v3777
  %3936 = vmatprep.subr.mxu0 %v3774
  %3937 = vmatpush1.msra.mxu0 %v3773
  %3938 = vmatprep.subr.mxu0 0.0
  %3939 = vmatpush2.msra.mxu0 0.0
  %3940 = vmatprep.subr.mxu0 0.0
  %3941 = vmatpush2.msra.mxu0 0.0
  %3942 = vmatprep.subr.mxu0 0.0
  %3943 = vmatpush2.msra.mxu0 0.0
  %3944 = vmatprep.subr.mxu0 0.0
  %3945 = vmatpush2.msra.mxu0 0.0
  %3946 = vmatprep.subr.mxu0 0.0
  %3947 = vmatpush2.msra.mxu0 0.0
  %3948 = vmatprep.subr.mxu0 0.0
  %3949 = vmatpush2.msra.mxu0 0.0
  %3950 = vmatprep.subr.mxu0 0.0
  %3951 = vmatpush2.msra.mxu0 0.0
  %3952 = vmatprep.subr.mxu0 0.0
  %3953 = vmatpush2.msra.mxu0 0.0
  %3954 = vmatprep.subr.mxu0 0.0
  %3955 = vmatpush2.msra.mxu0 0.0
  %3956 = vmatprep.subr.mxu0 0.0
  %3957 = vmatpush2.msra.mxu0 0.0
  %3958 = vmatprep.subr.mxu0 0.0
  %3959 = vmatpush2.msra.mxu0 0.0
  %3960 = vmatprep.subr.mxu0 0.0
  %3961 = vmatpush2.msra.mxu0 0.0
  %3962 = vmatprep.subr.mxu0 0.0
  %3963 = vmatpush2.msra.mxu0 0.0
  %3964 = vmatprep.subr.mxu0 0.0
  %3965 = vmatpush2.msra.mxu0 0.0
  %3966 = vmatprep.subr.mxu0 0.0
  %3967 = vmatpush2.msra.mxu0 0.0
  %3968 = vmatprep.subr.mxu0 0.0
  %3969 = vmatpush2.msra.mxu0 0.0
  %3970 = vmatprep.mubr.f32.mxu0 0.0
  %3971 = vmatmul.mubr.f32.gmra.mxu0 %v3761
  %v3972 = vpop.f32.mrf.mxu0
  %v3973 = vadd.f32 0.0, %v3972
  %v3974 = vpop.f32.mrf.mxu0
  %v3975 = vadd.f32 0.0, %v3974
  %3976 = vdwg.mxu0
  %v3977 = vadd.f32 %v3767, %v3902
  %v3978 = vadd.f32 %v3768, %v3904
  %v3979 = vadd.f32 %v3769, %v3973
  %v3980 = vadd.f32 %v3770, %v3975
  %v3981 = vxor.u32 %v3977, 2147483648
  %v3982 = vmul.f32 %v3981, 1.442695
  %v3983 = vpow.pop %v3982
  %v3984 = vadd.f32 %v3983, 1.0
  %v3985 = vrcp.pop %v3984
  %v3986 = vmul.f32 1.0, %v3985
  %v3987 = vxor.u32 %v3978, 2147483648
  %v3988 = vmul.f32 %v3987, 1.442695
  %v3989 = vpow.pop %v3988
  %v3990 = vadd.f32 %v3989, 1.0
  %v3991 = vrcp.pop %v3990
  %v3992 = vmul.f32 1.0, %v3991
  %v3993 = vtanh.pop %v3979
  %v3994 = vxor.u32 %v3980, 2147483648
  %v3995 = vmul.f32 %v3994, 1.442695
  %v3996 = vpow.pop %v3995
  %v3997 = vadd.f32 %v3996, 1.0
  %v3998 = vrcp.pop %v3997
  %v3999 = vmul.f32 1.0, %v3998
  %v4000 = vmul.f32 %v3992, %v3759
  %v4001 = vmul.f32 %v3986, %v3993
  %v4002 = vadd.f32 %v4000, %v4001
  %v4003 = vtanh.pop %v4002
  %v4004 = vmul.f32 %v3999, %v4003
  %s4005 = scalar_lea.vmem %s4, 104
  %4006 = vst [vmem:[%s4005] sm:$0xff] %v4004
  %s4007 = smul.u32 14, 4
  %s4008 = smul.addr %s4007, 8
  %s4009 = scalar_lea.vmem [#allocation2], %s4008
  %v4010 = vld [vmem:[%s4009] sm:$0xff]
  %v4011 = vld [vmem:[%s4009 + $0x8] sm:$0xff]
  %v4012 = vld [vmem:[%s4009 + $0x10] sm:$0xff]
  %v4013 = vld [vmem:[%s4009 + $0x18] sm:$0xff]
  %v4014 = vld [vmem:[%s2] sm:$0xff]
  %v4015 = vld [vmem:[%s2 + $0x8] sm:$0xff]
  %v4016 = vld [vmem:[%s2 + $0x10] sm:$0xff]
  %v4017 = vld [vmem:[%s2 + $0x18] sm:$0xff]
  %v4018 = vld [vmem:[%s2 + $0x20] sm:$0xff]
  %v4019 = vld [vmem:[%s2 + $0x28] sm:$0xff]
  %v4020 = vld [vmem:[%s2 + $0x30] sm:$0xff]
  %v4021 = vld [vmem:[%s2 + $0x38] sm:$0xff]
  %v4022 = vld [vmem:[%s2 + $0x40] sm:$0xff]
  %v4023 = vld [vmem:[%s2 + $0x48] sm:$0xff]
  %v4024 = vld [vmem:[%s2 + $0x50] sm:$0xff]
  %v4025 = vld [vmem:[%s2 + $0x58] sm:$0xff]
  %v4026 = vld [vmem:[%s2 + $0x60] sm:$0xff]
  %v4027 = vld [vmem:[%s2 + $0x68] sm:$0xff]
  %v4028 = vld [vmem:[%s2 + $0x70] sm:$0xff]
  %v4029 = vld [vmem:[%s2 + $0x78] sm:$0xff]
  %v4030 = vld [vmem:[%s2 + $0x80] sm:$0xff]
  %v4031 = vld [vmem:[%s2 + $0x88] sm:$0xff]
  %v4032 = vld [vmem:[%s2 + $0x90] sm:$0xff]
  %v4033 = vld [vmem:[%s2 + $0x98] sm:$0xff]
  %v4034 = vld [vmem:[%s2 + $0xa0] sm:$0xff]
  %v4035 = vld [vmem:[%s2 + $0xa8] sm:$0xff]
  %v4036 = vld [vmem:[%s2 + $0xb0] sm:$0xff]
  %v4037 = vld [vmem:[%s2 + $0xb8] sm:$0xff]
  %v4038 = vld [vmem:[%s2 + $0xc0] sm:$0xff]
  %v4039 = vld [vmem:[%s2 + $0xc8] sm:$0xff]
  %v4040 = vld [vmem:[%s2 + $0xd0] sm:$0xff]
  %v4041 = vld [vmem:[%s2 + $0xd8] sm:$0xff]
  %v4042 = vld [vmem:[%s2 + $0xe0] sm:$0xff]
  %v4043 = vld [vmem:[%s2 + $0xe8] sm:$0xff]
  %v4044 = vld [vmem:[%s2 + $0xf0] sm:$0xff]
  %v4045 = vld [vmem:[%s2 + $0xf8] sm:$0xff]
  %v4046 = vld [vmem:[%s2 + $0x100] sm:$0xff]
  %v4047 = vld [vmem:[%s2 + $0x108] sm:$0xff]
  %v4048 = vld [vmem:[%s2 + $0x110] sm:$0xff]
  %v4049 = vld [vmem:[%s2 + $0x118] sm:$0xff]
  %v4050 = vld [vmem:[%s2 + $0x120] sm:$0xff]
  %v4051 = vld [vmem:[%s2 + $0x128] sm:$0xff]
  %v4052 = vld [vmem:[%s2 + $0x130] sm:$0xff]
  %v4053 = vld [vmem:[%s2 + $0x138] sm:$0xff]
  %v4054 = vld [vmem:[%s2 + $0x140] sm:$0xff]
  %v4055 = vld [vmem:[%s2 + $0x148] sm:$0xff]
  %v4056 = vld [vmem:[%s2 + $0x150] sm:$0xff]
  %v4057 = vld [vmem:[%s2 + $0x158] sm:$0xff]
  %v4058 = vld [vmem:[%s2 + $0x160] sm:$0xff]
  %v4059 = vld [vmem:[%s2 + $0x168] sm:$0xff]
  %v4060 = vld [vmem:[%s2 + $0x170] sm:$0xff]
  %v4061 = vld [vmem:[%s2 + $0x178] sm:$0xff]
  %v4062 = vld [vmem:[%s2 + $0x180] sm:$0xff]
  %v4063 = vld [vmem:[%s2 + $0x188] sm:$0xff]
  %v4064 = vld [vmem:[%s2 + $0x190] sm:$0xff]
  %v4065 = vld [vmem:[%s2 + $0x198] sm:$0xff]
  %v4066 = vld [vmem:[%s2 + $0x1a0] sm:$0xff]
  %v4067 = vld [vmem:[%s2 + $0x1a8] sm:$0xff]
  %v4068 = vld [vmem:[%s2 + $0x1b0] sm:$0xff]
  %v4069 = vld [vmem:[%s2 + $0x1b8] sm:$0xff]
  %v4070 = vld [vmem:[%s2 + $0x1c0] sm:$0xff]
  %v4071 = vld [vmem:[%s2 + $0x1c8] sm:$0xff]
  %v4072 = vld [vmem:[%s2 + $0x1d0] sm:$0xff]
  %v4073 = vld [vmem:[%s2 + $0x1d8] sm:$0xff]
  %v4074 = vld [vmem:[%s2 + $0x1e0] sm:$0xff]
  %v4075 = vld [vmem:[%s2 + $0x1e8] sm:$0xff]
  %v4076 = vld [vmem:[%s2 + $0x1f0] sm:$0xff]
  %v4077 = vld [vmem:[%s2 + $0x1f8] sm:$0xff]
  %4078 = vmatprep.subr.mxu0 %v4075
  %4079 = vmatpush1.msra.mxu0 %v4074
  %4080 = vmatprep.subr.mxu0 %v4071
  %4081 = vmatpush1.msra.mxu0 %v4070
  %4082 = vmatprep.subr.mxu0 %v4067
  %4083 = vmatpush1.msra.mxu0 %v4066
  %4084 = vmatprep.subr.mxu0 %v4063
  %4085 = vmatpush1.msra.mxu0 %v4062
  %4086 = vmatprep.subr.mxu0 %v4059
  %4087 = vmatpush1.msra.mxu0 %v4058
  %4088 = vmatprep.subr.mxu0 %v4055
  %4089 = vmatpush1.msra.mxu0 %v4054
  %4090 = vmatprep.subr.mxu0 %v4051
  %4091 = vmatpush1.msra.mxu0 %v4050
  %4092 = vmatprep.subr.mxu0 %v4047
  %4093 = vmatpush1.msra.mxu0 %v4046
  %4094 = vmatprep.subr.mxu0 %v4043
  %4095 = vmatpush1.msra.mxu0 %v4042
  %4096 = vmatprep.subr.mxu0 %v4039
  %4097 = vmatpush1.msra.mxu0 %v4038
  %4098 = vmatprep.subr.mxu0 %v4035
  %4099 = vmatpush1.msra.mxu0 %v4034
  %4100 = vmatprep.subr.mxu0 %v4031
  %4101 = vmatpush1.msra.mxu0 %v4030
  %4102 = vmatprep.subr.mxu0 %v4027
  %4103 = vmatpush1.msra.mxu0 %v4026
  %4104 = vmatprep.subr.mxu0 %v4023
  %4105 = vmatpush1.msra.mxu0 %v4022
  %4106 = vmatprep.subr.mxu0 %v4019
  %4107 = vmatpush1.msra.mxu0 %v4018
  %4108 = vmatprep.subr.mxu0 %v4015
  %4109 = vmatpush1.msra.mxu0 %v4014
  %4110 = vmatprep.subr.mxu0 0.0
  %4111 = vmatpush2.msra.mxu0 0.0
  %4112 = vmatprep.subr.mxu0 0.0
  %4113 = vmatpush2.msra.mxu0 0.0
  %4114 = vmatprep.subr.mxu0 0.0
  %4115 = vmatpush2.msra.mxu0 0.0
  %4116 = vmatprep.subr.mxu0 0.0
  %4117 = vmatpush2.msra.mxu0 0.0
  %4118 = vmatprep.subr.mxu0 0.0
  %4119 = vmatpush2.msra.mxu0 0.0
  %4120 = vmatprep.subr.mxu0 0.0
  %4121 = vmatpush2.msra.mxu0 0.0
  %4122 = vmatprep.subr.mxu0 0.0
  %4123 = vmatpush2.msra.mxu0 0.0
  %4124 = vmatprep.subr.mxu0 0.0
  %4125 = vmatpush2.msra.mxu0 0.0
  %4126 = vmatprep.subr.mxu0 0.0
  %4127 = vmatpush2.msra.mxu0 0.0
  %4128 = vmatprep.subr.mxu0 0.0
  %4129 = vmatpush2.msra.mxu0 0.0
  %4130 = vmatprep.subr.mxu0 0.0
  %4131 = vmatpush2.msra.mxu0 0.0
  %4132 = vmatprep.subr.mxu0 0.0
  %4133 = vmatpush2.msra.mxu0 0.0
  %4134 = vmatprep.subr.mxu0 0.0
  %4135 = vmatpush2.msra.mxu0 0.0
  %4136 = vmatprep.subr.mxu0 0.0
  %4137 = vmatpush2.msra.mxu0 0.0
  %4138 = vmatprep.subr.mxu0 0.0
  %4139 = vmatpush2.msra.mxu0 0.0
  %4140 = vmatprep.subr.mxu0 0.0
  %4141 = vmatpush2.msra.mxu0 0.0
  %4142 = vmatprep.mubr.f32.mxu0 0.0
  %4143 = vmatmul.mubr.f32.gmra.mxu0 %v4004
  %v4144 = vpop.f32.mrf.mxu0
  %v4145 = vadd.f32 0.0, %v4144
  %v4146 = vpop.f32.mrf.mxu0
  %v4147 = vadd.f32 0.0, %v4146
  %4148 = vdwg.mxu0
  %4149 = vmatprep.subr.mxu0 %v4077
  %4150 = vmatpush1.msra.mxu0 %v4076
  %4151 = vmatprep.subr.mxu0 %v4073
  %4152 = vmatpush1.msra.mxu0 %v4072
  %4153 = vmatprep.subr.mxu0 %v4069
  %4154 = vmatpush1.msra.mxu0 %v4068
  %4155 = vmatprep.subr.mxu0 %v4065
  %4156 = vmatpush1.msra.mxu0 %v4064
  %4157 = vmatprep.subr.mxu0 %v4061
  %4158 = vmatpush1.msra.mxu0 %v4060
  %4159 = vmatprep.subr.mxu0 %v4057
  %4160 = vmatpush1.msra.mxu0 %v4056
  %4161 = vmatprep.subr.mxu0 %v4053
  %4162 = vmatpush1.msra.mxu0 %v4052
  %4163 = vmatprep.subr.mxu0 %v4049
  %4164 = vmatpush1.msra.mxu0 %v4048
  %4165 = vmatprep.subr.mxu0 %v4045
  %4166 = vmatpush1.msra.mxu0 %v4044
  %4167 = vmatprep.subr.mxu0 %v4041
  %4168 = vmatpush1.msra.mxu0 %v4040
  %4169 = vmatprep.subr.mxu0 %v4037
  %4170 = vmatpush1.msra.mxu0 %v4036
  %4171 = vmatprep.subr.mxu0 %v4033
  %4172 = vmatpush1.msra.mxu0 %v4032
  %4173 = vmatprep.subr.mxu0 %v4029
  %4174 = vmatpush1.msra.mxu0 %v4028
  %4175 = vmatprep.subr.mxu0 %v4025
  %4176 = vmatpush1.msra.mxu0 %v4024
  %4177 = vmatprep.subr.mxu0 %v4021
  %4178 = vmatpush1.msra.mxu0 %v4020
  %4179 = vmatprep.subr.mxu0 %v4017
  %4180 = vmatpush1.msra.mxu0 %v4016
  %4181 = vmatprep.subr.mxu0 0.0
  %4182 = vmatpush2.msra.mxu0 0.0
  %4183 = vmatprep.subr.mxu0 0.0
  %4184 = vmatpush2.msra.mxu0 0.0
  %4185 = vmatprep.subr.mxu0 0.0
  %4186 = vmatpush2.msra.mxu0 0.0
  %4187 = vmatprep.subr.mxu0 0.0
  %4188 = vmatpush2.msra.mxu0 0.0
  %4189 = vmatprep.subr.mxu0 0.0
  %4190 = vmatpush2.msra.mxu0 0.0
  %4191 = vmatprep.subr.mxu0 0.0
  %4192 = vmatpush2.msra.mxu0 0.0
  %4193 = vmatprep.subr.mxu0 0.0
  %4194 = vmatpush2.msra.mxu0 0.0
  %4195 = vmatprep.subr.mxu0 0.0
  %4196 = vmatpush2.msra.mxu0 0.0
  %4197 = vmatprep.subr.mxu0 0.0
  %4198 = vmatpush2.msra.mxu0 0.0
  %4199 = vmatprep.subr.mxu0 0.0
  %4200 = vmatpush2.msra.mxu0 0.0
  %4201 = vmatprep.subr.mxu0 0.0
  %4202 = vmatpush2.msra.mxu0 0.0
  %4203 = vmatprep.subr.mxu0 0.0
  %4204 = vmatpush2.msra.mxu0 0.0
  %4205 = vmatprep.subr.mxu0 0.0
  %4206 = vmatpush2.msra.mxu0 0.0
  %4207 = vmatprep.subr.mxu0 0.0
  %4208 = vmatpush2.msra.mxu0 0.0
  %4209 = vmatprep.subr.mxu0 0.0
  %4210 = vmatpush2.msra.mxu0 0.0
  %4211 = vmatprep.subr.mxu0 0.0
  %4212 = vmatpush2.msra.mxu0 0.0
  %4213 = vmatprep.mubr.f32.mxu0 0.0
  %4214 = vmatmul.mubr.f32.gmra.mxu0 %v4004
  %v4215 = vpop.f32.mrf.mxu0
  %v4216 = vadd.f32 0.0, %v4215
  %v4217 = vpop.f32.mrf.mxu0
  %v4218 = vadd.f32 0.0, %v4217
  %4219 = vdwg.mxu0
  %v4220 = vadd.f32 %v4010, %v4145
  %v4221 = vadd.f32 %v4011, %v4147
  %v4222 = vadd.f32 %v4012, %v4216
  %v4223 = vadd.f32 %v4013, %v4218
  %v4224 = vxor.u32 %v4220, 2147483648
  %v4225 = vmul.f32 %v4224, 1.442695
  %v4226 = vpow.pop %v4225
  %v4227 = vadd.f32 %v4226, 1.0
  %v4228 = vrcp.pop %v4227
  %v4229 = vmul.f32 1.0, %v4228
  %v4230 = vxor.u32 %v4221, 2147483648
  %v4231 = vmul.f32 %v4230, 1.442695
  %v4232 = vpow.pop %v4231
  %v4233 = vadd.f32 %v4232, 1.0
  %v4234 = vrcp.pop %v4233
  %v4235 = vmul.f32 1.0, %v4234
  %v4236 = vtanh.pop %v4222
  %v4237 = vxor.u32 %v4223, 2147483648
  %v4238 = vmul.f32 %v4237, 1.442695
  %v4239 = vpow.pop %v4238
  %v4240 = vadd.f32 %v4239, 1.0
  %v4241 = vrcp.pop %v4240
  %v4242 = vmul.f32 1.0, %v4241
  %v4243 = vmul.f32 %v4235, %v4002
  %v4244 = vmul.f32 %v4229, %v4236
  %v4245 = vadd.f32 %v4243, %v4244
  %v4246 = vtanh.pop %v4245
  %v4247 = vmul.f32 %v4242, %v4246
  %s4248 = scalar_lea.vmem %s4, 112
  %4249 = vst [vmem:[%s4248] sm:$0xff] %v4247
  %s4250 = smul.u32 15, 4
  %s4251 = smul.addr %s4250, 8
  %s4252 = scalar_lea.vmem [#allocation2], %s4251
  %v4253 = vld [vmem:[%s4252] sm:$0xff]
  %v4254 = vld [vmem:[%s4252 + $0x8] sm:$0xff]
  %v4255 = vld [vmem:[%s4252 + $0x10] sm:$0xff]
  %v4256 = vld [vmem:[%s4252 + $0x18] sm:$0xff]
  %v4257 = vld [vmem:[%s2] sm:$0xff]
  %v4258 = vld [vmem:[%s2 + $0x8] sm:$0xff]
  %v4259 = vld [vmem:[%s2 + $0x10] sm:$0xff]
  %v4260 = vld [vmem:[%s2 + $0x18] sm:$0xff]
  %v4261 = vld [vmem:[%s2 + $0x20] sm:$0xff]
  %v4262 = vld [vmem:[%s2 + $0x28] sm:$0xff]
  %v4263 = vld [vmem:[%s2 + $0x30] sm:$0xff]
  %v4264 = vld [vmem:[%s2 + $0x38] sm:$0xff]
  %v4265 = vld [vmem:[%s2 + $0x40] sm:$0xff]
  %v4266 = vld [vmem:[%s2 + $0x48] sm:$0xff]
  %v4267 = vld [vmem:[%s2 + $0x50] sm:$0xff]
  %v4268 = vld [vmem:[%s2 + $0x58] sm:$0xff]
  %v4269 = vld [vmem:[%s2 + $0x60] sm:$0xff]
  %v4270 = vld [vmem:[%s2 + $0x68] sm:$0xff]
  %v4271 = vld [vmem:[%s2 + $0x70] sm:$0xff]
  %v4272 = vld [vmem:[%s2 + $0x78] sm:$0xff]
  %v4273 = vld [vmem:[%s2 + $0x80] sm:$0xff]
  %v4274 = vld [vmem:[%s2 + $0x88] sm:$0xff]
  %v4275 = vld [vmem:[%s2 + $0x90] sm:$0xff]
  %v4276 = vld [vmem:[%s2 + $0x98] sm:$0xff]
  %v4277 = vld [vmem:[%s2 + $0xa0] sm:$0xff]
  %v4278 = vld [vmem:[%s2 + $0xa8] sm:$0xff]
  %v4279 = vld [vmem:[%s2 + $0xb0] sm:$0xff]
  %v4280 = vld [vmem:[%s2 + $0xb8] sm:$0xff]
  %v4281 = vld [vmem:[%s2 + $0xc0] sm:$0xff]
  %v4282 = vld [vmem:[%s2 + $0xc8] sm:$0xff]
  %v4283 = vld [vmem:[%s2 + $0xd0] sm:$0xff]
  %v4284 = vld [vmem:[%s2 + $0xd8] sm:$0xff]
  %v4285 = vld [vmem:[%s2 + $0xe0] sm:$0xff]
  %v4286 = vld [vmem:[%s2 + $0xe8] sm:$0xff]
  %v4287 = vld [vmem:[%s2 + $0xf0] sm:$0xff]
  %v4288 = vld [vmem:[%s2 + $0xf8] sm:$0xff]
  %v4289 = vld [vmem:[%s2 + $0x100] sm:$0xff]
  %v4290 = vld [vmem:[%s2 + $0x108] sm:$0xff]
  %v4291 = vld [vmem:[%s2 + $0x110] sm:$0xff]
  %v4292 = vld [vmem:[%s2 + $0x118] sm:$0xff]
  %v4293 = vld [vmem:[%s2 + $0x120] sm:$0xff]
  %v4294 = vld [vmem:[%s2 + $0x128] sm:$0xff]
  %v4295 = vld [vmem:[%s2 + $0x130] sm:$0xff]
  %v4296 = vld [vmem:[%s2 + $0x138] sm:$0xff]
  %v4297 = vld [vmem:[%s2 + $0x140] sm:$0xff]
  %v4298 = vld [vmem:[%s2 + $0x148] sm:$0xff]
  %v4299 = vld [vmem:[%s2 + $0x150] sm:$0xff]
  %v4300 = vld [vmem:[%s2 + $0x158] sm:$0xff]
  %v4301 = vld [vmem:[%s2 + $0x160] sm:$0xff]
  %v4302 = vld [vmem:[%s2 + $0x168] sm:$0xff]
  %v4303 = vld [vmem:[%s2 + $0x170] sm:$0xff]
  %v4304 = vld [vmem:[%s2 + $0x178] sm:$0xff]
  %v4305 = vld [vmem:[%s2 + $0x180] sm:$0xff]
  %v4306 = vld [vmem:[%s2 + $0x188] sm:$0xff]
  %v4307 = vld [vmem:[%s2 + $0x190] sm:$0xff]
  %v4308 = vld [vmem:[%s2 + $0x198] sm:$0xff]
  %v4309 = vld [vmem:[%s2 + $0x1a0] sm:$0xff]
  %v4310 = vld [vmem:[%s2 + $0x1a8] sm:$0xff]
  %v4311 = vld [vmem:[%s2 + $0x1b0] sm:$0xff]
  %v4312 = vld [vmem:[%s2 + $0x1b8] sm:$0xff]
  %v4313 = vld [vmem:[%s2 + $0x1c0] sm:$0xff]
  %v4314 = vld [vmem:[%s2 + $0x1c8] sm:$0xff]
  %v4315 = vld [vmem:[%s2 + $0x1d0] sm:$0xff]
  %v4316 = vld [vmem:[%s2 + $0x1d8] sm:$0xff]
  %v4317 = vld [vmem:[%s2 + $0x1e0] sm:$0xff]
  %v4318 = vld [vmem:[%s2 + $0x1e8] sm:$0xff]
  %v4319 = vld [vmem:[%s2 + $0x1f0] sm:$0xff]
  %v4320 = vld [vmem:[%s2 + $0x1f8] sm:$0xff]
  %4321 = vmatprep.subr.mxu0 %v4318
  %4322 = vmatpush1.msra.mxu0 %v4317
  %4323 = vmatprep.subr.mxu0 %v4314
  %4324 = vmatpush1.msra.mxu0 %v4313
  %4325 = vmatprep.subr.mxu0 %v4310
  %4326 = vmatpush1.msra.mxu0 %v4309
  %4327 = vmatprep.subr.mxu0 %v4306
  %4328 = vmatpush1.msra.mxu0 %v4305
  %4329 = vmatprep.subr.mxu0 %v4302
  %4330 = vmatpush1.msra.mxu0 %v4301
  %4331 = vmatprep.subr.mxu0 %v4298
  %4332 = vmatpush1.msra.mxu0 %v4297
  %4333 = vmatprep.subr.mxu0 %v4294
  %4334 = vmatpush1.msra.mxu0 %v4293
  %4335 = vmatprep.subr.mxu0 %v4290
  %4336 = vmatpush1.msra.mxu0 %v4289
  %4337 = vmatprep.subr.mxu0 %v4286
  %4338 = vmatpush1.msra.mxu0 %v4285
  %4339 = vmatprep.subr.mxu0 %v4282
  %4340 = vmatpush1.msra.mxu0 %v4281
  %4341 = vmatprep.subr.mxu0 %v4278
  %4342 = vmatpush1.msra.mxu0 %v4277
  %4343 = vmatprep.subr.mxu0 %v4274
  %4344 = vmatpush1.msra.mxu0 %v4273
  %4345 = vmatprep.subr.mxu0 %v4270
  %4346 = vmatpush1.msra.mxu0 %v4269
  %4347 = vmatprep.subr.mxu0 %v4266
  %4348 = vmatpush1.msra.mxu0 %v4265
  %4349 = vmatprep.subr.mxu0 %v4262
  %4350 = vmatpush1.msra.mxu0 %v4261
  %4351 = vmatprep.subr.mxu0 %v4258
  %4352 = vmatpush1.msra.mxu0 %v4257
  %4353 = vmatprep.subr.mxu0 0.0
  %4354 = vmatpush2.msra.mxu0 0.0
  %4355 = vmatprep.subr.mxu0 0.0
  %4356 = vmatpush2.msra.mxu0 0.0
  %4357 = vmatprep.subr.mxu0 0.0
  %4358 = vmatpush2.msra.mxu0 0.0
  %4359 = vmatprep.subr.mxu0 0.0
  %4360 = vmatpush2.msra.mxu0 0.0
  %4361 = vmatprep.subr.mxu0 0.0
  %4362 = vmatpush2.msra.mxu0 0.0
  %4363 = vmatprep.subr.mxu0 0.0
  %4364 = vmatpush2.msra.mxu0 0.0
  %4365 = vmatprep.subr.mxu0 0.0
  %4366 = vmatpush2.msra.mxu0 0.0
  %4367 = vmatprep.subr.mxu0 0.0
  %4368 = vmatpush2.msra.mxu0 0.0
  %4369 = vmatprep.subr.mxu0 0.0
  %4370 = vmatpush2.msra.mxu0 0.0
  %4371 = vmatprep.subr.mxu0 0.0
  %4372 = vmatpush2.msra.mxu0 0.0
  %4373 = vmatprep.subr.mxu0 0.0
  %4374 = vmatpush2.msra.mxu0 0.0
  %4375 = vmatprep.subr.mxu0 0.0
  %4376 = vmatpush2.msra.mxu0 0.0
  %4377 = vmatprep.subr.mxu0 0.0
  %4378 = vmatpush2.msra.mxu0 0.0
  %4379 = vmatprep.subr.mxu0 0.0
  %4380 = vmatpush2.msra.mxu0 0.0
  %4381 = vmatprep.subr.mxu0 0.0
  %4382 = vmatpush2.msra.mxu0 0.0
  %4383 = vmatprep.subr.mxu0 0.0
  %4384 = vmatpush2.msra.mxu0 0.0
  %4385 = vmatprep.mubr.f32.mxu0 0.0
  %4386 = vmatmul.mubr.f32.gmra.mxu0 %v4247
  %v4387 = vpop.f32.mrf.mxu0
  %v4388 = vadd.f32 0.0, %v4387
  %v4389 = vpop.f32.mrf.mxu0
  %v4390 = vadd.f32 0.0, %v4389
  %4391 = vdwg.mxu0
  %4392 = vmatprep.subr.mxu0 %v4320
  %4393 = vmatpush1.msra.mxu0 %v4319
  %4394 = vmatprep.subr.mxu0 %v4316
  %4395 = vmatpush1.msra.mxu0 %v4315
  %4396 = vmatprep.subr.mxu0 %v4312
  %4397 = vmatpush1.msra.mxu0 %v4311
  %4398 = vmatprep.subr.mxu0 %v4308
  %4399 = vmatpush1.msra.mxu0 %v4307
  %4400 = vmatprep.subr.mxu0 %v4304
  %4401 = vmatpush1.msra.mxu0 %v4303
  %4402 = vmatprep.subr.mxu0 %v4300
  %4403 = vmatpush1.msra.mxu0 %v4299
  %4404 = vmatprep.subr.mxu0 %v4296
  %4405 = vmatpush1.msra.mxu0 %v4295
  %4406 = vmatprep.subr.mxu0 %v4292
  %4407 = vmatpush1.msra.mxu0 %v4291
  %4408 = vmatprep.subr.mxu0 %v4288
  %4409 = vmatpush1.msra.mxu0 %v4287
  %4410 = vmatprep.subr.mxu0 %v4284
  %4411 = vmatpush1.msra.mxu0 %v4283
  %4412 = vmatprep.subr.mxu0 %v4280
  %4413 = vmatpush1.msra.mxu0 %v4279
  %4414 = vmatprep.subr.mxu0 %v4276
  %4415 = vmatpush1.msra.mxu0 %v4275
  %4416 = vmatprep.subr.mxu0 %v4272
  %4417 = vmatpush1.msra.mxu0 %v4271
  %4418 = vmatprep.subr.mxu0 %v4268
  %4419 = vmatpush1.msra.mxu0 %v4267
  %4420 = vmatprep.subr.mxu0 %v4264
  %4421 = vmatpush1.msra.mxu0 %v4263
  %4422 = vmatprep.subr.mxu0 %v4260
  %4423 = vmatpush1.msra.mxu0 %v4259
  %4424 = vmatprep.subr.mxu0 0.0
  %4425 = vmatpush2.msra.mxu0 0.0
  %4426 = vmatprep.subr.mxu0 0.0
  %4427 = vmatpush2.msra.mxu0 0.0
  %4428 = vmatprep.subr.mxu0 0.0
  %4429 = vmatpush2.msra.mxu0 0.0
  %4430 = vmatprep.subr.mxu0 0.0
  %4431 = vmatpush2.msra.mxu0 0.0
  %4432 = vmatprep.subr.mxu0 0.0
  %4433 = vmatpush2.msra.mxu0 0.0
  %4434 = vmatprep.subr.mxu0 0.0
  %4435 = vmatpush2.msra.mxu0 0.0
  %4436 = vmatprep.subr.mxu0 0.0
  %4437 = vmatpush2.msra.mxu0 0.0
  %4438 = vmatprep.subr.mxu0 0.0
  %4439 = vmatpush2.msra.mxu0 0.0
  %4440 = vmatprep.subr.mxu0 0.0
  %4441 = vmatpush2.msra.mxu0 0.0
  %4442 = vmatprep.subr.mxu0 0.0
  %4443 = vmatpush2.msra.mxu0 0.0
  %4444 = vmatprep.subr.mxu0 0.0
  %4445 = vmatpush2.msra.mxu0 0.0
  %4446 = vmatprep.subr.mxu0 0.0
  %4447 = vmatpush2.msra.mxu0 0.0
  %4448 = vmatprep.subr.mxu0 0.0
  %4449 = vmatpush2.msra.mxu0 0.0
  %4450 = vmatprep.subr.mxu0 0.0
  %4451 = vmatpush2.msra.mxu0 0.0
  %4452 = vmatprep.subr.mxu0 0.0
  %4453 = vmatpush2.msra.mxu0 0.0
  %4454 = vmatprep.subr.mxu0 0.0
  %4455 = vmatpush2.msra.mxu0 0.0
  %4456 = vmatprep.mubr.f32.mxu0 0.0
  %4457 = vmatmul.mubr.f32.gmra.mxu0 %v4247
  %v4458 = vpop.f32.mrf.mxu0
  %v4459 = vadd.f32 0.0, %v4458
  %v4460 = vpop.f32.mrf.mxu0
  %v4461 = vadd.f32 0.0, %v4460
  %4462 = vdwg.mxu0
  %v4463 = vadd.f32 %v4253, %v4388
  %v4464 = vadd.f32 %v4254, %v4390
  %v4465 = vadd.f32 %v4255, %v4459
  %v4466 = vadd.f32 %v4256, %v4461
  %v4467 = vxor.u32 %v4463, 2147483648
  %v4468 = vmul.f32 %v4467, 1.442695
  %v4469 = vpow.pop %v4468
  %v4470 = vadd.f32 %v4469, 1.0
  %v4471 = vrcp.pop %v4470
  %v4472 = vmul.f32 1.0, %v4471
  %v4473 = vxor.u32 %v4464, 2147483648
  %v4474 = vmul.f32 %v4473, 1.442695
  %v4475 = vpow.pop %v4474
  %v4476 = vadd.f32 %v4475, 1.0
  %v4477 = vrcp.pop %v4476
  %v4478 = vmul.f32 1.0, %v4477
  %v4479 = vtanh.pop %v4465
  %v4480 = vxor.u32 %v4466, 2147483648
  %v4481 = vmul.f32 %v4480, 1.442695
  %v4482 = vpow.pop %v4481
  %v4483 = vadd.f32 %v4482, 1.0
  %v4484 = vrcp.pop %v4483
  %v4485 = vmul.f32 1.0, %v4484
  %v4486 = vmul.f32 %v4478, %v4245
  %v4487 = vmul.f32 %v4472, %v4479
  %v4488 = vadd.f32 %v4486, %v4487
  %v4489 = vtanh.pop %v4488
  %v4490 = vmul.f32 %v4485, %v4489
  %s4491 = scalar_lea.vmem %s4, 120
  %4492 = vst [vmem:[%s4491] sm:$0xff] %v4490
  %s4493 = smul.u32 16, 4
  %s4494 = smul.addr %s4493, 8
  %s4495 = scalar_lea.vmem [#allocation2], %s4494
  %v4496 = vld [vmem:[%s4495] sm:$0xff]
  %v4497 = vld [vmem:[%s4495 + $0x8] sm:$0xff]
  %v4498 = vld [vmem:[%s4495 + $0x10] sm:$0xff]
  %v4499 = vld [vmem:[%s4495 + $0x18] sm:$0xff]
  %v4500 = vld [vmem:[%s2] sm:$0xff]
  %v4501 = vld [vmem:[%s2 + $0x8] sm:$0xff]
  %v4502 = vld [vmem:[%s2 + $0x10] sm:$0xff]
  %v4503 = vld [vmem:[%s2 + $0x18] sm:$0xff]
  %v4504 = vld [vmem:[%s2 + $0x20] sm:$0xff]
  %v4505 = vld [vmem:[%s2 + $0x28] sm:$0xff]
  %v4506 = vld [vmem:[%s2 + $0x30] sm:$0xff]
  %v4507 = vld [vmem:[%s2 + $0x38] sm:$0xff]
  %v4508 = vld [vmem:[%s2 + $0x40] sm:$0xff]
  %v4509 = vld [vmem:[%s2 + $0x48] sm:$0xff]
  %v4510 = vld [vmem:[%s2 + $0x50] sm:$0xff]
  %v4511 = vld [vmem:[%s2 + $0x58] sm:$0xff]
  %v4512 = vld [vmem:[%s2 + $0x60] sm:$0xff]
  %v4513 = vld [vmem:[%s2 + $0x68] sm:$0xff]
  %v4514 = vld [vmem:[%s2 + $0x70] sm:$0xff]
  %v4515 = vld [vmem:[%s2 + $0x78] sm:$0xff]
  %v4516 = vld [vmem:[%s2 + $0x80] sm:$0xff]
  %v4517 = vld [vmem:[%s2 + $0x88] sm:$0xff]
  %v4518 = vld [vmem:[%s2 + $0x90] sm:$0xff]
  %v4519 = vld [vmem:[%s2 + $0x98] sm:$0xff]
  %v4520 = vld [vmem:[%s2 + $0xa0] sm:$0xff]
  %v4521 = vld [vmem:[%s2 + $0xa8] sm:$0xff]
  %v4522 = vld [vmem:[%s2 + $0xb0] sm:$0xff]
  %v4523 = vld [vmem:[%s2 + $0xb8] sm:$0xff]
  %v4524 = vld [vmem:[%s2 + $0xc0] sm:$0xff]
  %v4525 = vld [vmem:[%s2 + $0xc8] sm:$0xff]
  %v4526 = vld [vmem:[%s2 + $0xd0] sm:$0xff]
  %v4527 = vld [vmem:[%s2 + $0xd8] sm:$0xff]
  %v4528 = vld [vmem:[%s2 + $0xe0] sm:$0xff]
  %v4529 = vld [vmem:[%s2 + $0xe8] sm:$0xff]
  %v4530 = vld [vmem:[%s2 + $0xf0] sm:$0xff]
  %v4531 = vld [vmem:[%s2 + $0xf8] sm:$0xff]
  %v4532 = vld [vmem:[%s2 + $0x100] sm:$0xff]
  %v4533 = vld [vmem:[%s2 + $0x108] sm:$0xff]
  %v4534 = vld [vmem:[%s2 + $0x110] sm:$0xff]
  %v4535 = vld [vmem:[%s2 + $0x118] sm:$0xff]
  %v4536 = vld [vmem:[%s2 + $0x120] sm:$0xff]
  %v4537 = vld [vmem:[%s2 + $0x128] sm:$0xff]
  %v4538 = vld [vmem:[%s2 + $0x130] sm:$0xff]
  %v4539 = vld [vmem:[%s2 + $0x138] sm:$0xff]
  %v4540 = vld [vmem:[%s2 + $0x140] sm:$0xff]
  %v4541 = vld [vmem:[%s2 + $0x148] sm:$0xff]
  %v4542 = vld [vmem:[%s2 + $0x150] sm:$0xff]
  %v4543 = vld [vmem:[%s2 + $0x158] sm:$0xff]
  %v4544 = vld [vmem:[%s2 + $0x160] sm:$0xff]
  %v4545 = vld [vmem:[%s2 + $0x168] sm:$0xff]
  %v4546 = vld [vmem:[%s2 + $0x170] sm:$0xff]
  %v4547 = vld [vmem:[%s2 + $0x178] sm:$0xff]
  %v4548 = vld [vmem:[%s2 + $0x180] sm:$0xff]
  %v4549 = vld [vmem:[%s2 + $0x188] sm:$0xff]
  %v4550 = vld [vmem:[%s2 + $0x190] sm:$0xff]
  %v4551 = vld [vmem:[%s2 + $0x198] sm:$0xff]
  %v4552 = vld [vmem:[%s2 + $0x1a0] sm:$0xff]
  %v4553 = vld [vmem:[%s2 + $0x1a8] sm:$0xff]
  %v4554 = vld [vmem:[%s2 + $0x1b0] sm:$0xff]
  %v4555 = vld [vmem:[%s2 + $0x1b8] sm:$0xff]
  %v4556 = vld [vmem:[%s2 + $0x1c0] sm:$0xff]
  %v4557 = vld [vmem:[%s2 + $0x1c8] sm:$0xff]
  %v4558 = vld [vmem:[%s2 + $0x1d0] sm:$0xff]
  %v4559 = vld [vmem:[%s2 + $0x1d8] sm:$0xff]
  %v4560 = vld [vmem:[%s2 + $0x1e0] sm:$0xff]
  %v4561 = vld [vmem:[%s2 + $0x1e8] sm:$0xff]
  %v4562 = vld [vmem:[%s2 + $0x1f0] sm:$0xff]
  %v4563 = vld [vmem:[%s2 + $0x1f8] sm:$0xff]
  %4564 = vmatprep.subr.mxu0 %v4561
  %4565 = vmatpush1.msra.mxu0 %v4560
  %4566 = vmatprep.subr.mxu0 %v4557
  %4567 = vmatpush1.msra.mxu0 %v4556
  %4568 = vmatprep.subr.mxu0 %v4553
  %4569 = vmatpush1.msra.mxu0 %v4552
  %4570 = vmatprep.subr.mxu0 %v4549
  %4571 = vmatpush1.msra.mxu0 %v4548
  %4572 = vmatprep.subr.mxu0 %v4545
  %4573 = vmatpush1.msra.mxu0 %v4544
  %4574 = vmatprep.subr.mxu0 %v4541
  %4575 = vmatpush1.msra.mxu0 %v4540
  %4576 = vmatprep.subr.mxu0 %v4537
  %4577 = vmatpush1.msra.mxu0 %v4536
  %4578 = vmatprep.subr.mxu0 %v4533
  %4579 = vmatpush1.msra.mxu0 %v4532
  %4580 = vmatprep.subr.mxu0 %v4529
  %4581 = vmatpush1.msra.mxu0 %v4528
  %4582 = vmatprep.subr.mxu0 %v4525
  %4583 = vmatpush1.msra.mxu0 %v4524
  %4584 = vmatprep.subr.mxu0 %v4521
  %4585 = vmatpush1.msra.mxu0 %v4520
  %4586 = vmatprep.subr.mxu0 %v4517
  %4587 = vmatpush1.msra.mxu0 %v4516
  %4588 = vmatprep.subr.mxu0 %v4513
  %4589 = vmatpush1.msra.mxu0 %v4512
  %4590 = vmatprep.subr.mxu0 %v4509
  %4591 = vmatpush1.msra.mxu0 %v4508
  %4592 = vmatprep.subr.mxu0 %v4505
  %4593 = vmatpush1.msra.mxu0 %v4504
  %4594 = vmatprep.subr.mxu0 %v4501
  %4595 = vmatpush1.msra.mxu0 %v4500
  %4596 = vmatprep.subr.mxu0 0.0
  %4597 = vmatpush2.msra.mxu0 0.0
  %4598 = vmatprep.subr.mxu0 0.0
  %4599 = vmatpush2.msra.mxu0 0.0
  %4600 = vmatprep.subr.mxu0 0.0
  %4601 = vmatpush2.msra.mxu0 0.0
  %4602 = vmatprep.subr.mxu0 0.0
  %4603 = vmatpush2.msra.mxu0 0.0
  %4604 = vmatprep.subr.mxu0 0.0
  %4605 = vmatpush2.msra.mxu0 0.0
  %4606 = vmatprep.subr.mxu0 0.0
  %4607 = vmatpush2.msra.mxu0 0.0
  %4608 = vmatprep.subr.mxu0 0.0
  %4609 = vmatpush2.msra.mxu0 0.0
  %4610 = vmatprep.subr.mxu0 0.0
  %4611 = vmatpush2.msra.mxu0 0.0
  %4612 = vmatprep.subr.mxu0 0.0
  %4613 = vmatpush2.msra.mxu0 0.0
  %4614 = vmatprep.subr.mxu0 0.0
  %4615 = vmatpush2.msra.mxu0 0.0
  %4616 = vmatprep.subr.mxu0 0.0
  %4617 = vmatpush2.msra.mxu0 0.0
  %4618 = vmatprep.subr.mxu0 0.0
  %4619 = vmatpush2.msra.mxu0 0.0
  %4620 = vmatprep.subr.mxu0 0.0
  %4621 = vmatpush2.msra.mxu0 0.0
  %4622 = vmatprep.subr.mxu0 0.0
  %4623 = vmatpush2.msra.mxu0 0.0
  %4624 = vmatprep.subr.mxu0 0.0
  %4625 = vmatpush2.msra.mxu0 0.0
  %4626 = vmatprep.subr.mxu0 0.0
  %4627 = vmatpush2.msra.mxu0 0.0
  %4628 = vmatprep.mubr.f32.mxu0 0.0
  %4629 = vmatmul.mubr.f32.gmra.mxu0 %v4490
  %v4630 = vpop.f32.mrf.mxu0
  %v4631 = vadd.f32 0.0, %v4630
  %v4632 = vpop.f32.mrf.mxu0
  %v4633 = vadd.f32 0.0, %v4632
  %4634 = vdwg.mxu0
  %4635 = vmatprep.subr.mxu0 %v4563
  %4636 = vmatpush1.msra.mxu0 %v4562
  %4637 = vmatprep.subr.mxu0 %v4559
  %4638 = vmatpush1.msra.mxu0 %v4558
  %4639 = vmatprep.subr.mxu0 %v4555
  %4640 = vmatpush1.msra.mxu0 %v4554
  %4641 = vmatprep.subr.mxu0 %v4551
  %4642 = vmatpush1.msra.mxu0 %v4550
  %4643 = vmatprep.subr.mxu0 %v4547
  %4644 = vmatpush1.msra.mxu0 %v4546
  %4645 = vmatprep.subr.mxu0 %v4543
  %4646 = vmatpush1.msra.mxu0 %v4542
  %4647 = vmatprep.subr.mxu0 %v4539
  %4648 = vmatpush1.msra.mxu0 %v4538
  %4649 = vmatprep.subr.mxu0 %v4535
  %4650 = vmatpush1.msra.mxu0 %v4534
  %4651 = vmatprep.subr.mxu0 %v4531
  %4652 = vmatpush1.msra.mxu0 %v4530
  %4653 = vmatprep.subr.mxu0 %v4527
  %4654 = vmatpush1.msra.mxu0 %v4526
  %4655 = vmatprep.subr.mxu0 %v4523
  %4656 = vmatpush1.msra.mxu0 %v4522
  %4657 = vmatprep.subr.mxu0 %v4519
  %4658 = vmatpush1.msra.mxu0 %v4518
  %4659 = vmatprep.subr.mxu0 %v4515
  %4660 = vmatpush1.msra.mxu0 %v4514
  %4661 = vmatprep.subr.mxu0 %v4511
  %4662 = vmatpush1.msra.mxu0 %v4510
  %4663 = vmatprep.subr.mxu0 %v4507
  %4664 = vmatpush1.msra.mxu0 %v4506
  %4665 = vmatprep.subr.mxu0 %v4503
  %4666 = vmatpush1.msra.mxu0 %v4502
  %4667 = vmatprep.subr.mxu0 0.0
  %4668 = vmatpush2.msra.mxu0 0.0
  %4669 = vmatprep.subr.mxu0 0.0
  %4670 = vmatpush2.msra.mxu0 0.0
  %4671 = vmatprep.subr.mxu0 0.0
  %4672 = vmatpush2.msra.mxu0 0.0
  %4673 = vmatprep.subr.mxu0 0.0
  %4674 = vmatpush2.msra.mxu0 0.0
  %4675 = vmatprep.subr.mxu0 0.0
  %4676 = vmatpush2.msra.mxu0 0.0
  %4677 = vmatprep.subr.mxu0 0.0
  %4678 = vmatpush2.msra.mxu0 0.0
  %4679 = vmatprep.subr.mxu0 0.0
  %4680 = vmatpush2.msra.mxu0 0.0
  %4681 = vmatprep.subr.mxu0 0.0
  %4682 = vmatpush2.msra.mxu0 0.0
  %4683 = vmatprep.subr.mxu0 0.0
  %4684 = vmatpush2.msra.mxu0 0.0
  %4685 = vmatprep.subr.mxu0 0.0
  %4686 = vmatpush2.msra.mxu0 0.0
  %4687 = vmatprep.subr.mxu0 0.0
  %4688 = vmatpush2.msra.mxu0 0.0
  %4689 = vmatprep.subr.mxu0 0.0
  %4690 = vmatpush2.msra.mxu0 0.0
  %4691 = vmatprep.subr.mxu0 0.0
  %4692 = vmatpush2.msra.mxu0 0.0
  %4693 = vmatprep.subr.mxu0 0.0
  %4694 = vmatpush2.msra.mxu0 0.0
  %4695 = vmatprep.subr.mxu0 0.0
  %4696 = vmatpush2.msra.mxu0 0.0
  %4697 = vmatprep.subr.mxu0 0.0
  %4698 = vmatpush2.msra.mxu0 0.0
  %4699 = vmatprep.mubr.f32.mxu0 0.0
  %4700 = vmatmul.mubr.f32.gmra.mxu0 %v4490
  %v4701 = vpop.f32.mrf.mxu0
  %v4702 = vadd.f32 0.0, %v4701
  %v4703 = vpop.f32.mrf.mxu0
  %v4704 = vadd.f32 0.0, %v4703
  %4705 = vdwg.mxu0
  %v4706 = vadd.f32 %v4496, %v4631
  %v4707 = vadd.f32 %v4497, %v4633
  %v4708 = vadd.f32 %v4498, %v4702
  %v4709 = vadd.f32 %v4499, %v4704
  %v4710 = vxor.u32 %v4706, 2147483648
  %v4711 = vmul.f32 %v4710, 1.442695
  %v4712 = vpow.pop %v4711
  %v4713 = vadd.f32 %v4712, 1.0
  %v4714 = vrcp.pop %v4713
  %v4715 = vmul.f32 1.0, %v4714
  %v4716 = vxor.u32 %v4707, 2147483648
  %v4717 = vmul.f32 %v4716, 1.442695
  %v4718 = vpow.pop %v4717
  %v4719 = vadd.f32 %v4718, 1.0
  %v4720 = vrcp.pop %v4719
  %v4721 = vmul.f32 1.0, %v4720
  %v4722 = vtanh.pop %v4708
  %v4723 = vxor.u32 %v4709, 2147483648
  %v4724 = vmul.f32 %v4723, 1.442695
  %v4725 = vpow.pop %v4724
  %v4726 = vadd.f32 %v4725, 1.0
  %v4727 = vrcp.pop %v4726
  %v4728 = vmul.f32 1.0, %v4727
  %v4729 = vmul.f32 %v4721, %v4488
  %v4730 = vmul.f32 %v4715, %v4722
  %v4731 = vadd.f32 %v4729, %v4730
  %v4732 = vtanh.pop %v4731
  %v4733 = vmul.f32 %v4728, %v4732
  %s4734 = scalar_lea.vmem %s4, 128
  %4735 = vst [vmem:[%s4734] sm:$0xff] %v4733
  %s4736 = smul.u32 17, 4
  %s4737 = smul.addr %s4736, 8
  %s4738 = scalar_lea.vmem [#allocation2], %s4737
  %v4739 = vld [vmem:[%s4738] sm:$0xff]
  %v4740 = vld [vmem:[%s4738 + $0x8] sm:$0xff]
  %v4741 = vld [vmem:[%s4738 + $0x10] sm:$0xff]
  %v4742 = vld [vmem:[%s4738 + $0x18] sm:$0xff]
  %v4743 = vld [vmem:[%s2] sm:$0xff]
  %v4744 = vld [vmem:[%s2 + $0x8] sm:$0xff]
  %v4745 = vld [vmem:[%s2 + $0x10] sm:$0xff]
  %v4746 = vld [vmem:[%s2 + $0x18] sm:$0xff]
  %v4747 = vld [vmem:[%s2 + $0x20] sm:$0xff]
  %v4748 = vld [vmem:[%s2 + $0x28] sm:$0xff]
  %v4749 = vld [vmem:[%s2 + $0x30] sm:$0xff]
  %v4750 = vld [vmem:[%s2 + $0x38] sm:$0xff]
  %v4751 = vld [vmem:[%s2 + $0x40] sm:$0xff]
  %v4752 = vld [vmem:[%s2 + $0x48] sm:$0xff]
  %v4753 = vld [vmem:[%s2 + $0x50] sm:$0xff]
  %v4754 = vld [vmem:[%s2 + $0x58] sm:$0xff]
  %v4755 = vld [vmem:[%s2 + $0x60] sm:$0xff]
  %v4756 = vld [vmem:[%s2 + $0x68] sm:$0xff]
  %v4757 = vld [vmem:[%s2 + $0x70] sm:$0xff]
  %v4758 = vld [vmem:[%s2 + $0x78] sm:$0xff]
  %v4759 = vld [vmem:[%s2 + $0x80] sm:$0xff]
  %v4760 = vld [vmem:[%s2 + $0x88] sm:$0xff]
  %v4761 = vld [vmem:[%s2 + $0x90] sm:$0xff]
  %v4762 = vld [vmem:[%s2 + $0x98] sm:$0xff]
  %v4763 = vld [vmem:[%s2 + $0xa0] sm:$0xff]
  %v4764 = vld [vmem:[%s2 + $0xa8] sm:$0xff]
  %v4765 = vld [vmem:[%s2 + $0xb0] sm:$0xff]
  %v4766 = vld [vmem:[%s2 + $0xb8] sm:$0xff]
  %v4767 = vld [vmem:[%s2 + $0xc0] sm:$0xff]
  %v4768 = vld [vmem:[%s2 + $0xc8] sm:$0xff]
  %v4769 = vld [vmem:[%s2 + $0xd0] sm:$0xff]
  %v4770 = vld [vmem:[%s2 + $0xd8] sm:$0xff]
  %v4771 = vld [vmem:[%s2 + $0xe0] sm:$0xff]
  %v4772 = vld [vmem:[%s2 + $0xe8] sm:$0xff]
  %v4773 = vld [vmem:[%s2 + $0xf0] sm:$0xff]
  %v4774 = vld [vmem:[%s2 + $0xf8] sm:$0xff]
  %v4775 = vld [vmem:[%s2 + $0x100] sm:$0xff]
  %v4776 = vld [vmem:[%s2 + $0x108] sm:$0xff]
  %v4777 = vld [vmem:[%s2 + $0x110] sm:$0xff]
  %v4778 = vld [vmem:[%s2 + $0x118] sm:$0xff]
  %v4779 = vld [vmem:[%s2 + $0x120] sm:$0xff]
  %v4780 = vld [vmem:[%s2 + $0x128] sm:$0xff]
  %v4781 = vld [vmem:[%s2 + $0x130] sm:$0xff]
  %v4782 = vld [vmem:[%s2 + $0x138] sm:$0xff]
  %v4783 = vld [vmem:[%s2 + $0x140] sm:$0xff]
  %v4784 = vld [vmem:[%s2 + $0x148] sm:$0xff]
  %v4785 = vld [vmem:[%s2 + $0x150] sm:$0xff]
  %v4786 = vld [vmem:[%s2 + $0x158] sm:$0xff]
  %v4787 = vld [vmem:[%s2 + $0x160] sm:$0xff]
  %v4788 = vld [vmem:[%s2 + $0x168] sm:$0xff]
  %v4789 = vld [vmem:[%s2 + $0x170] sm:$0xff]
  %v4790 = vld [vmem:[%s2 + $0x178] sm:$0xff]
  %v4791 = vld [vmem:[%s2 + $0x180] sm:$0xff]
  %v4792 = vld [vmem:[%s2 + $0x188] sm:$0xff]
  %v4793 = vld [vmem:[%s2 + $0x190] sm:$0xff]
  %v4794 = vld [vmem:[%s2 + $0x198] sm:$0xff]
  %v4795 = vld [vmem:[%s2 + $0x1a0] sm:$0xff]
  %v4796 = vld [vmem:[%s2 + $0x1a8] sm:$0xff]
  %v4797 = vld [vmem:[%s2 + $0x1b0] sm:$0xff]
  %v4798 = vld [vmem:[%s2 + $0x1b8] sm:$0xff]
  %v4799 = vld [vmem:[%s2 + $0x1c0] sm:$0xff]
  %v4800 = vld [vmem:[%s2 + $0x1c8] sm:$0xff]
  %v4801 = vld [vmem:[%s2 + $0x1d0] sm:$0xff]
  %v4802 = vld [vmem:[%s2 + $0x1d8] sm:$0xff]
  %v4803 = vld [vmem:[%s2 + $0x1e0] sm:$0xff]
  %v4804 = vld [vmem:[%s2 + $0x1e8] sm:$0xff]
  %v4805 = vld [vmem:[%s2 + $0x1f0] sm:$0xff]
  %v4806 = vld [vmem:[%s2 + $0x1f8] sm:$0xff]
  %4807 = vmatprep.subr.mxu0 %v4804
  %4808 = vmatpush1.msra.mxu0 %v4803
  %4809 = vmatprep.subr.mxu0 %v4800
  %4810 = vmatpush1.msra.mxu0 %v4799
  %4811 = vmatprep.subr.mxu0 %v4796
  %4812 = vmatpush1.msra.mxu0 %v4795
  %4813 = vmatprep.subr.mxu0 %v4792
  %4814 = vmatpush1.msra.mxu0 %v4791
  %4815 = vmatprep.subr.mxu0 %v4788
  %4816 = vmatpush1.msra.mxu0 %v4787
  %4817 = vmatprep.subr.mxu0 %v4784
  %4818 = vmatpush1.msra.mxu0 %v4783
  %4819 = vmatprep.subr.mxu0 %v4780
  %4820 = vmatpush1.msra.mxu0 %v4779
  %4821 = vmatprep.subr.mxu0 %v4776
  %4822 = vmatpush1.msra.mxu0 %v4775
  %4823 = vmatprep.subr.mxu0 %v4772
  %4824 = vmatpush1.msra.mxu0 %v4771
  %4825 = vmatprep.subr.mxu0 %v4768
  %4826 = vmatpush1.msra.mxu0 %v4767
  %4827 = vmatprep.subr.mxu0 %v4764
  %4828 = vmatpush1.msra.mxu0 %v4763
  %4829 = vmatprep.subr.mxu0 %v4760
  %4830 = vmatpush1.msra.mxu0 %v4759
  %4831 = vmatprep.subr.mxu0 %v4756
  %4832 = vmatpush1.msra.mxu0 %v4755
  %4833 = vmatprep.subr.mxu0 %v4752
  %4834 = vmatpush1.msra.mxu0 %v4751
  %4835 = vmatprep.subr.mxu0 %v4748
  %4836 = vmatpush1.msra.mxu0 %v4747
  %4837 = vmatprep.subr.mxu0 %v4744
  %4838 = vmatpush1.msra.mxu0 %v4743
  %4839 = vmatprep.subr.mxu0 0.0
  %4840 = vmatpush2.msra.mxu0 0.0
  %4841 = vmatprep.subr.mxu0 0.0
  %4842 = vmatpush2.msra.mxu0 0.0
  %4843 = vmatprep.subr.mxu0 0.0
  %4844 = vmatpush2.msra.mxu0 0.0
  %4845 = vmatprep.subr.mxu0 0.0
  %4846 = vmatpush2.msra.mxu0 0.0
  %4847 = vmatprep.subr.mxu0 0.0
  %4848 = vmatpush2.msra.mxu0 0.0
  %4849 = vmatprep.subr.mxu0 0.0
  %4850 = vmatpush2.msra.mxu0 0.0
  %4851 = vmatprep.subr.mxu0 0.0
  %4852 = vmatpush2.msra.mxu0 0.0
  %4853 = vmatprep.subr.mxu0 0.0
  %4854 = vmatpush2.msra.mxu0 0.0
  %4855 = vmatprep.subr.mxu0 0.0
  %4856 = vmatpush2.msra.mxu0 0.0
  %4857 = vmatprep.subr.mxu0 0.0
  %4858 = vmatpush2.msra.mxu0 0.0
  %4859 = vmatprep.subr.mxu0 0.0
  %4860 = vmatpush2.msra.mxu0 0.0
  %4861 = vmatprep.subr.mxu0 0.0
  %4862 = vmatpush2.msra.mxu0 0.0
  %4863 = vmatprep.subr.mxu0 0.0
  %4864 = vmatpush2.msra.mxu0 0.0
  %4865 = vmatprep.subr.mxu0 0.0
  %4866 = vmatpush2.msra.mxu0 0.0
  %4867 = vmatprep.subr.mxu0 0.0
  %4868 = vmatpush2.msra.mxu0 0.0
  %4869 = vmatprep.subr.mxu0 0.0
  %4870 = vmatpush2.msra.mxu0 0.0
  %4871 = vmatprep.mubr.f32.mxu0 0.0
  %4872 = vmatmul.mubr.f32.gmra.mxu0 %v4733
  %v4873 = vpop.f32.mrf.mxu0
  %v4874 = vadd.f32 0.0, %v4873
  %v4875 = vpop.f32.mrf.mxu0
  %v4876 = vadd.f32 0.0, %v4875
  %4877 = vdwg.mxu0
  %4878 = vmatprep.subr.mxu0 %v4806
  %4879 = vmatpush1.msra.mxu0 %v4805
  %4880 = vmatprep.subr.mxu0 %v4802
  %4881 = vmatpush1.msra.mxu0 %v4801
  %4882 = vmatprep.subr.mxu0 %v4798
  %4883 = vmatpush1.msra.mxu0 %v4797
  %4884 = vmatprep.subr.mxu0 %v4794
  %4885 = vmatpush1.msra.mxu0 %v4793
  %4886 = vmatprep.subr.mxu0 %v4790
  %4887 = vmatpush1.msra.mxu0 %v4789
  %4888 = vmatprep.subr.mxu0 %v4786
  %4889 = vmatpush1.msra.mxu0 %v4785
  %4890 = vmatprep.subr.mxu0 %v4782
  %4891 = vmatpush1.msra.mxu0 %v4781
  %4892 = vmatprep.subr.mxu0 %v4778
  %4893 = vmatpush1.msra.mxu0 %v4777
  %4894 = vmatprep.subr.mxu0 %v4774
  %4895 = vmatpush1.msra.mxu0 %v4773
  %4896 = vmatprep.subr.mxu0 %v4770
  %4897 = vmatpush1.msra.mxu0 %v4769
  %4898 = vmatprep.subr.mxu0 %v4766
  %4899 = vmatpush1.msra.mxu0 %v4765
  %4900 = vmatprep.subr.mxu0 %v4762
  %4901 = vmatpush1.msra.mxu0 %v4761
  %4902 = vmatprep.subr.mxu0 %v4758
  %4903 = vmatpush1.msra.mxu0 %v4757
  %4904 = vmatprep.subr.mxu0 %v4754
  %4905 = vmatpush1.msra.mxu0 %v4753
  %4906 = vmatprep.subr.mxu0 %v4750
  %4907 = vmatpush1.msra.mxu0 %v4749
  %4908 = vmatprep.subr.mxu0 %v4746
  %4909 = vmatpush1.msra.mxu0 %v4745
  %4910 = vmatprep.subr.mxu0 0.0
  %4911 = vmatpush2.msra.mxu0 0.0
  %4912 = vmatprep.subr.mxu0 0.0
  %4913 = vmatpush2.msra.mxu0 0.0
  %4914 = vmatprep.subr.mxu0 0.0
  %4915 = vmatpush2.msra.mxu0 0.0
  %4916 = vmatprep.subr.mxu0 0.0
  %4917 = vmatpush2.msra.mxu0 0.0
  %4918 = vmatprep.subr.mxu0 0.0
  %4919 = vmatpush2.msra.mxu0 0.0
  %4920 = vmatprep.subr.mxu0 0.0
  %4921 = vmatpush2.msra.mxu0 0.0
  %4922 = vmatprep.subr.mxu0 0.0
  %4923 = vmatpush2.msra.mxu0 0.0
  %4924 = vmatprep.subr.mxu0 0.0
  %4925 = vmatpush2.msra.mxu0 0.0
  %4926 = vmatprep.subr.mxu0 0.0
  %4927 = vmatpush2.msra.mxu0 0.0
  %4928 = vmatprep.subr.mxu0 0.0
  %4929 = vmatpush2.msra.mxu0 0.0
  %4930 = vmatprep.subr.mxu0 0.0
  %4931 = vmatpush2.msra.mxu0 0.0
  %4932 = vmatprep.subr.mxu0 0.0
  %4933 = vmatpush2.msra.mxu0 0.0
  %4934 = vmatprep.subr.mxu0 0.0
  %4935 = vmatpush2.msra.mxu0 0.0
  %4936 = vmatprep.subr.mxu0 0.0
  %4937 = vmatpush2.msra.mxu0 0.0
  %4938 = vmatprep.subr.mxu0 0.0
  %4939 = vmatpush2.msra.mxu0 0.0
  %4940 = vmatprep.subr.mxu0 0.0
  %4941 = vmatpush2.msra.mxu0 0.0
  %4942 = vmatprep.mubr.f32.mxu0 0.0
  %4943 = vmatmul.mubr.f32.gmra.mxu0 %v4733
  %v4944 = vpop.f32.mrf.mxu0
  %v4945 = vadd.f32 0.0, %v4944
  %v4946 = vpop.f32.mrf.mxu0
  %v4947 = vadd.f32 0.0, %v4946
  %4948 = vdwg.mxu0
  %v4949 = vadd.f32 %v4739, %v4874
  %v4950 = vadd.f32 %v4740, %v4876
  %v4951 = vadd.f32 %v4741, %v4945
  %v4952 = vadd.f32 %v4742, %v4947
  %v4953 = vxor.u32 %v4949, 2147483648
  %v4954 = vmul.f32 %v4953, 1.442695
  %v4955 = vpow.pop %v4954
  %v4956 = vadd.f32 %v4955, 1.0
  %v4957 = vrcp.pop %v4956
  %v4958 = vmul.f32 1.0, %v4957
  %v4959 = vxor.u32 %v4950, 2147483648
  %v4960 = vmul.f32 %v4959, 1.442695
  %v4961 = vpow.pop %v4960
  %v4962 = vadd.f32 %v4961, 1.0
  %v4963 = vrcp.pop %v4962
  %v4964 = vmul.f32 1.0, %v4963
  %v4965 = vtanh.pop %v4951
  %v4966 = vxor.u32 %v4952, 2147483648
  %v4967 = vmul.f32 %v4966, 1.442695
  %v4968 = vpow.pop %v4967
  %v4969 = vadd.f32 %v4968, 1.0
  %v4970 = vrcp.pop %v4969
  %v4971 = vmul.f32 1.0, %v4970
  %v4972 = vmul.f32 %v4964, %v4731
  %v4973 = vmul.f32 %v4958, %v4965
  %v4974 = vadd.f32 %v4972, %v4973
  %v4975 = vtanh.pop %v4974
  %v4976 = vmul.f32 %v4971, %v4975
  %s4977 = scalar_lea.vmem %s4, 136
  %4978 = vst [vmem:[%s4977] sm:$0xff] %v4976
  %s4979 = smul.u32 18, 4
  %s4980 = smul.addr %s4979, 8
  %s4981 = scalar_lea.vmem [#allocation2], %s4980
  %v4982 = vld [vmem:[%s4981] sm:$0xff]
  %v4983 = vld [vmem:[%s4981 + $0x8] sm:$0xff]
  %v4984 = vld [vmem:[%s4981 + $0x10] sm:$0xff]
  %v4985 = vld [vmem:[%s4981 + $0x18] sm:$0xff]
  %v4986 = vld [vmem:[%s2] sm:$0xff]
  %v4987 = vld [vmem:[%s2 + $0x8] sm:$0xff]
  %v4988 = vld [vmem:[%s2 + $0x10] sm:$0xff]
  %v4989 = vld [vmem:[%s2 + $0x18] sm:$0xff]
  %v4990 = vld [vmem:[%s2 + $0x20] sm:$0xff]
  %v4991 = vld [vmem:[%s2 + $0x28] sm:$0xff]
  %v4992 = vld [vmem:[%s2 + $0x30] sm:$0xff]
  %v4993 = vld [vmem:[%s2 + $0x38] sm:$0xff]
  %v4994 = vld [vmem:[%s2 + $0x40] sm:$0xff]
  %v4995 = vld [vmem:[%s2 + $0x48] sm:$0xff]
  %v4996 = vld [vmem:[%s2 + $0x50] sm:$0xff]
  %v4997 = vld [vmem:[%s2 + $0x58] sm:$0xff]
  %v4998 = vld [vmem:[%s2 + $0x60] sm:$0xff]
  %v4999 = vld [vmem:[%s2 + $0x68] sm:$0xff]
  %v5000 = vld [vmem:[%s2 + $0x70] sm:$0xff]
  %v5001 = vld [vmem:[%s2 + $0x78] sm:$0xff]
  %v5002 = vld [vmem:[%s2 + $0x80] sm:$0xff]
  %v5003 = vld [vmem:[%s2 + $0x88] sm:$0xff]
  %v5004 = vld [vmem:[%s2 + $0x90] sm:$0xff]
  %v5005 = vld [vmem:[%s2 + $0x98] sm:$0xff]
  %v5006 = vld [vmem:[%s2 + $0xa0] sm:$0xff]
  %v5007 = vld [vmem:[%s2 + $0xa8] sm:$0xff]
  %v5008 = vld [vmem:[%s2 + $0xb0] sm:$0xff]
  %v5009 = vld [vmem:[%s2 + $0xb8] sm:$0xff]
  %v5010 = vld [vmem:[%s2 + $0xc0] sm:$0xff]
  %v5011 = vld [vmem:[%s2 + $0xc8] sm:$0xff]
  %v5012 = vld [vmem:[%s2 + $0xd0] sm:$0xff]
  %v5013 = vld [vmem:[%s2 + $0xd8] sm:$0xff]
  %v5014 = vld [vmem:[%s2 + $0xe0] sm:$0xff]
  %v5015 = vld [vmem:[%s2 + $0xe8] sm:$0xff]
  %v5016 = vld [vmem:[%s2 + $0xf0] sm:$0xff]
  %v5017 = vld [vmem:[%s2 + $0xf8] sm:$0xff]
  %v5018 = vld [vmem:[%s2 + $0x100] sm:$0xff]
  %v5019 = vld [vmem:[%s2 + $0x108] sm:$0xff]
  %v5020 = vld [vmem:[%s2 + $0x110] sm:$0xff]
  %v5021 = vld [vmem:[%s2 + $0x118] sm:$0xff]
  %v5022 = vld [vmem:[%s2 + $0x120] sm:$0xff]
  %v5023 = vld [vmem:[%s2 + $0x128] sm:$0xff]
  %v5024 = vld [vmem:[%s2 + $0x130] sm:$0xff]
  %v5025 = vld [vmem:[%s2 + $0x138] sm:$0xff]
  %v5026 = vld [vmem:[%s2 + $0x140] sm:$0xff]
  %v5027 = vld [vmem:[%s2 + $0x148] sm:$0xff]
  %v5028 = vld [vmem:[%s2 + $0x150] sm:$0xff]
  %v5029 = vld [vmem:[%s2 + $0x158] sm:$0xff]
  %v5030 = vld [vmem:[%s2 + $0x160] sm:$0xff]
  %v5031 = vld [vmem:[%s2 + $0x168] sm:$0xff]
  %v5032 = vld [vmem:[%s2 + $0x170] sm:$0xff]
  %v5033 = vld [vmem:[%s2 + $0x178] sm:$0xff]
  %v5034 = vld [vmem:[%s2 + $0x180] sm:$0xff]
  %v5035 = vld [vmem:[%s2 + $0x188] sm:$0xff]
  %v5036 = vld [vmem:[%s2 + $0x190] sm:$0xff]
  %v5037 = vld [vmem:[%s2 + $0x198] sm:$0xff]
  %v5038 = vld [vmem:[%s2 + $0x1a0] sm:$0xff]
  %v5039 = vld [vmem:[%s2 + $0x1a8] sm:$0xff]
  %v5040 = vld [vmem:[%s2 + $0x1b0] sm:$0xff]
  %v5041 = vld [vmem:[%s2 + $0x1b8] sm:$0xff]
  %v5042 = vld [vmem:[%s2 + $0x1c0] sm:$0xff]
  %v5043 = vld [vmem:[%s2 + $0x1c8] sm:$0xff]
  %v5044 = vld [vmem:[%s2 + $0x1d0] sm:$0xff]
  %v5045 = vld [vmem:[%s2 + $0x1d8] sm:$0xff]
  %v5046 = vld [vmem:[%s2 + $0x1e0] sm:$0xff]
  %v5047 = vld [vmem:[%s2 + $0x1e8] sm:$0xff]
  %v5048 = vld [vmem:[%s2 + $0x1f0] sm:$0xff]
  %v5049 = vld [vmem:[%s2 + $0x1f8] sm:$0xff]
  %5050 = vmatprep.subr.mxu0 %v5047
  %5051 = vmatpush1.msra.mxu0 %v5046
  %5052 = vmatprep.subr.mxu0 %v5043
  %5053 = vmatpush1.msra.mxu0 %v5042
  %5054 = vmatprep.subr.mxu0 %v5039
  %5055 = vmatpush1.msra.mxu0 %v5038
  %5056 = vmatprep.subr.mxu0 %v5035
  %5057 = vmatpush1.msra.mxu0 %v5034
  %5058 = vmatprep.subr.mxu0 %v5031
  %5059 = vmatpush1.msra.mxu0 %v5030
  %5060 = vmatprep.subr.mxu0 %v5027
  %5061 = vmatpush1.msra.mxu0 %v5026
  %5062 = vmatprep.subr.mxu0 %v5023
  %5063 = vmatpush1.msra.mxu0 %v5022
  %5064 = vmatprep.subr.mxu0 %v5019
  %5065 = vmatpush1.msra.mxu0 %v5018
  %5066 = vmatprep.subr.mxu0 %v5015
  %5067 = vmatpush1.msra.mxu0 %v5014
  %5068 = vmatprep.subr.mxu0 %v5011
  %5069 = vmatpush1.msra.mxu0 %v5010
  %5070 = vmatprep.subr.mxu0 %v5007
  %5071 = vmatpush1.msra.mxu0 %v5006
  %5072 = vmatprep.subr.mxu0 %v5003
  %5073 = vmatpush1.msra.mxu0 %v5002
  %5074 = vmatprep.subr.mxu0 %v4999
  %5075 = vmatpush1.msra.mxu0 %v4998
  %5076 = vmatprep.subr.mxu0 %v4995
  %5077 = vmatpush1.msra.mxu0 %v4994
  %5078 = vmatprep.subr.mxu0 %v4991
  %5079 = vmatpush1.msra.mxu0 %v4990
  %5080 = vmatprep.subr.mxu0 %v4987
  %5081 = vmatpush1.msra.mxu0 %v4986
  %5082 = vmatprep.subr.mxu0 0.0
  %5083 = vmatpush2.msra.mxu0 0.0
  %5084 = vmatprep.subr.mxu0 0.0
  %5085 = vmatpush2.msra.mxu0 0.0
  %5086 = vmatprep.subr.mxu0 0.0
  %5087 = vmatpush2.msra.mxu0 0.0
  %5088 = vmatprep.subr.mxu0 0.0
  %5089 = vmatpush2.msra.mxu0 0.0
  %5090 = vmatprep.subr.mxu0 0.0
  %5091 = vmatpush2.msra.mxu0 0.0
  %5092 = vmatprep.subr.mxu0 0.0
  %5093 = vmatpush2.msra.mxu0 0.0
  %5094 = vmatprep.subr.mxu0 0.0
  %5095 = vmatpush2.msra.mxu0 0.0
  %5096 = vmatprep.subr.mxu0 0.0
  %5097 = vmatpush2.msra.mxu0 0.0
  %5098 = vmatprep.subr.mxu0 0.0
  %5099 = vmatpush2.msra.mxu0 0.0
  %5100 = vmatprep.subr.mxu0 0.0
  %5101 = vmatpush2.msra.mxu0 0.0
  %5102 = vmatprep.subr.mxu0 0.0
  %5103 = vmatpush2.msra.mxu0 0.0
  %5104 = vmatprep.subr.mxu0 0.0
  %5105 = vmatpush2.msra.mxu0 0.0
  %5106 = vmatprep.subr.mxu0 0.0
  %5107 = vmatpush2.msra.mxu0 0.0
  %5108 = vmatprep.subr.mxu0 0.0
  %5109 = vmatpush2.msra.mxu0 0.0
  %5110 = vmatprep.subr.mxu0 0.0
  %5111 = vmatpush2.msra.mxu0 0.0
  %5112 = vmatprep.subr.mxu0 0.0
  %5113 = vmatpush2.msra.mxu0 0.0
  %5114 = vmatprep.mubr.f32.mxu0 0.0
  %5115 = vmatmul.mubr.f32.gmra.mxu0 %v4976
  %v5116 = vpop.f32.mrf.mxu0
  %v5117 = vadd.f32 0.0, %v5116
  %v5118 = vpop.f32.mrf.mxu0
  %v5119 = vadd.f32 0.0, %v5118
  %5120 = vdwg.mxu0
  %5121 = vmatprep.subr.mxu0 %v5049
  %5122 = vmatpush1.msra.mxu0 %v5048
  %5123 = vmatprep.subr.mxu0 %v5045
  %5124 = vmatpush1.msra.mxu0 %v5044
  %5125 = vmatprep.subr.mxu0 %v5041
  %5126 = vmatpush1.msra.mxu0 %v5040
  %5127 = vmatprep.subr.mxu0 %v5037
  %5128 = vmatpush1.msra.mxu0 %v5036
  %5129 = vmatprep.subr.mxu0 %v5033
  %5130 = vmatpush1.msra.mxu0 %v5032
  %5131 = vmatprep.subr.mxu0 %v5029
  %5132 = vmatpush1.msra.mxu0 %v5028
  %5133 = vmatprep.subr.mxu0 %v5025
  %5134 = vmatpush1.msra.mxu0 %v5024
  %5135 = vmatprep.subr.mxu0 %v5021
  %5136 = vmatpush1.msra.mxu0 %v5020
  %5137 = vmatprep.subr.mxu0 %v5017
  %5138 = vmatpush1.msra.mxu0 %v5016
  %5139 = vmatprep.subr.mxu0 %v5013
  %5140 = vmatpush1.msra.mxu0 %v5012
  %5141 = vmatprep.subr.mxu0 %v5009
  %5142 = vmatpush1.msra.mxu0 %v5008
  %5143 = vmatprep.subr.mxu0 %v5005
  %5144 = vmatpush1.msra.mxu0 %v5004
  %5145 = vmatprep.subr.mxu0 %v5001
  %5146 = vmatpush1.msra.mxu0 %v5000
  %5147 = vmatprep.subr.mxu0 %v4997
  %5148 = vmatpush1.msra.mxu0 %v4996
  %5149 = vmatprep.subr.mxu0 %v4993
  %5150 = vmatpush1.msra.mxu0 %v4992
  %5151 = vmatprep.subr.mxu0 %v4989
  %5152 = vmatpush1.msra.mxu0 %v4988
  %5153 = vmatprep.subr.mxu0 0.0
  %5154 = vmatpush2.msra.mxu0 0.0
  %5155 = vmatprep.subr.mxu0 0.0
  %5156 = vmatpush2.msra.mxu0 0.0
  %5157 = vmatprep.subr.mxu0 0.0
  %5158 = vmatpush2.msra.mxu0 0.0
  %5159 = vmatprep.subr.mxu0 0.0
  %5160 = vmatpush2.msra.mxu0 0.0
  %5161 = vmatprep.subr.mxu0 0.0
  %5162 = vmatpush2.msra.mxu0 0.0
  %5163 = vmatprep.subr.mxu0 0.0
  %5164 = vmatpush2.msra.mxu0 0.0
  %5165 = vmatprep.subr.mxu0 0.0
  %5166 = vmatpush2.msra.mxu0 0.0
  %5167 = vmatprep.subr.mxu0 0.0
  %5168 = vmatpush2.msra.mxu0 0.0
  %5169 = vmatprep.subr.mxu0 0.0
  %5170 = vmatpush2.msra.mxu0 0.0
  %5171 = vmatprep.subr.mxu0 0.0
  %5172 = vmatpush2.msra.mxu0 0.0
  %5173 = vmatprep.subr.mxu0 0.0
  %5174 = vmatpush2.msra.mxu0 0.0
  %5175 = vmatprep.subr.mxu0 0.0
  %5176 = vmatpush2.msra.mxu0 0.0
  %5177 = vmatprep.subr.mxu0 0.0
  %5178 = vmatpush2.msra.mxu0 0.0
  %5179 = vmatprep.subr.mxu0 0.0
  %5180 = vmatpush2.msra.mxu0 0.0
  %5181 = vmatprep.subr.mxu0 0.0
  %5182 = vmatpush2.msra.mxu0 0.0
  %5183 = vmatprep.subr.mxu0 0.0
  %5184 = vmatpush2.msra.mxu0 0.0
  %5185 = vmatprep.mubr.f32.mxu0 0.0
  %5186 = vmatmul.mubr.f32.gmra.mxu0 %v4976
  %v5187 = vpop.f32.mrf.mxu0
  %v5188 = vadd.f32 0.0, %v5187
  %v5189 = vpop.f32.mrf.mxu0
  %v5190 = vadd.f32 0.0, %v5189
  %5191 = vdwg.mxu0
  %v5192 = vadd.f32 %v4982, %v5117
  %v5193 = vadd.f32 %v4983, %v5119
  %v5194 = vadd.f32 %v4984, %v5188
  %v5195 = vadd.f32 %v4985, %v5190
  %v5196 = vxor.u32 %v5192, 2147483648
  %v5197 = vmul.f32 %v5196, 1.442695
  %v5198 = vpow.pop %v5197
  %v5199 = vadd.f32 %v5198, 1.0
  %v5200 = vrcp.pop %v5199
  %v5201 = vmul.f32 1.0, %v5200
  %v5202 = vxor.u32 %v5193, 2147483648
  %v5203 = vmul.f32 %v5202, 1.442695
  %v5204 = vpow.pop %v5203
  %v5205 = vadd.f32 %v5204, 1.0
  %v5206 = vrcp.pop %v5205
  %v5207 = vmul.f32 1.0, %v5206
  %v5208 = vtanh.pop %v5194
  %v5209 = vxor.u32 %v5195, 2147483648
  %v5210 = vmul.f32 %v5209, 1.442695
  %v5211 = vpow.pop %v5210
  %v5212 = vadd.f32 %v5211, 1.0
  %v5213 = vrcp.pop %v5212
  %v5214 = vmul.f32 1.0, %v5213
  %v5215 = vmul.f32 %v5207, %v4974
  %v5216 = vmul.f32 %v5201, %v5208
  %v5217 = vadd.f32 %v5215, %v5216
  %v5218 = vtanh.pop %v5217
  %v5219 = vmul.f32 %v5214, %v5218
  %s5220 = scalar_lea.vmem %s4, 144
  %5221 = vst [vmem:[%s5220] sm:$0xff] %v5219
  %s5222 = smul.u32 19, 4
  %s5223 = smul.addr %s5222, 8
  %s5224 = scalar_lea.vmem [#allocation2], %s5223
  %v5225 = vld [vmem:[%s5224] sm:$0xff]
  %v5226 = vld [vmem:[%s5224 + $0x8] sm:$0xff]
  %v5227 = vld [vmem:[%s5224 + $0x10] sm:$0xff]
  %v5228 = vld [vmem:[%s5224 + $0x18] sm:$0xff]
  %v5229 = vld [vmem:[%s2] sm:$0xff]
  %v5230 = vld [vmem:[%s2 + $0x8] sm:$0xff]
  %v5231 = vld [vmem:[%s2 + $0x10] sm:$0xff]
  %v5232 = vld [vmem:[%s2 + $0x18] sm:$0xff]
  %v5233 = vld [vmem:[%s2 + $0x20] sm:$0xff]
  %v5234 = vld [vmem:[%s2 + $0x28] sm:$0xff]
  %v5235 = vld [vmem:[%s2 + $0x30] sm:$0xff]
  %v5236 = vld [vmem:[%s2 + $0x38] sm:$0xff]
  %v5237 = vld [vmem:[%s2 + $0x40] sm:$0xff]
  %v5238 = vld [vmem:[%s2 + $0x48] sm:$0xff]
  %v5239 = vld [vmem:[%s2 + $0x50] sm:$0xff]
  %v5240 = vld [vmem:[%s2 + $0x58] sm:$0xff]
  %v5241 = vld [vmem:[%s2 + $0x60] sm:$0xff]
  %v5242 = vld [vmem:[%s2 + $0x68] sm:$0xff]
  %v5243 = vld [vmem:[%s2 + $0x70] sm:$0xff]
  %v5244 = vld [vmem:[%s2 + $0x78] sm:$0xff]
  %v5245 = vld [vmem:[%s2 + $0x80] sm:$0xff]
  %v5246 = vld [vmem:[%s2 + $0x88] sm:$0xff]
  %v5247 = vld [vmem:[%s2 + $0x90] sm:$0xff]
  %v5248 = vld [vmem:[%s2 + $0x98] sm:$0xff]
  %v5249 = vld [vmem:[%s2 + $0xa0] sm:$0xff]
  %v5250 = vld [vmem:[%s2 + $0xa8] sm:$0xff]
  %v5251 = vld [vmem:[%s2 + $0xb0] sm:$0xff]
  %v5252 = vld [vmem:[%s2 + $0xb8] sm:$0xff]
  %v5253 = vld [vmem:[%s2 + $0xc0] sm:$0xff]
  %v5254 = vld [vmem:[%s2 + $0xc8] sm:$0xff]
  %v5255 = vld [vmem:[%s2 + $0xd0] sm:$0xff]
  %v5256 = vld [vmem:[%s2 + $0xd8] sm:$0xff]
  %v5257 = vld [vmem:[%s2 + $0xe0] sm:$0xff]
  %v5258 = vld [vmem:[%s2 + $0xe8] sm:$0xff]
  %v5259 = vld [vmem:[%s2 + $0xf0] sm:$0xff]
  %v5260 = vld [vmem:[%s2 + $0xf8] sm:$0xff]
  %v5261 = vld [vmem:[%s2 + $0x100] sm:$0xff]
  %v5262 = vld [vmem:[%s2 + $0x108] sm:$0xff]
  %v5263 = vld [vmem:[%s2 + $0x110] sm:$0xff]
  %v5264 = vld [vmem:[%s2 + $0x118] sm:$0xff]
  %v5265 = vld [vmem:[%s2 + $0x120] sm:$0xff]
  %v5266 = vld [vmem:[%s2 + $0x128] sm:$0xff]
  %v5267 = vld [vmem:[%s2 + $0x130] sm:$0xff]
  %v5268 = vld [vmem:[%s2 + $0x138] sm:$0xff]
  %v5269 = vld [vmem:[%s2 + $0x140] sm:$0xff]
  %v5270 = vld [vmem:[%s2 + $0x148] sm:$0xff]
  %v5271 = vld [vmem:[%s2 + $0x150] sm:$0xff]
  %v5272 = vld [vmem:[%s2 + $0x158] sm:$0xff]
  %v5273 = vld [vmem:[%s2 + $0x160] sm:$0xff]
  %v5274 = vld [vmem:[%s2 + $0x168] sm:$0xff]
  %v5275 = vld [vmem:[%s2 + $0x170] sm:$0xff]
  %v5276 = vld [vmem:[%s2 + $0x178] sm:$0xff]
  %v5277 = vld [vmem:[%s2 + $0x180] sm:$0xff]
  %v5278 = vld [vmem:[%s2 + $0x188] sm:$0xff]
  %v5279 = vld [vmem:[%s2 + $0x190] sm:$0xff]
  %v5280 = vld [vmem:[%s2 + $0x198] sm:$0xff]
  %v5281 = vld [vmem:[%s2 + $0x1a0] sm:$0xff]
  %v5282 = vld [vmem:[%s2 + $0x1a8] sm:$0xff]
  %v5283 = vld [vmem:[%s2 + $0x1b0] sm:$0xff]
  %v5284 = vld [vmem:[%s2 + $0x1b8] sm:$0xff]
  %v5285 = vld [vmem:[%s2 + $0x1c0] sm:$0xff]
  %v5286 = vld [vmem:[%s2 + $0x1c8] sm:$0xff]
  %v5287 = vld [vmem:[%s2 + $0x1d0] sm:$0xff]
  %v5288 = vld [vmem:[%s2 + $0x1d8] sm:$0xff]
  %v5289 = vld [vmem:[%s2 + $0x1e0] sm:$0xff]
  %v5290 = vld [vmem:[%s2 + $0x1e8] sm:$0xff]
  %v5291 = vld [vmem:[%s2 + $0x1f0] sm:$0xff]
  %v5292 = vld [vmem:[%s2 + $0x1f8] sm:$0xff]
  %5293 = vmatprep.subr.mxu0 %v5290
  %5294 = vmatpush1.msra.mxu0 %v5289
  %5295 = vmatprep.subr.mxu0 %v5286
  %5296 = vmatpush1.msra.mxu0 %v5285
  %5297 = vmatprep.subr.mxu0 %v5282
  %5298 = vmatpush1.msra.mxu0 %v5281
  %5299 = vmatprep.subr.mxu0 %v5278
  %5300 = vmatpush1.msra.mxu0 %v5277
  %5301 = vmatprep.subr.mxu0 %v5274
  %5302 = vmatpush1.msra.mxu0 %v5273
  %5303 = vmatprep.subr.mxu0 %v5270
  %5304 = vmatpush1.msra.mxu0 %v5269
  %5305 = vmatprep.subr.mxu0 %v5266
  %5306 = vmatpush1.msra.mxu0 %v5265
  %5307 = vmatprep.subr.mxu0 %v5262
  %5308 = vmatpush1.msra.mxu0 %v5261
  %5309 = vmatprep.subr.mxu0 %v5258
  %5310 = vmatpush1.msra.mxu0 %v5257
  %5311 = vmatprep.subr.mxu0 %v5254
  %5312 = vmatpush1.msra.mxu0 %v5253
  %5313 = vmatprep.subr.mxu0 %v5250
  %5314 = vmatpush1.msra.mxu0 %v5249
  %5315 = vmatprep.subr.mxu0 %v5246
  %5316 = vmatpush1.msra.mxu0 %v5245
  %5317 = vmatprep.subr.mxu0 %v5242
  %5318 = vmatpush1.msra.mxu0 %v5241
  %5319 = vmatprep.subr.mxu0 %v5238
  %5320 = vmatpush1.msra.mxu0 %v5237
  %5321 = vmatprep.subr.mxu0 %v5234
  %5322 = vmatpush1.msra.mxu0 %v5233
  %5323 = vmatprep.subr.mxu0 %v5230
  %5324 = vmatpush1.msra.mxu0 %v5229
  %5325 = vmatprep.subr.mxu0 0.0
  %5326 = vmatpush2.msra.mxu0 0.0
  %5327 = vmatprep.subr.mxu0 0.0
  %5328 = vmatpush2.msra.mxu0 0.0
  %5329 = vmatprep.subr.mxu0 0.0
  %5330 = vmatpush2.msra.mxu0 0.0
  %5331 = vmatprep.subr.mxu0 0.0
  %5332 = vmatpush2.msra.mxu0 0.0
  %5333 = vmatprep.subr.mxu0 0.0
  %5334 = vmatpush2.msra.mxu0 0.0
  %5335 = vmatprep.subr.mxu0 0.0
  %5336 = vmatpush2.msra.mxu0 0.0
  %5337 = vmatprep.subr.mxu0 0.0
  %5338 = vmatpush2.msra.mxu0 0.0
  %5339 = vmatprep.subr.mxu0 0.0
  %5340 = vmatpush2.msra.mxu0 0.0
  %5341 = vmatprep.subr.mxu0 0.0
  %5342 = vmatpush2.msra.mxu0 0.0
  %5343 = vmatprep.subr.mxu0 0.0
  %5344 = vmatpush2.msra.mxu0 0.0
  %5345 = vmatprep.subr.mxu0 0.0
  %5346 = vmatpush2.msra.mxu0 0.0
  %5347 = vmatprep.subr.mxu0 0.0
  %5348 = vmatpush2.msra.mxu0 0.0
  %5349 = vmatprep.subr.mxu0 0.0
  %5350 = vmatpush2.msra.mxu0 0.0
  %5351 = vmatprep.subr.mxu0 0.0
  %5352 = vmatpush2.msra.mxu0 0.0
  %5353 = vmatprep.subr.mxu0 0.0
  %5354 = vmatpush2.msra.mxu0 0.0
  %5355 = vmatprep.subr.mxu0 0.0
  %5356 = vmatpush2.msra.mxu0 0.0
  %5357 = vmatprep.mubr.f32.mxu0 0.0
  %5358 = vmatmul.mubr.f32.gmra.mxu0 %v5219
  %v5359 = vpop.f32.mrf.mxu0
  %v5360 = vadd.f32 0.0, %v5359
  %v5361 = vpop.f32.mrf.mxu0
  %v5362 = vadd.f32 0.0, %v5361
  %5363 = vdwg.mxu0
  %5364 = vmatprep.subr.mxu0 %v5292
  %5365 = vmatpush1.msra.mxu0 %v5291
  %5366 = vmatprep.subr.mxu0 %v5288
  %5367 = vmatpush1.msra.mxu0 %v5287
  %5368 = vmatprep.subr.mxu0 %v5284
  %5369 = vmatpush1.msra.mxu0 %v5283
  %5370 = vmatprep.subr.mxu0 %v5280
  %5371 = vmatpush1.msra.mxu0 %v5279
  %5372 = vmatprep.subr.mxu0 %v5276
  %5373 = vmatpush1.msra.mxu0 %v5275
  %5374 = vmatprep.subr.mxu0 %v5272
  %5375 = vmatpush1.msra.mxu0 %v5271
  %5376 = vmatprep.subr.mxu0 %v5268
  %5377 = vmatpush1.msra.mxu0 %v5267
  %5378 = vmatprep.subr.mxu0 %v5264
  %5379 = vmatpush1.msra.mxu0 %v5263
  %5380 = vmatprep.subr.mxu0 %v5260
  %5381 = vmatpush1.msra.mxu0 %v5259
  %5382 = vmatprep.subr.mxu0 %v5256
  %5383 = vmatpush1.msra.mxu0 %v5255
  %5384 = vmatprep.subr.mxu0 %v5252
  %5385 = vmatpush1.msra.mxu0 %v5251
  %5386 = vmatprep.subr.mxu0 %v5248
  %5387 = vmatpush1.msra.mxu0 %v5247
  %5388 = vmatprep.subr.mxu0 %v5244
  %5389 = vmatpush1.msra.mxu0 %v5243
  %5390 = vmatprep.subr.mxu0 %v5240
  %5391 = vmatpush1.msra.mxu0 %v5239
  %5392 = vmatprep.subr.mxu0 %v5236
  %5393 = vmatpush1.msra.mxu0 %v5235
  %5394 = vmatprep.subr.mxu0 %v5232
  %5395 = vmatpush1.msra.mxu0 %v5231
  %5396 = vmatprep.subr.mxu0 0.0
  %5397 = vmatpush2.msra.mxu0 0.0
  %5398 = vmatprep.subr.mxu0 0.0
  %5399 = vmatpush2.msra.mxu0 0.0
  %5400 = vmatprep.subr.mxu0 0.0
  %5401 = vmatpush2.msra.mxu0 0.0
  %5402 = vmatprep.subr.mxu0 0.0
  %5403 = vmatpush2.msra.mxu0 0.0
  %5404 = vmatprep.subr.mxu0 0.0
  %5405 = vmatpush2.msra.mxu0 0.0
  %5406 = vmatprep.subr.mxu0 0.0
  %5407 = vmatpush2.msra.mxu0 0.0
  %5408 = vmatprep.subr.mxu0 0.0
  %5409 = vmatpush2.msra.mxu0 0.0
  %5410 = vmatprep.subr.mxu0 0.0
  %5411 = vmatpush2.msra.mxu0 0.0
  %5412 = vmatprep.subr.mxu0 0.0
  %5413 = vmatpush2.msra.mxu0 0.0
  %5414 = vmatprep.subr.mxu0 0.0
  %5415 = vmatpush2.msra.mxu0 0.0
  %5416 = vmatprep.subr.mxu0 0.0
  %5417 = vmatpush2.msra.mxu0 0.0
  %5418 = vmatprep.subr.mxu0 0.0
  %5419 = vmatpush2.msra.mxu0 0.0
  %5420 = vmatprep.subr.mxu0 0.0
  %5421 = vmatpush2.msra.mxu0 0.0
  %5422 = vmatprep.subr.mxu0 0.0
  %5423 = vmatpush2.msra.mxu0 0.0
  %5424 = vmatprep.subr.mxu0 0.0
  %5425 = vmatpush2.msra.mxu0 0.0
  %5426 = vmatprep.subr.mxu0 0.0
  %5427 = vmatpush2.msra.mxu0 0.0
  %5428 = vmatprep.mubr.f32.mxu0 0.0
  %5429 = vmatmul.mubr.f32.gmra.mxu0 %v5219
  %v5430 = vpop.f32.mrf.mxu0
  %v5431 = vadd.f32 0.0, %v5430
  %v5432 = vpop.f32.mrf.mxu0
  %v5433 = vadd.f32 0.0, %v5432
  %5434 = vdwg.mxu0
  %v5435 = vadd.f32 %v5225, %v5360
  %v5436 = vadd.f32 %v5226, %v5362
  %v5437 = vadd.f32 %v5227, %v5431
  %v5438 = vadd.f32 %v5228, %v5433
  %v5439 = vxor.u32 %v5435, 2147483648
  %v5440 = vmul.f32 %v5439, 1.442695
  %v5441 = vpow.pop %v5440
  %v5442 = vadd.f32 %v5441, 1.0
  %v5443 = vrcp.pop %v5442
  %v5444 = vmul.f32 1.0, %v5443
  %v5445 = vxor.u32 %v5436, 2147483648
  %v5446 = vmul.f32 %v5445, 1.442695
  %v5447 = vpow.pop %v5446
  %v5448 = vadd.f32 %v5447, 1.0
  %v5449 = vrcp.pop %v5448
  %v5450 = vmul.f32 1.0, %v5449
  %v5451 = vtanh.pop %v5437
  %v5452 = vxor.u32 %v5438, 2147483648
  %v5453 = vmul.f32 %v5452, 1.442695
  %v5454 = vpow.pop %v5453
  %v5455 = vadd.f32 %v5454, 1.0
  %v5456 = vrcp.pop %v5455
  %v5457 = vmul.f32 1.0, %v5456
  %v5458 = vmul.f32 %v5450, %v5217
  %v5459 = vmul.f32 %v5444, %v5451
  %v5460 = vadd.f32 %v5458, %v5459
  %v5461 = vtanh.pop %v5460
  %v5462 = vmul.f32 %v5457, %v5461
  %s5463 = scalar_lea.vmem %s4, 152
  %5464 = vst [vmem:[%s5463] sm:$0xff] %v5462
  %5465 = vst [vmem:[%s5] sm:$0xff] %v5462
  %5466 = vst [vmem:[%s6] sm:$0xff] %v5460
  // Predicated region
  $region18: #{mylstm_forward.1} parent=0 // pred_check
    _
  $region19: #{mylstm_forward.1} parent=0 // pred_check_branch
    %5468 = sbr.rel (0) target = $region21
  $region20: #{mylstm_forward.1} parent=0 // pred_region
    _
  $region21: #{mylstm_forward.1} parent=0 // pred_fallthru
    _
  // Predicated region
  $region22: #{mylstm_forward.1} parent=0 // pred_check
    _
  $region23: #{mylstm_forward.1} parent=0 // pred_check_branch
    %5470 = sbr.rel (0) target = $region25
  $region24: #{mylstm_forward.1} parent=0 // pred_region
    _
  $region25: #{mylstm_forward.1} parent=0 // pred_fallthru
    _
  // Predicated region
  $region26: #{mylstm_forward.1} parent=0 // pred_check
    _
  $region27: #{mylstm_forward.1} parent=0 // pred_check_branch
    %5472 = sbr.rel (0) target = $region29
  $region28: #{mylstm_forward.1} parent=0 // pred_region
    _
  $region29: #{mylstm_forward.1} parent=0 // pred_fallthru
    _
  // Predicated region
  $region30: #{mylstm_forward.1} parent=0 // pred_check
    _
  $region31: #{mylstm_forward.1} parent=0 // pred_check_branch
    %5474 = sbr.rel (0) target = $region33
  $region32: #{mylstm_forward.1} parent=0 // pred_region
    _
  $region33: #{mylstm_forward.1} parent=0 // pred_fallthru
    _
  // Predicated region
  $region34: #{mylstm_forward.1} parent=0 // pred_check
    _
  $region35: #{mylstm_forward.1} parent=0 // pred_check_branch
    %5476 = sbr.rel (0) target = $region37
  $region36: #{mylstm_forward.1} parent=0 // pred_region
    _
  $region37: #{mylstm_forward.1} parent=0 // pred_fallthru
    _
  // Predicated region
  $region38: #{mylstm_forward.1} parent=0 // pred_check
    _
  $region39: #{mylstm_forward.1} parent=0 // pred_check_branch
    %5478 = sbr.rel (0) target = $region41
  $region40: #{mylstm_forward.1} parent=0 // pred_region
    _
  $region41: #{mylstm_forward.1} parent=0 // pred_fallthru
    _

</llo_original>
